<compile_context>
chip_gen: v6e
topology: v6e:2x2x1
jax: 0.10.0
libtpu: 0.0.40
codegen_flags: <defaults>
</compile_context>

<pallas_src>
import functools

import jax
import jax.numpy as jnp
from jax.experimental import pallas as pl
from jax.experimental.pallas import tpu as pltpu


def _round_up(n, m):
    return ((n + m - 1) // m) * m


def _vae_kernel(l_pad, x_ref, eps_ref,
                w1_ref, b1_ref,
                wh_ref, bh_ref,
                w3_ref, b3_ref,
                w4_ref, b4_ref,
                recon_ref, ml_ref):
    # ---- encode: h1 = relu(x @ W1 + b1) ----  (bf16 operands, f32 accumulate)
    h1 = jnp.dot(x_ref[...], w1_ref[...], preferred_element_type=jnp.float32)
    h1 = jnp.maximum(h1 + b1_ref[...], 0.0)

    # ---- fused mu|logvar head: one lane-dense [tb, 2*l_pad] matmul ----
    ml = jnp.dot(h1.astype(jnp.bfloat16), wh_ref[...],
                 preferred_element_type=jnp.float32) + bh_ref[...]
    mu = ml[:, :l_pad]
    logvar = ml[:, l_pad:]

    # ---- reparameterize: z = mu + eps * exp(0.5 * logvar)  (f32 elementwise) ----
    std = jnp.exp(0.5 * logvar)
    z = mu + eps_ref[...] * std

    # ---- decode: recon = sigmoid(relu(z @ W3 + b3) @ W4 + b4) ----
    h3 = jnp.dot(z.astype(jnp.bfloat16), w3_ref[...],
                 preferred_element_type=jnp.float32)
    h3 = jnp.maximum(h3 + b3_ref[...], 0.0)
    logits = jnp.dot(h3.astype(jnp.bfloat16), w4_ref[...],
                     preferred_element_type=jnp.float32) + b4_ref[...]

    recon_ref[...] = jax.nn.sigmoid(logits)
    ml_ref[...] = ml


@functools.partial(jax.jit, static_argnames=("batch_tile",))
def vae_forward(x, eps, params, *, batch_tile=128):
    """VAE forward.  x: [B, input_dim] f32, eps: [B, latent_dim] f32."""
    w1, b1, w21, b21, w22, b22, w3, b3, w4, b4 = params
    B, D = x.shape
    H = w1.shape[1]
    L = w21.shape[1]

    # TPU-friendly padded sizes: 8 sublanes on batch tiles, 128 lanes on features.
    tb = max(8, _round_up(batch_tile, 8))
    B_pad = _round_up(B, tb)
    D_pad = _round_up(D, 128)
    H_pad = _round_up(H, 128)
    L_pad = _round_up(L, 128)

    f32, bf16 = jnp.float32, jnp.bfloat16

    def pad2(a, r, c):
        return jnp.pad(a, ((0, r - a.shape[0]), (0, c - a.shape[1])))

    # Inputs (zero padding keeps padded lanes inert).
    x_p = pad2(x, B_pad, D_pad).astype(bf16)
    eps_p = pad2(eps, B_pad, L_pad).astype(f32)

    # Weights pre-transposed to [in, out]; zero-pad so padded lanes contribute 0.
    w1_p = pad2(w1, D_pad, H_pad).astype(bf16)
    b1_p = pad2(b1, 1, H_pad).astype(f32)

    # Fused mu|logvar head: mu -> lanes [0, L_pad), logvar -> lanes [L_pad, 2*L_pad).
    wh = jnp.zeros((H_pad, 2 * L_pad), f32)
    wh = wh.at[:H, :L].set(w21).at[:H, L_pad:L_pad + L].set(w22)
    bh = jnp.zeros((1, 2 * L_pad), f32)
    bh = bh.at[:, :L].set(b21).at[:, L_pad:L_pad + L].set(b22)
    wh = wh.astype(bf16)

    w3_p = pad2(w3, L_pad, H_pad).astype(bf16)
    b3_p = pad2(b3, 1, H_pad).astype(f32)
    w4_p = pad2(w4, H_pad, D_pad).astype(bf16)
    b4_p = pad2(b4, 1, D_pad).astype(f32)

    grid = (B_pad // tb,)
    bmap = lambda i: (i, 0)   # batch-tiled arrays
    wmap = lambda i: (0, 0)   # replicated weights / biases (block never changes,
                              # Pallas keeps it resident; no re-DMA per step)

    in_specs = [
        pl.BlockSpec((tb, D_pad), bmap),            # x
        pl.BlockSpec((tb, L_pad), bmap),            # eps
        pl.BlockSpec((D_pad, H_pad), wmap),         # W1
        pl.BlockSpec((1, H_pad), wmap),             # b1
        pl.BlockSpec((H_pad, 2 * L_pad), wmap),     # W_heads (mu|logvar fused)
        pl.BlockSpec((1, 2 * L_pad), wmap),         # b_heads
        pl.BlockSpec((L_pad, H_pad), wmap),         # W3
        pl.BlockSpec((1, H_pad), wmap),             # b3
        pl.BlockSpec((H_pad, D_pad), wmap),         # W4
        pl.BlockSpec((1, D_pad), wmap),             # b4
    ]
    out_specs = [
        pl.BlockSpec((tb, D_pad), bmap),            # recon (lane-dense)
        pl.BlockSpec((tb, 2 * L_pad), bmap),        # packed mu|logvar (lane-dense)
    ]
    out_shape = [
        jax.ShapeDtypeStruct((B_pad, D_pad), f32),
        jax.ShapeDtypeStruct((B_pad, 2 * L_pad), f32),
    ]

    recon_p, ml_p = pl.pallas_call(
        functools.partial(_vae_kernel, L_pad),
        grid=grid,
        in_specs=in_specs,
        out_specs=out_specs,
        out_shape=out_shape,
        compiler_params=pltpu.CompilerParams(
            dimension_semantics=("parallel",)),
    )(x_p, eps_p, w1_p, b1_p, wh, bh, w3_p, b3_p, w4_p, b4_p)

    # Slice padding off in the wrapper (keeps kernel stores unmasked/full-width).
    recon = recon_p[:B, :D]
    mu = ml_p[:B, :L]
    logvar = ml_p[:B, L_pad:L_pad + L]
    return recon, mu, logvar


def init_params(key, input_dim, hidden_dim, latent_dim):
    """Deterministic parameter init (PyTorch-Linear-style uniform fan-in)."""
    def linear(k, d_in, d_out):
        kw, kb = jax.random.split(k)
        bound = 1.0 / jnp.sqrt(d_in)
        # stored as [in, out] so the kernel does x @ W
        w = jax.random.uniform(kw, (d_in, d_out), jnp.float32, -bound, bound)
        b = jax.random.uniform(kb, (1, d_out), jnp.float32, -bound, bound)
        return w, b

    k1, k21, k22, k3, k4 = jax.random.split(key, 5)
    w1, b1 = linear(k1, input_dim, hidden_dim)      # fc1
    w21, b21 = linear(k21, hidden_dim, latent_dim)  # fc21 (mu)
    w22, b22 = linear(k22, hidden_dim, latent_dim)  # fc22 (logvar)
    w3, b3 = linear(k3, latent_dim, hidden_dim)     # fc3
    w4, b4 = linear(k4, hidden_dim, input_dim)      # fc4
    return (w1, b1, w21, b21, w22, b22, w3, b3, w4, b4)


def vae_reference(x, eps, params):
    """Plain-JAX f32 reference for correctness checking."""
    w1, b1, w21, b21, w22, b22, w3, b3, w4, b4 = params
    h1 = jnp.maximum(x @ w1 + b1, 0.0)
    mu = h1 @ w21 + b21
    logvar = h1 @ w22 + b22
    z = mu + eps * jnp.exp(0.5 * logvar)
    h3 = jnp.maximum(z @ w3 + b3, 0.0)
    recon = jax.nn.sigmoid(h3 @ w4 + b4)
    return recon, mu, logvar


if __name__ == "__main__":
    # Small MNIST-VAE-like shapes (input/hidden/latent intentionally NOT
    # multiples of 128 to exercise the wrapper's padding + slicing path).
    BATCH, INPUT_DIM, HIDDEN_DIM, LATENT_DIM = 200, 784, 400, 20

    key = jax.random.PRNGKey(0)
    k_params, k_x, k_eps = jax.random.split(key, 3)

    params = init_params(k_params, INPUT_DIM, HIDDEN_DIM, LATENT_DIM)
    # Inputs in [0, 1] (typical VAE data range for the BCE loss).
    x = jax.random.uniform(k_x, (BATCH, INPUT_DIM), jnp.float32)
    eps = jax.random.normal(k_eps, (BATCH, LATENT_DIM), jnp.float32)

    recon, mu, logvar = vae_forward(x, eps, params, batch_tile=128)
    jax.block_until_ready((recon, mu, logvar))

    # Correctness check against plain-JAX f32 reference.
    r_ref, mu_ref, lv_ref = vae_reference(x, eps, params)
    assert recon.shape == (BATCH, INPUT_DIM)
    assert mu.shape == (BATCH, LATENT_DIM) and logvar.shape == (BATCH, LATENT_DIM)
    # bf16 MXU operands with f32 accumulation -> relaxed tolerance vs f32 reference.
    assert jnp.allclose(recon, r_ref, atol=2e-2, rtol=2e-2)
    assert jnp.allclose(mu, mu_ref, atol=3e-2, rtol=3e-2)
    assert jnp.allclose(logvar, lv_ref, atol=3e-2, rtol=3e-2)

    print("KERNEL_OK")
</pallas_src>

<mosaic_0001>
module attributes {stable_mosaic.version = 11 : i64} {
  func.func @_vae_kernel(%arg0: i32, %arg1: memref<128x896xbf16, #tpu.memory_space<vmem>>, %arg2: memref<128x128xf32, #tpu.memory_space<vmem>>, %arg3: memref<896x512xbf16, #tpu.memory_space<vmem>>, %arg4: memref<1x512xf32, #tpu.memory_space<vmem>>, %arg5: memref<512x256xbf16, #tpu.memory_space<vmem>>, %arg6: memref<1x256xf32, #tpu.memory_space<vmem>>, %arg7: memref<128x512xbf16, #tpu.memory_space<vmem>>, %arg8: memref<1x512xf32, #tpu.memory_space<vmem>>, %arg9: memref<512x896xbf16, #tpu.memory_space<vmem>>, %arg10: memref<1x896xf32, #tpu.memory_space<vmem>>, %arg11: memref<128x896xf32, #tpu.memory_space<vmem>>, %arg12: memref<128x256xf32, #tpu.memory_space<vmem>>) attributes {dimension_semantics = [#tpu.dimension_semantics<parallel>], iteration_bounds = array<i64: 2>, scalar_prefetch = 0 : i64, scratch_operands = 0 : i64, tpu.core_type = #tpu.core_type<tc>, window_params = [{transform_indices = @transform_0, window_bounds = array<i64: 128, 896>}, {transform_indices = @transform_1, window_bounds = array<i64: 128, 128>}, {pipeline_mode = #tpu.pipeline_mode<synchronous>, transform_indices = @transform_2, window_bounds = array<i64: 896, 512>}, {pipeline_mode = #tpu.pipeline_mode<synchronous>, transform_indices = @transform_3, window_bounds = array<i64: 1, 512>}, {pipeline_mode = #tpu.pipeline_mode<synchronous>, transform_indices = @transform_4, window_bounds = array<i64: 512, 256>}, {pipeline_mode = #tpu.pipeline_mode<synchronous>, transform_indices = @transform_5, window_bounds = array<i64: 1, 256>}, {pipeline_mode = #tpu.pipeline_mode<synchronous>, transform_indices = @transform_6, window_bounds = array<i64: 128, 512>}, {pipeline_mode = #tpu.pipeline_mode<synchronous>, transform_indices = @transform_7, window_bounds = array<i64: 1, 512>}, {pipeline_mode = #tpu.pipeline_mode<synchronous>, transform_indices = @transform_8, window_bounds = array<i64: 512, 896>}, {pipeline_mode = #tpu.pipeline_mode<synchronous>, transform_indices = @transform_9, window_bounds = array<i64: 1, 896>}, {transform_indices = @transform_10, window_bounds = array<i64: 128, 896>}, {transform_indices = @transform_11, window_bounds = array<i64: 128, 256>}]} {
    %c0 = arith.constant 0 : index
    %c0_0 = arith.constant 0 : index
    %0 = vector.load %arg1[%c0, %c0_0] : memref<128x896xbf16, #tpu.memory_space<vmem>>, vector<128x896xbf16>
    %c0_1 = arith.constant 0 : index
    %c0_2 = arith.constant 0 : index
    %1 = vector.load %arg3[%c0_1, %c0_2] : memref<896x512xbf16, #tpu.memory_space<vmem>>, vector<896x512xbf16>
    %cst = arith.constant dense<0.000000e+00> : vector<128x512xf32>
    %2 = tpu.matmul %0, %1, %cst {dimension_numbers = #tpu.dot_dimension_numbers<[1], [0], [0], [1], [0, 0, 1, 1], [], []>} : vector<128x896xbf16>, vector<896x512xbf16>, vector<128x512xf32> -> vector<128x512xf32>
    %c0_3 = arith.constant 0 : index
    %c0_4 = arith.constant 0 : index
    %3 = vector.load %arg4[%c0_3, %c0_4] : memref<1x512xf32, #tpu.memory_space<vmem>>, vector<1x512xf32>
    %4 = vector.broadcast %3 : vector<1x512xf32> to vector<128x512xf32>
    %5 = arith.addf %2, %4 : vector<128x512xf32>
    %cst_5 = arith.constant 0.000000e+00 : f32
    %6 = vector.broadcast %cst_5 : f32 to vector<128x512xf32>
    %7 = arith.maximumf %5, %6 : vector<128x512xf32>
    %8 = arith.truncf %7 : vector<128x512xf32> to vector<128x512xbf16>
    %c0_6 = arith.constant 0 : index
    %c0_7 = arith.constant 0 : index
    %9 = vector.load %arg5[%c0_6, %c0_7] : memref<512x256xbf16, #tpu.memory_space<vmem>>, vector<512x256xbf16>
    %cst_8 = arith.constant dense<0.000000e+00> : vector<128x256xf32>
    %10 = tpu.matmul %8, %9, %cst_8 {dimension_numbers = #tpu.dot_dimension_numbers<[1], [0], [0], [1], [0, 0, 1, 1], [], []>} : vector<128x512xbf16>, vector<512x256xbf16>, vector<128x256xf32> -> vector<128x256xf32>
    %c0_9 = arith.constant 0 : index
    %c0_10 = arith.constant 0 : index
    %11 = vector.load %arg6[%c0_9, %c0_10] : memref<1x256xf32, #tpu.memory_space<vmem>>, vector<1x256xf32>
    %12 = vector.broadcast %11 : vector<1x256xf32> to vector<128x256xf32>
    %13 = arith.addf %10, %12 : vector<128x256xf32>
    %14 = vector.extract_strided_slice %13 {offsets = [0, 0], sizes = [128, 128], strides = [1, 1]} : vector<128x256xf32> to vector<128x128xf32>
    %15 = vector.extract_strided_slice %13 {offsets = [0, 128], sizes = [128, 128], strides = [1, 1]} : vector<128x256xf32> to vector<128x128xf32>
    %cst_11 = arith.constant 5.000000e-01 : f32
    %16 = vector.broadcast %cst_11 : f32 to vector<128x128xf32>
    %17 = arith.mulf %16, %15 : vector<128x128xf32>
    %18 = math.exp %17 : vector<128x128xf32>
    %c0_12 = arith.constant 0 : index
    %c0_13 = arith.constant 0 : index
    %19 = vector.load %arg2[%c0_12, %c0_13] : memref<128x128xf32, #tpu.memory_space<vmem>>, vector<128x128xf32>
    %20 = arith.mulf %19, %18 : vector<128x128xf32>
    %21 = arith.addf %14, %20 : vector<128x128xf32>
    %22 = arith.truncf %21 : vector<128x128xf32> to vector<128x128xbf16>
    %c0_14 = arith.constant 0 : index
    %c0_15 = arith.constant 0 : index
    %23 = vector.load %arg7[%c0_14, %c0_15] : memref<128x512xbf16, #tpu.memory_space<vmem>>, vector<128x512xbf16>
    %cst_16 = arith.constant dense<0.000000e+00> : vector<128x512xf32>
    %24 = tpu.matmul %22, %23, %cst_16 {dimension_numbers = #tpu.dot_dimension_numbers<[1], [0], [0], [1], [0, 0, 1, 1], [], []>} : vector<128x128xbf16>, vector<128x512xbf16>, vector<128x512xf32> -> vector<128x512xf32>
    %c0_17 = arith.constant 0 : index
    %c0_18 = arith.constant 0 : index
    %25 = vector.load %arg8[%c0_17, %c0_18] : memref<1x512xf32, #tpu.memory_space<vmem>>, vector<1x512xf32>
    %26 = vector.broadcast %25 : vector<1x512xf32> to vector<128x512xf32>
    %27 = arith.addf %24, %26 : vector<128x512xf32>
    %cst_19 = arith.constant 0.000000e+00 : f32
    %28 = vector.broadcast %cst_19 : f32 to vector<128x512xf32>
    %29 = arith.maximumf %27, %28 : vector<128x512xf32>
    %30 = arith.truncf %29 : vector<128x512xf32> to vector<128x512xbf16>
    %c0_20 = arith.constant 0 : index
    %c0_21 = arith.constant 0 : index
    %31 = vector.load %arg9[%c0_20, %c0_21] : memref<512x896xbf16, #tpu.memory_space<vmem>>, vector<512x896xbf16>
    %cst_22 = arith.constant dense<0.000000e+00> : vector<128x896xf32>
    %32 = tpu.matmul %30, %31, %cst_22 {dimension_numbers = #tpu.dot_dimension_numbers<[1], [0], [0], [1], [0, 0, 1, 1], [], []>} : vector<128x512xbf16>, vector<512x896xbf16>, vector<128x896xf32> -> vector<128x896xf32>
    %c0_23 = arith.constant 0 : index
    %c0_24 = arith.constant 0 : index
    %33 = vector.load %arg10[%c0_23, %c0_24] : memref<1x896xf32, #tpu.memory_space<vmem>>, vector<1x896xf32>
    %34 = vector.broadcast %33 : vector<1x896xf32> to vector<128x896xf32>
    %35 = arith.addf %32, %34 : vector<128x896xf32>
    %36 = arith.negf %35 : vector<128x896xf32>
    %37 = math.exp %36 : vector<128x896xf32>
    %cst_25 = arith.constant 1.000000e+00 : f32
    %38 = vector.broadcast %cst_25 : f32 to vector<128x896xf32>
    %39 = arith.addf %38, %37 : vector<128x896xf32>
    %40 = arith.divf %38, %39 : vector<128x896xf32>
    %c0_26 = arith.constant 0 : index
    %c0_27 = arith.constant 0 : index
    %41 = vector.load %arg11[%c0_26, %c0_27] : memref<128x896xf32, #tpu.memory_space<vmem>>, vector<128x896xf32>
    tpu.vector_store %arg11[%c0_26, %c0_27], %40 {strides = array<i32>} : memref<128x896xf32, #tpu.memory_space<vmem>>, vector<128x896xf32>,
    %c0_28 = arith.constant 0 : index
    %c0_29 = arith.constant 0 : index
    %42 = vector.load %arg12[%c0_28, %c0_29] : memref<128x256xf32, #tpu.memory_space<vmem>>, vector<128x256xf32>
    tpu.vector_store %arg12[%c0_28, %c0_29], %13 {strides = array<i32>} : memref<128x256xf32, #tpu.memory_space<vmem>>, vector<128x256xf32>,
    return
  }
  func.func @transform_0(%arg0: i32) -> (i32, i32) {
    %c0_i32 = arith.constant 0 : i32
    %c0_i32_0 = arith.constant 0 : i32
    return %arg0, %c0_i32 : i32, i32
  }
  func.func @transform_1(%arg0: i32) -> (i32, i32) {
    %c0_i32 = arith.constant 0 : i32
    %c0_i32_0 = arith.constant 0 : i32
    return %arg0, %c0_i32 : i32, i32
  }
  func.func @transform_2(%arg0: i32) -> (i32, i32) {
    %c0_i32 = arith.constant 0 : i32
    %c0_i32_0 = arith.constant 0 : i32
    %c0_i32_1 = arith.constant 0 : i32
    return %c0_i32, %c0_i32_0 : i32, i32
  }
  func.func @transform_3(%arg0: i32) -> (i32, i32) {
    %c0_i32 = arith.constant 0 : i32
    %c0_i32_0 = arith.constant 0 : i32
    %c0_i32_1 = arith.constant 0 : i32
    return %c0_i32, %c0_i32_0 : i32, i32
  }
  func.func @transform_4(%arg0: i32) -> (i32, i32) {
    %c0_i32 = arith.constant 0 : i32
    %c0_i32_0 = arith.constant 0 : i32
    %c0_i32_1 = arith.constant 0 : i32
    return %c0_i32, %c0_i32_0 : i32, i32
  }
  func.func @transform_5(%arg0: i32) -> (i32, i32) {
    %c0_i32 = arith.constant 0 : i32
    %c0_i32_0 = arith.constant 0 : i32
    %c0_i32_1 = arith.constant 0 : i32
    return %c0_i32, %c0_i32_0 : i32, i32
  }
  func.func @transform_6(%arg0: i32) -> (i32, i32) {
    %c0_i32 = arith.constant 0 : i32
    %c0_i32_0 = arith.constant 0 : i32
    %c0_i32_1 = arith.constant 0 : i32
    return %c0_i32, %c0_i32_0 : i32, i32
  }
  func.func @transform_7(%arg0: i32) -> (i32, i32) {
    %c0_i32 = arith.constant 0 : i32
    %c0_i32_0 = arith.constant 0 : i32
    %c0_i32_1 = arith.constant 0 : i32
    return %c0_i32, %c0_i32_0 : i32, i32
  }
  func.func @transform_8(%arg0: i32) -> (i32, i32) {
    %c0_i32 = arith.constant 0 : i32
    %c0_i32_0 = arith.constant 0 : i32
    %c0_i32_1 = arith.constant 0 : i32
    return %c0_i32, %c0_i32_0 : i32, i32
  }
  func.func @transform_9(%arg0: i32) -> (i32, i32) {
    %c0_i32 = arith.constant 0 : i32
    %c0_i32_0 = arith.constant 0 : i32
    %c0_i32_1 = arith.constant 0 : i32
    return %c0_i32, %c0_i32_0 : i32, i32
  }
  func.func @transform_10(%arg0: i32) -> (i32, i32) {
    %c0_i32 = arith.constant 0 : i32
    %c0_i32_0 = arith.constant 0 : i32
    return %arg0, %c0_i32 : i32, i32
  }
  func.func @transform_11(%arg0: i32) -> (i32, i32) {
    %c0_i32 = arith.constant 0 : i32
    %c0_i32_0 = arith.constant 0 : i32
    return %arg0, %c0_i32 : i32, i32
  }
}

</mosaic_0001>

<llo_original>
// kernel: vae_forward.1
$region0: #{vae_forward.1}
  #allocation0 [shape = 'u32[]', space=smem, size = 0x4, offset = 0x4, fixed_abs, tag = 'smem constant byte address 0x4 - core index']
  #allocation1 [shape = 'u32[144,128]{1,0:T(1,128)}', space=vmem, size = 0x12000, scoped, tag = 'internal scratch']
  %s0 = inlined_call_operand.vmem [shape: bf16[256,896], index: 0, kind: input, shape index: {}]
  %s1 = inlined_call_operand.vmem [shape: f32[256,128], index: 1, kind: input, shape index: {}]
  %s2 = inlined_call_operand.vmem [shape: bf16[896,512], index: 2, kind: input, shape index: {}]
  %s3 = inlined_call_operand.vmem [shape: f32[1,512], index: 3, kind: input, shape index: {}]
  %s4 = inlined_call_operand.vmem [shape: bf16[512,256], index: 4, kind: input, shape index: {}]
  %s5 = inlined_call_operand.vmem [shape: f32[1,256], index: 5, kind: input, shape index: {}]
  %s6 = inlined_call_operand.vmem [shape: bf16[128,512], index: 6, kind: input, shape index: {}]
  %s7 = inlined_call_operand.vmem [shape: f32[1,512], index: 7, kind: input, shape index: {}]
  %s8 = inlined_call_operand.vmem [shape: bf16[512,896], index: 8, kind: input, shape index: {}]
  %s9 = inlined_call_operand.vmem [shape: f32[1,896], index: 9, kind: input, shape index: {}]
  %s10 = inlined_call_operand.vmem [shape: f32[256,896], index: 10, kind: output, shape index: {0}]
  %s11 = inlined_call_operand.vmem [shape: f32[256,256], index: 11, kind: output, shape index: {1}]
  %12 = xla_tuple %s10, %s11
  %s13 = sld [smem:[#allocation0]]
  $region81: #{vae_forward.1} parent=0
    _
  %s15 = ssub.s32 1, %s13
  %s16 = scalar_select 0, %s15, %s13
  loop: start=0, step=1, limit=4
  $region2: #{vae_forward.1} parent=0 // loop_pre_header
    _
  $region3: #{vae_forward.1} parent=0 // loop_header
    %s18 = sphi 0, %s22
    %p19 = scmp.ge.s32.totalorder %s18, 4
    %s28 = sphi 0, %s30
    %s31 = sphi 0, %s28
    %s32 = sphi 0, %s31
    %s48 = sphi 0, %s32
    %s54 = sphi 0, %s56
    %s57 = sphi 0, %s54
    %s58 = sphi 0, %s57
    %s74 = sphi 0, %s58
    %s78 = sphi 0, %s78
    %s80 = sphi 0, %s78
    %s81 = sphi 0, %s80
    %s95 = sphi 0, %s81
    %s99 = sphi 0, %s99
    %s101 = sphi 0, %s99
    %s102 = sphi 0, %s101
    %s116 = sphi 0, %s102
    %s120 = sphi 0, %s120
    %s122 = sphi 0, %s120
    %s123 = sphi 0, %s122
    %s137 = sphi 0, %s123
    %s141 = sphi 0, %s141
    %s143 = sphi 0, %s141
    %s144 = sphi 0, %s143
    %s158 = sphi 0, %s144
    %s162 = sphi 0, %s162
    %s164 = sphi 0, %s162
    %s165 = sphi 0, %s164
    %s179 = sphi 0, %s165
    %s183 = sphi 0, %s183
    %s185 = sphi 0, %s183
    %s186 = sphi 0, %s185
    %s200 = sphi 0, %s186
    %s204 = sphi 0, %s204
    %s206 = sphi 0, %s204
    %s207 = sphi 0, %s206
    %s221 = sphi 0, %s207
    %s225 = sphi 0, %s225
    %s227 = sphi 0, %s225
    %s228 = sphi 0, %s227
    %s242 = sphi 0, %s228
    %s248 = sphi 0, %s250
    %s251 = sphi 0, %s248
    %s252 = sphi 0, %s251
    %s268 = sphi 0, %s252
    %s274 = sphi 0, %s276
    %s277 = sphi 0, %s274
    %s278 = sphi 0, %s277
    %s294 = sphi 0, %s278
  $region4: #{vae_forward.1} parent=0 // loop_header_branch
    %21 = sbr.rel (%p19) target = $region8
  $region5: #{vae_forward.1} parent=0 // loop_body
    %s23 = ssub.s32 %s18, 1
    %s24 = ssub.s32 %s18, 2
    %s25 = sadd.s32 %s18, 1
    %s26 = ssub.s32 %s18, %s25
    %p27 = scmp.eq.s32.totalorder %s26, 0
    %s29 = sadd.s32 %s28, 1
    %s30 = scalar_select %p27, %s28, %s29
    %p33 = pneg %p27
    %p34 = scmp.eq.s32.totalorder %s18, 1
    %p35 = por %p33, %p34
    %p36 = scmp.ne.s32.totalorder %s28, %s31
    %p37 = scmp.eq.s32.totalorder %s18, 0
    %p38 = por %p36, %p37
    %p39 = scmp.ne.s32.totalorder %s28, %s31
    %p40 = scmp.eq.s32.totalorder %s23, 1
    %p41 = por %p39, %p40
    %p42 = scmp.ne.s32.totalorder %s31, %s32
    %p43 = scmp.eq.s32.totalorder %s23, 0
    %p44 = por %p42, %p43
    %p45 = scmp.ne.s32.totalorder %s31, %s32
    %p46 = scmp.eq.s32.totalorder %s24, 1
    %p47 = por %p45, %p46
    %p49 = scmp.ne.s32.totalorder %s32, %s48
    %p50 = scmp.eq.s32.totalorder %s24, 0
    %p51 = por %p49, %p50
    %s52 = ssub.s32 %s18, %s25
    %p53 = scmp.eq.s32.totalorder %s52, 0
    %s55 = sadd.s32 %s54, 1
    %s56 = scalar_select %p53, %s54, %s55
    %p59 = pneg %p53
    %p60 = scmp.eq.s32.totalorder %s18, 1
    %p61 = por %p59, %p60
    %p62 = scmp.ne.s32.totalorder %s54, %s57
    %p63 = scmp.eq.s32.totalorder %s18, 0
    %p64 = por %p62, %p63
    %p65 = scmp.ne.s32.totalorder %s54, %s57
    %p66 = scmp.eq.s32.totalorder %s23, 1
    %p67 = por %p65, %p66
    %p68 = scmp.ne.s32.totalorder %s57, %s58
    %p69 = scmp.eq.s32.totalorder %s23, 0
    %p70 = por %p68, %p69
    %p71 = scmp.ne.s32.totalorder %s57, %s58
    %p72 = scmp.eq.s32.totalorder %s24, 1
    %p73 = por %p71, %p72
    %p75 = scmp.ne.s32.totalorder %s58, %s74
    %p76 = scmp.eq.s32.totalorder %s24, 0
    %p77 = por %p75, %p76
    %s79 = sadd.s32 %s78, 1
    %p82 = scmp.eq.s32.totalorder %s18, 1
    %p83 = scmp.ne.s32.totalorder %s78, %s80
    %p84 = scmp.eq.s32.totalorder %s18, 0
    %p85 = por %p83, %p84
    %p86 = scmp.ne.s32.totalorder %s78, %s80
    %p87 = scmp.eq.s32.totalorder %s23, 1
    %p88 = por %p86, %p87
    %p89 = scmp.ne.s32.totalorder %s80, %s81
    %p90 = scmp.eq.s32.totalorder %s23, 0
    %p91 = por %p89, %p90
    %p92 = scmp.ne.s32.totalorder %s80, %s81
    %p93 = scmp.eq.s32.totalorder %s24, 1
    %p94 = por %p92, %p93
    %p96 = scmp.ne.s32.totalorder %s81, %s95
    %p97 = scmp.eq.s32.totalorder %s24, 0
    %p98 = por %p96, %p97
    %s100 = sadd.s32 %s99, 1
    %p103 = scmp.eq.s32.totalorder %s18, 1
    %p104 = scmp.ne.s32.totalorder %s99, %s101
    %p105 = scmp.eq.s32.totalorder %s18, 0
    %p106 = por %p104, %p105
    %p107 = scmp.ne.s32.totalorder %s99, %s101
    %p108 = scmp.eq.s32.totalorder %s23, 1
    %p109 = por %p107, %p108
    %p110 = scmp.ne.s32.totalorder %s101, %s102
    %p111 = scmp.eq.s32.totalorder %s23, 0
    %p112 = por %p110, %p111
    %p113 = scmp.ne.s32.totalorder %s101, %s102
    %p114 = scmp.eq.s32.totalorder %s24, 1
    %p115 = por %p113, %p114
    %p117 = scmp.ne.s32.totalorder %s102, %s116
    %p118 = scmp.eq.s32.totalorder %s24, 0
    %p119 = por %p117, %p118
    %s121 = sadd.s32 %s120, 1
    %p124 = scmp.eq.s32.totalorder %s18, 1
    %p125 = scmp.ne.s32.totalorder %s120, %s122
    %p126 = scmp.eq.s32.totalorder %s18, 0
    %p127 = por %p125, %p126
    %p128 = scmp.ne.s32.totalorder %s120, %s122
    %p129 = scmp.eq.s32.totalorder %s23, 1
    %p130 = por %p128, %p129
    %p131 = scmp.ne.s32.totalorder %s122, %s123
    %p132 = scmp.eq.s32.totalorder %s23, 0
    %p133 = por %p131, %p132
    %p134 = scmp.ne.s32.totalorder %s122, %s123
    %p135 = scmp.eq.s32.totalorder %s24, 1
    %p136 = por %p134, %p135
    %p138 = scmp.ne.s32.totalorder %s123, %s137
    %p139 = scmp.eq.s32.totalorder %s24, 0
    %p140 = por %p138, %p139
    %s142 = sadd.s32 %s141, 1
    %p145 = scmp.eq.s32.totalorder %s18, 1
    %p146 = scmp.ne.s32.totalorder %s141, %s143
    %p147 = scmp.eq.s32.totalorder %s18, 0
    %p148 = por %p146, %p147
    %p149 = scmp.ne.s32.totalorder %s141, %s143
    %p150 = scmp.eq.s32.totalorder %s23, 1
    %p151 = por %p149, %p150
    %p152 = scmp.ne.s32.totalorder %s143, %s144
    %p153 = scmp.eq.s32.totalorder %s23, 0
    %p154 = por %p152, %p153
    %p155 = scmp.ne.s32.totalorder %s143, %s144
    %p156 = scmp.eq.s32.totalorder %s24, 1
    %p157 = por %p155, %p156
    %p159 = scmp.ne.s32.totalorder %s144, %s158
    %p160 = scmp.eq.s32.totalorder %s24, 0
    %p161 = por %p159, %p160
    %s163 = sadd.s32 %s162, 1
    %p166 = scmp.eq.s32.totalorder %s18, 1
    %p167 = scmp.ne.s32.totalorder %s162, %s164
    %p168 = scmp.eq.s32.totalorder %s18, 0
    %p169 = por %p167, %p168
    %p170 = scmp.ne.s32.totalorder %s162, %s164
    %p171 = scmp.eq.s32.totalorder %s23, 1
    %p172 = por %p170, %p171
    %p173 = scmp.ne.s32.totalorder %s164, %s165
    %p174 = scmp.eq.s32.totalorder %s23, 0
    %p175 = por %p173, %p174
    %p176 = scmp.ne.s32.totalorder %s164, %s165
    %p177 = scmp.eq.s32.totalorder %s24, 1
    %p178 = por %p176, %p177
    %p180 = scmp.ne.s32.totalorder %s165, %s179
    %p181 = scmp.eq.s32.totalorder %s24, 0
    %p182 = por %p180, %p181
    %s184 = sadd.s32 %s183, 1
    %p187 = scmp.eq.s32.totalorder %s18, 1
    %p188 = scmp.ne.s32.totalorder %s183, %s185
    %p189 = scmp.eq.s32.totalorder %s18, 0
    %p190 = por %p188, %p189
    %p191 = scmp.ne.s32.totalorder %s183, %s185
    %p192 = scmp.eq.s32.totalorder %s23, 1
    %p193 = por %p191, %p192
    %p194 = scmp.ne.s32.totalorder %s185, %s186
    %p195 = scmp.eq.s32.totalorder %s23, 0
    %p196 = por %p194, %p195
    %p197 = scmp.ne.s32.totalorder %s185, %s186
    %p198 = scmp.eq.s32.totalorder %s24, 1
    %p199 = por %p197, %p198
    %p201 = scmp.ne.s32.totalorder %s186, %s200
    %p202 = scmp.eq.s32.totalorder %s24, 0
    %p203 = por %p201, %p202
    %s205 = sadd.s32 %s204, 1
    %p208 = scmp.eq.s32.totalorder %s18, 1
    %p209 = scmp.ne.s32.totalorder %s204, %s206
    %p210 = scmp.eq.s32.totalorder %s18, 0
    %p211 = por %p209, %p210
    %p212 = scmp.ne.s32.totalorder %s204, %s206
    %p213 = scmp.eq.s32.totalorder %s23, 1
    %p214 = por %p212, %p213
    %p215 = scmp.ne.s32.totalorder %s206, %s207
    %p216 = scmp.eq.s32.totalorder %s23, 0
    %p217 = por %p215, %p216
    %p218 = scmp.ne.s32.totalorder %s206, %s207
    %p219 = scmp.eq.s32.totalorder %s24, 1
    %p220 = por %p218, %p219
    %p222 = scmp.ne.s32.totalorder %s207, %s221
    %p223 = scmp.eq.s32.totalorder %s24, 0
    %p224 = por %p222, %p223
    %s226 = sadd.s32 %s225, 1
    %p229 = scmp.eq.s32.totalorder %s18, 1
    %p230 = scmp.ne.s32.totalorder %s225, %s227
    %p231 = scmp.eq.s32.totalorder %s18, 0
    %p232 = por %p230, %p231
    %p233 = scmp.ne.s32.totalorder %s225, %s227
    %p234 = scmp.eq.s32.totalorder %s23, 1
    %p235 = por %p233, %p234
    %p236 = scmp.ne.s32.totalorder %s227, %s228
    %p237 = scmp.eq.s32.totalorder %s23, 0
    %p238 = por %p236, %p237
    %p239 = scmp.ne.s32.totalorder %s227, %s228
    %p240 = scmp.eq.s32.totalorder %s24, 1
    %p241 = por %p239, %p240
    %p243 = scmp.ne.s32.totalorder %s228, %s242
    %p244 = scmp.eq.s32.totalorder %s24, 0
    %p245 = por %p243, %p244
    %s246 = ssub.s32 %s18, %s25
    %p247 = scmp.eq.s32.totalorder %s246, 0
    %s249 = sadd.s32 %s248, 1
    %s250 = scalar_select %p247, %s248, %s249
    %p253 = pneg %p247
    %p254 = scmp.eq.s32.totalorder %s18, 1
    %p255 = por %p253, %p254
    %p256 = scmp.ne.s32.totalorder %s248, %s251
    %p257 = scmp.eq.s32.totalorder %s18, 0
    %p258 = por %p256, %p257
    %p259 = scmp.ne.s32.totalorder %s248, %s251
    %p260 = scmp.eq.s32.totalorder %s23, 1
    %p261 = por %p259, %p260
    %p262 = scmp.ne.s32.totalorder %s251, %s252
    %p263 = scmp.eq.s32.totalorder %s23, 0
    %p264 = por %p262, %p263
    %p265 = scmp.ne.s32.totalorder %s251, %s252
    %p266 = scmp.eq.s32.totalorder %s24, 1
    %p267 = por %p265, %p266
    %p269 = scmp.ne.s32.totalorder %s252, %s268
    %p270 = scmp.eq.s32.totalorder %s24, 0
    %p271 = por %p269, %p270
    %s272 = ssub.s32 %s18, %s25
    %p273 = scmp.eq.s32.totalorder %s272, 0
    %s275 = sadd.s32 %s274, 1
    %s276 = scalar_select %p273, %s274, %s275
    %p279 = pneg %p273
    %p280 = scmp.eq.s32.totalorder %s18, 1
    %p281 = por %p279, %p280
    %p282 = scmp.ne.s32.totalorder %s274, %s277
    %p283 = scmp.eq.s32.totalorder %s18, 0
    %p284 = por %p282, %p283
    %p285 = scmp.ne.s32.totalorder %s274, %s277
    %p286 = scmp.eq.s32.totalorder %s23, 1
    %p287 = por %p285, %p286
    %p288 = scmp.ne.s32.totalorder %s277, %s278
    %p289 = scmp.eq.s32.totalorder %s23, 0
    %p290 = por %p288, %p289
    %p291 = scmp.ne.s32.totalorder %s277, %s278
    %p292 = scmp.eq.s32.totalorder %s24, 1
    %p293 = por %p291, %p292
    %p295 = scmp.ne.s32.totalorder %s278, %s294
    %p296 = scmp.eq.s32.totalorder %s24, 0
    %p297 = por %p295, %p296
    %p298 = scmp.le.s32.totalorder 1, %s18
    %p299 = scmp.lt.s32.totalorder %s18, 3
    %p300 = pnand %p298, %p299
    %p301 = pneg %p300
    // Predicated region
    $region9: #{vae_forward.1} parent=5 // pred_check
      _
    $region10: #{vae_forward.1} parent=5 // pred_check_branch
      %303 = sbr.rel (%p300) target = $region12
    $region11: #{vae_forward.1} parent=5 // pred_region
      %s304 = ssub.s32 %s18, 1
      // Predicated region
      $region13: #{vae_forward.1} parent=11 // pred_check
        %p305 = pneg %p91
      $region14: #{vae_forward.1} parent=11 // pred_check_branch
        %307 = sbr.rel (%p305) target = $region16
      $region15: #{vae_forward.1} parent=11 // pred_region
        _
      $region16: #{vae_forward.1} parent=11 // pred_fallthru
        _
      // Predicated region
      $region17: #{vae_forward.1} parent=11 // pred_check
        %p308 = pneg %p112
      $region18: #{vae_forward.1} parent=11 // pred_check_branch
        %310 = sbr.rel (%p308) target = $region20
      $region19: #{vae_forward.1} parent=11 // pred_region
        _
      $region20: #{vae_forward.1} parent=11 // pred_fallthru
        _
      // Predicated region
      $region21: #{vae_forward.1} parent=11 // pred_check
        %p311 = pneg %p133
      $region22: #{vae_forward.1} parent=11 // pred_check_branch
        %313 = sbr.rel (%p311) target = $region24
      $region23: #{vae_forward.1} parent=11 // pred_region
        _
      $region24: #{vae_forward.1} parent=11 // pred_fallthru
        _
      // Predicated region
      $region25: #{vae_forward.1} parent=11 // pred_check
        %p314 = pneg %p154
      $region26: #{vae_forward.1} parent=11 // pred_check_branch
        %316 = sbr.rel (%p314) target = $region28
      $region27: #{vae_forward.1} parent=11 // pred_region
        _
      $region28: #{vae_forward.1} parent=11 // pred_fallthru
        _
      // Predicated region
      $region29: #{vae_forward.1} parent=11 // pred_check
        %p317 = pneg %p175
      $region30: #{vae_forward.1} parent=11 // pred_check_branch
        %319 = sbr.rel (%p317) target = $region32
      $region31: #{vae_forward.1} parent=11 // pred_region
        _
      $region32: #{vae_forward.1} parent=11 // pred_fallthru
        _
      // Predicated region
      $region33: #{vae_forward.1} parent=11 // pred_check
        %p320 = pneg %p196
      $region34: #{vae_forward.1} parent=11 // pred_check_branch
        %322 = sbr.rel (%p320) target = $region36
      $region35: #{vae_forward.1} parent=11 // pred_region
        _
      $region36: #{vae_forward.1} parent=11 // pred_fallthru
        _
      // Predicated region
      $region37: #{vae_forward.1} parent=11 // pred_check
        %p323 = pneg %p217
      $region38: #{vae_forward.1} parent=11 // pred_check_branch
        %325 = sbr.rel (%p323) target = $region40
      $region39: #{vae_forward.1} parent=11 // pred_region
        _
      $region40: #{vae_forward.1} parent=11 // pred_fallthru
        _
      // Predicated region
      $region41: #{vae_forward.1} parent=11 // pred_check
        %p326 = pneg %p238
      $region42: #{vae_forward.1} parent=11 // pred_check_branch
        %328 = sbr.rel (%p326) target = $region44
      $region43: #{vae_forward.1} parent=11 // pred_region
        _
      $region44: #{vae_forward.1} parent=11 // pred_fallthru
        _
    $region12: #{vae_forward.1} parent=5 // pred_fallthru
      _
    %p329 = scmp.lt.s32.totalorder %s18, 2
    // Predicated region
    $region45: #{vae_forward.1} parent=5 // pred_check
      %p330 = pneg %p329
    $region46: #{vae_forward.1} parent=5 // pred_check_branch
      %332 = sbr.rel (%p330) target = $region48
    $region47: #{vae_forward.1} parent=5 // pred_region
      // Predicated region
      $region49: #{vae_forward.1} parent=47 // pred_check
        %p333 = pneg %p38
      $region50: #{vae_forward.1} parent=47 // pred_check_branch
        %335 = sbr.rel (%p333) target = $region52
      $region51: #{vae_forward.1} parent=47 // pred_region
        %s336 = smul.u32 16, %s18
        %p337 = scmp.lt.s32.totalorder %s336, 31
        %s338 = scalar_select %p337, %s336, 31
        %s339 = smul.addr %s338, 7
        %s340 = smul.addr %s339, 4
        %s341 = scalar_lea.vmem %s0, %s340
        %s342 = smul.u32 16, %s18
      $region52: #{vae_forward.1} parent=47 // pred_fallthru
        _
      // Predicated region
      $region53: #{vae_forward.1} parent=47 // pred_check
        %p343 = pneg %p64
      $region54: #{vae_forward.1} parent=47 // pred_check_branch
        %345 = sbr.rel (%p343) target = $region56
      $region55: #{vae_forward.1} parent=47 // pred_region
        %s346 = smul.u32 16, %s18
        %p347 = scmp.lt.s32.totalorder %s346, 31
        %s348 = scalar_select %p347, %s346, 31
        %s349 = smul.addr %s348, 8
        %s350 = scalar_lea.vmem %s1, %s349
        %s351 = smul.u32 16, %s18
      $region56: #{vae_forward.1} parent=47 // pred_fallthru
        _
    $region48: #{vae_forward.1} parent=5 // pred_fallthru
      _
    %p352 = scmp.le.s32.totalorder 1, %s18
    %p353 = scmp.lt.s32.totalorder %s18, 3
    %p354 = pnand %p352, %p353
    %p355 = pneg %p354
    // Predicated region
    $region57: #{vae_forward.1} parent=5 // pred_check
      _
    $region58: #{vae_forward.1} parent=5 // pred_check_branch
      %357 = sbr.rel (%p354) target = $region60
    $region59: #{vae_forward.1} parent=5 // pred_region
      %s358 = ssub.s32 %s18, 1
      %s359 = smul.u32 16, %s23
      %p360 = scmp.lt.s32.totalorder %s359, 31
      %s361 = scalar_select %p360, %s359, 31
      %s362 = smul.addr %s361, 7
      %s363 = smul.addr %s362, 4
      %s364 = scalar_lea.vmem %s0, %s363
      %p365 = pneg %p44
      %p366 = pneg %p41
      %s367 = smul.u32 16, %s23
      %p368 = scmp.lt.s32.totalorder %s367, 31
      %s369 = scalar_select %p368, %s367, 31
      %s370 = smul.addr %s369, 8
      %s371 = scalar_lea.vmem %s1, %s370
      %p372 = pneg %p70
      %p373 = pneg %p67
      %p374 = pneg %p91
      %p375 = pneg %p88
      %p376 = pneg %p112
      %p377 = pneg %p109
      %p378 = pneg %p133
      %p379 = pneg %p130
      %p380 = pneg %p154
      %p381 = pneg %p151
      %p382 = pneg %p175
      %p383 = pneg %p172
      %p384 = pneg %p196
      %p385 = pneg %p193
      %p386 = pneg %p217
      %p387 = pneg %p214
      %p388 = pneg %p238
      %p389 = pneg %p235
      %p390 = pneg %p264
      %p391 = pneg %p261
      %s392 = smul.u32 16, %s23
      %p393 = scmp.lt.s32.totalorder %s392, 31
      %s394 = scalar_select %p393, %s392, 31
      %s395 = smul.addr %s394, 7
      %s396 = smul.addr %s395, 8
      %s397 = scalar_lea.vmem %s10, %s396
      %p398 = pneg %p290
      %p399 = pneg %p287
      %s400 = smul.u32 16, %s23
      %p401 = scmp.lt.s32.totalorder %s400, 31
      %s402 = scalar_select %p401, %s400, 31
      %s403 = smul.addr %s402, 2
      %s404 = smul.addr %s403, 8
      %s405 = scalar_lea.vmem %s11, %s404
      %s406 = smul.u32 16, %s23
      %p407 = scmp.lt.s32.totalorder %s406, 31
      %s408 = scalar_select %p407, %s406, 31
      %s409 = smul.addr %s408, 7
      %s410 = smul.addr %s409, 4
      %s411 = scalar_lea.vmem %s0, %s410
      %s412 = smul.u32 16, %s23
      %s413 = smul.u32 16, %s23
      %p414 = scmp.lt.s32.totalorder %s413, 31
      %s415 = scalar_select %p414, %s413, 31
      %s416 = smul.addr %s415, 8
      %s417 = scalar_lea.vmem %s1, %s416
      %s418 = smul.u32 16, %s23
      %s419 = smul.u32 16, %s23
      %p420 = scmp.lt.s32.totalorder %s419, 31
      %s421 = scalar_select %p420, %s419, 31
      %s422 = smul.addr %s421, 7
      %s423 = smul.addr %s422, 8
      %s424 = scalar_lea.vmem %s10, %s423
      %s425 = smul.u32 16, %s23
      %s426 = smul.u32 16, %s23
      %p427 = scmp.lt.s32.totalorder %s426, 31
      %s428 = scalar_select %p427, %s426, 31
      %s429 = smul.addr %s428, 2
      %s430 = smul.addr %s429, 8
      %s431 = scalar_lea.vmem %s11, %s430
      %s432 = smul.u32 16, %s23
      %v434 = vld [vmem:[%s411] sm:$0xff]
      %v435 = vld [vmem:[%s411 + $0x8] sm:$0xff]
      %v436 = vld [vmem:[%s411 + $0x10] sm:$0xff]
      %v437 = vld [vmem:[%s411 + $0x18] sm:$0xf]
      %v438 = vld [vmem:[%s411 + $0x1c] sm:$0xff]
      %v439 = vld [vmem:[%s411 + $0x24] sm:$0xff]
      %v440 = vld [vmem:[%s411 + $0x2c] sm:$0xff]
      %v441 = vld [vmem:[%s411 + $0x34] sm:$0xf]
      %v442 = vld [vmem:[%s411 + $0x38] sm:$0xff]
      %v443 = vld [vmem:[%s411 + $0x40] sm:$0xff]
      %v444 = vld [vmem:[%s411 + $0x48] sm:$0xff]
      %v445 = vld [vmem:[%s411 + $0x50] sm:$0xf]
      %v446 = vld [vmem:[%s411 + $0x54] sm:$0xff]
      %v447 = vld [vmem:[%s411 + $0x5c] sm:$0xff]
      %v448 = vld [vmem:[%s411 + $0x64] sm:$0xff]
      %v449 = vld [vmem:[%s411 + $0x6c] sm:$0xf]
      %v450 = vld [vmem:[%s411 + $0x70] sm:$0xff]
      %v451 = vld [vmem:[%s411 + $0x78] sm:$0xff]
      %v452 = vld [vmem:[%s411 + $0x80] sm:$0xff]
      %v453 = vld [vmem:[%s411 + $0x88] sm:$0xf]
      %v454 = vld [vmem:[%s411 + $0x8c] sm:$0xff]
      %v455 = vld [vmem:[%s411 + $0x94] sm:$0xff]
      %v456 = vld [vmem:[%s411 + $0x9c] sm:$0xff]
      %v457 = vld [vmem:[%s411 + $0xa4] sm:$0xf]
      %v458 = vld [vmem:[%s411 + $0xa8] sm:$0xff]
      %v459 = vld [vmem:[%s411 + $0xb0] sm:$0xff]
      %v460 = vld [vmem:[%s411 + $0xb8] sm:$0xff]
      %v461 = vld [vmem:[%s411 + $0xc0] sm:$0xf]
      %v462 = vld [vmem:[%s411 + $0xc4] sm:$0xff]
      %v463 = vld [vmem:[%s411 + $0xcc] sm:$0xff]
      %v464 = vld [vmem:[%s411 + $0xd4] sm:$0xff]
      %v465 = vld [vmem:[%s411 + $0xdc] sm:$0xf]
      %v466 = vld [vmem:[%s411 + $0xe0] sm:$0xff]
      %v467 = vld [vmem:[%s411 + $0xe8] sm:$0xff]
      %v468 = vld [vmem:[%s411 + $0xf0] sm:$0xff]
      %v469 = vld [vmem:[%s411 + $0xf8] sm:$0xf]
      %v470 = vld [vmem:[%s411 + $0xfc] sm:$0xff]
      %v471 = vld [vmem:[%s411 + $0x104] sm:$0xff]
      %v472 = vld [vmem:[%s411 + $0x10c] sm:$0xff]
      %v473 = vld [vmem:[%s411 + $0x114] sm:$0xf]
      %v474 = vld [vmem:[%s411 + $0x118] sm:$0xff]
      %v475 = vld [vmem:[%s411 + $0x120] sm:$0xff]
      %v476 = vld [vmem:[%s411 + $0x128] sm:$0xff]
      %v477 = vld [vmem:[%s411 + $0x130] sm:$0xf]
      %v478 = vld [vmem:[%s411 + $0x134] sm:$0xff]
      %v479 = vld [vmem:[%s411 + $0x13c] sm:$0xff]
      %v480 = vld [vmem:[%s411 + $0x144] sm:$0xff]
      %v481 = vld [vmem:[%s411 + $0x14c] sm:$0xf]
      %v482 = vld [vmem:[%s411 + $0x150] sm:$0xff]
      %v483 = vld [vmem:[%s411 + $0x158] sm:$0xff]
      %v484 = vld [vmem:[%s411 + $0x160] sm:$0xff]
      %v485 = vld [vmem:[%s411 + $0x168] sm:$0xf]
      %v486 = vld [vmem:[%s411 + $0x16c] sm:$0xff]
      %v487 = vld [vmem:[%s411 + $0x174] sm:$0xff]
      %v488 = vld [vmem:[%s411 + $0x17c] sm:$0xff]
      %v489 = vld [vmem:[%s411 + $0x184] sm:$0xf]
      %v490 = vld [vmem:[%s411 + $0x188] sm:$0xff]
      %v491 = vld [vmem:[%s411 + $0x190] sm:$0xff]
      %v492 = vld [vmem:[%s411 + $0x198] sm:$0xff]
      %v493 = vld [vmem:[%s411 + $0x1a0] sm:$0xf]
      %v494 = vld [vmem:[%s411 + $0x1a4] sm:$0xff]
      %v495 = vld [vmem:[%s411 + $0x1ac] sm:$0xff]
      %v496 = vld [vmem:[%s411 + $0x1b4] sm:$0xff]
      %v497 = vld [vmem:[%s411 + $0x1bc] sm:$0xf]
      %v498 = vld [vmem:[%s2] sm:$0xff]
      %v499 = vld [vmem:[%s2 + $0x8] sm:$0xff]
      %v500 = vld [vmem:[%s2 + $0x10] sm:$0xff]
      %v501 = vld [vmem:[%s2 + $0x18] sm:$0xff]
      %v502 = vld [vmem:[%s2 + $0x20] sm:$0xff]
      %v503 = vld [vmem:[%s2 + $0x28] sm:$0xff]
      %v504 = vld [vmem:[%s2 + $0x30] sm:$0xff]
      %v505 = vld [vmem:[%s2 + $0x38] sm:$0xff]
      %v506 = vld [vmem:[%s2 + $0x40] sm:$0xff]
      %v507 = vld [vmem:[%s2 + $0x48] sm:$0xff]
      %v508 = vld [vmem:[%s2 + $0x50] sm:$0xff]
      %v509 = vld [vmem:[%s2 + $0x58] sm:$0xff]
      %v510 = vld [vmem:[%s2 + $0x60] sm:$0xff]
      %v511 = vld [vmem:[%s2 + $0x68] sm:$0xff]
      %v512 = vld [vmem:[%s2 + $0x70] sm:$0xff]
      %v513 = vld [vmem:[%s2 + $0x78] sm:$0xff]
      %v514 = vld [vmem:[%s2 + $0x80] sm:$0xff]
      %v515 = vld [vmem:[%s2 + $0x88] sm:$0xff]
      %v516 = vld [vmem:[%s2 + $0x90] sm:$0xff]
      %v517 = vld [vmem:[%s2 + $0x98] sm:$0xff]
      %v518 = vld [vmem:[%s2 + $0xa0] sm:$0xff]
      %v519 = vld [vmem:[%s2 + $0xa8] sm:$0xff]
      %v520 = vld [vmem:[%s2 + $0xb0] sm:$0xff]
      %v521 = vld [vmem:[%s2 + $0xb8] sm:$0xff]
      %v522 = vld [vmem:[%s2 + $0xc0] sm:$0xff]
      %v523 = vld [vmem:[%s2 + $0xc8] sm:$0xff]
      %v524 = vld [vmem:[%s2 + $0xd0] sm:$0xff]
      %v525 = vld [vmem:[%s2 + $0xd8] sm:$0xff]
      %v526 = vld [vmem:[%s2 + $0xe0] sm:$0xff]
      %v527 = vld [vmem:[%s2 + $0xe8] sm:$0xff]
      %v528 = vld [vmem:[%s2 + $0xf0] sm:$0xff]
      %v529 = vld [vmem:[%s2 + $0xf8] sm:$0xff]
      %v530 = vld [vmem:[%s2 + $0x100] sm:$0xff]
      %v531 = vld [vmem:[%s2 + $0x108] sm:$0xff]
      %v532 = vld [vmem:[%s2 + $0x110] sm:$0xff]
      %v533 = vld [vmem:[%s2 + $0x118] sm:$0xff]
      %v534 = vld [vmem:[%s2 + $0x120] sm:$0xff]
      %v535 = vld [vmem:[%s2 + $0x128] sm:$0xff]
      %v536 = vld [vmem:[%s2 + $0x130] sm:$0xff]
      %v537 = vld [vmem:[%s2 + $0x138] sm:$0xff]
      %v538 = vld [vmem:[%s2 + $0x140] sm:$0xff]
      %v539 = vld [vmem:[%s2 + $0x148] sm:$0xff]
      %v540 = vld [vmem:[%s2 + $0x150] sm:$0xff]
      %v541 = vld [vmem:[%s2 + $0x158] sm:$0xff]
      %v542 = vld [vmem:[%s2 + $0x160] sm:$0xff]
      %v543 = vld [vmem:[%s2 + $0x168] sm:$0xff]
      %v544 = vld [vmem:[%s2 + $0x170] sm:$0xff]
      %v545 = vld [vmem:[%s2 + $0x178] sm:$0xff]
      %v546 = vld [vmem:[%s2 + $0x180] sm:$0xff]
      %v547 = vld [vmem:[%s2 + $0x188] sm:$0xff]
      %v548 = vld [vmem:[%s2 + $0x190] sm:$0xff]
      %v549 = vld [vmem:[%s2 + $0x198] sm:$0xff]
      %v550 = vld [vmem:[%s2 + $0x1a0] sm:$0xff]
      %v551 = vld [vmem:[%s2 + $0x1a8] sm:$0xff]
      %v552 = vld [vmem:[%s2 + $0x1b0] sm:$0xff]
      %v553 = vld [vmem:[%s2 + $0x1b8] sm:$0xff]
      %v554 = vld [vmem:[%s2 + $0x1c0] sm:$0xff]
      %v555 = vld [vmem:[%s2 + $0x1c8] sm:$0xff]
      %v556 = vld [vmem:[%s2 + $0x1d0] sm:$0xff]
      %v557 = vld [vmem:[%s2 + $0x1d8] sm:$0xff]
      %v558 = vld [vmem:[%s2 + $0x1e0] sm:$0xff]
      %v559 = vld [vmem:[%s2 + $0x1e8] sm:$0xff]
      %v560 = vld [vmem:[%s2 + $0x1f0] sm:$0xff]
      %v561 = vld [vmem:[%s2 + $0x1f8] sm:$0xff]
      %v562 = vld [vmem:[%s2 + $0x200] sm:$0xff]
      %v563 = vld [vmem:[%s2 + $0x208] sm:$0xff]
      %v564 = vld [vmem:[%s2 + $0x210] sm:$0xff]
      %v565 = vld [vmem:[%s2 + $0x218] sm:$0xff]
      %v566 = vld [vmem:[%s2 + $0x220] sm:$0xff]
      %v567 = vld [vmem:[%s2 + $0x228] sm:$0xff]
      %v568 = vld [vmem:[%s2 + $0x230] sm:$0xff]
      %v569 = vld [vmem:[%s2 + $0x238] sm:$0xff]
      %v570 = vld [vmem:[%s2 + $0x240] sm:$0xff]
      %v571 = vld [vmem:[%s2 + $0x248] sm:$0xff]
      %v572 = vld [vmem:[%s2 + $0x250] sm:$0xff]
      %v573 = vld [vmem:[%s2 + $0x258] sm:$0xff]
      %v574 = vld [vmem:[%s2 + $0x260] sm:$0xff]
      %v575 = vld [vmem:[%s2 + $0x268] sm:$0xff]
      %v576 = vld [vmem:[%s2 + $0x270] sm:$0xff]
      %v577 = vld [vmem:[%s2 + $0x278] sm:$0xff]
      %v578 = vld [vmem:[%s2 + $0x280] sm:$0xff]
      %v579 = vld [vmem:[%s2 + $0x288] sm:$0xff]
      %v580 = vld [vmem:[%s2 + $0x290] sm:$0xff]
      %v581 = vld [vmem:[%s2 + $0x298] sm:$0xff]
      %v582 = vld [vmem:[%s2 + $0x2a0] sm:$0xff]
      %v583 = vld [vmem:[%s2 + $0x2a8] sm:$0xff]
      %v584 = vld [vmem:[%s2 + $0x2b0] sm:$0xff]
      %v585 = vld [vmem:[%s2 + $0x2b8] sm:$0xff]
      %v586 = vld [vmem:[%s2 + $0x2c0] sm:$0xff]
      %v587 = vld [vmem:[%s2 + $0x2c8] sm:$0xff]
      %v588 = vld [vmem:[%s2 + $0x2d0] sm:$0xff]
      %v589 = vld [vmem:[%s2 + $0x2d8] sm:$0xff]
      %v590 = vld [vmem:[%s2 + $0x2e0] sm:$0xff]
      %v591 = vld [vmem:[%s2 + $0x2e8] sm:$0xff]
      %v592 = vld [vmem:[%s2 + $0x2f0] sm:$0xff]
      %v593 = vld [vmem:[%s2 + $0x2f8] sm:$0xff]
      %v594 = vld [vmem:[%s2 + $0x300] sm:$0xff]
      %v595 = vld [vmem:[%s2 + $0x308] sm:$0xff]
      %v596 = vld [vmem:[%s2 + $0x310] sm:$0xff]
      %v597 = vld [vmem:[%s2 + $0x318] sm:$0xff]
      %v598 = vld [vmem:[%s2 + $0x320] sm:$0xff]
      %v599 = vld [vmem:[%s2 + $0x328] sm:$0xff]
      %v600 = vld [vmem:[%s2 + $0x330] sm:$0xff]
      %v601 = vld [vmem:[%s2 + $0x338] sm:$0xff]
      %v602 = vld [vmem:[%s2 + $0x340] sm:$0xff]
      %v603 = vld [vmem:[%s2 + $0x348] sm:$0xff]
      %v604 = vld [vmem:[%s2 + $0x350] sm:$0xff]
      %v605 = vld [vmem:[%s2 + $0x358] sm:$0xff]
      %v606 = vld [vmem:[%s2 + $0x360] sm:$0xff]
      %v607 = vld [vmem:[%s2 + $0x368] sm:$0xff]
      %v608 = vld [vmem:[%s2 + $0x370] sm:$0xff]
      %v609 = vld [vmem:[%s2 + $0x378] sm:$0xff]
      %v610 = vld [vmem:[%s2 + $0x380] sm:$0xff]
      %v611 = vld [vmem:[%s2 + $0x388] sm:$0xff]
      %v612 = vld [vmem:[%s2 + $0x390] sm:$0xff]
      %v613 = vld [vmem:[%s2 + $0x398] sm:$0xff]
      %v614 = vld [vmem:[%s2 + $0x3a0] sm:$0xff]
      %v615 = vld [vmem:[%s2 + $0x3a8] sm:$0xff]
      %v616 = vld [vmem:[%s2 + $0x3b0] sm:$0xff]
      %v617 = vld [vmem:[%s2 + $0x3b8] sm:$0xff]
      %v618 = vld [vmem:[%s2 + $0x3c0] sm:$0xff]
      %v619 = vld [vmem:[%s2 + $0x3c8] sm:$0xff]
      %v620 = vld [vmem:[%s2 + $0x3d0] sm:$0xff]
      %v621 = vld [vmem:[%s2 + $0x3d8] sm:$0xff]
      %v622 = vld [vmem:[%s2 + $0x3e0] sm:$0xff]
      %v623 = vld [vmem:[%s2 + $0x3e8] sm:$0xff]
      %v624 = vld [vmem:[%s2 + $0x3f0] sm:$0xff]
      %v625 = vld [vmem:[%s2 + $0x3f8] sm:$0xff]
      %v626 = vld [vmem:[%s2 + $0x400] sm:$0xff]
      %v627 = vld [vmem:[%s2 + $0x408] sm:$0xff]
      %v628 = vld [vmem:[%s2 + $0x410] sm:$0xff]
      %v629 = vld [vmem:[%s2 + $0x418] sm:$0xff]
      %v630 = vld [vmem:[%s2 + $0x420] sm:$0xff]
      %v631 = vld [vmem:[%s2 + $0x428] sm:$0xff]
      %v632 = vld [vmem:[%s2 + $0x430] sm:$0xff]
      %v633 = vld [vmem:[%s2 + $0x438] sm:$0xff]
      %v634 = vld [vmem:[%s2 + $0x440] sm:$0xff]
      %v635 = vld [vmem:[%s2 + $0x448] sm:$0xff]
      %v636 = vld [vmem:[%s2 + $0x450] sm:$0xff]
      %v637 = vld [vmem:[%s2 + $0x458] sm:$0xff]
      %v638 = vld [vmem:[%s2 + $0x460] sm:$0xff]
      %v639 = vld [vmem:[%s2 + $0x468] sm:$0xff]
      %v640 = vld [vmem:[%s2 + $0x470] sm:$0xff]
      %v641 = vld [vmem:[%s2 + $0x478] sm:$0xff]
      %v642 = vld [vmem:[%s2 + $0x480] sm:$0xff]
      %v643 = vld [vmem:[%s2 + $0x488] sm:$0xff]
      %v644 = vld [vmem:[%s2 + $0x490] sm:$0xff]
      %v645 = vld [vmem:[%s2 + $0x498] sm:$0xff]
      %v646 = vld [vmem:[%s2 + $0x4a0] sm:$0xff]
      %v647 = vld [vmem:[%s2 + $0x4a8] sm:$0xff]
      %v648 = vld [vmem:[%s2 + $0x4b0] sm:$0xff]
      %v649 = vld [vmem:[%s2 + $0x4b8] sm:$0xff]
      %v650 = vld [vmem:[%s2 + $0x4c0] sm:$0xff]
      %v651 = vld [vmem:[%s2 + $0x4c8] sm:$0xff]
      %v652 = vld [vmem:[%s2 + $0x4d0] sm:$0xff]
      %v653 = vld [vmem:[%s2 + $0x4d8] sm:$0xff]
      %v654 = vld [vmem:[%s2 + $0x4e0] sm:$0xff]
      %v655 = vld [vmem:[%s2 + $0x4e8] sm:$0xff]
      %v656 = vld [vmem:[%s2 + $0x4f0] sm:$0xff]
      %v657 = vld [vmem:[%s2 + $0x4f8] sm:$0xff]
      %v658 = vld [vmem:[%s2 + $0x500] sm:$0xff]
      %v659 = vld [vmem:[%s2 + $0x508] sm:$0xff]
      %v660 = vld [vmem:[%s2 + $0x510] sm:$0xff]
      %v661 = vld [vmem:[%s2 + $0x518] sm:$0xff]
      %v662 = vld [vmem:[%s2 + $0x520] sm:$0xff]
      %v663 = vld [vmem:[%s2 + $0x528] sm:$0xff]
      %v664 = vld [vmem:[%s2 + $0x530] sm:$0xff]
      %v665 = vld [vmem:[%s2 + $0x538] sm:$0xff]
      %v666 = vld [vmem:[%s2 + $0x540] sm:$0xff]
      %v667 = vld [vmem:[%s2 + $0x548] sm:$0xff]
      %v668 = vld [vmem:[%s2 + $0x550] sm:$0xff]
      %v669 = vld [vmem:[%s2 + $0x558] sm:$0xff]
      %v670 = vld [vmem:[%s2 + $0x560] sm:$0xff]
      %v671 = vld [vmem:[%s2 + $0x568] sm:$0xff]
      %v672 = vld [vmem:[%s2 + $0x570] sm:$0xff]
      %v673 = vld [vmem:[%s2 + $0x578] sm:$0xff]
      %v674 = vld [vmem:[%s2 + $0x580] sm:$0xff]
      %v675 = vld [vmem:[%s2 + $0x588] sm:$0xff]
      %v676 = vld [vmem:[%s2 + $0x590] sm:$0xff]
      %v677 = vld [vmem:[%s2 + $0x598] sm:$0xff]
      %v678 = vld [vmem:[%s2 + $0x5a0] sm:$0xff]
      %v679 = vld [vmem:[%s2 + $0x5a8] sm:$0xff]
      %v680 = vld [vmem:[%s2 + $0x5b0] sm:$0xff]
      %v681 = vld [vmem:[%s2 + $0x5b8] sm:$0xff]
      %v682 = vld [vmem:[%s2 + $0x5c0] sm:$0xff]
      %v683 = vld [vmem:[%s2 + $0x5c8] sm:$0xff]
      %v684 = vld [vmem:[%s2 + $0x5d0] sm:$0xff]
      %v685 = vld [vmem:[%s2 + $0x5d8] sm:$0xff]
      %v686 = vld [vmem:[%s2 + $0x5e0] sm:$0xff]
      %v687 = vld [vmem:[%s2 + $0x5e8] sm:$0xff]
      %v688 = vld [vmem:[%s2 + $0x5f0] sm:$0xff]
      %v689 = vld [vmem:[%s2 + $0x5f8] sm:$0xff]
      %v690 = vld [vmem:[%s2 + $0x600] sm:$0xff]
      %v691 = vld [vmem:[%s2 + $0x608] sm:$0xff]
      %v692 = vld [vmem:[%s2 + $0x610] sm:$0xff]
      %v693 = vld [vmem:[%s2 + $0x618] sm:$0xff]
      %v694 = vld [vmem:[%s2 + $0x620] sm:$0xff]
      %v695 = vld [vmem:[%s2 + $0x628] sm:$0xff]
      %v696 = vld [vmem:[%s2 + $0x630] sm:$0xff]
      %v697 = vld [vmem:[%s2 + $0x638] sm:$0xff]
      %v698 = vld [vmem:[%s2 + $0x640] sm:$0xff]
      %v699 = vld [vmem:[%s2 + $0x648] sm:$0xff]
      %v700 = vld [vmem:[%s2 + $0x650] sm:$0xff]
      %v701 = vld [vmem:[%s2 + $0x658] sm:$0xff]
      %v702 = vld [vmem:[%s2 + $0x660] sm:$0xff]
      %v703 = vld [vmem:[%s2 + $0x668] sm:$0xff]
      %v704 = vld [vmem:[%s2 + $0x670] sm:$0xff]
      %v705 = vld [vmem:[%s2 + $0x678] sm:$0xff]
      %v706 = vld [vmem:[%s2 + $0x680] sm:$0xff]
      %v707 = vld [vmem:[%s2 + $0x688] sm:$0xff]
      %v708 = vld [vmem:[%s2 + $0x690] sm:$0xff]
      %v709 = vld [vmem:[%s2 + $0x698] sm:$0xff]
      %v710 = vld [vmem:[%s2 + $0x6a0] sm:$0xff]
      %v711 = vld [vmem:[%s2 + $0x6a8] sm:$0xff]
      %v712 = vld [vmem:[%s2 + $0x6b0] sm:$0xff]
      %v713 = vld [vmem:[%s2 + $0x6b8] sm:$0xff]
      %v714 = vld [vmem:[%s2 + $0x6c0] sm:$0xff]
      %v715 = vld [vmem:[%s2 + $0x6c8] sm:$0xff]
      %v716 = vld [vmem:[%s2 + $0x6d0] sm:$0xff]
      %v717 = vld [vmem:[%s2 + $0x6d8] sm:$0xff]
      %v718 = vld [vmem:[%s2 + $0x6e0] sm:$0xff]
      %v719 = vld [vmem:[%s2 + $0x6e8] sm:$0xff]
      %v720 = vld [vmem:[%s2 + $0x6f0] sm:$0xff]
      %v721 = vld [vmem:[%s2 + $0x6f8] sm:$0xff]
      %v722 = vld [vmem:[%s3] sm:$0xf]
      %v724 = vlaneseq
      %v725 = vshrl.u32 %v724, 7
      %v726 = vsub.s32 0, %v725
      %v727 = vrot.slane %v722, %v726
      %v728 = vlaneseq
      %v729 = vshrl.u32 %v728, 7
      %v730 = vsub.s32 1, %v729
      %v731 = vrot.slane %v722, %v730
      %v732 = vlaneseq
      %v733 = vshrl.u32 %v732, 7
      %v734 = vsub.s32 2, %v733
      %v735 = vrot.slane %v722, %v734
      %v736 = vlaneseq
      %v737 = vshrl.u32 %v736, 7
      %v738 = vsub.s32 3, %v737
      %v739 = vrot.slane %v722, %v738
      %v808 = vunpack.c.l.b16 %v434
      %v809 = vunpack.c.h.b16 %v434
      %v810 = vunpack.c.l.b16 %v435
      %v811 = vunpack.c.h.b16 %v435
      %v812 = vunpack.c.l.b16 %v436
      %v813 = vunpack.c.h.b16 %v436
      %v814 = vunpack.c.l.b16 %v437
      %v815 = vunpack.c.l.b16 %v438
      %v816 = vunpack.c.h.b16 %v438
      %v817 = vunpack.c.l.b16 %v439
      %v818 = vunpack.c.h.b16 %v439
      %v819 = vunpack.c.l.b16 %v440
      %v820 = vunpack.c.h.b16 %v440
      %v821 = vunpack.c.l.b16 %v441
      %v822 = vunpack.c.l.b16 %v442
      %v823 = vunpack.c.h.b16 %v442
      %v824 = vunpack.c.l.b16 %v443
      %v825 = vunpack.c.h.b16 %v443
      %v826 = vunpack.c.l.b16 %v444
      %v827 = vunpack.c.h.b16 %v444
      %v828 = vunpack.c.l.b16 %v445
      %v829 = vunpack.c.l.b16 %v446
      %v830 = vunpack.c.h.b16 %v446
      %v831 = vunpack.c.l.b16 %v447
      %v832 = vunpack.c.h.b16 %v447
      %v833 = vunpack.c.l.b16 %v448
      %v834 = vunpack.c.h.b16 %v448
      %v835 = vunpack.c.l.b16 %v449
      %v836 = vunpack.c.l.b16 %v450
      %v837 = vunpack.c.h.b16 %v450
      %v838 = vunpack.c.l.b16 %v451
      %v839 = vunpack.c.h.b16 %v451
      %v840 = vunpack.c.l.b16 %v452
      %v841 = vunpack.c.h.b16 %v452
      %v842 = vunpack.c.l.b16 %v453
      %v843 = vunpack.c.l.b16 %v454
      %v844 = vunpack.c.h.b16 %v454
      %v845 = vunpack.c.l.b16 %v455
      %v846 = vunpack.c.h.b16 %v455
      %v847 = vunpack.c.l.b16 %v456
      %v848 = vunpack.c.h.b16 %v456
      %v849 = vunpack.c.l.b16 %v457
      %v850 = vunpack.c.l.b16 %v458
      %v851 = vunpack.c.h.b16 %v458
      %v852 = vunpack.c.l.b16 %v459
      %v853 = vunpack.c.h.b16 %v459
      %v854 = vunpack.c.l.b16 %v460
      %v855 = vunpack.c.h.b16 %v460
      %v856 = vunpack.c.l.b16 %v461
      %v857 = vunpack.c.l.b16 %v462
      %v858 = vunpack.c.h.b16 %v462
      %v859 = vunpack.c.l.b16 %v463
      %v860 = vunpack.c.h.b16 %v463
      %v861 = vunpack.c.l.b16 %v464
      %v862 = vunpack.c.h.b16 %v464
      %v863 = vunpack.c.l.b16 %v465
      %v864 = vunpack.c.l.b16 %v466
      %v865 = vunpack.c.h.b16 %v466
      %v866 = vunpack.c.l.b16 %v467
      %v867 = vunpack.c.h.b16 %v467
      %v868 = vunpack.c.l.b16 %v468
      %v869 = vunpack.c.h.b16 %v468
      %v870 = vunpack.c.l.b16 %v469
      %v871 = vunpack.c.l.b16 %v470
      %v872 = vunpack.c.h.b16 %v470
      %v873 = vunpack.c.l.b16 %v471
      %v874 = vunpack.c.h.b16 %v471
      %v875 = vunpack.c.l.b16 %v472
      %v876 = vunpack.c.h.b16 %v472
      %v877 = vunpack.c.l.b16 %v473
      %v878 = vunpack.c.l.b16 %v474
      %v879 = vunpack.c.h.b16 %v474
      %v880 = vunpack.c.l.b16 %v475
      %v881 = vunpack.c.h.b16 %v475
      %v882 = vunpack.c.l.b16 %v476
      %v883 = vunpack.c.h.b16 %v476
      %v884 = vunpack.c.l.b16 %v477
      %v885 = vunpack.c.l.b16 %v478
      %v886 = vunpack.c.h.b16 %v478
      %v887 = vunpack.c.l.b16 %v479
      %v888 = vunpack.c.h.b16 %v479
      %v889 = vunpack.c.l.b16 %v480
      %v890 = vunpack.c.h.b16 %v480
      %v891 = vunpack.c.l.b16 %v481
      %v892 = vunpack.c.l.b16 %v482
      %v893 = vunpack.c.h.b16 %v482
      %v894 = vunpack.c.l.b16 %v483
      %v895 = vunpack.c.h.b16 %v483
      %v896 = vunpack.c.l.b16 %v484
      %v897 = vunpack.c.h.b16 %v484
      %v898 = vunpack.c.l.b16 %v485
      %v899 = vunpack.c.l.b16 %v486
      %v900 = vunpack.c.h.b16 %v486
      %v901 = vunpack.c.l.b16 %v487
      %v902 = vunpack.c.h.b16 %v487
      %v903 = vunpack.c.l.b16 %v488
      %v904 = vunpack.c.h.b16 %v488
      %v905 = vunpack.c.l.b16 %v489
      %v906 = vunpack.c.l.b16 %v490
      %v907 = vunpack.c.h.b16 %v490
      %v908 = vunpack.c.l.b16 %v491
      %v909 = vunpack.c.h.b16 %v491
      %v910 = vunpack.c.l.b16 %v492
      %v911 = vunpack.c.h.b16 %v492
      %v912 = vunpack.c.l.b16 %v493
      %v913 = vunpack.c.l.b16 %v494
      %v914 = vunpack.c.h.b16 %v494
      %v915 = vunpack.c.l.b16 %v495
      %v916 = vunpack.c.h.b16 %v495
      %v917 = vunpack.c.l.b16 %v496
      %v918 = vunpack.c.h.b16 %v496
      %v919 = vunpack.c.l.b16 %v497
      %v920 = vpack.c.b16 %v815, %v808
      %v921 = vpack.c.b16 %v816, %v809
      %v922 = vpack.c.b16 %v817, %v810
      %v923 = vpack.c.b16 %v818, %v811
      %v924 = vpack.c.b16 %v819, %v812
      %v925 = vpack.c.b16 %v820, %v813
      %v926 = vpack.c.b16 %v821, %v814
      %v927 = vpack.c.b16 %v829, %v822
      %v928 = vpack.c.b16 %v830, %v823
      %v929 = vpack.c.b16 %v831, %v824
      %v930 = vpack.c.b16 %v832, %v825
      %v931 = vpack.c.b16 %v833, %v826
      %v932 = vpack.c.b16 %v834, %v827
      %v933 = vpack.c.b16 %v835, %v828
      %v934 = vpack.c.b16 %v843, %v836
      %v935 = vpack.c.b16 %v844, %v837
      %v936 = vpack.c.b16 %v845, %v838
      %v937 = vpack.c.b16 %v846, %v839
      %v938 = vpack.c.b16 %v847, %v840
      %v939 = vpack.c.b16 %v848, %v841
      %v940 = vpack.c.b16 %v849, %v842
      %v941 = vpack.c.b16 %v857, %v850
      %v942 = vpack.c.b16 %v858, %v851
      %v943 = vpack.c.b16 %v859, %v852
      %v944 = vpack.c.b16 %v860, %v853
      %v945 = vpack.c.b16 %v861, %v854
      %v946 = vpack.c.b16 %v862, %v855
      %v947 = vpack.c.b16 %v863, %v856
      %v948 = vpack.c.b16 %v871, %v864
      %v949 = vpack.c.b16 %v872, %v865
      %v950 = vpack.c.b16 %v873, %v866
      %v951 = vpack.c.b16 %v874, %v867
      %v952 = vpack.c.b16 %v875, %v868
      %v953 = vpack.c.b16 %v876, %v869
      %v954 = vpack.c.b16 %v877, %v870
      %v955 = vpack.c.b16 %v885, %v878
      %v956 = vpack.c.b16 %v886, %v879
      %v957 = vpack.c.b16 %v887, %v880
      %v958 = vpack.c.b16 %v888, %v881
      %v959 = vpack.c.b16 %v889, %v882
      %v960 = vpack.c.b16 %v890, %v883
      %v961 = vpack.c.b16 %v891, %v884
      %v962 = vpack.c.b16 %v899, %v892
      %v963 = vpack.c.b16 %v900, %v893
      %v964 = vpack.c.b16 %v901, %v894
      %v965 = vpack.c.b16 %v902, %v895
      %v966 = vpack.c.b16 %v903, %v896
      %v967 = vpack.c.b16 %v904, %v897
      %v968 = vpack.c.b16 %v905, %v898
      %v969 = vpack.c.b16 %v913, %v906
      %v970 = vpack.c.b16 %v914, %v907
      %v971 = vpack.c.b16 %v915, %v908
      %v972 = vpack.c.b16 %v916, %v909
      %v973 = vpack.c.b16 %v917, %v910
      %v974 = vpack.c.b16 %v918, %v911
      %v975 = vpack.c.b16 %v919, %v912
      %v1256 = vunpack.c.l.b16 %v498
      %v1257 = vunpack.c.h.b16 %v498
      %v1258 = vunpack.c.l.b16 %v499
      %v1259 = vunpack.c.h.b16 %v499
      %v1260 = vunpack.c.l.b16 %v500
      %v1261 = vunpack.c.h.b16 %v500
      %v1262 = vunpack.c.l.b16 %v501
      %v1263 = vunpack.c.h.b16 %v501
      %v1264 = vunpack.c.l.b16 %v502
      %v1265 = vunpack.c.h.b16 %v502
      %v1266 = vunpack.c.l.b16 %v503
      %v1267 = vunpack.c.h.b16 %v503
      %v1268 = vunpack.c.l.b16 %v504
      %v1269 = vunpack.c.h.b16 %v504
      %v1270 = vunpack.c.l.b16 %v505
      %v1271 = vunpack.c.h.b16 %v505
      %v1272 = vunpack.c.l.b16 %v506
      %v1273 = vunpack.c.h.b16 %v506
      %v1274 = vunpack.c.l.b16 %v507
      %v1275 = vunpack.c.h.b16 %v507
      %v1276 = vunpack.c.l.b16 %v508
      %v1277 = vunpack.c.h.b16 %v508
      %v1278 = vunpack.c.l.b16 %v509
      %v1279 = vunpack.c.h.b16 %v509
      %v1280 = vunpack.c.l.b16 %v510
      %v1281 = vunpack.c.h.b16 %v510
      %v1282 = vunpack.c.l.b16 %v511
      %v1283 = vunpack.c.h.b16 %v511
      %v1284 = vunpack.c.l.b16 %v512
      %v1285 = vunpack.c.h.b16 %v512
      %v1286 = vunpack.c.l.b16 %v513
      %v1287 = vunpack.c.h.b16 %v513
      %v1288 = vunpack.c.l.b16 %v514
      %v1289 = vunpack.c.h.b16 %v514
      %v1290 = vunpack.c.l.b16 %v515
      %v1291 = vunpack.c.h.b16 %v515
      %v1292 = vunpack.c.l.b16 %v516
      %v1293 = vunpack.c.h.b16 %v516
      %v1294 = vunpack.c.l.b16 %v517
      %v1295 = vunpack.c.h.b16 %v517
      %v1296 = vunpack.c.l.b16 %v518
      %v1297 = vunpack.c.h.b16 %v518
      %v1298 = vunpack.c.l.b16 %v519
      %v1299 = vunpack.c.h.b16 %v519
      %v1300 = vunpack.c.l.b16 %v520
      %v1301 = vunpack.c.h.b16 %v520
      %v1302 = vunpack.c.l.b16 %v521
      %v1303 = vunpack.c.h.b16 %v521
      %v1304 = vunpack.c.l.b16 %v522
      %v1305 = vunpack.c.h.b16 %v522
      %v1306 = vunpack.c.l.b16 %v523
      %v1307 = vunpack.c.h.b16 %v523
      %v1308 = vunpack.c.l.b16 %v524
      %v1309 = vunpack.c.h.b16 %v524
      %v1310 = vunpack.c.l.b16 %v525
      %v1311 = vunpack.c.h.b16 %v525
      %v1312 = vunpack.c.l.b16 %v526
      %v1313 = vunpack.c.h.b16 %v526
      %v1314 = vunpack.c.l.b16 %v527
      %v1315 = vunpack.c.h.b16 %v527
      %v1316 = vunpack.c.l.b16 %v528
      %v1317 = vunpack.c.h.b16 %v528
      %v1318 = vunpack.c.l.b16 %v529
      %v1319 = vunpack.c.h.b16 %v529
      %v1320 = vunpack.c.l.b16 %v530
      %v1321 = vunpack.c.h.b16 %v530
      %v1322 = vunpack.c.l.b16 %v531
      %v1323 = vunpack.c.h.b16 %v531
      %v1324 = vunpack.c.l.b16 %v532
      %v1325 = vunpack.c.h.b16 %v532
      %v1326 = vunpack.c.l.b16 %v533
      %v1327 = vunpack.c.h.b16 %v533
      %v1328 = vunpack.c.l.b16 %v534
      %v1329 = vunpack.c.h.b16 %v534
      %v1330 = vunpack.c.l.b16 %v535
      %v1331 = vunpack.c.h.b16 %v535
      %v1332 = vunpack.c.l.b16 %v536
      %v1333 = vunpack.c.h.b16 %v536
      %v1334 = vunpack.c.l.b16 %v537
      %v1335 = vunpack.c.h.b16 %v537
      %v1336 = vunpack.c.l.b16 %v538
      %v1337 = vunpack.c.h.b16 %v538
      %v1338 = vunpack.c.l.b16 %v539
      %v1339 = vunpack.c.h.b16 %v539
      %v1340 = vunpack.c.l.b16 %v540
      %v1341 = vunpack.c.h.b16 %v540
      %v1342 = vunpack.c.l.b16 %v541
      %v1343 = vunpack.c.h.b16 %v541
      %v1344 = vunpack.c.l.b16 %v542
      %v1345 = vunpack.c.h.b16 %v542
      %v1346 = vunpack.c.l.b16 %v543
      %v1347 = vunpack.c.h.b16 %v543
      %v1348 = vunpack.c.l.b16 %v544
      %v1349 = vunpack.c.h.b16 %v544
      %v1350 = vunpack.c.l.b16 %v545
      %v1351 = vunpack.c.h.b16 %v545
      %v1352 = vunpack.c.l.b16 %v546
      %v1353 = vunpack.c.h.b16 %v546
      %v1354 = vunpack.c.l.b16 %v547
      %v1355 = vunpack.c.h.b16 %v547
      %v1356 = vunpack.c.l.b16 %v548
      %v1357 = vunpack.c.h.b16 %v548
      %v1358 = vunpack.c.l.b16 %v549
      %v1359 = vunpack.c.h.b16 %v549
      %v1360 = vunpack.c.l.b16 %v550
      %v1361 = vunpack.c.h.b16 %v550
      %v1362 = vunpack.c.l.b16 %v551
      %v1363 = vunpack.c.h.b16 %v551
      %v1364 = vunpack.c.l.b16 %v552
      %v1365 = vunpack.c.h.b16 %v552
      %v1366 = vunpack.c.l.b16 %v553
      %v1367 = vunpack.c.h.b16 %v553
      %v1368 = vunpack.c.l.b16 %v554
      %v1369 = vunpack.c.h.b16 %v554
      %v1370 = vunpack.c.l.b16 %v555
      %v1371 = vunpack.c.h.b16 %v555
      %v1372 = vunpack.c.l.b16 %v556
      %v1373 = vunpack.c.h.b16 %v556
      %v1374 = vunpack.c.l.b16 %v557
      %v1375 = vunpack.c.h.b16 %v557
      %v1376 = vunpack.c.l.b16 %v558
      %v1377 = vunpack.c.h.b16 %v558
      %v1378 = vunpack.c.l.b16 %v559
      %v1379 = vunpack.c.h.b16 %v559
      %v1380 = vunpack.c.l.b16 %v560
      %v1381 = vunpack.c.h.b16 %v560
      %v1382 = vunpack.c.l.b16 %v561
      %v1383 = vunpack.c.h.b16 %v561
      %v1384 = vunpack.c.l.b16 %v562
      %v1385 = vunpack.c.h.b16 %v562
      %v1386 = vunpack.c.l.b16 %v563
      %v1387 = vunpack.c.h.b16 %v563
      %v1388 = vunpack.c.l.b16 %v564
      %v1389 = vunpack.c.h.b16 %v564
      %v1390 = vunpack.c.l.b16 %v565
      %v1391 = vunpack.c.h.b16 %v565
      %v1392 = vunpack.c.l.b16 %v566
      %v1393 = vunpack.c.h.b16 %v566
      %v1394 = vunpack.c.l.b16 %v567
      %v1395 = vunpack.c.h.b16 %v567
      %v1396 = vunpack.c.l.b16 %v568
      %v1397 = vunpack.c.h.b16 %v568
      %v1398 = vunpack.c.l.b16 %v569
      %v1399 = vunpack.c.h.b16 %v569
      %v1400 = vunpack.c.l.b16 %v570
      %v1401 = vunpack.c.h.b16 %v570
      %v1402 = vunpack.c.l.b16 %v571
      %v1403 = vunpack.c.h.b16 %v571
      %v1404 = vunpack.c.l.b16 %v572
      %v1405 = vunpack.c.h.b16 %v572
      %v1406 = vunpack.c.l.b16 %v573
      %v1407 = vunpack.c.h.b16 %v573
      %v1408 = vunpack.c.l.b16 %v574
      %v1409 = vunpack.c.h.b16 %v574
      %v1410 = vunpack.c.l.b16 %v575
      %v1411 = vunpack.c.h.b16 %v575
      %v1412 = vunpack.c.l.b16 %v576
      %v1413 = vunpack.c.h.b16 %v576
      %v1414 = vunpack.c.l.b16 %v577
      %v1415 = vunpack.c.h.b16 %v577
      %v1416 = vunpack.c.l.b16 %v578
      %v1417 = vunpack.c.h.b16 %v578
      %v1418 = vunpack.c.l.b16 %v579
      %v1419 = vunpack.c.h.b16 %v579
      %v1420 = vunpack.c.l.b16 %v580
      %v1421 = vunpack.c.h.b16 %v580
      %v1422 = vunpack.c.l.b16 %v581
      %v1423 = vunpack.c.h.b16 %v581
      %v1424 = vunpack.c.l.b16 %v582
      %v1425 = vunpack.c.h.b16 %v582
      %v1426 = vunpack.c.l.b16 %v583
      %v1427 = vunpack.c.h.b16 %v583
      %v1428 = vunpack.c.l.b16 %v584
      %v1429 = vunpack.c.h.b16 %v584
      %v1430 = vunpack.c.l.b16 %v585
      %v1431 = vunpack.c.h.b16 %v585
      %v1432 = vunpack.c.l.b16 %v586
      %v1433 = vunpack.c.h.b16 %v586
      %v1434 = vunpack.c.l.b16 %v587
      %v1435 = vunpack.c.h.b16 %v587
      %v1436 = vunpack.c.l.b16 %v588
      %v1437 = vunpack.c.h.b16 %v588
      %v1438 = vunpack.c.l.b16 %v589
      %v1439 = vunpack.c.h.b16 %v589
      %v1440 = vunpack.c.l.b16 %v590
      %v1441 = vunpack.c.h.b16 %v590
      %v1442 = vunpack.c.l.b16 %v591
      %v1443 = vunpack.c.h.b16 %v591
      %v1444 = vunpack.c.l.b16 %v592
      %v1445 = vunpack.c.h.b16 %v592
      %v1446 = vunpack.c.l.b16 %v593
      %v1447 = vunpack.c.h.b16 %v593
      %v1448 = vunpack.c.l.b16 %v594
      %v1449 = vunpack.c.h.b16 %v594
      %v1450 = vunpack.c.l.b16 %v595
      %v1451 = vunpack.c.h.b16 %v595
      %v1452 = vunpack.c.l.b16 %v596
      %v1453 = vunpack.c.h.b16 %v596
      %v1454 = vunpack.c.l.b16 %v597
      %v1455 = vunpack.c.h.b16 %v597
      %v1456 = vunpack.c.l.b16 %v598
      %v1457 = vunpack.c.h.b16 %v598
      %v1458 = vunpack.c.l.b16 %v599
      %v1459 = vunpack.c.h.b16 %v599
      %v1460 = vunpack.c.l.b16 %v600
      %v1461 = vunpack.c.h.b16 %v600
      %v1462 = vunpack.c.l.b16 %v601
      %v1463 = vunpack.c.h.b16 %v601
      %v1464 = vunpack.c.l.b16 %v602
      %v1465 = vunpack.c.h.b16 %v602
      %v1466 = vunpack.c.l.b16 %v603
      %v1467 = vunpack.c.h.b16 %v603
      %v1468 = vunpack.c.l.b16 %v604
      %v1469 = vunpack.c.h.b16 %v604
      %v1470 = vunpack.c.l.b16 %v605
      %v1471 = vunpack.c.h.b16 %v605
      %v1472 = vunpack.c.l.b16 %v606
      %v1473 = vunpack.c.h.b16 %v606
      %v1474 = vunpack.c.l.b16 %v607
      %v1475 = vunpack.c.h.b16 %v607
      %v1476 = vunpack.c.l.b16 %v608
      %v1477 = vunpack.c.h.b16 %v608
      %v1478 = vunpack.c.l.b16 %v609
      %v1479 = vunpack.c.h.b16 %v609
      %v1480 = vunpack.c.l.b16 %v610
      %v1481 = vunpack.c.h.b16 %v610
      %v1482 = vunpack.c.l.b16 %v611
      %v1483 = vunpack.c.h.b16 %v611
      %v1484 = vunpack.c.l.b16 %v612
      %v1485 = vunpack.c.h.b16 %v612
      %v1486 = vunpack.c.l.b16 %v613
      %v1487 = vunpack.c.h.b16 %v613
      %v1488 = vunpack.c.l.b16 %v614
      %v1489 = vunpack.c.h.b16 %v614
      %v1490 = vunpack.c.l.b16 %v615
      %v1491 = vunpack.c.h.b16 %v615
      %v1492 = vunpack.c.l.b16 %v616
      %v1493 = vunpack.c.h.b16 %v616
      %v1494 = vunpack.c.l.b16 %v617
      %v1495 = vunpack.c.h.b16 %v617
      %v1496 = vunpack.c.l.b16 %v618
      %v1497 = vunpack.c.h.b16 %v618
      %v1498 = vunpack.c.l.b16 %v619
      %v1499 = vunpack.c.h.b16 %v619
      %v1500 = vunpack.c.l.b16 %v620
      %v1501 = vunpack.c.h.b16 %v620
      %v1502 = vunpack.c.l.b16 %v621
      %v1503 = vunpack.c.h.b16 %v621
      %v1504 = vunpack.c.l.b16 %v622
      %v1505 = vunpack.c.h.b16 %v622
      %v1506 = vunpack.c.l.b16 %v623
      %v1507 = vunpack.c.h.b16 %v623
      %v1508 = vunpack.c.l.b16 %v624
      %v1509 = vunpack.c.h.b16 %v624
      %v1510 = vunpack.c.l.b16 %v625
      %v1511 = vunpack.c.h.b16 %v625
      %v1512 = vunpack.c.l.b16 %v626
      %v1513 = vunpack.c.h.b16 %v626
      %v1514 = vunpack.c.l.b16 %v627
      %v1515 = vunpack.c.h.b16 %v627
      %v1516 = vunpack.c.l.b16 %v628
      %v1517 = vunpack.c.h.b16 %v628
      %v1518 = vunpack.c.l.b16 %v629
      %v1519 = vunpack.c.h.b16 %v629
      %v1520 = vunpack.c.l.b16 %v630
      %v1521 = vunpack.c.h.b16 %v630
      %v1522 = vunpack.c.l.b16 %v631
      %v1523 = vunpack.c.h.b16 %v631
      %v1524 = vunpack.c.l.b16 %v632
      %v1525 = vunpack.c.h.b16 %v632
      %v1526 = vunpack.c.l.b16 %v633
      %v1527 = vunpack.c.h.b16 %v633
      %v1528 = vunpack.c.l.b16 %v634
      %v1529 = vunpack.c.h.b16 %v634
      %v1530 = vunpack.c.l.b16 %v635
      %v1531 = vunpack.c.h.b16 %v635
      %v1532 = vunpack.c.l.b16 %v636
      %v1533 = vunpack.c.h.b16 %v636
      %v1534 = vunpack.c.l.b16 %v637
      %v1535 = vunpack.c.h.b16 %v637
      %v1536 = vunpack.c.l.b16 %v638
      %v1537 = vunpack.c.h.b16 %v638
      %v1538 = vunpack.c.l.b16 %v639
      %v1539 = vunpack.c.h.b16 %v639
      %v1540 = vunpack.c.l.b16 %v640
      %v1541 = vunpack.c.h.b16 %v640
      %v1542 = vunpack.c.l.b16 %v641
      %v1543 = vunpack.c.h.b16 %v641
      %v1544 = vunpack.c.l.b16 %v642
      %v1545 = vunpack.c.h.b16 %v642
      %v1546 = vunpack.c.l.b16 %v643
      %v1547 = vunpack.c.h.b16 %v643
      %v1548 = vunpack.c.l.b16 %v644
      %v1549 = vunpack.c.h.b16 %v644
      %v1550 = vunpack.c.l.b16 %v645
      %v1551 = vunpack.c.h.b16 %v645
      %v1552 = vunpack.c.l.b16 %v646
      %v1553 = vunpack.c.h.b16 %v646
      %v1554 = vunpack.c.l.b16 %v647
      %v1555 = vunpack.c.h.b16 %v647
      %v1556 = vunpack.c.l.b16 %v648
      %v1557 = vunpack.c.h.b16 %v648
      %v1558 = vunpack.c.l.b16 %v649
      %v1559 = vunpack.c.h.b16 %v649
      %v1560 = vunpack.c.l.b16 %v650
      %v1561 = vunpack.c.h.b16 %v650
      %v1562 = vunpack.c.l.b16 %v651
      %v1563 = vunpack.c.h.b16 %v651
      %v1564 = vunpack.c.l.b16 %v652
      %v1565 = vunpack.c.h.b16 %v652
      %v1566 = vunpack.c.l.b16 %v653
      %v1567 = vunpack.c.h.b16 %v653
      %v1568 = vunpack.c.l.b16 %v654
      %v1569 = vunpack.c.h.b16 %v654
      %v1570 = vunpack.c.l.b16 %v655
      %v1571 = vunpack.c.h.b16 %v655
      %v1572 = vunpack.c.l.b16 %v656
      %v1573 = vunpack.c.h.b16 %v656
      %v1574 = vunpack.c.l.b16 %v657
      %v1575 = vunpack.c.h.b16 %v657
      %v1576 = vunpack.c.l.b16 %v658
      %v1577 = vunpack.c.h.b16 %v658
      %v1578 = vunpack.c.l.b16 %v659
      %v1579 = vunpack.c.h.b16 %v659
      %v1580 = vunpack.c.l.b16 %v660
      %v1581 = vunpack.c.h.b16 %v660
      %v1582 = vunpack.c.l.b16 %v661
      %v1583 = vunpack.c.h.b16 %v661
      %v1584 = vunpack.c.l.b16 %v662
      %v1585 = vunpack.c.h.b16 %v662
      %v1586 = vunpack.c.l.b16 %v663
      %v1587 = vunpack.c.h.b16 %v663
      %v1588 = vunpack.c.l.b16 %v664
      %v1589 = vunpack.c.h.b16 %v664
      %v1590 = vunpack.c.l.b16 %v665
      %v1591 = vunpack.c.h.b16 %v665
      %v1592 = vunpack.c.l.b16 %v666
      %v1593 = vunpack.c.h.b16 %v666
      %v1594 = vunpack.c.l.b16 %v667
      %v1595 = vunpack.c.h.b16 %v667
      %v1596 = vunpack.c.l.b16 %v668
      %v1597 = vunpack.c.h.b16 %v668
      %v1598 = vunpack.c.l.b16 %v669
      %v1599 = vunpack.c.h.b16 %v669
      %v1600 = vunpack.c.l.b16 %v670
      %v1601 = vunpack.c.h.b16 %v670
      %v1602 = vunpack.c.l.b16 %v671
      %v1603 = vunpack.c.h.b16 %v671
      %v1604 = vunpack.c.l.b16 %v672
      %v1605 = vunpack.c.h.b16 %v672
      %v1606 = vunpack.c.l.b16 %v673
      %v1607 = vunpack.c.h.b16 %v673
      %v1608 = vunpack.c.l.b16 %v674
      %v1609 = vunpack.c.h.b16 %v674
      %v1610 = vunpack.c.l.b16 %v675
      %v1611 = vunpack.c.h.b16 %v675
      %v1612 = vunpack.c.l.b16 %v676
      %v1613 = vunpack.c.h.b16 %v676
      %v1614 = vunpack.c.l.b16 %v677
      %v1615 = vunpack.c.h.b16 %v677
      %v1616 = vunpack.c.l.b16 %v678
      %v1617 = vunpack.c.h.b16 %v678
      %v1618 = vunpack.c.l.b16 %v679
      %v1619 = vunpack.c.h.b16 %v679
      %v1620 = vunpack.c.l.b16 %v680
      %v1621 = vunpack.c.h.b16 %v680
      %v1622 = vunpack.c.l.b16 %v681
      %v1623 = vunpack.c.h.b16 %v681
      %v1624 = vunpack.c.l.b16 %v682
      %v1625 = vunpack.c.h.b16 %v682
      %v1626 = vunpack.c.l.b16 %v683
      %v1627 = vunpack.c.h.b16 %v683
      %v1628 = vunpack.c.l.b16 %v684
      %v1629 = vunpack.c.h.b16 %v684
      %v1630 = vunpack.c.l.b16 %v685
      %v1631 = vunpack.c.h.b16 %v685
      %v1632 = vunpack.c.l.b16 %v686
      %v1633 = vunpack.c.h.b16 %v686
      %v1634 = vunpack.c.l.b16 %v687
      %v1635 = vunpack.c.h.b16 %v687
      %v1636 = vunpack.c.l.b16 %v688
      %v1637 = vunpack.c.h.b16 %v688
      %v1638 = vunpack.c.l.b16 %v689
      %v1639 = vunpack.c.h.b16 %v689
      %v1640 = vunpack.c.l.b16 %v690
      %v1641 = vunpack.c.h.b16 %v690
      %v1642 = vunpack.c.l.b16 %v691
      %v1643 = vunpack.c.h.b16 %v691
      %v1644 = vunpack.c.l.b16 %v692
      %v1645 = vunpack.c.h.b16 %v692
      %v1646 = vunpack.c.l.b16 %v693
      %v1647 = vunpack.c.h.b16 %v693
      %v1648 = vunpack.c.l.b16 %v694
      %v1649 = vunpack.c.h.b16 %v694
      %v1650 = vunpack.c.l.b16 %v695
      %v1651 = vunpack.c.h.b16 %v695
      %v1652 = vunpack.c.l.b16 %v696
      %v1653 = vunpack.c.h.b16 %v696
      %v1654 = vunpack.c.l.b16 %v697
      %v1655 = vunpack.c.h.b16 %v697
      %v1656 = vunpack.c.l.b16 %v698
      %v1657 = vunpack.c.h.b16 %v698
      %v1658 = vunpack.c.l.b16 %v699
      %v1659 = vunpack.c.h.b16 %v699
      %v1660 = vunpack.c.l.b16 %v700
      %v1661 = vunpack.c.h.b16 %v700
      %v1662 = vunpack.c.l.b16 %v701
      %v1663 = vunpack.c.h.b16 %v701
      %v1664 = vunpack.c.l.b16 %v702
      %v1665 = vunpack.c.h.b16 %v702
      %v1666 = vunpack.c.l.b16 %v703
      %v1667 = vunpack.c.h.b16 %v703
      %v1668 = vunpack.c.l.b16 %v704
      %v1669 = vunpack.c.h.b16 %v704
      %v1670 = vunpack.c.l.b16 %v705
      %v1671 = vunpack.c.h.b16 %v705
      %v1672 = vunpack.c.l.b16 %v706
      %v1673 = vunpack.c.h.b16 %v706
      %v1674 = vunpack.c.l.b16 %v707
      %v1675 = vunpack.c.h.b16 %v707
      %v1676 = vunpack.c.l.b16 %v708
      %v1677 = vunpack.c.h.b16 %v708
      %v1678 = vunpack.c.l.b16 %v709
      %v1679 = vunpack.c.h.b16 %v709
      %v1680 = vunpack.c.l.b16 %v710
      %v1681 = vunpack.c.h.b16 %v710
      %v1682 = vunpack.c.l.b16 %v711
      %v1683 = vunpack.c.h.b16 %v711
      %v1684 = vunpack.c.l.b16 %v712
      %v1685 = vunpack.c.h.b16 %v712
      %v1686 = vunpack.c.l.b16 %v713
      %v1687 = vunpack.c.h.b16 %v713
      %v1688 = vunpack.c.l.b16 %v714
      %v1689 = vunpack.c.h.b16 %v714
      %v1690 = vunpack.c.l.b16 %v715
      %v1691 = vunpack.c.h.b16 %v715
      %v1692 = vunpack.c.l.b16 %v716
      %v1693 = vunpack.c.h.b16 %v716
      %v1694 = vunpack.c.l.b16 %v717
      %v1695 = vunpack.c.h.b16 %v717
      %v1696 = vunpack.c.l.b16 %v718
      %v1697 = vunpack.c.h.b16 %v718
      %v1698 = vunpack.c.l.b16 %v719
      %v1699 = vunpack.c.h.b16 %v719
      %v1700 = vunpack.c.l.b16 %v720
      %v1701 = vunpack.c.h.b16 %v720
      %v1702 = vunpack.c.l.b16 %v721
      %v1703 = vunpack.c.h.b16 %v721
      %v1704 = vpack.c.b16 %v1260, %v1256
      %v1705 = vpack.c.b16 %v1261, %v1257
      %v1706 = vpack.c.b16 %v1262, %v1258
      %v1707 = vpack.c.b16 %v1263, %v1259
      %v1708 = vpack.c.b16 %v1268, %v1264
      %v1709 = vpack.c.b16 %v1269, %v1265
      %v1710 = vpack.c.b16 %v1270, %v1266
      %v1711 = vpack.c.b16 %v1271, %v1267
      %v1712 = vpack.c.b16 %v1276, %v1272
      %v1713 = vpack.c.b16 %v1277, %v1273
      %v1714 = vpack.c.b16 %v1278, %v1274
      %v1715 = vpack.c.b16 %v1279, %v1275
      %v1716 = vpack.c.b16 %v1284, %v1280
      %v1717 = vpack.c.b16 %v1285, %v1281
      %v1718 = vpack.c.b16 %v1286, %v1282
      %v1719 = vpack.c.b16 %v1287, %v1283
      %v1720 = vpack.c.b16 %v1292, %v1288
      %v1721 = vpack.c.b16 %v1293, %v1289
      %v1722 = vpack.c.b16 %v1294, %v1290
      %v1723 = vpack.c.b16 %v1295, %v1291
      %v1724 = vpack.c.b16 %v1300, %v1296
      %v1725 = vpack.c.b16 %v1301, %v1297
      %v1726 = vpack.c.b16 %v1302, %v1298
      %v1727 = vpack.c.b16 %v1303, %v1299
      %v1728 = vpack.c.b16 %v1308, %v1304
      %v1729 = vpack.c.b16 %v1309, %v1305
      %v1730 = vpack.c.b16 %v1310, %v1306
      %v1731 = vpack.c.b16 %v1311, %v1307
      %v1732 = vpack.c.b16 %v1316, %v1312
      %v1733 = vpack.c.b16 %v1317, %v1313
      %v1734 = vpack.c.b16 %v1318, %v1314
      %v1735 = vpack.c.b16 %v1319, %v1315
      %v1736 = vpack.c.b16 %v1324, %v1320
      %v1737 = vpack.c.b16 %v1325, %v1321
      %v1738 = vpack.c.b16 %v1326, %v1322
      %v1739 = vpack.c.b16 %v1327, %v1323
      %v1740 = vpack.c.b16 %v1332, %v1328
      %v1741 = vpack.c.b16 %v1333, %v1329
      %v1742 = vpack.c.b16 %v1334, %v1330
      %v1743 = vpack.c.b16 %v1335, %v1331
      %v1744 = vpack.c.b16 %v1340, %v1336
      %v1745 = vpack.c.b16 %v1341, %v1337
      %v1746 = vpack.c.b16 %v1342, %v1338
      %v1747 = vpack.c.b16 %v1343, %v1339
      %v1748 = vpack.c.b16 %v1348, %v1344
      %v1749 = vpack.c.b16 %v1349, %v1345
      %v1750 = vpack.c.b16 %v1350, %v1346
      %v1751 = vpack.c.b16 %v1351, %v1347
      %v1752 = vpack.c.b16 %v1356, %v1352
      %v1753 = vpack.c.b16 %v1357, %v1353
      %v1754 = vpack.c.b16 %v1358, %v1354
      %v1755 = vpack.c.b16 %v1359, %v1355
      %v1756 = vpack.c.b16 %v1364, %v1360
      %v1757 = vpack.c.b16 %v1365, %v1361
      %v1758 = vpack.c.b16 %v1366, %v1362
      %v1759 = vpack.c.b16 %v1367, %v1363
      %v1760 = vpack.c.b16 %v1372, %v1368
      %v1761 = vpack.c.b16 %v1373, %v1369
      %v1762 = vpack.c.b16 %v1374, %v1370
      %v1763 = vpack.c.b16 %v1375, %v1371
      %v1764 = vpack.c.b16 %v1380, %v1376
      %v1765 = vpack.c.b16 %v1381, %v1377
      %v1766 = vpack.c.b16 %v1382, %v1378
      %v1767 = vpack.c.b16 %v1383, %v1379
      %v1768 = vpack.c.b16 %v1388, %v1384
      %v1769 = vpack.c.b16 %v1389, %v1385
      %v1770 = vpack.c.b16 %v1390, %v1386
      %v1771 = vpack.c.b16 %v1391, %v1387
      %v1772 = vpack.c.b16 %v1396, %v1392
      %v1773 = vpack.c.b16 %v1397, %v1393
      %v1774 = vpack.c.b16 %v1398, %v1394
      %v1775 = vpack.c.b16 %v1399, %v1395
      %v1776 = vpack.c.b16 %v1404, %v1400
      %v1777 = vpack.c.b16 %v1405, %v1401
      %v1778 = vpack.c.b16 %v1406, %v1402
      %v1779 = vpack.c.b16 %v1407, %v1403
      %v1780 = vpack.c.b16 %v1412, %v1408
      %v1781 = vpack.c.b16 %v1413, %v1409
      %v1782 = vpack.c.b16 %v1414, %v1410
      %v1783 = vpack.c.b16 %v1415, %v1411
      %v1784 = vpack.c.b16 %v1420, %v1416
      %v1785 = vpack.c.b16 %v1421, %v1417
      %v1786 = vpack.c.b16 %v1422, %v1418
      %v1787 = vpack.c.b16 %v1423, %v1419
      %v1788 = vpack.c.b16 %v1428, %v1424
      %v1789 = vpack.c.b16 %v1429, %v1425
      %v1790 = vpack.c.b16 %v1430, %v1426
      %v1791 = vpack.c.b16 %v1431, %v1427
      %v1792 = vpack.c.b16 %v1436, %v1432
      %v1793 = vpack.c.b16 %v1437, %v1433
      %v1794 = vpack.c.b16 %v1438, %v1434
      %v1795 = vpack.c.b16 %v1439, %v1435
      %v1796 = vpack.c.b16 %v1444, %v1440
      %v1797 = vpack.c.b16 %v1445, %v1441
      %v1798 = vpack.c.b16 %v1446, %v1442
      %v1799 = vpack.c.b16 %v1447, %v1443
      %v1800 = vpack.c.b16 %v1452, %v1448
      %v1801 = vpack.c.b16 %v1453, %v1449
      %v1802 = vpack.c.b16 %v1454, %v1450
      %v1803 = vpack.c.b16 %v1455, %v1451
      %v1804 = vpack.c.b16 %v1460, %v1456
      %v1805 = vpack.c.b16 %v1461, %v1457
      %v1806 = vpack.c.b16 %v1462, %v1458
      %v1807 = vpack.c.b16 %v1463, %v1459
      %v1808 = vpack.c.b16 %v1468, %v1464
      %v1809 = vpack.c.b16 %v1469, %v1465
      %v1810 = vpack.c.b16 %v1470, %v1466
      %v1811 = vpack.c.b16 %v1471, %v1467
      %v1812 = vpack.c.b16 %v1476, %v1472
      %v1813 = vpack.c.b16 %v1477, %v1473
      %v1814 = vpack.c.b16 %v1478, %v1474
      %v1815 = vpack.c.b16 %v1479, %v1475
      %v1816 = vpack.c.b16 %v1484, %v1480
      %v1817 = vpack.c.b16 %v1485, %v1481
      %v1818 = vpack.c.b16 %v1486, %v1482
      %v1819 = vpack.c.b16 %v1487, %v1483
      %v1820 = vpack.c.b16 %v1492, %v1488
      %v1821 = vpack.c.b16 %v1493, %v1489
      %v1822 = vpack.c.b16 %v1494, %v1490
      %v1823 = vpack.c.b16 %v1495, %v1491
      %v1824 = vpack.c.b16 %v1500, %v1496
      %v1825 = vpack.c.b16 %v1501, %v1497
      %v1826 = vpack.c.b16 %v1502, %v1498
      %v1827 = vpack.c.b16 %v1503, %v1499
      %v1828 = vpack.c.b16 %v1508, %v1504
      %v1829 = vpack.c.b16 %v1509, %v1505
      %v1830 = vpack.c.b16 %v1510, %v1506
      %v1831 = vpack.c.b16 %v1511, %v1507
      %v1832 = vpack.c.b16 %v1516, %v1512
      %v1833 = vpack.c.b16 %v1517, %v1513
      %v1834 = vpack.c.b16 %v1518, %v1514
      %v1835 = vpack.c.b16 %v1519, %v1515
      %v1836 = vpack.c.b16 %v1524, %v1520
      %v1837 = vpack.c.b16 %v1525, %v1521
      %v1838 = vpack.c.b16 %v1526, %v1522
      %v1839 = vpack.c.b16 %v1527, %v1523
      %v1840 = vpack.c.b16 %v1532, %v1528
      %v1841 = vpack.c.b16 %v1533, %v1529
      %v1842 = vpack.c.b16 %v1534, %v1530
      %v1843 = vpack.c.b16 %v1535, %v1531
      %v1844 = vpack.c.b16 %v1540, %v1536
      %v1845 = vpack.c.b16 %v1541, %v1537
      %v1846 = vpack.c.b16 %v1542, %v1538
      %v1847 = vpack.c.b16 %v1543, %v1539
      %v1848 = vpack.c.b16 %v1548, %v1544
      %v1849 = vpack.c.b16 %v1549, %v1545
      %v1850 = vpack.c.b16 %v1550, %v1546
      %v1851 = vpack.c.b16 %v1551, %v1547
      %v1852 = vpack.c.b16 %v1556, %v1552
      %v1853 = vpack.c.b16 %v1557, %v1553
      %v1854 = vpack.c.b16 %v1558, %v1554
      %v1855 = vpack.c.b16 %v1559, %v1555
      %v1856 = vpack.c.b16 %v1564, %v1560
      %v1857 = vpack.c.b16 %v1565, %v1561
      %v1858 = vpack.c.b16 %v1566, %v1562
      %v1859 = vpack.c.b16 %v1567, %v1563
      %v1860 = vpack.c.b16 %v1572, %v1568
      %v1861 = vpack.c.b16 %v1573, %v1569
      %v1862 = vpack.c.b16 %v1574, %v1570
      %v1863 = vpack.c.b16 %v1575, %v1571
      %v1864 = vpack.c.b16 %v1580, %v1576
      %v1865 = vpack.c.b16 %v1581, %v1577
      %v1866 = vpack.c.b16 %v1582, %v1578
      %v1867 = vpack.c.b16 %v1583, %v1579
      %v1868 = vpack.c.b16 %v1588, %v1584
      %v1869 = vpack.c.b16 %v1589, %v1585
      %v1870 = vpack.c.b16 %v1590, %v1586
      %v1871 = vpack.c.b16 %v1591, %v1587
      %v1872 = vpack.c.b16 %v1596, %v1592
      %v1873 = vpack.c.b16 %v1597, %v1593
      %v1874 = vpack.c.b16 %v1598, %v1594
      %v1875 = vpack.c.b16 %v1599, %v1595
      %v1876 = vpack.c.b16 %v1604, %v1600
      %v1877 = vpack.c.b16 %v1605, %v1601
      %v1878 = vpack.c.b16 %v1606, %v1602
      %v1879 = vpack.c.b16 %v1607, %v1603
      %v1880 = vpack.c.b16 %v1612, %v1608
      %v1881 = vpack.c.b16 %v1613, %v1609
      %v1882 = vpack.c.b16 %v1614, %v1610
      %v1883 = vpack.c.b16 %v1615, %v1611
      %v1884 = vpack.c.b16 %v1620, %v1616
      %v1885 = vpack.c.b16 %v1621, %v1617
      %v1886 = vpack.c.b16 %v1622, %v1618
      %v1887 = vpack.c.b16 %v1623, %v1619
      %v1888 = vpack.c.b16 %v1628, %v1624
      %v1889 = vpack.c.b16 %v1629, %v1625
      %v1890 = vpack.c.b16 %v1630, %v1626
      %v1891 = vpack.c.b16 %v1631, %v1627
      %v1892 = vpack.c.b16 %v1636, %v1632
      %v1893 = vpack.c.b16 %v1637, %v1633
      %v1894 = vpack.c.b16 %v1638, %v1634
      %v1895 = vpack.c.b16 %v1639, %v1635
      %v1896 = vpack.c.b16 %v1644, %v1640
      %v1897 = vpack.c.b16 %v1645, %v1641
      %v1898 = vpack.c.b16 %v1646, %v1642
      %v1899 = vpack.c.b16 %v1647, %v1643
      %v1900 = vpack.c.b16 %v1652, %v1648
      %v1901 = vpack.c.b16 %v1653, %v1649
      %v1902 = vpack.c.b16 %v1654, %v1650
      %v1903 = vpack.c.b16 %v1655, %v1651
      %v1904 = vpack.c.b16 %v1660, %v1656
      %v1905 = vpack.c.b16 %v1661, %v1657
      %v1906 = vpack.c.b16 %v1662, %v1658
      %v1907 = vpack.c.b16 %v1663, %v1659
      %v1908 = vpack.c.b16 %v1668, %v1664
      %v1909 = vpack.c.b16 %v1669, %v1665
      %v1910 = vpack.c.b16 %v1670, %v1666
      %v1911 = vpack.c.b16 %v1671, %v1667
      %v1912 = vpack.c.b16 %v1676, %v1672
      %v1913 = vpack.c.b16 %v1677, %v1673
      %v1914 = vpack.c.b16 %v1678, %v1674
      %v1915 = vpack.c.b16 %v1679, %v1675
      %v1916 = vpack.c.b16 %v1684, %v1680
      %v1917 = vpack.c.b16 %v1685, %v1681
      %v1918 = vpack.c.b16 %v1686, %v1682
      %v1919 = vpack.c.b16 %v1687, %v1683
      %v1920 = vpack.c.b16 %v1692, %v1688
      %v1921 = vpack.c.b16 %v1693, %v1689
      %v1922 = vpack.c.b16 %v1694, %v1690
      %v1923 = vpack.c.b16 %v1695, %v1691
      %v1924 = vpack.c.b16 %v1700, %v1696
      %v1925 = vpack.c.b16 %v1701, %v1697
      %v1926 = vpack.c.b16 %v1702, %v1698
      %v1927 = vpack.c.b16 %v1703, %v1699
      %2152 = vmatprep.subr.bf16.mxu0 %v1733
      %2153 = vmatpush1.bf16.msra.mxu0 %v1732
      %2154 = vmatprep.subr.bf16.mxu0 %v1729
      %2155 = vmatpush1.bf16.msra.mxu0 %v1728
      %2156 = vmatprep.subr.bf16.mxu0 %v1725
      %2157 = vmatpush1.bf16.msra.mxu0 %v1724
      %2158 = vmatprep.subr.bf16.mxu0 %v1721
      %2159 = vmatpush1.bf16.msra.mxu0 %v1720
      %2160 = vmatprep.subr.bf16.mxu0 %v1717
      %2161 = vmatpush1.bf16.msra.mxu0 %v1716
      %2162 = vmatprep.subr.bf16.mxu0 %v1713
      %2163 = vmatpush1.bf16.msra.mxu0 %v1712
      %2164 = vmatprep.subr.bf16.mxu0 %v1709
      %2165 = vmatpush1.bf16.msra.mxu0 %v1708
      %2166 = vmatprep.subr.bf16.mxu0 %v1705
      %2167 = vmatpush1.bf16.msra.mxu0 %v1704
      %2168 = vmatprep.subr.bf16.mxu0 %v1765
      %2169 = vmatpush2.bf16.msra.mxu0 %v1764
      %2170 = vmatprep.subr.bf16.mxu0 %v1761
      %2171 = vmatpush2.bf16.msra.mxu0 %v1760
      %2172 = vmatprep.subr.bf16.mxu0 %v1757
      %2173 = vmatpush2.bf16.msra.mxu0 %v1756
      %2174 = vmatprep.subr.bf16.mxu0 %v1753
      %2175 = vmatpush2.bf16.msra.mxu0 %v1752
      %2176 = vmatprep.subr.bf16.mxu0 %v1749
      %2177 = vmatpush2.bf16.msra.mxu0 %v1748
      %2178 = vmatprep.subr.bf16.mxu0 %v1745
      %2179 = vmatpush2.bf16.msra.mxu0 %v1744
      %2180 = vmatprep.subr.bf16.mxu0 %v1741
      %2181 = vmatpush2.bf16.msra.mxu0 %v1740
      %2182 = vmatprep.subr.bf16.mxu0 %v1737
      %2183 = vmatpush2.bf16.msra.mxu0 %v1736
      %2184 = vmatprep.mubr.bf16.mxu0 %v921
      %2185 = vmatmul.mubr.bf16.gmra.mxu0 %v920
      %v2186 = vpop.f32.mrf.mxu0
      %v2187 = vadd.f32 %v727, %v2186
      %v2188 = vpop.f32.mrf.mxu0
      %v2189 = vadd.f32 %v731, %v2188
      %v2190 = vpop.f32.mrf.mxu0
      %v2191 = vadd.f32 %v727, %v2190
      %v2192 = vpop.f32.mrf.mxu0
      %v2193 = vadd.f32 %v731, %v2192
      %2194 = vmatprep.mubr.bf16.mxu0 %v928
      %2195 = vmatmul.mubr.bf16.gmra.mxu0 %v927
      %v2196 = vpop.f32.mrf.mxu0
      %v2197 = vadd.f32 %v727, %v2196
      %v2198 = vpop.f32.mrf.mxu0
      %v2199 = vadd.f32 %v731, %v2198
      %v2200 = vpop.f32.mrf.mxu0
      %v2201 = vadd.f32 %v727, %v2200
      %v2202 = vpop.f32.mrf.mxu0
      %v2203 = vadd.f32 %v731, %v2202
      %2204 = vmatprep.mubr.bf16.mxu0 %v935
      %2205 = vmatmul.mubr.bf16.gmra.mxu0 %v934
      %v2206 = vpop.f32.mrf.mxu0
      %v2207 = vadd.f32 %v727, %v2206
      %v2208 = vpop.f32.mrf.mxu0
      %v2209 = vadd.f32 %v731, %v2208
      %v2210 = vpop.f32.mrf.mxu0
      %v2211 = vadd.f32 %v727, %v2210
      %v2212 = vpop.f32.mrf.mxu0
      %v2213 = vadd.f32 %v731, %v2212
      %2214 = vmatprep.mubr.bf16.mxu0 %v942
      %2215 = vmatmul.mubr.bf16.gmra.mxu0 %v941
      %v2216 = vpop.f32.mrf.mxu0
      %v2217 = vadd.f32 %v727, %v2216
      %v2218 = vpop.f32.mrf.mxu0
      %v2219 = vadd.f32 %v731, %v2218
      %v2220 = vpop.f32.mrf.mxu0
      %v2221 = vadd.f32 %v727, %v2220
      %v2222 = vpop.f32.mrf.mxu0
      %v2223 = vadd.f32 %v731, %v2222
      %2224 = vmatprep.mubr.bf16.mxu0 %v949
      %2225 = vmatmul.mubr.bf16.gmra.mxu0 %v948
      %v2226 = vpop.f32.mrf.mxu0
      %v2227 = vadd.f32 %v727, %v2226
      %v2228 = vpop.f32.mrf.mxu0
      %v2229 = vadd.f32 %v731, %v2228
      %v2230 = vpop.f32.mrf.mxu0
      %v2231 = vadd.f32 %v727, %v2230
      %v2232 = vpop.f32.mrf.mxu0
      %v2233 = vadd.f32 %v731, %v2232
      %2234 = vmatprep.mubr.bf16.mxu0 %v956
      %2235 = vmatmul.mubr.bf16.gmra.mxu0 %v955
      %v2236 = vpop.f32.mrf.mxu0
      %v2237 = vadd.f32 %v727, %v2236
      %v2238 = vpop.f32.mrf.mxu0
      %v2239 = vadd.f32 %v731, %v2238
      %v2240 = vpop.f32.mrf.mxu0
      %v2241 = vadd.f32 %v727, %v2240
      %v2242 = vpop.f32.mrf.mxu0
      %v2243 = vadd.f32 %v731, %v2242
      %2244 = vmatprep.mubr.bf16.mxu0 %v963
      %2245 = vmatmul.mubr.bf16.gmra.mxu0 %v962
      %v2246 = vpop.f32.mrf.mxu0
      %v2247 = vadd.f32 %v727, %v2246
      %v2248 = vpop.f32.mrf.mxu0
      %v2249 = vadd.f32 %v731, %v2248
      %v2250 = vpop.f32.mrf.mxu0
      %v2251 = vadd.f32 %v727, %v2250
      %v2252 = vpop.f32.mrf.mxu0
      %v2253 = vadd.f32 %v731, %v2252
      %2254 = vmatprep.mubr.bf16.mxu0 %v970
      %2255 = vmatmul.mubr.bf16.gmra.mxu0 %v969
      %v2256 = vpop.f32.mrf.mxu0
      %v2257 = vadd.f32 %v727, %v2256
      %v2258 = vpop.f32.mrf.mxu0
      %v2259 = vadd.f32 %v731, %v2258
      %v2260 = vpop.f32.mrf.mxu0
      %v2261 = vadd.f32 %v727, %v2260
      %v2262 = vpop.f32.mrf.mxu0
      %v2263 = vadd.f32 %v731, %v2262
      %2264 = vdwg.mxu0
      %2265 = vmatprep.subr.bf16.mxu0 %v1797
      %2266 = vmatpush1.bf16.msra.mxu0 %v1796
      %2267 = vmatprep.subr.bf16.mxu0 %v1793
      %2268 = vmatpush1.bf16.msra.mxu0 %v1792
      %2269 = vmatprep.subr.bf16.mxu0 %v1789
      %2270 = vmatpush1.bf16.msra.mxu0 %v1788
      %2271 = vmatprep.subr.bf16.mxu0 %v1785
      %2272 = vmatpush1.bf16.msra.mxu0 %v1784
      %2273 = vmatprep.subr.bf16.mxu0 %v1781
      %2274 = vmatpush1.bf16.msra.mxu0 %v1780
      %2275 = vmatprep.subr.bf16.mxu0 %v1777
      %2276 = vmatpush1.bf16.msra.mxu0 %v1776
      %2277 = vmatprep.subr.bf16.mxu0 %v1773
      %2278 = vmatpush1.bf16.msra.mxu0 %v1772
      %2279 = vmatprep.subr.bf16.mxu0 %v1769
      %2280 = vmatpush1.bf16.msra.mxu0 %v1768
      %2281 = vmatprep.subr.bf16.mxu0 %v1829
      %2282 = vmatpush2.bf16.msra.mxu0 %v1828
      %2283 = vmatprep.subr.bf16.mxu0 %v1825
      %2284 = vmatpush2.bf16.msra.mxu0 %v1824
      %2285 = vmatprep.subr.bf16.mxu0 %v1821
      %2286 = vmatpush2.bf16.msra.mxu0 %v1820
      %2287 = vmatprep.subr.bf16.mxu0 %v1817
      %2288 = vmatpush2.bf16.msra.mxu0 %v1816
      %2289 = vmatprep.subr.bf16.mxu0 %v1813
      %2290 = vmatpush2.bf16.msra.mxu0 %v1812
      %2291 = vmatprep.subr.bf16.mxu0 %v1809
      %2292 = vmatpush2.bf16.msra.mxu0 %v1808
      %2293 = vmatprep.subr.bf16.mxu0 %v1805
      %2294 = vmatpush2.bf16.msra.mxu0 %v1804
      %2295 = vmatprep.subr.bf16.mxu0 %v1801
      %2296 = vmatpush2.bf16.msra.mxu0 %v1800
      %2297 = vmatprep.mubr.bf16.mxu0 %v923
      %2298 = vmatmul.mubr.bf16.gmra.mxu0 %v922
      %v2299 = vpop.f32.mrf.mxu0
      %v2300 = vadd.f32 %v2187, %v2299
      %v2301 = vpop.f32.mrf.mxu0
      %v2302 = vadd.f32 %v2189, %v2301
      %v2303 = vpop.f32.mrf.mxu0
      %v2304 = vadd.f32 %v2191, %v2303
      %v2305 = vpop.f32.mrf.mxu0
      %v2306 = vadd.f32 %v2193, %v2305
      %2307 = vmatprep.mubr.bf16.mxu0 %v930
      %2308 = vmatmul.mubr.bf16.gmra.mxu0 %v929
      %v2309 = vpop.f32.mrf.mxu0
      %v2310 = vadd.f32 %v2197, %v2309
      %v2311 = vpop.f32.mrf.mxu0
      %v2312 = vadd.f32 %v2199, %v2311
      %v2313 = vpop.f32.mrf.mxu0
      %v2314 = vadd.f32 %v2201, %v2313
      %v2315 = vpop.f32.mrf.mxu0
      %v2316 = vadd.f32 %v2203, %v2315
      %2317 = vmatprep.mubr.bf16.mxu0 %v937
      %2318 = vmatmul.mubr.bf16.gmra.mxu0 %v936
      %v2319 = vpop.f32.mrf.mxu0
      %v2320 = vadd.f32 %v2207, %v2319
      %v2321 = vpop.f32.mrf.mxu0
      %v2322 = vadd.f32 %v2209, %v2321
      %v2323 = vpop.f32.mrf.mxu0
      %v2324 = vadd.f32 %v2211, %v2323
      %v2325 = vpop.f32.mrf.mxu0
      %v2326 = vadd.f32 %v2213, %v2325
      %2327 = vmatprep.mubr.bf16.mxu0 %v944
      %2328 = vmatmul.mubr.bf16.gmra.mxu0 %v943
      %v2329 = vpop.f32.mrf.mxu0
      %v2330 = vadd.f32 %v2217, %v2329
      %v2331 = vpop.f32.mrf.mxu0
      %v2332 = vadd.f32 %v2219, %v2331
      %v2333 = vpop.f32.mrf.mxu0
      %v2334 = vadd.f32 %v2221, %v2333
      %v2335 = vpop.f32.mrf.mxu0
      %v2336 = vadd.f32 %v2223, %v2335
      %2337 = vmatprep.mubr.bf16.mxu0 %v951
      %2338 = vmatmul.mubr.bf16.gmra.mxu0 %v950
      %v2339 = vpop.f32.mrf.mxu0
      %v2340 = vadd.f32 %v2227, %v2339
      %v2341 = vpop.f32.mrf.mxu0
      %v2342 = vadd.f32 %v2229, %v2341
      %v2343 = vpop.f32.mrf.mxu0
      %v2344 = vadd.f32 %v2231, %v2343
      %v2345 = vpop.f32.mrf.mxu0
      %v2346 = vadd.f32 %v2233, %v2345
      %2347 = vmatprep.mubr.bf16.mxu0 %v958
      %2348 = vmatmul.mubr.bf16.gmra.mxu0 %v957
      %v2349 = vpop.f32.mrf.mxu0
      %v2350 = vadd.f32 %v2237, %v2349
      %v2351 = vpop.f32.mrf.mxu0
      %v2352 = vadd.f32 %v2239, %v2351
      %v2353 = vpop.f32.mrf.mxu0
      %v2354 = vadd.f32 %v2241, %v2353
      %v2355 = vpop.f32.mrf.mxu0
      %v2356 = vadd.f32 %v2243, %v2355
      %2357 = vmatprep.mubr.bf16.mxu0 %v965
      %2358 = vmatmul.mubr.bf16.gmra.mxu0 %v964
      %v2359 = vpop.f32.mrf.mxu0
      %v2360 = vadd.f32 %v2247, %v2359
      %v2361 = vpop.f32.mrf.mxu0
      %v2362 = vadd.f32 %v2249, %v2361
      %v2363 = vpop.f32.mrf.mxu0
      %v2364 = vadd.f32 %v2251, %v2363
      %v2365 = vpop.f32.mrf.mxu0
      %v2366 = vadd.f32 %v2253, %v2365
      %2367 = vmatprep.mubr.bf16.mxu0 %v972
      %2368 = vmatmul.mubr.bf16.gmra.mxu0 %v971
      %v2369 = vpop.f32.mrf.mxu0
      %v2370 = vadd.f32 %v2257, %v2369
      %v2371 = vpop.f32.mrf.mxu0
      %v2372 = vadd.f32 %v2259, %v2371
      %v2373 = vpop.f32.mrf.mxu0
      %v2374 = vadd.f32 %v2261, %v2373
      %v2375 = vpop.f32.mrf.mxu0
      %v2376 = vadd.f32 %v2263, %v2375
      %2377 = vdwg.mxu0
      %2378 = vmatprep.subr.bf16.mxu0 %v1861
      %2379 = vmatpush1.bf16.msra.mxu0 %v1860
      %2380 = vmatprep.subr.bf16.mxu0 %v1857
      %2381 = vmatpush1.bf16.msra.mxu0 %v1856
      %2382 = vmatprep.subr.bf16.mxu0 %v1853
      %2383 = vmatpush1.bf16.msra.mxu0 %v1852
      %2384 = vmatprep.subr.bf16.mxu0 %v1849
      %2385 = vmatpush1.bf16.msra.mxu0 %v1848
      %2386 = vmatprep.subr.bf16.mxu0 %v1845
      %2387 = vmatpush1.bf16.msra.mxu0 %v1844
      %2388 = vmatprep.subr.bf16.mxu0 %v1841
      %2389 = vmatpush1.bf16.msra.mxu0 %v1840
      %2390 = vmatprep.subr.bf16.mxu0 %v1837
      %2391 = vmatpush1.bf16.msra.mxu0 %v1836
      %2392 = vmatprep.subr.bf16.mxu0 %v1833
      %2393 = vmatpush1.bf16.msra.mxu0 %v1832
      %2394 = vmatprep.subr.bf16.mxu0 %v1893
      %2395 = vmatpush2.bf16.msra.mxu0 %v1892
      %2396 = vmatprep.subr.bf16.mxu0 %v1889
      %2397 = vmatpush2.bf16.msra.mxu0 %v1888
      %2398 = vmatprep.subr.bf16.mxu0 %v1885
      %2399 = vmatpush2.bf16.msra.mxu0 %v1884
      %2400 = vmatprep.subr.bf16.mxu0 %v1881
      %2401 = vmatpush2.bf16.msra.mxu0 %v1880
      %2402 = vmatprep.subr.bf16.mxu0 %v1877
      %2403 = vmatpush2.bf16.msra.mxu0 %v1876
      %2404 = vmatprep.subr.bf16.mxu0 %v1873
      %2405 = vmatpush2.bf16.msra.mxu0 %v1872
      %2406 = vmatprep.subr.bf16.mxu0 %v1869
      %2407 = vmatpush2.bf16.msra.mxu0 %v1868
      %2408 = vmatprep.subr.bf16.mxu0 %v1865
      %2409 = vmatpush2.bf16.msra.mxu0 %v1864
      %2410 = vmatprep.mubr.bf16.mxu0 %v925
      %2411 = vmatmul.mubr.bf16.gmra.mxu0 %v924
      %v2412 = vpop.f32.mrf.mxu0
      %v2413 = vadd.f32 %v2300, %v2412
      %v2414 = vpop.f32.mrf.mxu0
      %v2415 = vadd.f32 %v2302, %v2414
      %v2416 = vpop.f32.mrf.mxu0
      %v2417 = vadd.f32 %v2304, %v2416
      %v2418 = vpop.f32.mrf.mxu0
      %v2419 = vadd.f32 %v2306, %v2418
      %2420 = vmatprep.mubr.bf16.mxu0 %v932
      %2421 = vmatmul.mubr.bf16.gmra.mxu0 %v931
      %v2422 = vpop.f32.mrf.mxu0
      %v2423 = vadd.f32 %v2310, %v2422
      %v2424 = vpop.f32.mrf.mxu0
      %v2425 = vadd.f32 %v2312, %v2424
      %v2426 = vpop.f32.mrf.mxu0
      %v2427 = vadd.f32 %v2314, %v2426
      %v2428 = vpop.f32.mrf.mxu0
      %v2429 = vadd.f32 %v2316, %v2428
      %2430 = vmatprep.mubr.bf16.mxu0 %v939
      %2431 = vmatmul.mubr.bf16.gmra.mxu0 %v938
      %v2432 = vpop.f32.mrf.mxu0
      %v2433 = vadd.f32 %v2320, %v2432
      %v2434 = vpop.f32.mrf.mxu0
      %v2435 = vadd.f32 %v2322, %v2434
      %v2436 = vpop.f32.mrf.mxu0
      %v2437 = vadd.f32 %v2324, %v2436
      %v2438 = vpop.f32.mrf.mxu0
      %v2439 = vadd.f32 %v2326, %v2438
      %2440 = vmatprep.mubr.bf16.mxu0 %v946
      %2441 = vmatmul.mubr.bf16.gmra.mxu0 %v945
      %v2442 = vpop.f32.mrf.mxu0
      %v2443 = vadd.f32 %v2330, %v2442
      %v2444 = vpop.f32.mrf.mxu0
      %v2445 = vadd.f32 %v2332, %v2444
      %v2446 = vpop.f32.mrf.mxu0
      %v2447 = vadd.f32 %v2334, %v2446
      %v2448 = vpop.f32.mrf.mxu0
      %v2449 = vadd.f32 %v2336, %v2448
      %2450 = vmatprep.mubr.bf16.mxu0 %v953
      %2451 = vmatmul.mubr.bf16.gmra.mxu0 %v952
      %v2452 = vpop.f32.mrf.mxu0
      %v2453 = vadd.f32 %v2340, %v2452
      %v2454 = vpop.f32.mrf.mxu0
      %v2455 = vadd.f32 %v2342, %v2454
      %v2456 = vpop.f32.mrf.mxu0
      %v2457 = vadd.f32 %v2344, %v2456
      %v2458 = vpop.f32.mrf.mxu0
      %v2459 = vadd.f32 %v2346, %v2458
      %2460 = vmatprep.mubr.bf16.mxu0 %v960
      %2461 = vmatmul.mubr.bf16.gmra.mxu0 %v959
      %v2462 = vpop.f32.mrf.mxu0
      %v2463 = vadd.f32 %v2350, %v2462
      %v2464 = vpop.f32.mrf.mxu0
      %v2465 = vadd.f32 %v2352, %v2464
      %v2466 = vpop.f32.mrf.mxu0
      %v2467 = vadd.f32 %v2354, %v2466
      %v2468 = vpop.f32.mrf.mxu0
      %v2469 = vadd.f32 %v2356, %v2468
      %2470 = vmatprep.mubr.bf16.mxu0 %v967
      %2471 = vmatmul.mubr.bf16.gmra.mxu0 %v966
      %v2472 = vpop.f32.mrf.mxu0
      %v2473 = vadd.f32 %v2360, %v2472
      %v2474 = vpop.f32.mrf.mxu0
      %v2475 = vadd.f32 %v2362, %v2474
      %v2476 = vpop.f32.mrf.mxu0
      %v2477 = vadd.f32 %v2364, %v2476
      %v2478 = vpop.f32.mrf.mxu0
      %v2479 = vadd.f32 %v2366, %v2478
      %2480 = vmatprep.mubr.bf16.mxu0 %v974
      %2481 = vmatmul.mubr.bf16.gmra.mxu0 %v973
      %v2482 = vpop.f32.mrf.mxu0
      %v2483 = vadd.f32 %v2370, %v2482
      %v2484 = vpop.f32.mrf.mxu0
      %v2485 = vadd.f32 %v2372, %v2484
      %v2486 = vpop.f32.mrf.mxu0
      %v2487 = vadd.f32 %v2374, %v2486
      %v2488 = vpop.f32.mrf.mxu0
      %v2489 = vadd.f32 %v2376, %v2488
      %2490 = vdwg.mxu0
      %2491 = vmatprep.subr.bf16.mxu0 %v1925
      %2492 = vmatpush1.bf16.msra.mxu0 %v1924
      %2493 = vmatprep.subr.bf16.mxu0 %v1921
      %2494 = vmatpush1.bf16.msra.mxu0 %v1920
      %2495 = vmatprep.subr.bf16.mxu0 %v1917
      %2496 = vmatpush1.bf16.msra.mxu0 %v1916
      %2497 = vmatprep.subr.bf16.mxu0 %v1913
      %2498 = vmatpush1.bf16.msra.mxu0 %v1912
      %2499 = vmatprep.subr.bf16.mxu0 %v1909
      %2500 = vmatpush1.bf16.msra.mxu0 %v1908
      %2501 = vmatprep.subr.bf16.mxu0 %v1905
      %2502 = vmatpush1.bf16.msra.mxu0 %v1904
      %2503 = vmatprep.subr.bf16.mxu0 %v1901
      %2504 = vmatpush1.bf16.msra.mxu0 %v1900
      %2505 = vmatprep.subr.bf16.mxu0 %v1897
      %2506 = vmatpush1.bf16.msra.mxu0 %v1896
      %2507 = vmatprep.subr.bf16.mxu0 0
      %2508 = vmatpush2.bf16.msra.mxu0 0
      %2509 = vmatprep.subr.bf16.mxu0 0
      %2510 = vmatpush2.bf16.msra.mxu0 0
      %2511 = vmatprep.subr.bf16.mxu0 0
      %2512 = vmatpush2.bf16.msra.mxu0 0
      %2513 = vmatprep.subr.bf16.mxu0 0
      %2514 = vmatpush2.bf16.msra.mxu0 0
      %2515 = vmatprep.subr.bf16.mxu0 0
      %2516 = vmatpush2.bf16.msra.mxu0 0
      %2517 = vmatprep.subr.bf16.mxu0 0
      %2518 = vmatpush2.bf16.msra.mxu0 0
      %2519 = vmatprep.subr.bf16.mxu0 0
      %2520 = vmatpush2.bf16.msra.mxu0 0
      %2521 = vmatprep.subr.bf16.mxu0 0
      %2522 = vmatpush2.bf16.msra.mxu0 0
      %2523 = vmatprep.mubr.bf16.mxu0 0
      %2524 = vmatmul.mubr.bf16.gmra.mxu0 %v926
      %v2525 = vpop.f32.mrf.mxu0
      %v2526 = vadd.f32 %v2413, %v2525
      %v2527 = vpop.f32.mrf.mxu0
      %v2528 = vadd.f32 %v2415, %v2527
      %v2529 = vpop.f32.mrf.mxu0
      %v2530 = vadd.f32 %v2417, %v2529
      %v2531 = vpop.f32.mrf.mxu0
      %v2532 = vadd.f32 %v2419, %v2531
      %2533 = vmatprep.mubr.bf16.mxu0 0
      %2534 = vmatmul.mubr.bf16.gmra.mxu0 %v933
      %v2535 = vpop.f32.mrf.mxu0
      %v2536 = vadd.f32 %v2423, %v2535
      %v2537 = vpop.f32.mrf.mxu0
      %v2538 = vadd.f32 %v2425, %v2537
      %v2539 = vpop.f32.mrf.mxu0
      %v2540 = vadd.f32 %v2427, %v2539
      %v2541 = vpop.f32.mrf.mxu0
      %v2542 = vadd.f32 %v2429, %v2541
      %2543 = vmatprep.mubr.bf16.mxu0 0
      %2544 = vmatmul.mubr.bf16.gmra.mxu0 %v940
      %v2545 = vpop.f32.mrf.mxu0
      %v2546 = vadd.f32 %v2433, %v2545
      %v2547 = vpop.f32.mrf.mxu0
      %v2548 = vadd.f32 %v2435, %v2547
      %v2549 = vpop.f32.mrf.mxu0
      %v2550 = vadd.f32 %v2437, %v2549
      %v2551 = vpop.f32.mrf.mxu0
      %v2552 = vadd.f32 %v2439, %v2551
      %2553 = vmatprep.mubr.bf16.mxu0 0
      %2554 = vmatmul.mubr.bf16.gmra.mxu0 %v947
      %v2555 = vpop.f32.mrf.mxu0
      %v2556 = vadd.f32 %v2443, %v2555
      %v2557 = vpop.f32.mrf.mxu0
      %v2558 = vadd.f32 %v2445, %v2557
      %v2559 = vpop.f32.mrf.mxu0
      %v2560 = vadd.f32 %v2447, %v2559
      %v2561 = vpop.f32.mrf.mxu0
      %v2562 = vadd.f32 %v2449, %v2561
      %2563 = vmatprep.mubr.bf16.mxu0 0
      %2564 = vmatmul.mubr.bf16.gmra.mxu0 %v954
      %v2565 = vpop.f32.mrf.mxu0
      %v2566 = vadd.f32 %v2453, %v2565
      %v2567 = vpop.f32.mrf.mxu0
      %v2568 = vadd.f32 %v2455, %v2567
      %v2569 = vpop.f32.mrf.mxu0
      %v2570 = vadd.f32 %v2457, %v2569
      %v2571 = vpop.f32.mrf.mxu0
      %v2572 = vadd.f32 %v2459, %v2571
      %2573 = vmatprep.mubr.bf16.mxu0 0
      %2574 = vmatmul.mubr.bf16.gmra.mxu0 %v961
      %v2575 = vpop.f32.mrf.mxu0
      %v2576 = vadd.f32 %v2463, %v2575
      %v2577 = vpop.f32.mrf.mxu0
      %v2578 = vadd.f32 %v2465, %v2577
      %v2579 = vpop.f32.mrf.mxu0
      %v2580 = vadd.f32 %v2467, %v2579
      %v2581 = vpop.f32.mrf.mxu0
      %v2582 = vadd.f32 %v2469, %v2581
      %2583 = vmatprep.mubr.bf16.mxu0 0
      %2584 = vmatmul.mubr.bf16.gmra.mxu0 %v968
      %v2585 = vpop.f32.mrf.mxu0
      %v2586 = vadd.f32 %v2473, %v2585
      %v2587 = vpop.f32.mrf.mxu0
      %v2588 = vadd.f32 %v2475, %v2587
      %v2589 = vpop.f32.mrf.mxu0
      %v2590 = vadd.f32 %v2477, %v2589
      %v2591 = vpop.f32.mrf.mxu0
      %v2592 = vadd.f32 %v2479, %v2591
      %2593 = vmatprep.mubr.bf16.mxu0 0
      %2594 = vmatmul.mubr.bf16.gmra.mxu0 %v975
      %v2595 = vpop.f32.mrf.mxu0
      %v2596 = vadd.f32 %v2483, %v2595
      %v2597 = vpop.f32.mrf.mxu0
      %v2598 = vadd.f32 %v2485, %v2597
      %v2599 = vpop.f32.mrf.mxu0
      %v2600 = vadd.f32 %v2487, %v2599
      %v2601 = vpop.f32.mrf.mxu0
      %v2602 = vadd.f32 %v2489, %v2601
      %2603 = vdwg.mxu0
      %2604 = vmatprep.subr.bf16.mxu0 %v1735
      %2605 = vmatpush1.bf16.msra.mxu0 %v1734
      %2606 = vmatprep.subr.bf16.mxu0 %v1731
      %2607 = vmatpush1.bf16.msra.mxu0 %v1730
      %2608 = vmatprep.subr.bf16.mxu0 %v1727
      %2609 = vmatpush1.bf16.msra.mxu0 %v1726
      %2610 = vmatprep.subr.bf16.mxu0 %v1723
      %2611 = vmatpush1.bf16.msra.mxu0 %v1722
      %2612 = vmatprep.subr.bf16.mxu0 %v1719
      %2613 = vmatpush1.bf16.msra.mxu0 %v1718
      %2614 = vmatprep.subr.bf16.mxu0 %v1715
      %2615 = vmatpush1.bf16.msra.mxu0 %v1714
      %2616 = vmatprep.subr.bf16.mxu0 %v1711
      %2617 = vmatpush1.bf16.msra.mxu0 %v1710
      %2618 = vmatprep.subr.bf16.mxu0 %v1707
      %2619 = vmatpush1.bf16.msra.mxu0 %v1706
      %2620 = vmatprep.subr.bf16.mxu0 %v1767
      %2621 = vmatpush2.bf16.msra.mxu0 %v1766
      %2622 = vmatprep.subr.bf16.mxu0 %v1763
      %2623 = vmatpush2.bf16.msra.mxu0 %v1762
      %2624 = vmatprep.subr.bf16.mxu0 %v1759
      %2625 = vmatpush2.bf16.msra.mxu0 %v1758
      %2626 = vmatprep.subr.bf16.mxu0 %v1755
      %2627 = vmatpush2.bf16.msra.mxu0 %v1754
      %2628 = vmatprep.subr.bf16.mxu0 %v1751
      %2629 = vmatpush2.bf16.msra.mxu0 %v1750
      %2630 = vmatprep.subr.bf16.mxu0 %v1747
      %2631 = vmatpush2.bf16.msra.mxu0 %v1746
      %2632 = vmatprep.subr.bf16.mxu0 %v1743
      %2633 = vmatpush2.bf16.msra.mxu0 %v1742
      %2634 = vmatprep.subr.bf16.mxu0 %v1739
      %2635 = vmatpush2.bf16.msra.mxu0 %v1738
      %2636 = vmatprep.mubr.bf16.mxu0 %v921
      %2637 = vmatmul.mubr.bf16.gmra.mxu0 %v920
      %v2638 = vpop.f32.mrf.mxu0
      %v2639 = vadd.f32 %v735, %v2638
      %v2640 = vpop.f32.mrf.mxu0
      %v2641 = vadd.f32 %v739, %v2640
      %v2642 = vpop.f32.mrf.mxu0
      %v2643 = vadd.f32 %v735, %v2642
      %v2644 = vpop.f32.mrf.mxu0
      %v2645 = vadd.f32 %v739, %v2644
      %2646 = vmatprep.mubr.bf16.mxu0 %v928
      %2647 = vmatmul.mubr.bf16.gmra.mxu0 %v927
      %v2648 = vpop.f32.mrf.mxu0
      %v2649 = vadd.f32 %v735, %v2648
      %v2650 = vpop.f32.mrf.mxu0
      %v2651 = vadd.f32 %v739, %v2650
      %v2652 = vpop.f32.mrf.mxu0
      %v2653 = vadd.f32 %v735, %v2652
      %v2654 = vpop.f32.mrf.mxu0
      %v2655 = vadd.f32 %v739, %v2654
      %2656 = vmatprep.mubr.bf16.mxu0 %v935
      %2657 = vmatmul.mubr.bf16.gmra.mxu0 %v934
      %v2658 = vpop.f32.mrf.mxu0
      %v2659 = vadd.f32 %v735, %v2658
      %v2660 = vpop.f32.mrf.mxu0
      %v2661 = vadd.f32 %v739, %v2660
      %v2662 = vpop.f32.mrf.mxu0
      %v2663 = vadd.f32 %v735, %v2662
      %v2664 = vpop.f32.mrf.mxu0
      %v2665 = vadd.f32 %v739, %v2664
      %2666 = vmatprep.mubr.bf16.mxu0 %v942
      %2667 = vmatmul.mubr.bf16.gmra.mxu0 %v941
      %v2668 = vpop.f32.mrf.mxu0
      %v2669 = vadd.f32 %v735, %v2668
      %v2670 = vpop.f32.mrf.mxu0
      %v2671 = vadd.f32 %v739, %v2670
      %v2672 = vpop.f32.mrf.mxu0
      %v2673 = vadd.f32 %v735, %v2672
      %v2674 = vpop.f32.mrf.mxu0
      %v2675 = vadd.f32 %v739, %v2674
      %2676 = vmatprep.mubr.bf16.mxu0 %v949
      %2677 = vmatmul.mubr.bf16.gmra.mxu0 %v948
      %v2678 = vpop.f32.mrf.mxu0
      %v2679 = vadd.f32 %v735, %v2678
      %v2680 = vpop.f32.mrf.mxu0
      %v2681 = vadd.f32 %v739, %v2680
      %v2682 = vpop.f32.mrf.mxu0
      %v2683 = vadd.f32 %v735, %v2682
      %v2684 = vpop.f32.mrf.mxu0
      %v2685 = vadd.f32 %v739, %v2684
      %2686 = vmatprep.mubr.bf16.mxu0 %v956
      %2687 = vmatmul.mubr.bf16.gmra.mxu0 %v955
      %v2688 = vpop.f32.mrf.mxu0
      %v2689 = vadd.f32 %v735, %v2688
      %v2690 = vpop.f32.mrf.mxu0
      %v2691 = vadd.f32 %v739, %v2690
      %v2692 = vpop.f32.mrf.mxu0
      %v2693 = vadd.f32 %v735, %v2692
      %v2694 = vpop.f32.mrf.mxu0
      %v2695 = vadd.f32 %v739, %v2694
      %2696 = vmatprep.mubr.bf16.mxu0 %v963
      %2697 = vmatmul.mubr.bf16.gmra.mxu0 %v962
      %v2698 = vpop.f32.mrf.mxu0
      %v2699 = vadd.f32 %v735, %v2698
      %v2700 = vpop.f32.mrf.mxu0
      %v2701 = vadd.f32 %v739, %v2700
      %v2702 = vpop.f32.mrf.mxu0
      %v2703 = vadd.f32 %v735, %v2702
      %v2704 = vpop.f32.mrf.mxu0
      %v2705 = vadd.f32 %v739, %v2704
      %2706 = vmatprep.mubr.bf16.mxu0 %v970
      %2707 = vmatmul.mubr.bf16.gmra.mxu0 %v969
      %v2708 = vpop.f32.mrf.mxu0
      %v2709 = vadd.f32 %v735, %v2708
      %v2710 = vpop.f32.mrf.mxu0
      %v2711 = vadd.f32 %v739, %v2710
      %v2712 = vpop.f32.mrf.mxu0
      %v2713 = vadd.f32 %v735, %v2712
      %v2714 = vpop.f32.mrf.mxu0
      %v2715 = vadd.f32 %v739, %v2714
      %2716 = vdwg.mxu0
      %2717 = vmatprep.subr.bf16.mxu0 %v1799
      %2718 = vmatpush1.bf16.msra.mxu0 %v1798
      %2719 = vmatprep.subr.bf16.mxu0 %v1795
      %2720 = vmatpush1.bf16.msra.mxu0 %v1794
      %2721 = vmatprep.subr.bf16.mxu0 %v1791
      %2722 = vmatpush1.bf16.msra.mxu0 %v1790
      %2723 = vmatprep.subr.bf16.mxu0 %v1787
      %2724 = vmatpush1.bf16.msra.mxu0 %v1786
      %2725 = vmatprep.subr.bf16.mxu0 %v1783
      %2726 = vmatpush1.bf16.msra.mxu0 %v1782
      %2727 = vmatprep.subr.bf16.mxu0 %v1779
      %2728 = vmatpush1.bf16.msra.mxu0 %v1778
      %2729 = vmatprep.subr.bf16.mxu0 %v1775
      %2730 = vmatpush1.bf16.msra.mxu0 %v1774
      %2731 = vmatprep.subr.bf16.mxu0 %v1771
      %2732 = vmatpush1.bf16.msra.mxu0 %v1770
      %2733 = vmatprep.subr.bf16.mxu0 %v1831
      %2734 = vmatpush2.bf16.msra.mxu0 %v1830
      %2735 = vmatprep.subr.bf16.mxu0 %v1827
      %2736 = vmatpush2.bf16.msra.mxu0 %v1826
      %2737 = vmatprep.subr.bf16.mxu0 %v1823
      %2738 = vmatpush2.bf16.msra.mxu0 %v1822
      %2739 = vmatprep.subr.bf16.mxu0 %v1819
      %2740 = vmatpush2.bf16.msra.mxu0 %v1818
      %2741 = vmatprep.subr.bf16.mxu0 %v1815
      %2742 = vmatpush2.bf16.msra.mxu0 %v1814
      %2743 = vmatprep.subr.bf16.mxu0 %v1811
      %2744 = vmatpush2.bf16.msra.mxu0 %v1810
      %2745 = vmatprep.subr.bf16.mxu0 %v1807
      %2746 = vmatpush2.bf16.msra.mxu0 %v1806
      %2747 = vmatprep.subr.bf16.mxu0 %v1803
      %2748 = vmatpush2.bf16.msra.mxu0 %v1802
      %2749 = vmatprep.mubr.bf16.mxu0 %v923
      %2750 = vmatmul.mubr.bf16.gmra.mxu0 %v922
      %v2751 = vpop.f32.mrf.mxu0
      %v2752 = vadd.f32 %v2639, %v2751
      %v2753 = vpop.f32.mrf.mxu0
      %v2754 = vadd.f32 %v2641, %v2753
      %v2755 = vpop.f32.mrf.mxu0
      %v2756 = vadd.f32 %v2643, %v2755
      %v2757 = vpop.f32.mrf.mxu0
      %v2758 = vadd.f32 %v2645, %v2757
      %2759 = vmatprep.mubr.bf16.mxu0 %v930
      %2760 = vmatmul.mubr.bf16.gmra.mxu0 %v929
      %v2761 = vpop.f32.mrf.mxu0
      %v2762 = vadd.f32 %v2649, %v2761
      %v2763 = vpop.f32.mrf.mxu0
      %v2764 = vadd.f32 %v2651, %v2763
      %v2765 = vpop.f32.mrf.mxu0
      %v2766 = vadd.f32 %v2653, %v2765
      %v2767 = vpop.f32.mrf.mxu0
      %v2768 = vadd.f32 %v2655, %v2767
      %2769 = vmatprep.mubr.bf16.mxu0 %v937
      %2770 = vmatmul.mubr.bf16.gmra.mxu0 %v936
      %v2771 = vpop.f32.mrf.mxu0
      %v2772 = vadd.f32 %v2659, %v2771
      %v2773 = vpop.f32.mrf.mxu0
      %v2774 = vadd.f32 %v2661, %v2773
      %v2775 = vpop.f32.mrf.mxu0
      %v2776 = vadd.f32 %v2663, %v2775
      %v2777 = vpop.f32.mrf.mxu0
      %v2778 = vadd.f32 %v2665, %v2777
      %2779 = vmatprep.mubr.bf16.mxu0 %v944
      %2780 = vmatmul.mubr.bf16.gmra.mxu0 %v943
      %v2781 = vpop.f32.mrf.mxu0
      %v2782 = vadd.f32 %v2669, %v2781
      %v2783 = vpop.f32.mrf.mxu0
      %v2784 = vadd.f32 %v2671, %v2783
      %v2785 = vpop.f32.mrf.mxu0
      %v2786 = vadd.f32 %v2673, %v2785
      %v2787 = vpop.f32.mrf.mxu0
      %v2788 = vadd.f32 %v2675, %v2787
      %2789 = vmatprep.mubr.bf16.mxu0 %v951
      %2790 = vmatmul.mubr.bf16.gmra.mxu0 %v950
      %v2791 = vpop.f32.mrf.mxu0
      %v2792 = vadd.f32 %v2679, %v2791
      %v2793 = vpop.f32.mrf.mxu0
      %v2794 = vadd.f32 %v2681, %v2793
      %v2795 = vpop.f32.mrf.mxu0
      %v2796 = vadd.f32 %v2683, %v2795
      %v2797 = vpop.f32.mrf.mxu0
      %v2798 = vadd.f32 %v2685, %v2797
      %2799 = vmatprep.mubr.bf16.mxu0 %v958
      %2800 = vmatmul.mubr.bf16.gmra.mxu0 %v957
      %v2801 = vpop.f32.mrf.mxu0
      %v2802 = vadd.f32 %v2689, %v2801
      %v2803 = vpop.f32.mrf.mxu0
      %v2804 = vadd.f32 %v2691, %v2803
      %v2805 = vpop.f32.mrf.mxu0
      %v2806 = vadd.f32 %v2693, %v2805
      %v2807 = vpop.f32.mrf.mxu0
      %v2808 = vadd.f32 %v2695, %v2807
      %2809 = vmatprep.mubr.bf16.mxu0 %v965
      %2810 = vmatmul.mubr.bf16.gmra.mxu0 %v964
      %v2811 = vpop.f32.mrf.mxu0
      %v2812 = vadd.f32 %v2699, %v2811
      %v2813 = vpop.f32.mrf.mxu0
      %v2814 = vadd.f32 %v2701, %v2813
      %v2815 = vpop.f32.mrf.mxu0
      %v2816 = vadd.f32 %v2703, %v2815
      %v2817 = vpop.f32.mrf.mxu0
      %v2818 = vadd.f32 %v2705, %v2817
      %2819 = vmatprep.mubr.bf16.mxu0 %v972
      %2820 = vmatmul.mubr.bf16.gmra.mxu0 %v971
      %v2821 = vpop.f32.mrf.mxu0
      %v2822 = vadd.f32 %v2709, %v2821
      %v2823 = vpop.f32.mrf.mxu0
      %v2824 = vadd.f32 %v2711, %v2823
      %v2825 = vpop.f32.mrf.mxu0
      %v2826 = vadd.f32 %v2713, %v2825
      %v2827 = vpop.f32.mrf.mxu0
      %v2828 = vadd.f32 %v2715, %v2827
      %2829 = vdwg.mxu0
      %2830 = vmatprep.subr.bf16.mxu0 %v1863
      %2831 = vmatpush1.bf16.msra.mxu0 %v1862
      %2832 = vmatprep.subr.bf16.mxu0 %v1859
      %2833 = vmatpush1.bf16.msra.mxu0 %v1858
      %2834 = vmatprep.subr.bf16.mxu0 %v1855
      %2835 = vmatpush1.bf16.msra.mxu0 %v1854
      %2836 = vmatprep.subr.bf16.mxu0 %v1851
      %2837 = vmatpush1.bf16.msra.mxu0 %v1850
      %2838 = vmatprep.subr.bf16.mxu0 %v1847
      %2839 = vmatpush1.bf16.msra.mxu0 %v1846
      %2840 = vmatprep.subr.bf16.mxu0 %v1843
      %2841 = vmatpush1.bf16.msra.mxu0 %v1842
      %2842 = vmatprep.subr.bf16.mxu0 %v1839
      %2843 = vmatpush1.bf16.msra.mxu0 %v1838
      %2844 = vmatprep.subr.bf16.mxu0 %v1835
      %2845 = vmatpush1.bf16.msra.mxu0 %v1834
      %2846 = vmatprep.subr.bf16.mxu0 %v1895
      %2847 = vmatpush2.bf16.msra.mxu0 %v1894
      %2848 = vmatprep.subr.bf16.mxu0 %v1891
      %2849 = vmatpush2.bf16.msra.mxu0 %v1890
      %2850 = vmatprep.subr.bf16.mxu0 %v1887
      %2851 = vmatpush2.bf16.msra.mxu0 %v1886
      %2852 = vmatprep.subr.bf16.mxu0 %v1883
      %2853 = vmatpush2.bf16.msra.mxu0 %v1882
      %2854 = vmatprep.subr.bf16.mxu0 %v1879
      %2855 = vmatpush2.bf16.msra.mxu0 %v1878
      %2856 = vmatprep.subr.bf16.mxu0 %v1875
      %2857 = vmatpush2.bf16.msra.mxu0 %v1874
      %2858 = vmatprep.subr.bf16.mxu0 %v1871
      %2859 = vmatpush2.bf16.msra.mxu0 %v1870
      %2860 = vmatprep.subr.bf16.mxu0 %v1867
      %2861 = vmatpush2.bf16.msra.mxu0 %v1866
      %2862 = vmatprep.mubr.bf16.mxu0 %v925
      %2863 = vmatmul.mubr.bf16.gmra.mxu0 %v924
      %v2864 = vpop.f32.mrf.mxu0
      %v2865 = vadd.f32 %v2752, %v2864
      %v2866 = vpop.f32.mrf.mxu0
      %v2867 = vadd.f32 %v2754, %v2866
      %v2868 = vpop.f32.mrf.mxu0
      %v2869 = vadd.f32 %v2756, %v2868
      %v2870 = vpop.f32.mrf.mxu0
      %v2871 = vadd.f32 %v2758, %v2870
      %2872 = vmatprep.mubr.bf16.mxu0 %v932
      %2873 = vmatmul.mubr.bf16.gmra.mxu0 %v931
      %v2874 = vpop.f32.mrf.mxu0
      %v2875 = vadd.f32 %v2762, %v2874
      %v2876 = vpop.f32.mrf.mxu0
      %v2877 = vadd.f32 %v2764, %v2876
      %v2878 = vpop.f32.mrf.mxu0
      %v2879 = vadd.f32 %v2766, %v2878
      %v2880 = vpop.f32.mrf.mxu0
      %v2881 = vadd.f32 %v2768, %v2880
      %2882 = vmatprep.mubr.bf16.mxu0 %v939
      %2883 = vmatmul.mubr.bf16.gmra.mxu0 %v938
      %v2884 = vpop.f32.mrf.mxu0
      %v2885 = vadd.f32 %v2772, %v2884
      %v2886 = vpop.f32.mrf.mxu0
      %v2887 = vadd.f32 %v2774, %v2886
      %v2888 = vpop.f32.mrf.mxu0
      %v2889 = vadd.f32 %v2776, %v2888
      %v2890 = vpop.f32.mrf.mxu0
      %v2891 = vadd.f32 %v2778, %v2890
      %2892 = vmatprep.mubr.bf16.mxu0 %v946
      %2893 = vmatmul.mubr.bf16.gmra.mxu0 %v945
      %v2894 = vpop.f32.mrf.mxu0
      %v2895 = vadd.f32 %v2782, %v2894
      %v2896 = vpop.f32.mrf.mxu0
      %v2897 = vadd.f32 %v2784, %v2896
      %v2898 = vpop.f32.mrf.mxu0
      %v2899 = vadd.f32 %v2786, %v2898
      %v2900 = vpop.f32.mrf.mxu0
      %v2901 = vadd.f32 %v2788, %v2900
      %2902 = vmatprep.mubr.bf16.mxu0 %v953
      %2903 = vmatmul.mubr.bf16.gmra.mxu0 %v952
      %v2904 = vpop.f32.mrf.mxu0
      %v2905 = vadd.f32 %v2792, %v2904
      %v2906 = vpop.f32.mrf.mxu0
      %v2907 = vadd.f32 %v2794, %v2906
      %v2908 = vpop.f32.mrf.mxu0
      %v2909 = vadd.f32 %v2796, %v2908
      %v2910 = vpop.f32.mrf.mxu0
      %v2911 = vadd.f32 %v2798, %v2910
      %2912 = vmatprep.mubr.bf16.mxu0 %v960
      %2913 = vmatmul.mubr.bf16.gmra.mxu0 %v959
      %v2914 = vpop.f32.mrf.mxu0
      %v2915 = vadd.f32 %v2802, %v2914
      %v2916 = vpop.f32.mrf.mxu0
      %v2917 = vadd.f32 %v2804, %v2916
      %v2918 = vpop.f32.mrf.mxu0
      %v2919 = vadd.f32 %v2806, %v2918
      %v2920 = vpop.f32.mrf.mxu0
      %v2921 = vadd.f32 %v2808, %v2920
      %2922 = vmatprep.mubr.bf16.mxu0 %v967
      %2923 = vmatmul.mubr.bf16.gmra.mxu0 %v966
      %v2924 = vpop.f32.mrf.mxu0
      %v2925 = vadd.f32 %v2812, %v2924
      %v2926 = vpop.f32.mrf.mxu0
      %v2927 = vadd.f32 %v2814, %v2926
      %v2928 = vpop.f32.mrf.mxu0
      %v2929 = vadd.f32 %v2816, %v2928
      %v2930 = vpop.f32.mrf.mxu0
      %v2931 = vadd.f32 %v2818, %v2930
      %2932 = vmatprep.mubr.bf16.mxu0 %v974
      %2933 = vmatmul.mubr.bf16.gmra.mxu0 %v973
      %v2934 = vpop.f32.mrf.mxu0
      %v2935 = vadd.f32 %v2822, %v2934
      %v2936 = vpop.f32.mrf.mxu0
      %v2937 = vadd.f32 %v2824, %v2936
      %v2938 = vpop.f32.mrf.mxu0
      %v2939 = vadd.f32 %v2826, %v2938
      %v2940 = vpop.f32.mrf.mxu0
      %v2941 = vadd.f32 %v2828, %v2940
      %2942 = vdwg.mxu0
      %2943 = vmatprep.subr.bf16.mxu0 %v1927
      %2944 = vmatpush1.bf16.msra.mxu0 %v1926
      %2945 = vmatprep.subr.bf16.mxu0 %v1923
      %2946 = vmatpush1.bf16.msra.mxu0 %v1922
      %2947 = vmatprep.subr.bf16.mxu0 %v1919
      %2948 = vmatpush1.bf16.msra.mxu0 %v1918
      %2949 = vmatprep.subr.bf16.mxu0 %v1915
      %2950 = vmatpush1.bf16.msra.mxu0 %v1914
      %2951 = vmatprep.subr.bf16.mxu0 %v1911
      %2952 = vmatpush1.bf16.msra.mxu0 %v1910
      %2953 = vmatprep.subr.bf16.mxu0 %v1907
      %2954 = vmatpush1.bf16.msra.mxu0 %v1906
      %2955 = vmatprep.subr.bf16.mxu0 %v1903
      %2956 = vmatpush1.bf16.msra.mxu0 %v1902
      %2957 = vmatprep.subr.bf16.mxu0 %v1899
      %2958 = vmatpush1.bf16.msra.mxu0 %v1898
      %2959 = vmatprep.subr.bf16.mxu0 0
      %2960 = vmatpush2.bf16.msra.mxu0 0
      %2961 = vmatprep.subr.bf16.mxu0 0
      %2962 = vmatpush2.bf16.msra.mxu0 0
      %2963 = vmatprep.subr.bf16.mxu0 0
      %2964 = vmatpush2.bf16.msra.mxu0 0
      %2965 = vmatprep.subr.bf16.mxu0 0
      %2966 = vmatpush2.bf16.msra.mxu0 0
      %2967 = vmatprep.subr.bf16.mxu0 0
      %2968 = vmatpush2.bf16.msra.mxu0 0
      %2969 = vmatprep.subr.bf16.mxu0 0
      %2970 = vmatpush2.bf16.msra.mxu0 0
      %2971 = vmatprep.subr.bf16.mxu0 0
      %2972 = vmatpush2.bf16.msra.mxu0 0
      %2973 = vmatprep.subr.bf16.mxu0 0
      %2974 = vmatpush2.bf16.msra.mxu0 0
      %2975 = vmatprep.mubr.bf16.mxu0 0
      %2976 = vmatmul.mubr.bf16.gmra.mxu0 %v926
      %v2977 = vpop.f32.mrf.mxu0
      %v2978 = vadd.f32 %v2865, %v2977
      %v2979 = vpop.f32.mrf.mxu0
      %v2980 = vadd.f32 %v2867, %v2979
      %v2981 = vpop.f32.mrf.mxu0
      %v2982 = vadd.f32 %v2869, %v2981
      %v2983 = vpop.f32.mrf.mxu0
      %v2984 = vadd.f32 %v2871, %v2983
      %2985 = vmatprep.mubr.bf16.mxu0 0
      %2986 = vmatmul.mubr.bf16.gmra.mxu0 %v933
      %v2987 = vpop.f32.mrf.mxu0
      %v2988 = vadd.f32 %v2875, %v2987
      %v2989 = vpop.f32.mrf.mxu0
      %v2990 = vadd.f32 %v2877, %v2989
      %v2991 = vpop.f32.mrf.mxu0
      %v2992 = vadd.f32 %v2879, %v2991
      %v2993 = vpop.f32.mrf.mxu0
      %v2994 = vadd.f32 %v2881, %v2993
      %2995 = vmatprep.mubr.bf16.mxu0 0
      %2996 = vmatmul.mubr.bf16.gmra.mxu0 %v940
      %v2997 = vpop.f32.mrf.mxu0
      %v2998 = vadd.f32 %v2885, %v2997
      %v2999 = vpop.f32.mrf.mxu0
      %v3000 = vadd.f32 %v2887, %v2999
      %v3001 = vpop.f32.mrf.mxu0
      %v3002 = vadd.f32 %v2889, %v3001
      %v3003 = vpop.f32.mrf.mxu0
      %v3004 = vadd.f32 %v2891, %v3003
      %3005 = vmatprep.mubr.bf16.mxu0 0
      %3006 = vmatmul.mubr.bf16.gmra.mxu0 %v947
      %v3007 = vpop.f32.mrf.mxu0
      %v3008 = vadd.f32 %v2895, %v3007
      %v3009 = vpop.f32.mrf.mxu0
      %v3010 = vadd.f32 %v2897, %v3009
      %v3011 = vpop.f32.mrf.mxu0
      %v3012 = vadd.f32 %v2899, %v3011
      %v3013 = vpop.f32.mrf.mxu0
      %v3014 = vadd.f32 %v2901, %v3013
      %3015 = vmatprep.mubr.bf16.mxu0 0
      %3016 = vmatmul.mubr.bf16.gmra.mxu0 %v954
      %v3017 = vpop.f32.mrf.mxu0
      %v3018 = vadd.f32 %v2905, %v3017
      %v3019 = vpop.f32.mrf.mxu0
      %v3020 = vadd.f32 %v2907, %v3019
      %v3021 = vpop.f32.mrf.mxu0
      %v3022 = vadd.f32 %v2909, %v3021
      %v3023 = vpop.f32.mrf.mxu0
      %v3024 = vadd.f32 %v2911, %v3023
      %3025 = vmatprep.mubr.bf16.mxu0 0
      %3026 = vmatmul.mubr.bf16.gmra.mxu0 %v961
      %v3027 = vpop.f32.mrf.mxu0
      %v3028 = vadd.f32 %v2915, %v3027
      %v3029 = vpop.f32.mrf.mxu0
      %v3030 = vadd.f32 %v2917, %v3029
      %v3031 = vpop.f32.mrf.mxu0
      %v3032 = vadd.f32 %v2919, %v3031
      %v3033 = vpop.f32.mrf.mxu0
      %v3034 = vadd.f32 %v2921, %v3033
      %3035 = vmatprep.mubr.bf16.mxu0 0
      %3036 = vmatmul.mubr.bf16.gmra.mxu0 %v968
      %v3037 = vpop.f32.mrf.mxu0
      %v3038 = vadd.f32 %v2925, %v3037
      %v3039 = vpop.f32.mrf.mxu0
      %v3040 = vadd.f32 %v2927, %v3039
      %v3041 = vpop.f32.mrf.mxu0
      %v3042 = vadd.f32 %v2929, %v3041
      %v3043 = vpop.f32.mrf.mxu0
      %v3044 = vadd.f32 %v2931, %v3043
      %3045 = vmatprep.mubr.bf16.mxu0 0
      %3046 = vmatmul.mubr.bf16.gmra.mxu0 %v975
      %v3047 = vpop.f32.mrf.mxu0
      %v3048 = vadd.f32 %v2935, %v3047
      %v3049 = vpop.f32.mrf.mxu0
      %v3050 = vadd.f32 %v2937, %v3049
      %v3051 = vpop.f32.mrf.mxu0
      %v3052 = vadd.f32 %v2939, %v3051
      %v3053 = vpop.f32.mrf.mxu0
      %v3054 = vadd.f32 %v2941, %v3053
      %3055 = vdwg.mxu0
      %v3056 = vmax.f32 %v2526, 0.0
      %v3057 = vmax.f32 %v2528, 0.0
      %v3058 = vmax.f32 %v2978, 0.0
      %v3059 = vmax.f32 %v2980, 0.0
      %v3060 = vmax.f32 %v2530, 0.0
      %v3061 = vmax.f32 %v2532, 0.0
      %v3062 = vmax.f32 %v2982, 0.0
      %v3063 = vmax.f32 %v2984, 0.0
      %v3064 = vmax.f32 %v2536, 0.0
      %v3065 = vmax.f32 %v2538, 0.0
      %v3066 = vmax.f32 %v2988, 0.0
      %v3067 = vmax.f32 %v2990, 0.0
      %v3068 = vmax.f32 %v2540, 0.0
      %v3069 = vmax.f32 %v2542, 0.0
      %v3070 = vmax.f32 %v2992, 0.0
      %v3071 = vmax.f32 %v2994, 0.0
      %v3072 = vmax.f32 %v2546, 0.0
      %v3073 = vmax.f32 %v2548, 0.0
      %v3074 = vmax.f32 %v2998, 0.0
      %v3075 = vmax.f32 %v3000, 0.0
      %v3076 = vmax.f32 %v2550, 0.0
      %v3077 = vmax.f32 %v2552, 0.0
      %v3078 = vmax.f32 %v3002, 0.0
      %v3079 = vmax.f32 %v3004, 0.0
      %v3080 = vmax.f32 %v2556, 0.0
      %v3081 = vmax.f32 %v2558, 0.0
      %v3082 = vmax.f32 %v3008, 0.0
      %v3083 = vmax.f32 %v3010, 0.0
      %v3084 = vmax.f32 %v2560, 0.0
      %v3085 = vmax.f32 %v2562, 0.0
      %v3086 = vmax.f32 %v3012, 0.0
      %v3087 = vmax.f32 %v3014, 0.0
      %v3088 = vmax.f32 %v2566, 0.0
      %v3089 = vmax.f32 %v2568, 0.0
      %v3090 = vmax.f32 %v3018, 0.0
      %v3091 = vmax.f32 %v3020, 0.0
      %v3092 = vmax.f32 %v2570, 0.0
      %v3093 = vmax.f32 %v2572, 0.0
      %v3094 = vmax.f32 %v3022, 0.0
      %v3095 = vmax.f32 %v3024, 0.0
      %v3096 = vmax.f32 %v2576, 0.0
      %v3097 = vmax.f32 %v2578, 0.0
      %v3098 = vmax.f32 %v3028, 0.0
      %v3099 = vmax.f32 %v3030, 0.0
      %v3100 = vmax.f32 %v2580, 0.0
      %v3101 = vmax.f32 %v2582, 0.0
      %v3102 = vmax.f32 %v3032, 0.0
      %v3103 = vmax.f32 %v3034, 0.0
      %v3104 = vmax.f32 %v2586, 0.0
      %v3105 = vmax.f32 %v2588, 0.0
      %v3106 = vmax.f32 %v3038, 0.0
      %v3107 = vmax.f32 %v3040, 0.0
      %v3108 = vmax.f32 %v2590, 0.0
      %v3109 = vmax.f32 %v2592, 0.0
      %v3110 = vmax.f32 %v3042, 0.0
      %v3111 = vmax.f32 %v3044, 0.0
      %v3112 = vmax.f32 %v2596, 0.0
      %v3113 = vmax.f32 %v2598, 0.0
      %v3114 = vmax.f32 %v3048, 0.0
      %v3115 = vmax.f32 %v3050, 0.0
      %v3116 = vmax.f32 %v2600, 0.0
      %v3117 = vmax.f32 %v2602, 0.0
      %v3118 = vmax.f32 %v3052, 0.0
      %v3119 = vmax.f32 %v3054, 0.0
      %v3120 = vpack.c.bf16 %v3060, %v3056
      %v3121 = vpack.c.bf16 %v3061, %v3057
      %v3122 = vpack.c.bf16 %v3062, %v3058
      %v3123 = vpack.c.bf16 %v3063, %v3059
      %v3124 = vpack.c.bf16 %v3068, %v3064
      %v3125 = vpack.c.bf16 %v3069, %v3065
      %v3126 = vpack.c.bf16 %v3070, %v3066
      %v3127 = vpack.c.bf16 %v3071, %v3067
      %v3128 = vpack.c.bf16 %v3076, %v3072
      %v3129 = vpack.c.bf16 %v3077, %v3073
      %v3130 = vpack.c.bf16 %v3078, %v3074
      %v3131 = vpack.c.bf16 %v3079, %v3075
      %v3132 = vpack.c.bf16 %v3084, %v3080
      %v3133 = vpack.c.bf16 %v3085, %v3081
      %v3134 = vpack.c.bf16 %v3086, %v3082
      %v3135 = vpack.c.bf16 %v3087, %v3083
      %v3136 = vpack.c.bf16 %v3092, %v3088
      %v3137 = vpack.c.bf16 %v3093, %v3089
      %v3138 = vpack.c.bf16 %v3094, %v3090
      %v3139 = vpack.c.bf16 %v3095, %v3091
      %v3140 = vpack.c.bf16 %v3100, %v3096
      %v3141 = vpack.c.bf16 %v3101, %v3097
      %v3142 = vpack.c.bf16 %v3102, %v3098
      %v3143 = vpack.c.bf16 %v3103, %v3099
      %v3144 = vpack.c.bf16 %v3108, %v3104
      %v3145 = vpack.c.bf16 %v3109, %v3105
      %v3146 = vpack.c.bf16 %v3110, %v3106
      %v3147 = vpack.c.bf16 %v3111, %v3107
      %v3148 = vpack.c.bf16 %v3116, %v3112
      %v3149 = vpack.c.bf16 %v3117, %v3113
      %v3150 = vpack.c.bf16 %v3118, %v3114
      %v3151 = vpack.c.bf16 %v3119, %v3115
      %v3152 = vld [vmem:[%s4] sm:$0xff]
      %v3153 = vld [vmem:[%s4 + $0x8] sm:$0xff]
      %v3154 = vld [vmem:[%s4 + $0x10] sm:$0xff]
      %v3155 = vld [vmem:[%s4 + $0x18] sm:$0xff]
      %v3156 = vld [vmem:[%s4 + $0x20] sm:$0xff]
      %v3157 = vld [vmem:[%s4 + $0x28] sm:$0xff]
      %v3158 = vld [vmem:[%s4 + $0x30] sm:$0xff]
      %v3159 = vld [vmem:[%s4 + $0x38] sm:$0xff]
      %v3160 = vld [vmem:[%s4 + $0x40] sm:$0xff]
      %v3161 = vld [vmem:[%s4 + $0x48] sm:$0xff]
      %v3162 = vld [vmem:[%s4 + $0x50] sm:$0xff]
      %v3163 = vld [vmem:[%s4 + $0x58] sm:$0xff]
      %v3164 = vld [vmem:[%s4 + $0x60] sm:$0xff]
      %v3165 = vld [vmem:[%s4 + $0x68] sm:$0xff]
      %v3166 = vld [vmem:[%s4 + $0x70] sm:$0xff]
      %v3167 = vld [vmem:[%s4 + $0x78] sm:$0xff]
      %v3168 = vld [vmem:[%s4 + $0x80] sm:$0xff]
      %v3169 = vld [vmem:[%s4 + $0x88] sm:$0xff]
      %v3170 = vld [vmem:[%s4 + $0x90] sm:$0xff]
      %v3171 = vld [vmem:[%s4 + $0x98] sm:$0xff]
      %v3172 = vld [vmem:[%s4 + $0xa0] sm:$0xff]
      %v3173 = vld [vmem:[%s4 + $0xa8] sm:$0xff]
      %v3174 = vld [vmem:[%s4 + $0xb0] sm:$0xff]
      %v3175 = vld [vmem:[%s4 + $0xb8] sm:$0xff]
      %v3176 = vld [vmem:[%s4 + $0xc0] sm:$0xff]
      %v3177 = vld [vmem:[%s4 + $0xc8] sm:$0xff]
      %v3178 = vld [vmem:[%s4 + $0xd0] sm:$0xff]
      %v3179 = vld [vmem:[%s4 + $0xd8] sm:$0xff]
      %v3180 = vld [vmem:[%s4 + $0xe0] sm:$0xff]
      %v3181 = vld [vmem:[%s4 + $0xe8] sm:$0xff]
      %v3182 = vld [vmem:[%s4 + $0xf0] sm:$0xff]
      %v3183 = vld [vmem:[%s4 + $0xf8] sm:$0xff]
      %v3184 = vld [vmem:[%s4 + $0x100] sm:$0xff]
      %v3185 = vld [vmem:[%s4 + $0x108] sm:$0xff]
      %v3186 = vld [vmem:[%s4 + $0x110] sm:$0xff]
      %v3187 = vld [vmem:[%s4 + $0x118] sm:$0xff]
      %v3188 = vld [vmem:[%s4 + $0x120] sm:$0xff]
      %v3189 = vld [vmem:[%s4 + $0x128] sm:$0xff]
      %v3190 = vld [vmem:[%s4 + $0x130] sm:$0xff]
      %v3191 = vld [vmem:[%s4 + $0x138] sm:$0xff]
      %v3192 = vld [vmem:[%s4 + $0x140] sm:$0xff]
      %v3193 = vld [vmem:[%s4 + $0x148] sm:$0xff]
      %v3194 = vld [vmem:[%s4 + $0x150] sm:$0xff]
      %v3195 = vld [vmem:[%s4 + $0x158] sm:$0xff]
      %v3196 = vld [vmem:[%s4 + $0x160] sm:$0xff]
      %v3197 = vld [vmem:[%s4 + $0x168] sm:$0xff]
      %v3198 = vld [vmem:[%s4 + $0x170] sm:$0xff]
      %v3199 = vld [vmem:[%s4 + $0x178] sm:$0xff]
      %v3200 = vld [vmem:[%s4 + $0x180] sm:$0xff]
      %v3201 = vld [vmem:[%s4 + $0x188] sm:$0xff]
      %v3202 = vld [vmem:[%s4 + $0x190] sm:$0xff]
      %v3203 = vld [vmem:[%s4 + $0x198] sm:$0xff]
      %v3204 = vld [vmem:[%s4 + $0x1a0] sm:$0xff]
      %v3205 = vld [vmem:[%s4 + $0x1a8] sm:$0xff]
      %v3206 = vld [vmem:[%s4 + $0x1b0] sm:$0xff]
      %v3207 = vld [vmem:[%s4 + $0x1b8] sm:$0xff]
      %v3208 = vld [vmem:[%s4 + $0x1c0] sm:$0xff]
      %v3209 = vld [vmem:[%s4 + $0x1c8] sm:$0xff]
      %v3210 = vld [vmem:[%s4 + $0x1d0] sm:$0xff]
      %v3211 = vld [vmem:[%s4 + $0x1d8] sm:$0xff]
      %v3212 = vld [vmem:[%s4 + $0x1e0] sm:$0xff]
      %v3213 = vld [vmem:[%s4 + $0x1e8] sm:$0xff]
      %v3214 = vld [vmem:[%s4 + $0x1f0] sm:$0xff]
      %v3215 = vld [vmem:[%s4 + $0x1f8] sm:$0xff]
      %v3216 = vld [vmem:[%s5] sm:$0x3]
      %v3218 = vlaneseq
      %v3219 = vshrl.u32 %v3218, 7
      %v3220 = vsub.s32 0, %v3219
      %v3221 = vrot.slane %v3216, %v3220
      %v3222 = vlaneseq
      %v3223 = vshrl.u32 %v3222, 7
      %v3224 = vsub.s32 1, %v3223
      %v3225 = vrot.slane %v3216, %v3224
      %v3292 = vunpack.c.l.b16 %v3152
      %v3293 = vunpack.c.h.b16 %v3152
      %v3294 = vunpack.c.l.b16 %v3153
      %v3295 = vunpack.c.h.b16 %v3153
      %v3296 = vunpack.c.l.b16 %v3154
      %v3297 = vunpack.c.h.b16 %v3154
      %v3298 = vunpack.c.l.b16 %v3155
      %v3299 = vunpack.c.h.b16 %v3155
      %v3300 = vunpack.c.l.b16 %v3156
      %v3301 = vunpack.c.h.b16 %v3156
      %v3302 = vunpack.c.l.b16 %v3157
      %v3303 = vunpack.c.h.b16 %v3157
      %v3304 = vunpack.c.l.b16 %v3158
      %v3305 = vunpack.c.h.b16 %v3158
      %v3306 = vunpack.c.l.b16 %v3159
      %v3307 = vunpack.c.h.b16 %v3159
      %v3308 = vunpack.c.l.b16 %v3160
      %v3309 = vunpack.c.h.b16 %v3160
      %v3310 = vunpack.c.l.b16 %v3161
      %v3311 = vunpack.c.h.b16 %v3161
      %v3312 = vunpack.c.l.b16 %v3162
      %v3313 = vunpack.c.h.b16 %v3162
      %v3314 = vunpack.c.l.b16 %v3163
      %v3315 = vunpack.c.h.b16 %v3163
      %v3316 = vunpack.c.l.b16 %v3164
      %v3317 = vunpack.c.h.b16 %v3164
      %v3318 = vunpack.c.l.b16 %v3165
      %v3319 = vunpack.c.h.b16 %v3165
      %v3320 = vunpack.c.l.b16 %v3166
      %v3321 = vunpack.c.h.b16 %v3166
      %v3322 = vunpack.c.l.b16 %v3167
      %v3323 = vunpack.c.h.b16 %v3167
      %v3324 = vunpack.c.l.b16 %v3168
      %v3325 = vunpack.c.h.b16 %v3168
      %v3326 = vunpack.c.l.b16 %v3169
      %v3327 = vunpack.c.h.b16 %v3169
      %v3328 = vunpack.c.l.b16 %v3170
      %v3329 = vunpack.c.h.b16 %v3170
      %v3330 = vunpack.c.l.b16 %v3171
      %v3331 = vunpack.c.h.b16 %v3171
      %v3332 = vunpack.c.l.b16 %v3172
      %v3333 = vunpack.c.h.b16 %v3172
      %v3334 = vunpack.c.l.b16 %v3173
      %v3335 = vunpack.c.h.b16 %v3173
      %v3336 = vunpack.c.l.b16 %v3174
      %v3337 = vunpack.c.h.b16 %v3174
      %v3338 = vunpack.c.l.b16 %v3175
      %v3339 = vunpack.c.h.b16 %v3175
      %v3340 = vunpack.c.l.b16 %v3176
      %v3341 = vunpack.c.h.b16 %v3176
      %v3342 = vunpack.c.l.b16 %v3177
      %v3343 = vunpack.c.h.b16 %v3177
      %v3344 = vunpack.c.l.b16 %v3178
      %v3345 = vunpack.c.h.b16 %v3178
      %v3346 = vunpack.c.l.b16 %v3179
      %v3347 = vunpack.c.h.b16 %v3179
      %v3348 = vunpack.c.l.b16 %v3180
      %v3349 = vunpack.c.h.b16 %v3180
      %v3350 = vunpack.c.l.b16 %v3181
      %v3351 = vunpack.c.h.b16 %v3181
      %v3352 = vunpack.c.l.b16 %v3182
      %v3353 = vunpack.c.h.b16 %v3182
      %v3354 = vunpack.c.l.b16 %v3183
      %v3355 = vunpack.c.h.b16 %v3183
      %v3356 = vunpack.c.l.b16 %v3184
      %v3357 = vunpack.c.h.b16 %v3184
      %v3358 = vunpack.c.l.b16 %v3185
      %v3359 = vunpack.c.h.b16 %v3185
      %v3360 = vunpack.c.l.b16 %v3186
      %v3361 = vunpack.c.h.b16 %v3186
      %v3362 = vunpack.c.l.b16 %v3187
      %v3363 = vunpack.c.h.b16 %v3187
      %v3364 = vunpack.c.l.b16 %v3188
      %v3365 = vunpack.c.h.b16 %v3188
      %v3366 = vunpack.c.l.b16 %v3189
      %v3367 = vunpack.c.h.b16 %v3189
      %v3368 = vunpack.c.l.b16 %v3190
      %v3369 = vunpack.c.h.b16 %v3190
      %v3370 = vunpack.c.l.b16 %v3191
      %v3371 = vunpack.c.h.b16 %v3191
      %v3372 = vunpack.c.l.b16 %v3192
      %v3373 = vunpack.c.h.b16 %v3192
      %v3374 = vunpack.c.l.b16 %v3193
      %v3375 = vunpack.c.h.b16 %v3193
      %v3376 = vunpack.c.l.b16 %v3194
      %v3377 = vunpack.c.h.b16 %v3194
      %v3378 = vunpack.c.l.b16 %v3195
      %v3379 = vunpack.c.h.b16 %v3195
      %v3380 = vunpack.c.l.b16 %v3196
      %v3381 = vunpack.c.h.b16 %v3196
      %v3382 = vunpack.c.l.b16 %v3197
      %v3383 = vunpack.c.h.b16 %v3197
      %v3384 = vunpack.c.l.b16 %v3198
      %v3385 = vunpack.c.h.b16 %v3198
      %v3386 = vunpack.c.l.b16 %v3199
      %v3387 = vunpack.c.h.b16 %v3199
      %v3388 = vunpack.c.l.b16 %v3200
      %v3389 = vunpack.c.h.b16 %v3200
      %v3390 = vunpack.c.l.b16 %v3201
      %v3391 = vunpack.c.h.b16 %v3201
      %v3392 = vunpack.c.l.b16 %v3202
      %v3393 = vunpack.c.h.b16 %v3202
      %v3394 = vunpack.c.l.b16 %v3203
      %v3395 = vunpack.c.h.b16 %v3203
      %v3396 = vunpack.c.l.b16 %v3204
      %v3397 = vunpack.c.h.b16 %v3204
      %v3398 = vunpack.c.l.b16 %v3205
      %v3399 = vunpack.c.h.b16 %v3205
      %v3400 = vunpack.c.l.b16 %v3206
      %v3401 = vunpack.c.h.b16 %v3206
      %v3402 = vunpack.c.l.b16 %v3207
      %v3403 = vunpack.c.h.b16 %v3207
      %v3404 = vunpack.c.l.b16 %v3208
      %v3405 = vunpack.c.h.b16 %v3208
      %v3406 = vunpack.c.l.b16 %v3209
      %v3407 = vunpack.c.h.b16 %v3209
      %v3408 = vunpack.c.l.b16 %v3210
      %v3409 = vunpack.c.h.b16 %v3210
      %v3410 = vunpack.c.l.b16 %v3211
      %v3411 = vunpack.c.h.b16 %v3211
      %v3412 = vunpack.c.l.b16 %v3212
      %v3413 = vunpack.c.h.b16 %v3212
      %v3414 = vunpack.c.l.b16 %v3213
      %v3415 = vunpack.c.h.b16 %v3213
      %v3416 = vunpack.c.l.b16 %v3214
      %v3417 = vunpack.c.h.b16 %v3214
      %v3418 = vunpack.c.l.b16 %v3215
      %v3419 = vunpack.c.h.b16 %v3215
      %v3420 = vpack.c.b16 %v3294, %v3292
      %v3421 = vpack.c.b16 %v3295, %v3293
      %v3422 = vpack.c.b16 %v3298, %v3296
      %v3423 = vpack.c.b16 %v3299, %v3297
      %v3424 = vpack.c.b16 %v3302, %v3300
      %v3425 = vpack.c.b16 %v3303, %v3301
      %v3426 = vpack.c.b16 %v3306, %v3304
      %v3427 = vpack.c.b16 %v3307, %v3305
      %v3428 = vpack.c.b16 %v3310, %v3308
      %v3429 = vpack.c.b16 %v3311, %v3309
      %v3430 = vpack.c.b16 %v3314, %v3312
      %v3431 = vpack.c.b16 %v3315, %v3313
      %v3432 = vpack.c.b16 %v3318, %v3316
      %v3433 = vpack.c.b16 %v3319, %v3317
      %v3434 = vpack.c.b16 %v3322, %v3320
      %v3435 = vpack.c.b16 %v3323, %v3321
      %v3436 = vpack.c.b16 %v3326, %v3324
      %v3437 = vpack.c.b16 %v3327, %v3325
      %v3438 = vpack.c.b16 %v3330, %v3328
      %v3439 = vpack.c.b16 %v3331, %v3329
      %v3440 = vpack.c.b16 %v3334, %v3332
      %v3441 = vpack.c.b16 %v3335, %v3333
      %v3442 = vpack.c.b16 %v3338, %v3336
      %v3443 = vpack.c.b16 %v3339, %v3337
      %v3444 = vpack.c.b16 %v3342, %v3340
      %v3445 = vpack.c.b16 %v3343, %v3341
      %v3446 = vpack.c.b16 %v3346, %v3344
      %v3447 = vpack.c.b16 %v3347, %v3345
      %v3448 = vpack.c.b16 %v3350, %v3348
      %v3449 = vpack.c.b16 %v3351, %v3349
      %v3450 = vpack.c.b16 %v3354, %v3352
      %v3451 = vpack.c.b16 %v3355, %v3353
      %v3452 = vpack.c.b16 %v3358, %v3356
      %v3453 = vpack.c.b16 %v3359, %v3357
      %v3454 = vpack.c.b16 %v3362, %v3360
      %v3455 = vpack.c.b16 %v3363, %v3361
      %v3456 = vpack.c.b16 %v3366, %v3364
      %v3457 = vpack.c.b16 %v3367, %v3365
      %v3458 = vpack.c.b16 %v3370, %v3368
      %v3459 = vpack.c.b16 %v3371, %v3369
      %v3460 = vpack.c.b16 %v3374, %v3372
      %v3461 = vpack.c.b16 %v3375, %v3373
      %v3462 = vpack.c.b16 %v3378, %v3376
      %v3463 = vpack.c.b16 %v3379, %v3377
      %v3464 = vpack.c.b16 %v3382, %v3380
      %v3465 = vpack.c.b16 %v3383, %v3381
      %v3466 = vpack.c.b16 %v3386, %v3384
      %v3467 = vpack.c.b16 %v3387, %v3385
      %v3468 = vpack.c.b16 %v3390, %v3388
      %v3469 = vpack.c.b16 %v3391, %v3389
      %v3470 = vpack.c.b16 %v3394, %v3392
      %v3471 = vpack.c.b16 %v3395, %v3393
      %v3472 = vpack.c.b16 %v3398, %v3396
      %v3473 = vpack.c.b16 %v3399, %v3397
      %v3474 = vpack.c.b16 %v3402, %v3400
      %v3475 = vpack.c.b16 %v3403, %v3401
      %v3476 = vpack.c.b16 %v3406, %v3404
      %v3477 = vpack.c.b16 %v3407, %v3405
      %v3478 = vpack.c.b16 %v3410, %v3408
      %v3479 = vpack.c.b16 %v3411, %v3409
      %v3480 = vpack.c.b16 %v3414, %v3412
      %v3481 = vpack.c.b16 %v3415, %v3413
      %v3482 = vpack.c.b16 %v3418, %v3416
      %v3483 = vpack.c.b16 %v3419, %v3417
      %3548 = vmatprep.subr.bf16.mxu0 %v3435
      %3549 = vmatpush1.bf16.msra.mxu0 %v3434
      %3550 = vmatprep.subr.bf16.mxu0 %v3433
      %3551 = vmatpush1.bf16.msra.mxu0 %v3432
      %3552 = vmatprep.subr.bf16.mxu0 %v3431
      %3553 = vmatpush1.bf16.msra.mxu0 %v3430
      %3554 = vmatprep.subr.bf16.mxu0 %v3429
      %3555 = vmatpush1.bf16.msra.mxu0 %v3428
      %3556 = vmatprep.subr.bf16.mxu0 %v3427
      %3557 = vmatpush1.bf16.msra.mxu0 %v3426
      %3558 = vmatprep.subr.bf16.mxu0 %v3425
      %3559 = vmatpush1.bf16.msra.mxu0 %v3424
      %3560 = vmatprep.subr.bf16.mxu0 %v3423
      %3561 = vmatpush1.bf16.msra.mxu0 %v3422
      %3562 = vmatprep.subr.bf16.mxu0 %v3421
      %3563 = vmatpush1.bf16.msra.mxu0 %v3420
      %3564 = vmatprep.subr.bf16.mxu0 %v3451
      %3565 = vmatpush2.bf16.msra.mxu0 %v3450
      %3566 = vmatprep.subr.bf16.mxu0 %v3449
      %3567 = vmatpush2.bf16.msra.mxu0 %v3448
      %3568 = vmatprep.subr.bf16.mxu0 %v3447
      %3569 = vmatpush2.bf16.msra.mxu0 %v3446
      %3570 = vmatprep.subr.bf16.mxu0 %v3445
      %3571 = vmatpush2.bf16.msra.mxu0 %v3444
      %3572 = vmatprep.subr.bf16.mxu0 %v3443
      %3573 = vmatpush2.bf16.msra.mxu0 %v3442
      %3574 = vmatprep.subr.bf16.mxu0 %v3441
      %3575 = vmatpush2.bf16.msra.mxu0 %v3440
      %3576 = vmatprep.subr.bf16.mxu0 %v3439
      %3577 = vmatpush2.bf16.msra.mxu0 %v3438
      %3578 = vmatprep.subr.bf16.mxu0 %v3437
      %3579 = vmatpush2.bf16.msra.mxu0 %v3436
      %3580 = vmatprep.mubr.bf16.mxu0 %v3121
      %3581 = vmatmul.mubr.bf16.gmra.mxu0 %v3120
      %v3582 = vpop.f32.mrf.mxu0
      %v3583 = vadd.f32 %v3221, %v3582
      %v3584 = vpop.f32.mrf.mxu0
      %v3585 = vadd.f32 %v3225, %v3584
      %v3586 = vpop.f32.mrf.mxu0
      %v3587 = vadd.f32 %v3221, %v3586
      %v3588 = vpop.f32.mrf.mxu0
      %v3589 = vadd.f32 %v3225, %v3588
      %3590 = vmatprep.mubr.bf16.mxu0 %v3125
      %3591 = vmatmul.mubr.bf16.gmra.mxu0 %v3124
      %v3592 = vpop.f32.mrf.mxu0
      %v3593 = vadd.f32 %v3221, %v3592
      %v3594 = vpop.f32.mrf.mxu0
      %v3595 = vadd.f32 %v3225, %v3594
      %v3596 = vpop.f32.mrf.mxu0
      %v3597 = vadd.f32 %v3221, %v3596
      %v3598 = vpop.f32.mrf.mxu0
      %v3599 = vadd.f32 %v3225, %v3598
      %3600 = vmatprep.mubr.bf16.mxu0 %v3129
      %3601 = vmatmul.mubr.bf16.gmra.mxu0 %v3128
      %v3602 = vpop.f32.mrf.mxu0
      %v3603 = vadd.f32 %v3221, %v3602
      %v3604 = vpop.f32.mrf.mxu0
      %v3605 = vadd.f32 %v3225, %v3604
      %v3606 = vpop.f32.mrf.mxu0
      %v3607 = vadd.f32 %v3221, %v3606
      %v3608 = vpop.f32.mrf.mxu0
      %v3609 = vadd.f32 %v3225, %v3608
      %3610 = vmatprep.mubr.bf16.mxu0 %v3133
      %3611 = vmatmul.mubr.bf16.gmra.mxu0 %v3132
      %v3612 = vpop.f32.mrf.mxu0
      %v3613 = vadd.f32 %v3221, %v3612
      %v3614 = vpop.f32.mrf.mxu0
      %v3615 = vadd.f32 %v3225, %v3614
      %v3616 = vpop.f32.mrf.mxu0
      %v3617 = vadd.f32 %v3221, %v3616
      %v3618 = vpop.f32.mrf.mxu0
      %v3619 = vadd.f32 %v3225, %v3618
      %3620 = vmatprep.mubr.bf16.mxu0 %v3137
      %3621 = vmatmul.mubr.bf16.gmra.mxu0 %v3136
      %v3622 = vpop.f32.mrf.mxu0
      %v3623 = vadd.f32 %v3221, %v3622
      %v3624 = vpop.f32.mrf.mxu0
      %v3625 = vadd.f32 %v3225, %v3624
      %v3626 = vpop.f32.mrf.mxu0
      %v3627 = vadd.f32 %v3221, %v3626
      %v3628 = vpop.f32.mrf.mxu0
      %v3629 = vadd.f32 %v3225, %v3628
      %3630 = vmatprep.mubr.bf16.mxu0 %v3141
      %3631 = vmatmul.mubr.bf16.gmra.mxu0 %v3140
      %v3632 = vpop.f32.mrf.mxu0
      %v3633 = vadd.f32 %v3221, %v3632
      %v3634 = vpop.f32.mrf.mxu0
      %v3635 = vadd.f32 %v3225, %v3634
      %v3636 = vpop.f32.mrf.mxu0
      %v3637 = vadd.f32 %v3221, %v3636
      %v3638 = vpop.f32.mrf.mxu0
      %v3639 = vadd.f32 %v3225, %v3638
      %3640 = vmatprep.mubr.bf16.mxu0 %v3145
      %3641 = vmatmul.mubr.bf16.gmra.mxu0 %v3144
      %v3642 = vpop.f32.mrf.mxu0
      %v3643 = vadd.f32 %v3221, %v3642
      %v3644 = vpop.f32.mrf.mxu0
      %v3645 = vadd.f32 %v3225, %v3644
      %v3646 = vpop.f32.mrf.mxu0
      %v3647 = vadd.f32 %v3221, %v3646
      %v3648 = vpop.f32.mrf.mxu0
      %v3649 = vadd.f32 %v3225, %v3648
      %3650 = vmatprep.mubr.bf16.mxu0 %v3149
      %3651 = vmatmul.mubr.bf16.gmra.mxu0 %v3148
      %v3652 = vpop.f32.mrf.mxu0
      %v3653 = vadd.f32 %v3221, %v3652
      %v3654 = vpop.f32.mrf.mxu0
      %v3655 = vadd.f32 %v3225, %v3654
      %v3656 = vpop.f32.mrf.mxu0
      %v3657 = vadd.f32 %v3221, %v3656
      %v3658 = vpop.f32.mrf.mxu0
      %v3659 = vadd.f32 %v3225, %v3658
      %3660 = vdwg.mxu0
      %3661 = vmatprep.subr.bf16.mxu0 %v3467
      %3662 = vmatpush1.bf16.msra.mxu0 %v3466
      %3663 = vmatprep.subr.bf16.mxu0 %v3465
      %3664 = vmatpush1.bf16.msra.mxu0 %v3464
      %3665 = vmatprep.subr.bf16.mxu0 %v3463
      %3666 = vmatpush1.bf16.msra.mxu0 %v3462
      %3667 = vmatprep.subr.bf16.mxu0 %v3461
      %3668 = vmatpush1.bf16.msra.mxu0 %v3460
      %3669 = vmatprep.subr.bf16.mxu0 %v3459
      %3670 = vmatpush1.bf16.msra.mxu0 %v3458
      %3671 = vmatprep.subr.bf16.mxu0 %v3457
      %3672 = vmatpush1.bf16.msra.mxu0 %v3456
      %3673 = vmatprep.subr.bf16.mxu0 %v3455
      %3674 = vmatpush1.bf16.msra.mxu0 %v3454
      %3675 = vmatprep.subr.bf16.mxu0 %v3453
      %3676 = vmatpush1.bf16.msra.mxu0 %v3452
      %3677 = vmatprep.subr.bf16.mxu0 %v3483
      %3678 = vmatpush2.bf16.msra.mxu0 %v3482
      %3679 = vmatprep.subr.bf16.mxu0 %v3481
      %3680 = vmatpush2.bf16.msra.mxu0 %v3480
      %3681 = vmatprep.subr.bf16.mxu0 %v3479
      %3682 = vmatpush2.bf16.msra.mxu0 %v3478
      %3683 = vmatprep.subr.bf16.mxu0 %v3477
      %3684 = vmatpush2.bf16.msra.mxu0 %v3476
      %3685 = vmatprep.subr.bf16.mxu0 %v3475
      %3686 = vmatpush2.bf16.msra.mxu0 %v3474
      %3687 = vmatprep.subr.bf16.mxu0 %v3473
      %3688 = vmatpush2.bf16.msra.mxu0 %v3472
      %3689 = vmatprep.subr.bf16.mxu0 %v3471
      %3690 = vmatpush2.bf16.msra.mxu0 %v3470
      %3691 = vmatprep.subr.bf16.mxu0 %v3469
      %3692 = vmatpush2.bf16.msra.mxu0 %v3468
      %3693 = vmatprep.mubr.bf16.mxu0 %v3123
      %3694 = vmatmul.mubr.bf16.gmra.mxu0 %v3122
      %v3695 = vpop.f32.mrf.mxu0
      %v3696 = vadd.f32 %v3583, %v3695
      %v3697 = vpop.f32.mrf.mxu0
      %v3698 = vadd.f32 %v3585, %v3697
      %v3699 = vpop.f32.mrf.mxu0
      %v3700 = vadd.f32 %v3587, %v3699
      %v3701 = vpop.f32.mrf.mxu0
      %v3702 = vadd.f32 %v3589, %v3701
      %3703 = vmatprep.mubr.bf16.mxu0 %v3127
      %3704 = vmatmul.mubr.bf16.gmra.mxu0 %v3126
      %v3705 = vpop.f32.mrf.mxu0
      %v3706 = vadd.f32 %v3593, %v3705
      %v3707 = vpop.f32.mrf.mxu0
      %v3708 = vadd.f32 %v3595, %v3707
      %v3709 = vpop.f32.mrf.mxu0
      %v3710 = vadd.f32 %v3597, %v3709
      %v3711 = vpop.f32.mrf.mxu0
      %v3712 = vadd.f32 %v3599, %v3711
      %3713 = vmatprep.mubr.bf16.mxu0 %v3131
      %3714 = vmatmul.mubr.bf16.gmra.mxu0 %v3130
      %v3715 = vpop.f32.mrf.mxu0
      %v3716 = vadd.f32 %v3603, %v3715
      %v3717 = vpop.f32.mrf.mxu0
      %v3718 = vadd.f32 %v3605, %v3717
      %v3719 = vpop.f32.mrf.mxu0
      %v3720 = vadd.f32 %v3607, %v3719
      %v3721 = vpop.f32.mrf.mxu0
      %v3722 = vadd.f32 %v3609, %v3721
      %3723 = vmatprep.mubr.bf16.mxu0 %v3135
      %3724 = vmatmul.mubr.bf16.gmra.mxu0 %v3134
      %v3725 = vpop.f32.mrf.mxu0
      %v3726 = vadd.f32 %v3613, %v3725
      %v3727 = vpop.f32.mrf.mxu0
      %v3728 = vadd.f32 %v3615, %v3727
      %v3729 = vpop.f32.mrf.mxu0
      %v3730 = vadd.f32 %v3617, %v3729
      %v3731 = vpop.f32.mrf.mxu0
      %v3732 = vadd.f32 %v3619, %v3731
      %3733 = vmatprep.mubr.bf16.mxu0 %v3139
      %3734 = vmatmul.mubr.bf16.gmra.mxu0 %v3138
      %v3735 = vpop.f32.mrf.mxu0
      %v3736 = vadd.f32 %v3623, %v3735
      %v3737 = vpop.f32.mrf.mxu0
      %v3738 = vadd.f32 %v3625, %v3737
      %v3739 = vpop.f32.mrf.mxu0
      %v3740 = vadd.f32 %v3627, %v3739
      %v3741 = vpop.f32.mrf.mxu0
      %v3742 = vadd.f32 %v3629, %v3741
      %3743 = vmatprep.mubr.bf16.mxu0 %v3143
      %3744 = vmatmul.mubr.bf16.gmra.mxu0 %v3142
      %v3745 = vpop.f32.mrf.mxu0
      %v3746 = vadd.f32 %v3633, %v3745
      %v3747 = vpop.f32.mrf.mxu0
      %v3748 = vadd.f32 %v3635, %v3747
      %v3749 = vpop.f32.mrf.mxu0
      %v3750 = vadd.f32 %v3637, %v3749
      %v3751 = vpop.f32.mrf.mxu0
      %v3752 = vadd.f32 %v3639, %v3751
      %3753 = vmatprep.mubr.bf16.mxu0 %v3147
      %3754 = vmatmul.mubr.bf16.gmra.mxu0 %v3146
      %v3755 = vpop.f32.mrf.mxu0
      %v3756 = vadd.f32 %v3643, %v3755
      %v3757 = vpop.f32.mrf.mxu0
      %v3758 = vadd.f32 %v3645, %v3757
      %v3759 = vpop.f32.mrf.mxu0
      %v3760 = vadd.f32 %v3647, %v3759
      %v3761 = vpop.f32.mrf.mxu0
      %v3762 = vadd.f32 %v3649, %v3761
      %3763 = vmatprep.mubr.bf16.mxu0 %v3151
      %3764 = vmatmul.mubr.bf16.gmra.mxu0 %v3150
      %v3765 = vpop.f32.mrf.mxu0
      %v3766 = vadd.f32 %v3653, %v3765
      %v3767 = vpop.f32.mrf.mxu0
      %v3768 = vadd.f32 %v3655, %v3767
      %v3769 = vpop.f32.mrf.mxu0
      %v3770 = vadd.f32 %v3657, %v3769
      %v3771 = vpop.f32.mrf.mxu0
      %v3772 = vadd.f32 %v3659, %v3771
      %3773 = vdwg.mxu0
      %v3774 = vmul.f32 %v3698, 0.5
      %v3775 = vmul.f32 %v3702, 0.5
      %v3776 = vmul.f32 %v3708, 0.5
      %v3777 = vmul.f32 %v3712, 0.5
      %v3778 = vmul.f32 %v3718, 0.5
      %v3779 = vmul.f32 %v3722, 0.5
      %v3780 = vmul.f32 %v3728, 0.5
      %v3781 = vmul.f32 %v3732, 0.5
      %v3782 = vmul.f32 %v3738, 0.5
      %v3783 = vmul.f32 %v3742, 0.5
      %v3784 = vmul.f32 %v3748, 0.5
      %v3785 = vmul.f32 %v3752, 0.5
      %v3786 = vmul.f32 %v3758, 0.5
      %v3787 = vmul.f32 %v3762, 0.5
      %v3788 = vmul.f32 %v3768, 0.5
      %v3789 = vmul.f32 %v3772, 0.5
      %v3790 = vmul.f32 %v3774, 1.442695
      %v3791 = vpow.pop %v3790
      %v3792 = vmul.f32 %v3775, 1.442695
      %v3793 = vpow.pop %v3792
      %v3794 = vmul.f32 %v3776, 1.442695
      %v3795 = vpow.pop %v3794
      %v3796 = vmul.f32 %v3777, 1.442695
      %v3797 = vpow.pop %v3796
      %v3798 = vmul.f32 %v3778, 1.442695
      %v3799 = vpow.pop %v3798
      %v3800 = vmul.f32 %v3779, 1.442695
      %v3801 = vpow.pop %v3800
      %v3802 = vmul.f32 %v3780, 1.442695
      %v3803 = vpow.pop %v3802
      %v3804 = vmul.f32 %v3781, 1.442695
      %v3805 = vpow.pop %v3804
      %v3806 = vmul.f32 %v3782, 1.442695
      %v3807 = vpow.pop %v3806
      %v3808 = vmul.f32 %v3783, 1.442695
      %v3809 = vpow.pop %v3808
      %v3810 = vmul.f32 %v3784, 1.442695
      %v3811 = vpow.pop %v3810
      %v3812 = vmul.f32 %v3785, 1.442695
      %v3813 = vpow.pop %v3812
      %v3814 = vmul.f32 %v3786, 1.442695
      %v3815 = vpow.pop %v3814
      %v3816 = vmul.f32 %v3787, 1.442695
      %v3817 = vpow.pop %v3816
      %v3818 = vmul.f32 %v3788, 1.442695
      %v3819 = vpow.pop %v3818
      %v3820 = vmul.f32 %v3789, 1.442695
      %v3821 = vpow.pop %v3820
      %v3822 = vld [vmem:[%s417] sm:$0xff]
      %v3823 = vld [vmem:[%s417 + $0x8] sm:$0xff]
      %v3824 = vld [vmem:[%s417 + $0x10] sm:$0xff]
      %v3825 = vld [vmem:[%s417 + $0x18] sm:$0xff]
      %v3826 = vld [vmem:[%s417 + $0x20] sm:$0xff]
      %v3827 = vld [vmem:[%s417 + $0x28] sm:$0xff]
      %v3828 = vld [vmem:[%s417 + $0x30] sm:$0xff]
      %v3829 = vld [vmem:[%s417 + $0x38] sm:$0xff]
      %v3830 = vld [vmem:[%s417 + $0x40] sm:$0xff]
      %v3831 = vld [vmem:[%s417 + $0x48] sm:$0xff]
      %v3832 = vld [vmem:[%s417 + $0x50] sm:$0xff]
      %v3833 = vld [vmem:[%s417 + $0x58] sm:$0xff]
      %v3834 = vld [vmem:[%s417 + $0x60] sm:$0xff]
      %v3835 = vld [vmem:[%s417 + $0x68] sm:$0xff]
      %v3836 = vld [vmem:[%s417 + $0x70] sm:$0xff]
      %v3837 = vld [vmem:[%s417 + $0x78] sm:$0xff]
      %v3838 = vmul.f32 %v3822, %v3791
      %v3839 = vmul.f32 %v3823, %v3793
      %v3840 = vmul.f32 %v3824, %v3795
      %v3841 = vmul.f32 %v3825, %v3797
      %v3842 = vmul.f32 %v3826, %v3799
      %v3843 = vmul.f32 %v3827, %v3801
      %v3844 = vmul.f32 %v3828, %v3803
      %v3845 = vmul.f32 %v3829, %v3805
      %v3846 = vmul.f32 %v3830, %v3807
      %v3847 = vmul.f32 %v3831, %v3809
      %v3848 = vmul.f32 %v3832, %v3811
      %v3849 = vmul.f32 %v3833, %v3813
      %v3850 = vmul.f32 %v3834, %v3815
      %v3851 = vmul.f32 %v3835, %v3817
      %v3852 = vmul.f32 %v3836, %v3819
      %v3853 = vmul.f32 %v3837, %v3821
      %v3854 = vadd.f32 %v3696, %v3838
      %v3855 = vadd.f32 %v3700, %v3839
      %v3856 = vadd.f32 %v3706, %v3840
      %v3857 = vadd.f32 %v3710, %v3841
      %v3858 = vadd.f32 %v3716, %v3842
      %v3859 = vadd.f32 %v3720, %v3843
      %v3860 = vadd.f32 %v3726, %v3844
      %v3861 = vadd.f32 %v3730, %v3845
      %v3862 = vadd.f32 %v3736, %v3846
      %v3863 = vadd.f32 %v3740, %v3847
      %v3864 = vadd.f32 %v3746, %v3848
      %v3865 = vadd.f32 %v3750, %v3849
      %v3866 = vadd.f32 %v3756, %v3850
      %v3867 = vadd.f32 %v3760, %v3851
      %v3868 = vadd.f32 %v3766, %v3852
      %v3869 = vadd.f32 %v3770, %v3853
      %v3870 = vpack.c.bf16 %v3855, %v3854
      %v3871 = vpack.c.bf16 %v3857, %v3856
      %v3872 = vpack.c.bf16 %v3859, %v3858
      %v3873 = vpack.c.bf16 %v3861, %v3860
      %v3874 = vpack.c.bf16 %v3863, %v3862
      %v3875 = vpack.c.bf16 %v3865, %v3864
      %v3876 = vpack.c.bf16 %v3867, %v3866
      %v3877 = vpack.c.bf16 %v3869, %v3868
      %v3878 = vld [vmem:[%s6] sm:$0xff]
      %v3879 = vld [vmem:[%s6 + $0x8] sm:$0xff]
      %v3880 = vld [vmem:[%s6 + $0x10] sm:$0xff]
      %v3881 = vld [vmem:[%s6 + $0x18] sm:$0xff]
      %v3882 = vld [vmem:[%s6 + $0x20] sm:$0xff]
      %v3883 = vld [vmem:[%s6 + $0x28] sm:$0xff]
      %v3884 = vld [vmem:[%s6 + $0x30] sm:$0xff]
      %v3885 = vld [vmem:[%s6 + $0x38] sm:$0xff]
      %v3886 = vld [vmem:[%s6 + $0x40] sm:$0xff]
      %v3887 = vld [vmem:[%s6 + $0x48] sm:$0xff]
      %v3888 = vld [vmem:[%s6 + $0x50] sm:$0xff]
      %v3889 = vld [vmem:[%s6 + $0x58] sm:$0xff]
      %v3890 = vld [vmem:[%s6 + $0x60] sm:$0xff]
      %v3891 = vld [vmem:[%s6 + $0x68] sm:$0xff]
      %v3892 = vld [vmem:[%s6 + $0x70] sm:$0xff]
      %v3893 = vld [vmem:[%s6 + $0x78] sm:$0xff]
      %v3894 = vld [vmem:[%s6 + $0x80] sm:$0xff]
      %v3895 = vld [vmem:[%s6 + $0x88] sm:$0xff]
      %v3896 = vld [vmem:[%s6 + $0x90] sm:$0xff]
      %v3897 = vld [vmem:[%s6 + $0x98] sm:$0xff]
      %v3898 = vld [vmem:[%s6 + $0xa0] sm:$0xff]
      %v3899 = vld [vmem:[%s6 + $0xa8] sm:$0xff]
      %v3900 = vld [vmem:[%s6 + $0xb0] sm:$0xff]
      %v3901 = vld [vmem:[%s6 + $0xb8] sm:$0xff]
      %v3902 = vld [vmem:[%s6 + $0xc0] sm:$0xff]
      %v3903 = vld [vmem:[%s6 + $0xc8] sm:$0xff]
      %v3904 = vld [vmem:[%s6 + $0xd0] sm:$0xff]
      %v3905 = vld [vmem:[%s6 + $0xd8] sm:$0xff]
      %v3906 = vld [vmem:[%s6 + $0xe0] sm:$0xff]
      %v3907 = vld [vmem:[%s6 + $0xe8] sm:$0xff]
      %v3908 = vld [vmem:[%s6 + $0xf0] sm:$0xff]
      %v3909 = vld [vmem:[%s6 + $0xf8] sm:$0xff]
      %v3910 = vld [vmem:[%s7] sm:$0xf]
      %v3912 = vlaneseq
      %v3913 = vshrl.u32 %v3912, 7
      %v3914 = vsub.s32 0, %v3913
      %v3915 = vrot.slane %v3910, %v3914
      %v3916 = vlaneseq
      %v3917 = vshrl.u32 %v3916, 7
      %v3918 = vsub.s32 1, %v3917
      %v3919 = vrot.slane %v3910, %v3918
      %v3920 = vlaneseq
      %v3921 = vshrl.u32 %v3920, 7
      %v3922 = vsub.s32 2, %v3921
      %v3923 = vrot.slane %v3910, %v3922
      %v3924 = vlaneseq
      %v3925 = vshrl.u32 %v3924, 7
      %v3926 = vsub.s32 3, %v3925
      %v3927 = vrot.slane %v3910, %v3926
      %v3964 = vunpack.c.l.b16 %v3878
      %v3965 = vunpack.c.h.b16 %v3878
      %v3966 = vunpack.c.l.b16 %v3879
      %v3967 = vunpack.c.h.b16 %v3879
      %v3968 = vunpack.c.l.b16 %v3880
      %v3969 = vunpack.c.h.b16 %v3880
      %v3970 = vunpack.c.l.b16 %v3881
      %v3971 = vunpack.c.h.b16 %v3881
      %v3972 = vunpack.c.l.b16 %v3882
      %v3973 = vunpack.c.h.b16 %v3882
      %v3974 = vunpack.c.l.b16 %v3883
      %v3975 = vunpack.c.h.b16 %v3883
      %v3976 = vunpack.c.l.b16 %v3884
      %v3977 = vunpack.c.h.b16 %v3884
      %v3978 = vunpack.c.l.b16 %v3885
      %v3979 = vunpack.c.h.b16 %v3885
      %v3980 = vunpack.c.l.b16 %v3886
      %v3981 = vunpack.c.h.b16 %v3886
      %v3982 = vunpack.c.l.b16 %v3887
      %v3983 = vunpack.c.h.b16 %v3887
      %v3984 = vunpack.c.l.b16 %v3888
      %v3985 = vunpack.c.h.b16 %v3888
      %v3986 = vunpack.c.l.b16 %v3889
      %v3987 = vunpack.c.h.b16 %v3889
      %v3988 = vunpack.c.l.b16 %v3890
      %v3989 = vunpack.c.h.b16 %v3890
      %v3990 = vunpack.c.l.b16 %v3891
      %v3991 = vunpack.c.h.b16 %v3891
      %v3992 = vunpack.c.l.b16 %v3892
      %v3993 = vunpack.c.h.b16 %v3892
      %v3994 = vunpack.c.l.b16 %v3893
      %v3995 = vunpack.c.h.b16 %v3893
      %v3996 = vunpack.c.l.b16 %v3894
      %v3997 = vunpack.c.h.b16 %v3894
      %v3998 = vunpack.c.l.b16 %v3895
      %v3999 = vunpack.c.h.b16 %v3895
      %v4000 = vunpack.c.l.b16 %v3896
      %v4001 = vunpack.c.h.b16 %v3896
      %v4002 = vunpack.c.l.b16 %v3897
      %v4003 = vunpack.c.h.b16 %v3897
      %v4004 = vunpack.c.l.b16 %v3898
      %v4005 = vunpack.c.h.b16 %v3898
      %v4006 = vunpack.c.l.b16 %v3899
      %v4007 = vunpack.c.h.b16 %v3899
      %v4008 = vunpack.c.l.b16 %v3900
      %v4009 = vunpack.c.h.b16 %v3900
      %v4010 = vunpack.c.l.b16 %v3901
      %v4011 = vunpack.c.h.b16 %v3901
      %v4012 = vunpack.c.l.b16 %v3902
      %v4013 = vunpack.c.h.b16 %v3902
      %v4014 = vunpack.c.l.b16 %v3903
      %v4015 = vunpack.c.h.b16 %v3903
      %v4016 = vunpack.c.l.b16 %v3904
      %v4017 = vunpack.c.h.b16 %v3904
      %v4018 = vunpack.c.l.b16 %v3905
      %v4019 = vunpack.c.h.b16 %v3905
      %v4020 = vunpack.c.l.b16 %v3906
      %v4021 = vunpack.c.h.b16 %v3906
      %v4022 = vunpack.c.l.b16 %v3907
      %v4023 = vunpack.c.h.b16 %v3907
      %v4024 = vunpack.c.l.b16 %v3908
      %v4025 = vunpack.c.h.b16 %v3908
      %v4026 = vunpack.c.l.b16 %v3909
      %v4027 = vunpack.c.h.b16 %v3909
      %v4028 = vpack.c.b16 %v3968, %v3964
      %v4029 = vpack.c.b16 %v3969, %v3965
      %v4030 = vpack.c.b16 %v3970, %v3966
      %v4031 = vpack.c.b16 %v3971, %v3967
      %v4032 = vpack.c.b16 %v3976, %v3972
      %v4033 = vpack.c.b16 %v3977, %v3973
      %v4034 = vpack.c.b16 %v3978, %v3974
      %v4035 = vpack.c.b16 %v3979, %v3975
      %v4036 = vpack.c.b16 %v3984, %v3980
      %v4037 = vpack.c.b16 %v3985, %v3981
      %v4038 = vpack.c.b16 %v3986, %v3982
      %v4039 = vpack.c.b16 %v3987, %v3983
      %v4040 = vpack.c.b16 %v3992, %v3988
      %v4041 = vpack.c.b16 %v3993, %v3989
      %v4042 = vpack.c.b16 %v3994, %v3990
      %v4043 = vpack.c.b16 %v3995, %v3991
      %v4044 = vpack.c.b16 %v4000, %v3996
      %v4045 = vpack.c.b16 %v4001, %v3997
      %v4046 = vpack.c.b16 %v4002, %v3998
      %v4047 = vpack.c.b16 %v4003, %v3999
      %v4048 = vpack.c.b16 %v4008, %v4004
      %v4049 = vpack.c.b16 %v4009, %v4005
      %v4050 = vpack.c.b16 %v4010, %v4006
      %v4051 = vpack.c.b16 %v4011, %v4007
      %v4052 = vpack.c.b16 %v4016, %v4012
      %v4053 = vpack.c.b16 %v4017, %v4013
      %v4054 = vpack.c.b16 %v4018, %v4014
      %v4055 = vpack.c.b16 %v4019, %v4015
      %v4056 = vpack.c.b16 %v4024, %v4020
      %v4057 = vpack.c.b16 %v4025, %v4021
      %v4058 = vpack.c.b16 %v4026, %v4022
      %v4059 = vpack.c.b16 %v4027, %v4023
      %4092 = vmatprep.subr.bf16.mxu0 %v4057
      %4093 = vmatpush1.bf16.msra.mxu0 %v4056
      %4094 = vmatprep.subr.bf16.mxu0 %v4053
      %4095 = vmatpush1.bf16.msra.mxu0 %v4052
      %4096 = vmatprep.subr.bf16.mxu0 %v4049
      %4097 = vmatpush1.bf16.msra.mxu0 %v4048
      %4098 = vmatprep.subr.bf16.mxu0 %v4045
      %4099 = vmatpush1.bf16.msra.mxu0 %v4044
      %4100 = vmatprep.subr.bf16.mxu0 %v4041
      %4101 = vmatpush1.bf16.msra.mxu0 %v4040
      %4102 = vmatprep.subr.bf16.mxu0 %v4037
      %4103 = vmatpush1.bf16.msra.mxu0 %v4036
      %4104 = vmatprep.subr.bf16.mxu0 %v4033
      %4105 = vmatpush1.bf16.msra.mxu0 %v4032
      %4106 = vmatprep.subr.bf16.mxu0 %v4029
      %4107 = vmatpush1.bf16.msra.mxu0 %v4028
      %4108 = vmatprep.subr.bf16.mxu0 0
      %4109 = vmatpush2.bf16.msra.mxu0 0
      %4110 = vmatprep.subr.bf16.mxu0 0
      %4111 = vmatpush2.bf16.msra.mxu0 0
      %4112 = vmatprep.subr.bf16.mxu0 0
      %4113 = vmatpush2.bf16.msra.mxu0 0
      %4114 = vmatprep.subr.bf16.mxu0 0
      %4115 = vmatpush2.bf16.msra.mxu0 0
      %4116 = vmatprep.subr.bf16.mxu0 0
      %4117 = vmatpush2.bf16.msra.mxu0 0
      %4118 = vmatprep.subr.bf16.mxu0 0
      %4119 = vmatpush2.bf16.msra.mxu0 0
      %4120 = vmatprep.subr.bf16.mxu0 0
      %4121 = vmatpush2.bf16.msra.mxu0 0
      %4122 = vmatprep.subr.bf16.mxu0 0
      %4123 = vmatpush2.bf16.msra.mxu0 0
      %4124 = vmatprep.mubr.bf16.mxu0 0
      %4125 = vmatmul.mubr.bf16.gmra.mxu0 %v3870
      %v4126 = vpop.f32.mrf.mxu0
      %v4127 = vadd.f32 %v3915, %v4126
      %v4128 = vpop.f32.mrf.mxu0
      %v4129 = vadd.f32 %v3919, %v4128
      %v4130 = vpop.f32.mrf.mxu0
      %v4131 = vadd.f32 %v3915, %v4130
      %v4132 = vpop.f32.mrf.mxu0
      %v4133 = vadd.f32 %v3919, %v4132
      %4134 = vmatprep.mubr.bf16.mxu0 0
      %4135 = vmatmul.mubr.bf16.gmra.mxu0 %v3871
      %v4136 = vpop.f32.mrf.mxu0
      %v4137 = vadd.f32 %v3915, %v4136
      %v4138 = vpop.f32.mrf.mxu0
      %v4139 = vadd.f32 %v3919, %v4138
      %v4140 = vpop.f32.mrf.mxu0
      %v4141 = vadd.f32 %v3915, %v4140
      %v4142 = vpop.f32.mrf.mxu0
      %v4143 = vadd.f32 %v3919, %v4142
      %4144 = vmatprep.mubr.bf16.mxu0 0
      %4145 = vmatmul.mubr.bf16.gmra.mxu0 %v3872
      %v4146 = vpop.f32.mrf.mxu0
      %v4147 = vadd.f32 %v3915, %v4146
      %v4148 = vpop.f32.mrf.mxu0
      %v4149 = vadd.f32 %v3919, %v4148
      %v4150 = vpop.f32.mrf.mxu0
      %v4151 = vadd.f32 %v3915, %v4150
      %v4152 = vpop.f32.mrf.mxu0
      %v4153 = vadd.f32 %v3919, %v4152
      %4154 = vmatprep.mubr.bf16.mxu0 0
      %4155 = vmatmul.mubr.bf16.gmra.mxu0 %v3873
      %v4156 = vpop.f32.mrf.mxu0
      %v4157 = vadd.f32 %v3915, %v4156
      %v4158 = vpop.f32.mrf.mxu0
      %v4159 = vadd.f32 %v3919, %v4158
      %v4160 = vpop.f32.mrf.mxu0
      %v4161 = vadd.f32 %v3915, %v4160
      %v4162 = vpop.f32.mrf.mxu0
      %v4163 = vadd.f32 %v3919, %v4162
      %4164 = vmatprep.mubr.bf16.mxu0 0
      %4165 = vmatmul.mubr.bf16.gmra.mxu0 %v3874
      %v4166 = vpop.f32.mrf.mxu0
      %v4167 = vadd.f32 %v3915, %v4166
      %v4168 = vpop.f32.mrf.mxu0
      %v4169 = vadd.f32 %v3919, %v4168
      %v4170 = vpop.f32.mrf.mxu0
      %v4171 = vadd.f32 %v3915, %v4170
      %v4172 = vpop.f32.mrf.mxu0
      %v4173 = vadd.f32 %v3919, %v4172
      %4174 = vmatprep.mubr.bf16.mxu0 0
      %4175 = vmatmul.mubr.bf16.gmra.mxu0 %v3875
      %v4176 = vpop.f32.mrf.mxu0
      %v4177 = vadd.f32 %v3915, %v4176
      %v4178 = vpop.f32.mrf.mxu0
      %v4179 = vadd.f32 %v3919, %v4178
      %v4180 = vpop.f32.mrf.mxu0
      %v4181 = vadd.f32 %v3915, %v4180
      %v4182 = vpop.f32.mrf.mxu0
      %v4183 = vadd.f32 %v3919, %v4182
      %4184 = vmatprep.mubr.bf16.mxu0 0
      %4185 = vmatmul.mubr.bf16.gmra.mxu0 %v3876
      %v4186 = vpop.f32.mrf.mxu0
      %v4187 = vadd.f32 %v3915, %v4186
      %v4188 = vpop.f32.mrf.mxu0
      %v4189 = vadd.f32 %v3919, %v4188
      %v4190 = vpop.f32.mrf.mxu0
      %v4191 = vadd.f32 %v3915, %v4190
      %v4192 = vpop.f32.mrf.mxu0
      %v4193 = vadd.f32 %v3919, %v4192
      %4194 = vmatprep.mubr.bf16.mxu0 0
      %4195 = vmatmul.mubr.bf16.gmra.mxu0 %v3877
      %v4196 = vpop.f32.mrf.mxu0
      %v4197 = vadd.f32 %v3915, %v4196
      %v4198 = vpop.f32.mrf.mxu0
      %v4199 = vadd.f32 %v3919, %v4198
      %v4200 = vpop.f32.mrf.mxu0
      %v4201 = vadd.f32 %v3915, %v4200
      %v4202 = vpop.f32.mrf.mxu0
      %v4203 = vadd.f32 %v3919, %v4202
      %4204 = vdwg.mxu0
      %4205 = vmatprep.subr.bf16.mxu0 %v4059
      %4206 = vmatpush1.bf16.msra.mxu0 %v4058
      %4207 = vmatprep.subr.bf16.mxu0 %v4055
      %4208 = vmatpush1.bf16.msra.mxu0 %v4054
      %4209 = vmatprep.subr.bf16.mxu0 %v4051
      %4210 = vmatpush1.bf16.msra.mxu0 %v4050
      %4211 = vmatprep.subr.bf16.mxu0 %v4047
      %4212 = vmatpush1.bf16.msra.mxu0 %v4046
      %4213 = vmatprep.subr.bf16.mxu0 %v4043
      %4214 = vmatpush1.bf16.msra.mxu0 %v4042
      %4215 = vmatprep.subr.bf16.mxu0 %v4039
      %4216 = vmatpush1.bf16.msra.mxu0 %v4038
      %4217 = vmatprep.subr.bf16.mxu0 %v4035
      %4218 = vmatpush1.bf16.msra.mxu0 %v4034
      %4219 = vmatprep.subr.bf16.mxu0 %v4031
      %4220 = vmatpush1.bf16.msra.mxu0 %v4030
      %4221 = vmatprep.subr.bf16.mxu0 0
      %4222 = vmatpush2.bf16.msra.mxu0 0
      %4223 = vmatprep.subr.bf16.mxu0 0
      %4224 = vmatpush2.bf16.msra.mxu0 0
      %4225 = vmatprep.subr.bf16.mxu0 0
      %4226 = vmatpush2.bf16.msra.mxu0 0
      %4227 = vmatprep.subr.bf16.mxu0 0
      %4228 = vmatpush2.bf16.msra.mxu0 0
      %4229 = vmatprep.subr.bf16.mxu0 0
      %4230 = vmatpush2.bf16.msra.mxu0 0
      %4231 = vmatprep.subr.bf16.mxu0 0
      %4232 = vmatpush2.bf16.msra.mxu0 0
      %4233 = vmatprep.subr.bf16.mxu0 0
      %4234 = vmatpush2.bf16.msra.mxu0 0
      %4235 = vmatprep.subr.bf16.mxu0 0
      %4236 = vmatpush2.bf16.msra.mxu0 0
      %4237 = vmatprep.mubr.bf16.mxu0 0
      %4238 = vmatmul.mubr.bf16.gmra.mxu0 %v3870
      %v4239 = vpop.f32.mrf.mxu0
      %v4240 = vadd.f32 %v3923, %v4239
      %v4241 = vpop.f32.mrf.mxu0
      %v4242 = vadd.f32 %v3927, %v4241
      %v4243 = vpop.f32.mrf.mxu0
      %v4244 = vadd.f32 %v3923, %v4243
      %v4245 = vpop.f32.mrf.mxu0
      %v4246 = vadd.f32 %v3927, %v4245
      %4247 = vmatprep.mubr.bf16.mxu0 0
      %4248 = vmatmul.mubr.bf16.gmra.mxu0 %v3871
      %v4249 = vpop.f32.mrf.mxu0
      %v4250 = vadd.f32 %v3923, %v4249
      %v4251 = vpop.f32.mrf.mxu0
      %v4252 = vadd.f32 %v3927, %v4251
      %v4253 = vpop.f32.mrf.mxu0
      %v4254 = vadd.f32 %v3923, %v4253
      %v4255 = vpop.f32.mrf.mxu0
      %v4256 = vadd.f32 %v3927, %v4255
      %4257 = vmatprep.mubr.bf16.mxu0 0
      %4258 = vmatmul.mubr.bf16.gmra.mxu0 %v3872
      %v4259 = vpop.f32.mrf.mxu0
      %v4260 = vadd.f32 %v3923, %v4259
      %v4261 = vpop.f32.mrf.mxu0
      %v4262 = vadd.f32 %v3927, %v4261
      %v4263 = vpop.f32.mrf.mxu0
      %v4264 = vadd.f32 %v3923, %v4263
      %v4265 = vpop.f32.mrf.mxu0
      %v4266 = vadd.f32 %v3927, %v4265
      %4267 = vmatprep.mubr.bf16.mxu0 0
      %4268 = vmatmul.mubr.bf16.gmra.mxu0 %v3873
      %v4269 = vpop.f32.mrf.mxu0
      %v4270 = vadd.f32 %v3923, %v4269
      %v4271 = vpop.f32.mrf.mxu0
      %v4272 = vadd.f32 %v3927, %v4271
      %v4273 = vpop.f32.mrf.mxu0
      %v4274 = vadd.f32 %v3923, %v4273
      %v4275 = vpop.f32.mrf.mxu0
      %v4276 = vadd.f32 %v3927, %v4275
      %4277 = vmatprep.mubr.bf16.mxu0 0
      %4278 = vmatmul.mubr.bf16.gmra.mxu0 %v3874
      %v4279 = vpop.f32.mrf.mxu0
      %v4280 = vadd.f32 %v3923, %v4279
      %v4281 = vpop.f32.mrf.mxu0
      %v4282 = vadd.f32 %v3927, %v4281
      %v4283 = vpop.f32.mrf.mxu0
      %v4284 = vadd.f32 %v3923, %v4283
      %v4285 = vpop.f32.mrf.mxu0
      %v4286 = vadd.f32 %v3927, %v4285
      %4287 = vmatprep.mubr.bf16.mxu0 0
      %4288 = vmatmul.mubr.bf16.gmra.mxu0 %v3875
      %v4289 = vpop.f32.mrf.mxu0
      %v4290 = vadd.f32 %v3923, %v4289
      %v4291 = vpop.f32.mrf.mxu0
      %v4292 = vadd.f32 %v3927, %v4291
      %v4293 = vpop.f32.mrf.mxu0
      %v4294 = vadd.f32 %v3923, %v4293
      %v4295 = vpop.f32.mrf.mxu0
      %v4296 = vadd.f32 %v3927, %v4295
      %4297 = vmatprep.mubr.bf16.mxu0 0
      %4298 = vmatmul.mubr.bf16.gmra.mxu0 %v3876
      %v4299 = vpop.f32.mrf.mxu0
      %v4300 = vadd.f32 %v3923, %v4299
      %v4301 = vpop.f32.mrf.mxu0
      %v4302 = vadd.f32 %v3927, %v4301
      %v4303 = vpop.f32.mrf.mxu0
      %v4304 = vadd.f32 %v3923, %v4303
      %v4305 = vpop.f32.mrf.mxu0
      %v4306 = vadd.f32 %v3927, %v4305
      %4307 = vmatprep.mubr.bf16.mxu0 0
      %4308 = vmatmul.mubr.bf16.gmra.mxu0 %v3877
      %v4309 = vpop.f32.mrf.mxu0
      %v4310 = vadd.f32 %v3923, %v4309
      %v4311 = vpop.f32.mrf.mxu0
      %v4312 = vadd.f32 %v3927, %v4311
      %v4313 = vpop.f32.mrf.mxu0
      %v4314 = vadd.f32 %v3923, %v4313
      %v4315 = vpop.f32.mrf.mxu0
      %v4316 = vadd.f32 %v3927, %v4315
      %4317 = vdwg.mxu0
      %v4318 = vmax.f32 %v4127, 0.0
      %v4319 = vmax.f32 %v4129, 0.0
      %v4320 = vmax.f32 %v4240, 0.0
      %v4321 = vmax.f32 %v4242, 0.0
      %v4322 = vmax.f32 %v4131, 0.0
      %v4323 = vmax.f32 %v4133, 0.0
      %v4324 = vmax.f32 %v4244, 0.0
      %v4325 = vmax.f32 %v4246, 0.0
      %v4326 = vmax.f32 %v4137, 0.0
      %v4327 = vmax.f32 %v4139, 0.0
      %v4328 = vmax.f32 %v4250, 0.0
      %v4329 = vmax.f32 %v4252, 0.0
      %v4330 = vmax.f32 %v4141, 0.0
      %v4331 = vmax.f32 %v4143, 0.0
      %v4332 = vmax.f32 %v4254, 0.0
      %v4333 = vmax.f32 %v4256, 0.0
      %v4334 = vmax.f32 %v4147, 0.0
      %v4335 = vmax.f32 %v4149, 0.0
      %v4336 = vmax.f32 %v4260, 0.0
      %v4337 = vmax.f32 %v4262, 0.0
      %v4338 = vmax.f32 %v4151, 0.0
      %v4339 = vmax.f32 %v4153, 0.0
      %v4340 = vmax.f32 %v4264, 0.0
      %v4341 = vmax.f32 %v4266, 0.0
      %v4342 = vmax.f32 %v4157, 0.0
      %v4343 = vmax.f32 %v4159, 0.0
      %v4344 = vmax.f32 %v4270, 0.0
      %v4345 = vmax.f32 %v4272, 0.0
      %v4346 = vmax.f32 %v4161, 0.0
      %v4347 = vmax.f32 %v4163, 0.0
      %v4348 = vmax.f32 %v4274, 0.0
      %v4349 = vmax.f32 %v4276, 0.0
      %v4350 = vmax.f32 %v4167, 0.0
      %v4351 = vmax.f32 %v4169, 0.0
      %v4352 = vmax.f32 %v4280, 0.0
      %v4353 = vmax.f32 %v4282, 0.0
      %v4354 = vmax.f32 %v4171, 0.0
      %v4355 = vmax.f32 %v4173, 0.0
      %v4356 = vmax.f32 %v4284, 0.0
      %v4357 = vmax.f32 %v4286, 0.0
      %v4358 = vmax.f32 %v4177, 0.0
      %v4359 = vmax.f32 %v4179, 0.0
      %v4360 = vmax.f32 %v4290, 0.0
      %v4361 = vmax.f32 %v4292, 0.0
      %v4362 = vmax.f32 %v4181, 0.0
      %v4363 = vmax.f32 %v4183, 0.0
      %v4364 = vmax.f32 %v4294, 0.0
      %v4365 = vmax.f32 %v4296, 0.0
      %v4366 = vmax.f32 %v4187, 0.0
      %v4367 = vmax.f32 %v4189, 0.0
      %v4368 = vmax.f32 %v4300, 0.0
      %v4369 = vmax.f32 %v4302, 0.0
      %v4370 = vmax.f32 %v4191, 0.0
      %v4371 = vmax.f32 %v4193, 0.0
      %v4372 = vmax.f32 %v4304, 0.0
      %v4373 = vmax.f32 %v4306, 0.0
      %v4374 = vmax.f32 %v4197, 0.0
      %v4375 = vmax.f32 %v4199, 0.0
      %v4376 = vmax.f32 %v4310, 0.0
      %v4377 = vmax.f32 %v4312, 0.0
      %v4378 = vmax.f32 %v4201, 0.0
      %v4379 = vmax.f32 %v4203, 0.0
      %v4380 = vmax.f32 %v4314, 0.0
      %v4381 = vmax.f32 %v4316, 0.0
      %v4382 = vpack.c.bf16 %v4322, %v4318
      %v4383 = vpack.c.bf16 %v4323, %v4319
      %v4384 = vpack.c.bf16 %v4324, %v4320
      %v4385 = vpack.c.bf16 %v4325, %v4321
      %v4386 = vpack.c.bf16 %v4330, %v4326
      %v4387 = vpack.c.bf16 %v4331, %v4327
      %v4388 = vpack.c.bf16 %v4332, %v4328
      %v4389 = vpack.c.bf16 %v4333, %v4329
      %v4390 = vpack.c.bf16 %v4338, %v4334
      %v4391 = vpack.c.bf16 %v4339, %v4335
      %v4392 = vpack.c.bf16 %v4340, %v4336
      %v4393 = vpack.c.bf16 %v4341, %v4337
      %v4394 = vpack.c.bf16 %v4346, %v4342
      %v4395 = vpack.c.bf16 %v4347, %v4343
      %v4396 = vpack.c.bf16 %v4348, %v4344
      %v4397 = vpack.c.bf16 %v4349, %v4345
      %v4398 = vpack.c.bf16 %v4354, %v4350
      %v4399 = vpack.c.bf16 %v4355, %v4351
      %v4400 = vpack.c.bf16 %v4356, %v4352
      %v4401 = vpack.c.bf16 %v4357, %v4353
      %v4402 = vpack.c.bf16 %v4362, %v4358
      %v4403 = vpack.c.bf16 %v4363, %v4359
      %v4404 = vpack.c.bf16 %v4364, %v4360
      %v4405 = vpack.c.bf16 %v4365, %v4361
      %v4406 = vpack.c.bf16 %v4370, %v4366
      %v4407 = vpack.c.bf16 %v4371, %v4367
      %v4408 = vpack.c.bf16 %v4372, %v4368
      %v4409 = vpack.c.bf16 %v4373, %v4369
      %v4410 = vpack.c.bf16 %v4378, %v4374
      %v4411 = vpack.c.bf16 %v4379, %v4375
      %v4412 = vpack.c.bf16 %v4380, %v4376
      %v4413 = vpack.c.bf16 %v4381, %v4377
      %v4414 = vld [vmem:[%s8] sm:$0xff]
      %v4415 = vld [vmem:[%s8 + $0x8] sm:$0xff]
      %v4416 = vld [vmem:[%s8 + $0x10] sm:$0xff]
      %v4417 = vld [vmem:[%s8 + $0x18] sm:$0xf]
      %v4418 = vld [vmem:[%s8 + $0x1c] sm:$0xff]
      %v4419 = vld [vmem:[%s8 + $0x24] sm:$0xff]
      %v4420 = vld [vmem:[%s8 + $0x2c] sm:$0xff]
      %v4421 = vld [vmem:[%s8 + $0x34] sm:$0xf]
      %v4422 = vld [vmem:[%s8 + $0x38] sm:$0xff]
      %v4423 = vld [vmem:[%s8 + $0x40] sm:$0xff]
      %v4424 = vld [vmem:[%s8 + $0x48] sm:$0xff]
      %v4425 = vld [vmem:[%s8 + $0x50] sm:$0xf]
      %v4426 = vld [vmem:[%s8 + $0x54] sm:$0xff]
      %v4427 = vld [vmem:[%s8 + $0x5c] sm:$0xff]
      %v4428 = vld [vmem:[%s8 + $0x64] sm:$0xff]
      %v4429 = vld [vmem:[%s8 + $0x6c] sm:$0xf]
      %v4430 = vld [vmem:[%s8 + $0x70] sm:$0xff]
      %v4431 = vld [vmem:[%s8 + $0x78] sm:$0xff]
      %v4432 = vld [vmem:[%s8 + $0x80] sm:$0xff]
      %v4433 = vld [vmem:[%s8 + $0x88] sm:$0xf]
      %v4434 = vld [vmem:[%s8 + $0x8c] sm:$0xff]
      %v4435 = vld [vmem:[%s8 + $0x94] sm:$0xff]
      %v4436 = vld [vmem:[%s8 + $0x9c] sm:$0xff]
      %v4437 = vld [vmem:[%s8 + $0xa4] sm:$0xf]
      %v4438 = vld [vmem:[%s8 + $0xa8] sm:$0xff]
      %v4439 = vld [vmem:[%s8 + $0xb0] sm:$0xff]
      %v4440 = vld [vmem:[%s8 + $0xb8] sm:$0xff]
      %v4441 = vld [vmem:[%s8 + $0xc0] sm:$0xf]
      %v4442 = vld [vmem:[%s8 + $0xc4] sm:$0xff]
      %v4443 = vld [vmem:[%s8 + $0xcc] sm:$0xff]
      %v4444 = vld [vmem:[%s8 + $0xd4] sm:$0xff]
      %v4445 = vld [vmem:[%s8 + $0xdc] sm:$0xf]
      %v4446 = vld [vmem:[%s8 + $0xe0] sm:$0xff]
      %v4447 = vld [vmem:[%s8 + $0xe8] sm:$0xff]
      %v4448 = vld [vmem:[%s8 + $0xf0] sm:$0xff]
      %v4449 = vld [vmem:[%s8 + $0xf8] sm:$0xf]
      %v4450 = vld [vmem:[%s8 + $0xfc] sm:$0xff]
      %v4451 = vld [vmem:[%s8 + $0x104] sm:$0xff]
      %v4452 = vld [vmem:[%s8 + $0x10c] sm:$0xff]
      %v4453 = vld [vmem:[%s8 + $0x114] sm:$0xf]
      %v4454 = vld [vmem:[%s8 + $0x118] sm:$0xff]
      %v4455 = vld [vmem:[%s8 + $0x120] sm:$0xff]
      %v4456 = vld [vmem:[%s8 + $0x128] sm:$0xff]
      %v4457 = vld [vmem:[%s8 + $0x130] sm:$0xf]
      %v4458 = vld [vmem:[%s8 + $0x134] sm:$0xff]
      %v4459 = vld [vmem:[%s8 + $0x13c] sm:$0xff]
      %v4460 = vld [vmem:[%s8 + $0x144] sm:$0xff]
      %v4461 = vld [vmem:[%s8 + $0x14c] sm:$0xf]
      %v4462 = vld [vmem:[%s8 + $0x150] sm:$0xff]
      %v4463 = vld [vmem:[%s8 + $0x158] sm:$0xff]
      %v4464 = vld [vmem:[%s8 + $0x160] sm:$0xff]
      %v4465 = vld [vmem:[%s8 + $0x168] sm:$0xf]
      %v4466 = vld [vmem:[%s8 + $0x16c] sm:$0xff]
      %v4467 = vld [vmem:[%s8 + $0x174] sm:$0xff]
      %v4468 = vld [vmem:[%s8 + $0x17c] sm:$0xff]
      %v4469 = vld [vmem:[%s8 + $0x184] sm:$0xf]
      %v4470 = vld [vmem:[%s8 + $0x188] sm:$0xff]
      %v4471 = vld [vmem:[%s8 + $0x190] sm:$0xff]
      %v4472 = vld [vmem:[%s8 + $0x198] sm:$0xff]
      %v4473 = vld [vmem:[%s8 + $0x1a0] sm:$0xf]
      %v4474 = vld [vmem:[%s8 + $0x1a4] sm:$0xff]
      %v4475 = vld [vmem:[%s8 + $0x1ac] sm:$0xff]
      %v4476 = vld [vmem:[%s8 + $0x1b4] sm:$0xff]
      %v4477 = vld [vmem:[%s8 + $0x1bc] sm:$0xf]
      %v4478 = vld [vmem:[%s8 + $0x1c0] sm:$0xff]
      %v4479 = vld [vmem:[%s8 + $0x1c8] sm:$0xff]
      %v4480 = vld [vmem:[%s8 + $0x1d0] sm:$0xff]
      %v4481 = vld [vmem:[%s8 + $0x1d8] sm:$0xf]
      %v4482 = vld [vmem:[%s8 + $0x1dc] sm:$0xff]
      %v4483 = vld [vmem:[%s8 + $0x1e4] sm:$0xff]
      %v4484 = vld [vmem:[%s8 + $0x1ec] sm:$0xff]
      %v4485 = vld [vmem:[%s8 + $0x1f4] sm:$0xf]
      %v4486 = vld [vmem:[%s8 + $0x1f8] sm:$0xff]
      %v4487 = vld [vmem:[%s8 + $0x200] sm:$0xff]
      %v4488 = vld [vmem:[%s8 + $0x208] sm:$0xff]
      %v4489 = vld [vmem:[%s8 + $0x210] sm:$0xf]
      %v4490 = vld [vmem:[%s8 + $0x214] sm:$0xff]
      %v4491 = vld [vmem:[%s8 + $0x21c] sm:$0xff]
      %v4492 = vld [vmem:[%s8 + $0x224] sm:$0xff]
      %v4493 = vld [vmem:[%s8 + $0x22c] sm:$0xf]
      %v4494 = vld [vmem:[%s8 + $0x230] sm:$0xff]
      %v4495 = vld [vmem:[%s8 + $0x238] sm:$0xff]
      %v4496 = vld [vmem:[%s8 + $0x240] sm:$0xff]
      %v4497 = vld [vmem:[%s8 + $0x248] sm:$0xf]
      %v4498 = vld [vmem:[%s8 + $0x24c] sm:$0xff]
      %v4499 = vld [vmem:[%s8 + $0x254] sm:$0xff]
      %v4500 = vld [vmem:[%s8 + $0x25c] sm:$0xff]
      %v4501 = vld [vmem:[%s8 + $0x264] sm:$0xf]
      %v4502 = vld [vmem:[%s8 + $0x268] sm:$0xff]
      %v4503 = vld [vmem:[%s8 + $0x270] sm:$0xff]
      %v4504 = vld [vmem:[%s8 + $0x278] sm:$0xff]
      %v4505 = vld [vmem:[%s8 + $0x280] sm:$0xf]
      %v4506 = vld [vmem:[%s8 + $0x284] sm:$0xff]
      %v4507 = vld [vmem:[%s8 + $0x28c] sm:$0xff]
      %v4508 = vld [vmem:[%s8 + $0x294] sm:$0xff]
      %v4509 = vld [vmem:[%s8 + $0x29c] sm:$0xf]
      %v4510 = vld [vmem:[%s8 + $0x2a0] sm:$0xff]
      %v4511 = vld [vmem:[%s8 + $0x2a8] sm:$0xff]
      %v4512 = vld [vmem:[%s8 + $0x2b0] sm:$0xff]
      %v4513 = vld [vmem:[%s8 + $0x2b8] sm:$0xf]
      %v4514 = vld [vmem:[%s8 + $0x2bc] sm:$0xff]
      %v4515 = vld [vmem:[%s8 + $0x2c4] sm:$0xff]
      %v4516 = vld [vmem:[%s8 + $0x2cc] sm:$0xff]
      %v4517 = vld [vmem:[%s8 + $0x2d4] sm:$0xf]
      %v4518 = vld [vmem:[%s8 + $0x2d8] sm:$0xff]
      %v4519 = vld [vmem:[%s8 + $0x2e0] sm:$0xff]
      %v4520 = vld [vmem:[%s8 + $0x2e8] sm:$0xff]
      %v4521 = vld [vmem:[%s8 + $0x2f0] sm:$0xf]
      %v4522 = vld [vmem:[%s8 + $0x2f4] sm:$0xff]
      %v4523 = vld [vmem:[%s8 + $0x2fc] sm:$0xff]
      %v4524 = vld [vmem:[%s8 + $0x304] sm:$0xff]
      %v4525 = vld [vmem:[%s8 + $0x30c] sm:$0xf]
      %v4526 = vld [vmem:[%s8 + $0x310] sm:$0xff]
      %v4527 = vld [vmem:[%s8 + $0x318] sm:$0xff]
      %v4528 = vld [vmem:[%s8 + $0x320] sm:$0xff]
      %v4529 = vld [vmem:[%s8 + $0x328] sm:$0xf]
      %v4530 = vld [vmem:[%s8 + $0x32c] sm:$0xff]
      %v4531 = vld [vmem:[%s8 + $0x334] sm:$0xff]
      %v4532 = vld [vmem:[%s8 + $0x33c] sm:$0xff]
      %v4533 = vld [vmem:[%s8 + $0x344] sm:$0xf]
      %v4534 = vld [vmem:[%s8 + $0x348] sm:$0xff]
      %v4535 = vld [vmem:[%s8 + $0x350] sm:$0xff]
      %v4536 = vld [vmem:[%s8 + $0x358] sm:$0xff]
      %v4537 = vld [vmem:[%s8 + $0x360] sm:$0xf]
      %v4538 = vld [vmem:[%s8 + $0x364] sm:$0xff]
      %v4539 = vld [vmem:[%s8 + $0x36c] sm:$0xff]
      %v4540 = vld [vmem:[%s8 + $0x374] sm:$0xff]
      %v4541 = vld [vmem:[%s8 + $0x37c] sm:$0xf]
      %v4542 = vld [vmem:[%s8 + $0x380] sm:$0xff]
      %v4543 = vld [vmem:[%s8 + $0x388] sm:$0xff]
      %v4544 = vld [vmem:[%s8 + $0x390] sm:$0xff]
      %v4545 = vld [vmem:[%s8 + $0x398] sm:$0xf]
      %v4546 = vld [vmem:[%s8 + $0x39c] sm:$0xff]
      %v4547 = vld [vmem:[%s8 + $0x3a4] sm:$0xff]
      %v4548 = vld [vmem:[%s8 + $0x3ac] sm:$0xff]
      %v4549 = vld [vmem:[%s8 + $0x3b4] sm:$0xf]
      %v4550 = vld [vmem:[%s8 + $0x3b8] sm:$0xff]
      %v4551 = vld [vmem:[%s8 + $0x3c0] sm:$0xff]
      %v4552 = vld [vmem:[%s8 + $0x3c8] sm:$0xff]
      %v4553 = vld [vmem:[%s8 + $0x3d0] sm:$0xf]
      %v4554 = vld [vmem:[%s8 + $0x3d4] sm:$0xff]
      %v4555 = vld [vmem:[%s8 + $0x3dc] sm:$0xff]
      %v4556 = vld [vmem:[%s8 + $0x3e4] sm:$0xff]
      %v4557 = vld [vmem:[%s8 + $0x3ec] sm:$0xf]
      %v4558 = vld [vmem:[%s8 + $0x3f0] sm:$0xff]
      %v4559 = vld [vmem:[%s8 + $0x3f8] sm:$0xff]
      %v4560 = vld [vmem:[%s8 + $0x400] sm:$0xff]
      %v4561 = vld [vmem:[%s8 + $0x408] sm:$0xf]
      %v4562 = vld [vmem:[%s8 + $0x40c] sm:$0xff]
      %v4563 = vld [vmem:[%s8 + $0x414] sm:$0xff]
      %v4564 = vld [vmem:[%s8 + $0x41c] sm:$0xff]
      %v4565 = vld [vmem:[%s8 + $0x424] sm:$0xf]
      %v4566 = vld [vmem:[%s8 + $0x428] sm:$0xff]
      %v4567 = vld [vmem:[%s8 + $0x430] sm:$0xff]
      %v4568 = vld [vmem:[%s8 + $0x438] sm:$0xff]
      %v4569 = vld [vmem:[%s8 + $0x440] sm:$0xf]
      %v4570 = vld [vmem:[%s8 + $0x444] sm:$0xff]
      %v4571 = vld [vmem:[%s8 + $0x44c] sm:$0xff]
      %v4572 = vld [vmem:[%s8 + $0x454] sm:$0xff]
      %v4573 = vld [vmem:[%s8 + $0x45c] sm:$0xf]
      %v4574 = vld [vmem:[%s8 + $0x460] sm:$0xff]
      %v4575 = vld [vmem:[%s8 + $0x468] sm:$0xff]
      %v4576 = vld [vmem:[%s8 + $0x470] sm:$0xff]
      %v4577 = vld [vmem:[%s8 + $0x478] sm:$0xf]
      %v4578 = vld [vmem:[%s8 + $0x47c] sm:$0xff]
      %v4579 = vld [vmem:[%s8 + $0x484] sm:$0xff]
      %v4580 = vld [vmem:[%s8 + $0x48c] sm:$0xff]
      %v4581 = vld [vmem:[%s8 + $0x494] sm:$0xf]
      %v4582 = vld [vmem:[%s8 + $0x498] sm:$0xff]
      %v4583 = vld [vmem:[%s8 + $0x4a0] sm:$0xff]
      %v4584 = vld [vmem:[%s8 + $0x4a8] sm:$0xff]
      %v4585 = vld [vmem:[%s8 + $0x4b0] sm:$0xf]
      %v4586 = vld [vmem:[%s8 + $0x4b4] sm:$0xff]
      %v4587 = vld [vmem:[%s8 + $0x4bc] sm:$0xff]
      %v4588 = vld [vmem:[%s8 + $0x4c4] sm:$0xff]
      %v4589 = vld [vmem:[%s8 + $0x4cc] sm:$0xf]
      %v4590 = vld [vmem:[%s8 + $0x4d0] sm:$0xff]
      %v4591 = vld [vmem:[%s8 + $0x4d8] sm:$0xff]
      %v4592 = vld [vmem:[%s8 + $0x4e0] sm:$0xff]
      %v4593 = vld [vmem:[%s8 + $0x4e8] sm:$0xf]
      %v4594 = vld [vmem:[%s8 + $0x4ec] sm:$0xff]
      %v4595 = vld [vmem:[%s8 + $0x4f4] sm:$0xff]
      %v4596 = vld [vmem:[%s8 + $0x4fc] sm:$0xff]
      %v4597 = vld [vmem:[%s8 + $0x504] sm:$0xf]
      %v4598 = vld [vmem:[%s8 + $0x508] sm:$0xff]
      %v4599 = vld [vmem:[%s8 + $0x510] sm:$0xff]
      %v4600 = vld [vmem:[%s8 + $0x518] sm:$0xff]
      %v4601 = vld [vmem:[%s8 + $0x520] sm:$0xf]
      %v4602 = vld [vmem:[%s8 + $0x524] sm:$0xff]
      %v4603 = vld [vmem:[%s8 + $0x52c] sm:$0xff]
      %v4604 = vld [vmem:[%s8 + $0x534] sm:$0xff]
      %v4605 = vld [vmem:[%s8 + $0x53c] sm:$0xf]
      %v4606 = vld [vmem:[%s8 + $0x540] sm:$0xff]
      %v4607 = vld [vmem:[%s8 + $0x548] sm:$0xff]
      %v4608 = vld [vmem:[%s8 + $0x550] sm:$0xff]
      %v4609 = vld [vmem:[%s8 + $0x558] sm:$0xf]
      %v4610 = vld [vmem:[%s8 + $0x55c] sm:$0xff]
      %v4611 = vld [vmem:[%s8 + $0x564] sm:$0xff]
      %v4612 = vld [vmem:[%s8 + $0x56c] sm:$0xff]
      %v4613 = vld [vmem:[%s8 + $0x574] sm:$0xf]
      %v4614 = vld [vmem:[%s8 + $0x578] sm:$0xff]
      %v4615 = vld [vmem:[%s8 + $0x580] sm:$0xff]
      %v4616 = vld [vmem:[%s8 + $0x588] sm:$0xff]
      %v4617 = vld [vmem:[%s8 + $0x590] sm:$0xf]
      %v4618 = vld [vmem:[%s8 + $0x594] sm:$0xff]
      %v4619 = vld [vmem:[%s8 + $0x59c] sm:$0xff]
      %v4620 = vld [vmem:[%s8 + $0x5a4] sm:$0xff]
      %v4621 = vld [vmem:[%s8 + $0x5ac] sm:$0xf]
      %v4622 = vld [vmem:[%s8 + $0x5b0] sm:$0xff]
      %v4623 = vld [vmem:[%s8 + $0x5b8] sm:$0xff]
      %v4624 = vld [vmem:[%s8 + $0x5c0] sm:$0xff]
      %v4625 = vld [vmem:[%s8 + $0x5c8] sm:$0xf]
      %v4626 = vld [vmem:[%s8 + $0x5cc] sm:$0xff]
      %v4627 = vld [vmem:[%s8 + $0x5d4] sm:$0xff]
      %v4628 = vld [vmem:[%s8 + $0x5dc] sm:$0xff]
      %v4629 = vld [vmem:[%s8 + $0x5e4] sm:$0xf]
      %v4630 = vld [vmem:[%s8 + $0x5e8] sm:$0xff]
      %v4631 = vld [vmem:[%s8 + $0x5f0] sm:$0xff]
      %v4632 = vld [vmem:[%s8 + $0x5f8] sm:$0xff]
      %v4633 = vld [vmem:[%s8 + $0x600] sm:$0xf]
      %v4634 = vld [vmem:[%s8 + $0x604] sm:$0xff]
      %v4635 = vld [vmem:[%s8 + $0x60c] sm:$0xff]
      %v4636 = vld [vmem:[%s8 + $0x614] sm:$0xff]
      %v4637 = vld [vmem:[%s8 + $0x61c] sm:$0xf]
      %v4638 = vld [vmem:[%s8 + $0x620] sm:$0xff]
      %v4639 = vld [vmem:[%s8 + $0x628] sm:$0xff]
      %v4640 = vld [vmem:[%s8 + $0x630] sm:$0xff]
      %v4641 = vld [vmem:[%s8 + $0x638] sm:$0xf]
      %v4642 = vld [vmem:[%s8 + $0x63c] sm:$0xff]
      %v4643 = vld [vmem:[%s8 + $0x644] sm:$0xff]
      %v4644 = vld [vmem:[%s8 + $0x64c] sm:$0xff]
      %v4645 = vld [vmem:[%s8 + $0x654] sm:$0xf]
      %v4646 = vld [vmem:[%s8 + $0x658] sm:$0xff]
      %v4647 = vld [vmem:[%s8 + $0x660] sm:$0xff]
      %v4648 = vld [vmem:[%s8 + $0x668] sm:$0xff]
      %v4649 = vld [vmem:[%s8 + $0x670] sm:$0xf]
      %v4650 = vld [vmem:[%s8 + $0x674] sm:$0xff]
      %v4651 = vld [vmem:[%s8 + $0x67c] sm:$0xff]
      %v4652 = vld [vmem:[%s8 + $0x684] sm:$0xff]
      %v4653 = vld [vmem:[%s8 + $0x68c] sm:$0xf]
      %v4654 = vld [vmem:[%s8 + $0x690] sm:$0xff]
      %v4655 = vld [vmem:[%s8 + $0x698] sm:$0xff]
      %v4656 = vld [vmem:[%s8 + $0x6a0] sm:$0xff]
      %v4657 = vld [vmem:[%s8 + $0x6a8] sm:$0xf]
      %v4658 = vld [vmem:[%s8 + $0x6ac] sm:$0xff]
      %v4659 = vld [vmem:[%s8 + $0x6b4] sm:$0xff]
      %v4660 = vld [vmem:[%s8 + $0x6bc] sm:$0xff]
      %v4661 = vld [vmem:[%s8 + $0x6c4] sm:$0xf]
      %v4662 = vld [vmem:[%s8 + $0x6c8] sm:$0xff]
      %v4663 = vld [vmem:[%s8 + $0x6d0] sm:$0xff]
      %v4664 = vld [vmem:[%s8 + $0x6d8] sm:$0xff]
      %v4665 = vld [vmem:[%s8 + $0x6e0] sm:$0xf]
      %v4666 = vld [vmem:[%s8 + $0x6e4] sm:$0xff]
      %v4667 = vld [vmem:[%s8 + $0x6ec] sm:$0xff]
      %v4668 = vld [vmem:[%s8 + $0x6f4] sm:$0xff]
      %v4669 = vld [vmem:[%s8 + $0x6fc] sm:$0xf]
      %v4670 = vld [vmem:[%s9] sm:$0xff]
      %v4672 = vlaneseq
      %v4673 = vshrl.u32 %v4672, 7
      %v4674 = vsub.s32 0, %v4673
      %v4675 = vrot.slane %v4670, %v4674
      %v4676 = vlaneseq
      %v4677 = vshrl.u32 %v4676, 7
      %v4678 = vsub.s32 1, %v4677
      %v4679 = vrot.slane %v4670, %v4678
      %v4680 = vlaneseq
      %v4681 = vshrl.u32 %v4680, 7
      %v4682 = vsub.s32 2, %v4681
      %v4683 = vrot.slane %v4670, %v4682
      %v4684 = vlaneseq
      %v4685 = vshrl.u32 %v4684, 7
      %v4686 = vsub.s32 3, %v4685
      %v4687 = vrot.slane %v4670, %v4686
      %v4688 = vlaneseq
      %v4689 = vshrl.u32 %v4688, 7
      %v4690 = vsub.s32 4, %v4689
      %v4691 = vrot.slane %v4670, %v4690
      %v4692 = vlaneseq
      %v4693 = vshrl.u32 %v4692, 7
      %v4694 = vsub.s32 5, %v4693
      %v4695 = vrot.slane %v4670, %v4694
      %v4696 = vlaneseq
      %v4697 = vshrl.u32 %v4696, 7
      %v4698 = vsub.s32 6, %v4697
      %v4699 = vrot.slane %v4670, %v4698
      %v4963 = vunpack.c.l.b16 %v4414
      %v4964 = vunpack.c.h.b16 %v4414
      %v4965 = vunpack.c.l.b16 %v4415
      %v4966 = vunpack.c.h.b16 %v4415
      %v4967 = vunpack.c.l.b16 %v4416
      %v4968 = vunpack.c.h.b16 %v4416
      %v4969 = vunpack.c.l.b16 %v4417
      %v4970 = vunpack.c.l.b16 %v4418
      %v4971 = vunpack.c.h.b16 %v4418
      %v4972 = vunpack.c.l.b16 %v4419
      %v4973 = vunpack.c.h.b16 %v4419
      %v4974 = vunpack.c.l.b16 %v4420
      %v4975 = vunpack.c.h.b16 %v4420
      %v4976 = vunpack.c.l.b16 %v4421
      %v4977 = vunpack.c.l.b16 %v4422
      %v4978 = vunpack.c.h.b16 %v4422
      %v4979 = vunpack.c.l.b16 %v4423
      %v4980 = vunpack.c.h.b16 %v4423
      %v4981 = vunpack.c.l.b16 %v4424
      %v4982 = vunpack.c.h.b16 %v4424
      %v4983 = vunpack.c.l.b16 %v4425
      %v4984 = vunpack.c.l.b16 %v4426
      %v4985 = vunpack.c.h.b16 %v4426
      %v4986 = vunpack.c.l.b16 %v4427
      %v4987 = vunpack.c.h.b16 %v4427
      %v4988 = vunpack.c.l.b16 %v4428
      %v4989 = vunpack.c.h.b16 %v4428
      %v4990 = vunpack.c.l.b16 %v4429
      %v4991 = vunpack.c.l.b16 %v4430
      %v4992 = vunpack.c.h.b16 %v4430
      %v4993 = vunpack.c.l.b16 %v4431
      %v4994 = vunpack.c.h.b16 %v4431
      %v4995 = vunpack.c.l.b16 %v4432
      %v4996 = vunpack.c.h.b16 %v4432
      %v4997 = vunpack.c.l.b16 %v4433
      %v4998 = vunpack.c.l.b16 %v4434
      %v4999 = vunpack.c.h.b16 %v4434
      %v5000 = vunpack.c.l.b16 %v4435
      %v5001 = vunpack.c.h.b16 %v4435
      %v5002 = vunpack.c.l.b16 %v4436
      %v5003 = vunpack.c.h.b16 %v4436
      %v5004 = vunpack.c.l.b16 %v4437
      %v5005 = vunpack.c.l.b16 %v4438
      %v5006 = vunpack.c.h.b16 %v4438
      %v5007 = vunpack.c.l.b16 %v4439
      %v5008 = vunpack.c.h.b16 %v4439
      %v5009 = vunpack.c.l.b16 %v4440
      %v5010 = vunpack.c.h.b16 %v4440
      %v5011 = vunpack.c.l.b16 %v4441
      %v5012 = vunpack.c.l.b16 %v4442
      %v5013 = vunpack.c.h.b16 %v4442
      %v5014 = vunpack.c.l.b16 %v4443
      %v5015 = vunpack.c.h.b16 %v4443
      %v5016 = vunpack.c.l.b16 %v4444
      %v5017 = vunpack.c.h.b16 %v4444
      %v5018 = vunpack.c.l.b16 %v4445
      %v5019 = vunpack.c.l.b16 %v4446
      %v5020 = vunpack.c.h.b16 %v4446
      %v5021 = vunpack.c.l.b16 %v4447
      %v5022 = vunpack.c.h.b16 %v4447
      %v5023 = vunpack.c.l.b16 %v4448
      %v5024 = vunpack.c.h.b16 %v4448
      %v5025 = vunpack.c.l.b16 %v4449
      %v5026 = vunpack.c.l.b16 %v4450
      %v5027 = vunpack.c.h.b16 %v4450
      %v5028 = vunpack.c.l.b16 %v4451
      %v5029 = vunpack.c.h.b16 %v4451
      %v5030 = vunpack.c.l.b16 %v4452
      %v5031 = vunpack.c.h.b16 %v4452
      %v5032 = vunpack.c.l.b16 %v4453
      %v5033 = vunpack.c.l.b16 %v4454
      %v5034 = vunpack.c.h.b16 %v4454
      %v5035 = vunpack.c.l.b16 %v4455
      %v5036 = vunpack.c.h.b16 %v4455
      %v5037 = vunpack.c.l.b16 %v4456
      %v5038 = vunpack.c.h.b16 %v4456
      %v5039 = vunpack.c.l.b16 %v4457
      %v5040 = vunpack.c.l.b16 %v4458
      %v5041 = vunpack.c.h.b16 %v4458
      %v5042 = vunpack.c.l.b16 %v4459
      %v5043 = vunpack.c.h.b16 %v4459
      %v5044 = vunpack.c.l.b16 %v4460
      %v5045 = vunpack.c.h.b16 %v4460
      %v5046 = vunpack.c.l.b16 %v4461
      %v5047 = vunpack.c.l.b16 %v4462
      %v5048 = vunpack.c.h.b16 %v4462
      %v5049 = vunpack.c.l.b16 %v4463
      %v5050 = vunpack.c.h.b16 %v4463
      %v5051 = vunpack.c.l.b16 %v4464
      %v5052 = vunpack.c.h.b16 %v4464
      %v5053 = vunpack.c.l.b16 %v4465
      %v5054 = vunpack.c.l.b16 %v4466
      %v5055 = vunpack.c.h.b16 %v4466
      %v5056 = vunpack.c.l.b16 %v4467
      %v5057 = vunpack.c.h.b16 %v4467
      %v5058 = vunpack.c.l.b16 %v4468
      %v5059 = vunpack.c.h.b16 %v4468
      %v5060 = vunpack.c.l.b16 %v4469
      %v5061 = vunpack.c.l.b16 %v4470
      %v5062 = vunpack.c.h.b16 %v4470
      %v5063 = vunpack.c.l.b16 %v4471
      %v5064 = vunpack.c.h.b16 %v4471
      %v5065 = vunpack.c.l.b16 %v4472
      %v5066 = vunpack.c.h.b16 %v4472
      %v5067 = vunpack.c.l.b16 %v4473
      %v5068 = vunpack.c.l.b16 %v4474
      %v5069 = vunpack.c.h.b16 %v4474
      %v5070 = vunpack.c.l.b16 %v4475
      %v5071 = vunpack.c.h.b16 %v4475
      %v5072 = vunpack.c.l.b16 %v4476
      %v5073 = vunpack.c.h.b16 %v4476
      %v5074 = vunpack.c.l.b16 %v4477
      %v5075 = vunpack.c.l.b16 %v4478
      %v5076 = vunpack.c.h.b16 %v4478
      %v5077 = vunpack.c.l.b16 %v4479
      %v5078 = vunpack.c.h.b16 %v4479
      %v5079 = vunpack.c.l.b16 %v4480
      %v5080 = vunpack.c.h.b16 %v4480
      %v5081 = vunpack.c.l.b16 %v4481
      %v5082 = vunpack.c.l.b16 %v4482
      %v5083 = vunpack.c.h.b16 %v4482
      %v5084 = vunpack.c.l.b16 %v4483
      %v5085 = vunpack.c.h.b16 %v4483
      %v5086 = vunpack.c.l.b16 %v4484
      %v5087 = vunpack.c.h.b16 %v4484
      %v5088 = vunpack.c.l.b16 %v4485
      %v5089 = vunpack.c.l.b16 %v4486
      %v5090 = vunpack.c.h.b16 %v4486
      %v5091 = vunpack.c.l.b16 %v4487
      %v5092 = vunpack.c.h.b16 %v4487
      %v5093 = vunpack.c.l.b16 %v4488
      %v5094 = vunpack.c.h.b16 %v4488
      %v5095 = vunpack.c.l.b16 %v4489
      %v5096 = vunpack.c.l.b16 %v4490
      %v5097 = vunpack.c.h.b16 %v4490
      %v5098 = vunpack.c.l.b16 %v4491
      %v5099 = vunpack.c.h.b16 %v4491
      %v5100 = vunpack.c.l.b16 %v4492
      %v5101 = vunpack.c.h.b16 %v4492
      %v5102 = vunpack.c.l.b16 %v4493
      %v5103 = vunpack.c.l.b16 %v4494
      %v5104 = vunpack.c.h.b16 %v4494
      %v5105 = vunpack.c.l.b16 %v4495
      %v5106 = vunpack.c.h.b16 %v4495
      %v5107 = vunpack.c.l.b16 %v4496
      %v5108 = vunpack.c.h.b16 %v4496
      %v5109 = vunpack.c.l.b16 %v4497
      %v5110 = vunpack.c.l.b16 %v4498
      %v5111 = vunpack.c.h.b16 %v4498
      %v5112 = vunpack.c.l.b16 %v4499
      %v5113 = vunpack.c.h.b16 %v4499
      %v5114 = vunpack.c.l.b16 %v4500
      %v5115 = vunpack.c.h.b16 %v4500
      %v5116 = vunpack.c.l.b16 %v4501
      %v5117 = vunpack.c.l.b16 %v4502
      %v5118 = vunpack.c.h.b16 %v4502
      %v5119 = vunpack.c.l.b16 %v4503
      %v5120 = vunpack.c.h.b16 %v4503
      %v5121 = vunpack.c.l.b16 %v4504
      %v5122 = vunpack.c.h.b16 %v4504
      %v5123 = vunpack.c.l.b16 %v4505
      %v5124 = vunpack.c.l.b16 %v4506
      %v5125 = vunpack.c.h.b16 %v4506
      %v5126 = vunpack.c.l.b16 %v4507
      %v5127 = vunpack.c.h.b16 %v4507
      %v5128 = vunpack.c.l.b16 %v4508
      %v5129 = vunpack.c.h.b16 %v4508
      %v5130 = vunpack.c.l.b16 %v4509
      %v5131 = vunpack.c.l.b16 %v4510
      %v5132 = vunpack.c.h.b16 %v4510
      %v5133 = vunpack.c.l.b16 %v4511
      %v5134 = vunpack.c.h.b16 %v4511
      %v5135 = vunpack.c.l.b16 %v4512
      %v5136 = vunpack.c.h.b16 %v4512
      %v5137 = vunpack.c.l.b16 %v4513
      %v5138 = vunpack.c.l.b16 %v4514
      %v5139 = vunpack.c.h.b16 %v4514
      %v5140 = vunpack.c.l.b16 %v4515
      %v5141 = vunpack.c.h.b16 %v4515
      %v5142 = vunpack.c.l.b16 %v4516
      %v5143 = vunpack.c.h.b16 %v4516
      %v5144 = vunpack.c.l.b16 %v4517
      %v5145 = vunpack.c.l.b16 %v4518
      %v5146 = vunpack.c.h.b16 %v4518
      %v5147 = vunpack.c.l.b16 %v4519
      %v5148 = vunpack.c.h.b16 %v4519
      %v5149 = vunpack.c.l.b16 %v4520
      %v5150 = vunpack.c.h.b16 %v4520
      %v5151 = vunpack.c.l.b16 %v4521
      %v5152 = vunpack.c.l.b16 %v4522
      %v5153 = vunpack.c.h.b16 %v4522
      %v5154 = vunpack.c.l.b16 %v4523
      %v5155 = vunpack.c.h.b16 %v4523
      %v5156 = vunpack.c.l.b16 %v4524
      %v5157 = vunpack.c.h.b16 %v4524
      %v5158 = vunpack.c.l.b16 %v4525
      %v5159 = vunpack.c.l.b16 %v4526
      %v5160 = vunpack.c.h.b16 %v4526
      %v5161 = vunpack.c.l.b16 %v4527
      %v5162 = vunpack.c.h.b16 %v4527
      %v5163 = vunpack.c.l.b16 %v4528
      %v5164 = vunpack.c.h.b16 %v4528
      %v5165 = vunpack.c.l.b16 %v4529
      %v5166 = vunpack.c.l.b16 %v4530
      %v5167 = vunpack.c.h.b16 %v4530
      %v5168 = vunpack.c.l.b16 %v4531
      %v5169 = vunpack.c.h.b16 %v4531
      %v5170 = vunpack.c.l.b16 %v4532
      %v5171 = vunpack.c.h.b16 %v4532
      %v5172 = vunpack.c.l.b16 %v4533
      %v5173 = vunpack.c.l.b16 %v4534
      %v5174 = vunpack.c.h.b16 %v4534
      %v5175 = vunpack.c.l.b16 %v4535
      %v5176 = vunpack.c.h.b16 %v4535
      %v5177 = vunpack.c.l.b16 %v4536
      %v5178 = vunpack.c.h.b16 %v4536
      %v5179 = vunpack.c.l.b16 %v4537
      %v5180 = vunpack.c.l.b16 %v4538
      %v5181 = vunpack.c.h.b16 %v4538
      %v5182 = vunpack.c.l.b16 %v4539
      %v5183 = vunpack.c.h.b16 %v4539
      %v5184 = vunpack.c.l.b16 %v4540
      %v5185 = vunpack.c.h.b16 %v4540
      %v5186 = vunpack.c.l.b16 %v4541
      %v5187 = vunpack.c.l.b16 %v4542
      %v5188 = vunpack.c.h.b16 %v4542
      %v5189 = vunpack.c.l.b16 %v4543
      %v5190 = vunpack.c.h.b16 %v4543
      %v5191 = vunpack.c.l.b16 %v4544
      %v5192 = vunpack.c.h.b16 %v4544
      %v5193 = vunpack.c.l.b16 %v4545
      %v5194 = vunpack.c.l.b16 %v4546
      %v5195 = vunpack.c.h.b16 %v4546
      %v5196 = vunpack.c.l.b16 %v4547
      %v5197 = vunpack.c.h.b16 %v4547
      %v5198 = vunpack.c.l.b16 %v4548
      %v5199 = vunpack.c.h.b16 %v4548
      %v5200 = vunpack.c.l.b16 %v4549
      %v5201 = vunpack.c.l.b16 %v4550
      %v5202 = vunpack.c.h.b16 %v4550
      %v5203 = vunpack.c.l.b16 %v4551
      %v5204 = vunpack.c.h.b16 %v4551
      %v5205 = vunpack.c.l.b16 %v4552
      %v5206 = vunpack.c.h.b16 %v4552
      %v5207 = vunpack.c.l.b16 %v4553
      %v5208 = vunpack.c.l.b16 %v4554
      %v5209 = vunpack.c.h.b16 %v4554
      %v5210 = vunpack.c.l.b16 %v4555
      %v5211 = vunpack.c.h.b16 %v4555
      %v5212 = vunpack.c.l.b16 %v4556
      %v5213 = vunpack.c.h.b16 %v4556
      %v5214 = vunpack.c.l.b16 %v4557
      %v5215 = vunpack.c.l.b16 %v4558
      %v5216 = vunpack.c.h.b16 %v4558
      %v5217 = vunpack.c.l.b16 %v4559
      %v5218 = vunpack.c.h.b16 %v4559
      %v5219 = vunpack.c.l.b16 %v4560
      %v5220 = vunpack.c.h.b16 %v4560
      %v5221 = vunpack.c.l.b16 %v4561
      %v5222 = vunpack.c.l.b16 %v4562
      %v5223 = vunpack.c.h.b16 %v4562
      %v5224 = vunpack.c.l.b16 %v4563
      %v5225 = vunpack.c.h.b16 %v4563
      %v5226 = vunpack.c.l.b16 %v4564
      %v5227 = vunpack.c.h.b16 %v4564
      %v5228 = vunpack.c.l.b16 %v4565
      %v5229 = vunpack.c.l.b16 %v4566
      %v5230 = vunpack.c.h.b16 %v4566
      %v5231 = vunpack.c.l.b16 %v4567
      %v5232 = vunpack.c.h.b16 %v4567
      %v5233 = vunpack.c.l.b16 %v4568
      %v5234 = vunpack.c.h.b16 %v4568
      %v5235 = vunpack.c.l.b16 %v4569
      %v5236 = vunpack.c.l.b16 %v4570
      %v5237 = vunpack.c.h.b16 %v4570
      %v5238 = vunpack.c.l.b16 %v4571
      %v5239 = vunpack.c.h.b16 %v4571
      %v5240 = vunpack.c.l.b16 %v4572
      %v5241 = vunpack.c.h.b16 %v4572
      %v5242 = vunpack.c.l.b16 %v4573
      %v5243 = vunpack.c.l.b16 %v4574
      %v5244 = vunpack.c.h.b16 %v4574
      %v5245 = vunpack.c.l.b16 %v4575
      %v5246 = vunpack.c.h.b16 %v4575
      %v5247 = vunpack.c.l.b16 %v4576
      %v5248 = vunpack.c.h.b16 %v4576
      %v5249 = vunpack.c.l.b16 %v4577
      %v5250 = vunpack.c.l.b16 %v4578
      %v5251 = vunpack.c.h.b16 %v4578
      %v5252 = vunpack.c.l.b16 %v4579
      %v5253 = vunpack.c.h.b16 %v4579
      %v5254 = vunpack.c.l.b16 %v4580
      %v5255 = vunpack.c.h.b16 %v4580
      %v5256 = vunpack.c.l.b16 %v4581
      %v5257 = vunpack.c.l.b16 %v4582
      %v5258 = vunpack.c.h.b16 %v4582
      %v5259 = vunpack.c.l.b16 %v4583
      %v5260 = vunpack.c.h.b16 %v4583
      %v5261 = vunpack.c.l.b16 %v4584
      %v5262 = vunpack.c.h.b16 %v4584
      %v5263 = vunpack.c.l.b16 %v4585
      %v5264 = vunpack.c.l.b16 %v4586
      %v5265 = vunpack.c.h.b16 %v4586
      %v5266 = vunpack.c.l.b16 %v4587
      %v5267 = vunpack.c.h.b16 %v4587
      %v5268 = vunpack.c.l.b16 %v4588
      %v5269 = vunpack.c.h.b16 %v4588
      %v5270 = vunpack.c.l.b16 %v4589
      %v5271 = vunpack.c.l.b16 %v4590
      %v5272 = vunpack.c.h.b16 %v4590
      %v5273 = vunpack.c.l.b16 %v4591
      %v5274 = vunpack.c.h.b16 %v4591
      %v5275 = vunpack.c.l.b16 %v4592
      %v5276 = vunpack.c.h.b16 %v4592
      %v5277 = vunpack.c.l.b16 %v4593
      %v5278 = vunpack.c.l.b16 %v4594
      %v5279 = vunpack.c.h.b16 %v4594
      %v5280 = vunpack.c.l.b16 %v4595
      %v5281 = vunpack.c.h.b16 %v4595
      %v5282 = vunpack.c.l.b16 %v4596
      %v5283 = vunpack.c.h.b16 %v4596
      %v5284 = vunpack.c.l.b16 %v4597
      %v5285 = vunpack.c.l.b16 %v4598
      %v5286 = vunpack.c.h.b16 %v4598
      %v5287 = vunpack.c.l.b16 %v4599
      %v5288 = vunpack.c.h.b16 %v4599
      %v5289 = vunpack.c.l.b16 %v4600
      %v5290 = vunpack.c.h.b16 %v4600
      %v5291 = vunpack.c.l.b16 %v4601
      %v5292 = vunpack.c.l.b16 %v4602
      %v5293 = vunpack.c.h.b16 %v4602
      %v5294 = vunpack.c.l.b16 %v4603
      %v5295 = vunpack.c.h.b16 %v4603
      %v5296 = vunpack.c.l.b16 %v4604
      %v5297 = vunpack.c.h.b16 %v4604
      %v5298 = vunpack.c.l.b16 %v4605
      %v5299 = vunpack.c.l.b16 %v4606
      %v5300 = vunpack.c.h.b16 %v4606
      %v5301 = vunpack.c.l.b16 %v4607
      %v5302 = vunpack.c.h.b16 %v4607
      %v5303 = vunpack.c.l.b16 %v4608
      %v5304 = vunpack.c.h.b16 %v4608
      %v5305 = vunpack.c.l.b16 %v4609
      %v5306 = vunpack.c.l.b16 %v4610
      %v5307 = vunpack.c.h.b16 %v4610
      %v5308 = vunpack.c.l.b16 %v4611
      %v5309 = vunpack.c.h.b16 %v4611
      %v5310 = vunpack.c.l.b16 %v4612
      %v5311 = vunpack.c.h.b16 %v4612
      %v5312 = vunpack.c.l.b16 %v4613
      %v5313 = vunpack.c.l.b16 %v4614
      %v5314 = vunpack.c.h.b16 %v4614
      %v5315 = vunpack.c.l.b16 %v4615
      %v5316 = vunpack.c.h.b16 %v4615
      %v5317 = vunpack.c.l.b16 %v4616
      %v5318 = vunpack.c.h.b16 %v4616
      %v5319 = vunpack.c.l.b16 %v4617
      %v5320 = vunpack.c.l.b16 %v4618
      %v5321 = vunpack.c.h.b16 %v4618
      %v5322 = vunpack.c.l.b16 %v4619
      %v5323 = vunpack.c.h.b16 %v4619
      %v5324 = vunpack.c.l.b16 %v4620
      %v5325 = vunpack.c.h.b16 %v4620
      %v5326 = vunpack.c.l.b16 %v4621
      %v5327 = vunpack.c.l.b16 %v4622
      %v5328 = vunpack.c.h.b16 %v4622
      %v5329 = vunpack.c.l.b16 %v4623
      %v5330 = vunpack.c.h.b16 %v4623
      %v5331 = vunpack.c.l.b16 %v4624
      %v5332 = vunpack.c.h.b16 %v4624
      %v5333 = vunpack.c.l.b16 %v4625
      %v5334 = vunpack.c.l.b16 %v4626
      %v5335 = vunpack.c.h.b16 %v4626
      %v5336 = vunpack.c.l.b16 %v4627
      %v5337 = vunpack.c.h.b16 %v4627
      %v5338 = vunpack.c.l.b16 %v4628
      %v5339 = vunpack.c.h.b16 %v4628
      %v5340 = vunpack.c.l.b16 %v4629
      %v5341 = vunpack.c.l.b16 %v4630
      %v5342 = vunpack.c.h.b16 %v4630
      %v5343 = vunpack.c.l.b16 %v4631
      %v5344 = vunpack.c.h.b16 %v4631
      %v5345 = vunpack.c.l.b16 %v4632
      %v5346 = vunpack.c.h.b16 %v4632
      %v5347 = vunpack.c.l.b16 %v4633
      %v5348 = vunpack.c.l.b16 %v4634
      %v5349 = vunpack.c.h.b16 %v4634
      %v5350 = vunpack.c.l.b16 %v4635
      %v5351 = vunpack.c.h.b16 %v4635
      %v5352 = vunpack.c.l.b16 %v4636
      %v5353 = vunpack.c.h.b16 %v4636
      %v5354 = vunpack.c.l.b16 %v4637
      %v5355 = vunpack.c.l.b16 %v4638
      %v5356 = vunpack.c.h.b16 %v4638
      %v5357 = vunpack.c.l.b16 %v4639
      %v5358 = vunpack.c.h.b16 %v4639
      %v5359 = vunpack.c.l.b16 %v4640
      %v5360 = vunpack.c.h.b16 %v4640
      %v5361 = vunpack.c.l.b16 %v4641
      %v5362 = vunpack.c.l.b16 %v4642
      %v5363 = vunpack.c.h.b16 %v4642
      %v5364 = vunpack.c.l.b16 %v4643
      %v5365 = vunpack.c.h.b16 %v4643
      %v5366 = vunpack.c.l.b16 %v4644
      %v5367 = vunpack.c.h.b16 %v4644
      %v5368 = vunpack.c.l.b16 %v4645
      %v5369 = vunpack.c.l.b16 %v4646
      %v5370 = vunpack.c.h.b16 %v4646
      %v5371 = vunpack.c.l.b16 %v4647
      %v5372 = vunpack.c.h.b16 %v4647
      %v5373 = vunpack.c.l.b16 %v4648
      %v5374 = vunpack.c.h.b16 %v4648
      %v5375 = vunpack.c.l.b16 %v4649
      %v5376 = vunpack.c.l.b16 %v4650
      %v5377 = vunpack.c.h.b16 %v4650
      %v5378 = vunpack.c.l.b16 %v4651
      %v5379 = vunpack.c.h.b16 %v4651
      %v5380 = vunpack.c.l.b16 %v4652
      %v5381 = vunpack.c.h.b16 %v4652
      %v5382 = vunpack.c.l.b16 %v4653
      %v5383 = vunpack.c.l.b16 %v4654
      %v5384 = vunpack.c.h.b16 %v4654
      %v5385 = vunpack.c.l.b16 %v4655
      %v5386 = vunpack.c.h.b16 %v4655
      %v5387 = vunpack.c.l.b16 %v4656
      %v5388 = vunpack.c.h.b16 %v4656
      %v5389 = vunpack.c.l.b16 %v4657
      %v5390 = vunpack.c.l.b16 %v4658
      %v5391 = vunpack.c.h.b16 %v4658
      %v5392 = vunpack.c.l.b16 %v4659
      %v5393 = vunpack.c.h.b16 %v4659
      %v5394 = vunpack.c.l.b16 %v4660
      %v5395 = vunpack.c.h.b16 %v4660
      %v5396 = vunpack.c.l.b16 %v4661
      %v5397 = vunpack.c.l.b16 %v4662
      %v5398 = vunpack.c.h.b16 %v4662
      %v5399 = vunpack.c.l.b16 %v4663
      %v5400 = vunpack.c.h.b16 %v4663
      %v5401 = vunpack.c.l.b16 %v4664
      %v5402 = vunpack.c.h.b16 %v4664
      %v5403 = vunpack.c.l.b16 %v4665
      %v5404 = vunpack.c.l.b16 %v4666
      %v5405 = vunpack.c.h.b16 %v4666
      %v5406 = vunpack.c.l.b16 %v4667
      %v5407 = vunpack.c.h.b16 %v4667
      %v5408 = vunpack.c.l.b16 %v4668
      %v5409 = vunpack.c.h.b16 %v4668
      %v5410 = vunpack.c.l.b16 %v4669
      %v5411 = vpack.c.b16 %v4970, %v4963
      %v5412 = vpack.c.b16 %v4971, %v4964
      %v5413 = vpack.c.b16 %v4972, %v4965
      %v5414 = vpack.c.b16 %v4973, %v4966
      %v5415 = vpack.c.b16 %v4974, %v4967
      %v5416 = vpack.c.b16 %v4975, %v4968
      %v5417 = vpack.c.b16 %v4976, %v4969
      %v5418 = vpack.c.b16 %v4984, %v4977
      %v5419 = vpack.c.b16 %v4985, %v4978
      %v5420 = vpack.c.b16 %v4986, %v4979
      %v5421 = vpack.c.b16 %v4987, %v4980
      %v5422 = vpack.c.b16 %v4988, %v4981
      %v5423 = vpack.c.b16 %v4989, %v4982
      %v5424 = vpack.c.b16 %v4990, %v4983
      %v5425 = vpack.c.b16 %v4998, %v4991
      %v5426 = vpack.c.b16 %v4999, %v4992
      %v5427 = vpack.c.b16 %v5000, %v4993
      %v5428 = vpack.c.b16 %v5001, %v4994
      %v5429 = vpack.c.b16 %v5002, %v4995
      %v5430 = vpack.c.b16 %v5003, %v4996
      %v5431 = vpack.c.b16 %v5004, %v4997
      %v5432 = vpack.c.b16 %v5012, %v5005
      %v5433 = vpack.c.b16 %v5013, %v5006
      %v5434 = vpack.c.b16 %v5014, %v5007
      %v5435 = vpack.c.b16 %v5015, %v5008
      %v5436 = vpack.c.b16 %v5016, %v5009
      %v5437 = vpack.c.b16 %v5017, %v5010
      %v5438 = vpack.c.b16 %v5018, %v5011
      %v5439 = vpack.c.b16 %v5026, %v5019
      %v5440 = vpack.c.b16 %v5027, %v5020
      %v5441 = vpack.c.b16 %v5028, %v5021
      %v5442 = vpack.c.b16 %v5029, %v5022
      %v5443 = vpack.c.b16 %v5030, %v5023
      %v5444 = vpack.c.b16 %v5031, %v5024
      %v5445 = vpack.c.b16 %v5032, %v5025
      %v5446 = vpack.c.b16 %v5040, %v5033
      %v5447 = vpack.c.b16 %v5041, %v5034
      %v5448 = vpack.c.b16 %v5042, %v5035
      %v5449 = vpack.c.b16 %v5043, %v5036
      %v5450 = vpack.c.b16 %v5044, %v5037
      %v5451 = vpack.c.b16 %v5045, %v5038
      %v5452 = vpack.c.b16 %v5046, %v5039
      %v5453 = vpack.c.b16 %v5054, %v5047
      %v5454 = vpack.c.b16 %v5055, %v5048
      %v5455 = vpack.c.b16 %v5056, %v5049
      %v5456 = vpack.c.b16 %v5057, %v5050
      %v5457 = vpack.c.b16 %v5058, %v5051
      %v5458 = vpack.c.b16 %v5059, %v5052
      %v5459 = vpack.c.b16 %v5060, %v5053
      %v5460 = vpack.c.b16 %v5068, %v5061
      %v5461 = vpack.c.b16 %v5069, %v5062
      %v5462 = vpack.c.b16 %v5070, %v5063
      %v5463 = vpack.c.b16 %v5071, %v5064
      %v5464 = vpack.c.b16 %v5072, %v5065
      %v5465 = vpack.c.b16 %v5073, %v5066
      %v5466 = vpack.c.b16 %v5074, %v5067
      %v5467 = vpack.c.b16 %v5082, %v5075
      %v5468 = vpack.c.b16 %v5083, %v5076
      %v5469 = vpack.c.b16 %v5084, %v5077
      %v5470 = vpack.c.b16 %v5085, %v5078
      %v5471 = vpack.c.b16 %v5086, %v5079
      %v5472 = vpack.c.b16 %v5087, %v5080
      %v5473 = vpack.c.b16 %v5088, %v5081
      %v5474 = vpack.c.b16 %v5096, %v5089
      %v5475 = vpack.c.b16 %v5097, %v5090
      %v5476 = vpack.c.b16 %v5098, %v5091
      %v5477 = vpack.c.b16 %v5099, %v5092
      %v5478 = vpack.c.b16 %v5100, %v5093
      %v5479 = vpack.c.b16 %v5101, %v5094
      %v5480 = vpack.c.b16 %v5102, %v5095
      %v5481 = vpack.c.b16 %v5110, %v5103
      %v5482 = vpack.c.b16 %v5111, %v5104
      %v5483 = vpack.c.b16 %v5112, %v5105
      %v5484 = vpack.c.b16 %v5113, %v5106
      %v5485 = vpack.c.b16 %v5114, %v5107
      %v5486 = vpack.c.b16 %v5115, %v5108
      %v5487 = vpack.c.b16 %v5116, %v5109
      %v5488 = vpack.c.b16 %v5124, %v5117
      %v5489 = vpack.c.b16 %v5125, %v5118
      %v5490 = vpack.c.b16 %v5126, %v5119
      %v5491 = vpack.c.b16 %v5127, %v5120
      %v5492 = vpack.c.b16 %v5128, %v5121
      %v5493 = vpack.c.b16 %v5129, %v5122
      %v5494 = vpack.c.b16 %v5130, %v5123
      %v5495 = vpack.c.b16 %v5138, %v5131
      %v5496 = vpack.c.b16 %v5139, %v5132
      %v5497 = vpack.c.b16 %v5140, %v5133
      %v5498 = vpack.c.b16 %v5141, %v5134
      %v5499 = vpack.c.b16 %v5142, %v5135
      %v5500 = vpack.c.b16 %v5143, %v5136
      %v5501 = vpack.c.b16 %v5144, %v5137
      %v5502 = vpack.c.b16 %v5152, %v5145
      %v5503 = vpack.c.b16 %v5153, %v5146
      %v5504 = vpack.c.b16 %v5154, %v5147
      %v5505 = vpack.c.b16 %v5155, %v5148
      %v5506 = vpack.c.b16 %v5156, %v5149
      %v5507 = vpack.c.b16 %v5157, %v5150
      %v5508 = vpack.c.b16 %v5158, %v5151
      %v5509 = vpack.c.b16 %v5166, %v5159
      %v5510 = vpack.c.b16 %v5167, %v5160
      %v5511 = vpack.c.b16 %v5168, %v5161
      %v5512 = vpack.c.b16 %v5169, %v5162
      %v5513 = vpack.c.b16 %v5170, %v5163
      %v5514 = vpack.c.b16 %v5171, %v5164
      %v5515 = vpack.c.b16 %v5172, %v5165
      %v5516 = vpack.c.b16 %v5180, %v5173
      %v5517 = vpack.c.b16 %v5181, %v5174
      %v5518 = vpack.c.b16 %v5182, %v5175
      %v5519 = vpack.c.b16 %v5183, %v5176
      %v5520 = vpack.c.b16 %v5184, %v5177
      %v5521 = vpack.c.b16 %v5185, %v5178
      %v5522 = vpack.c.b16 %v5186, %v5179
      %v5523 = vpack.c.b16 %v5194, %v5187
      %v5524 = vpack.c.b16 %v5195, %v5188
      %v5525 = vpack.c.b16 %v5196, %v5189
      %v5526 = vpack.c.b16 %v5197, %v5190
      %v5527 = vpack.c.b16 %v5198, %v5191
      %v5528 = vpack.c.b16 %v5199, %v5192
      %v5529 = vpack.c.b16 %v5200, %v5193
      %v5530 = vpack.c.b16 %v5208, %v5201
      %v5531 = vpack.c.b16 %v5209, %v5202
      %v5532 = vpack.c.b16 %v5210, %v5203
      %v5533 = vpack.c.b16 %v5211, %v5204
      %v5534 = vpack.c.b16 %v5212, %v5205
      %v5535 = vpack.c.b16 %v5213, %v5206
      %v5536 = vpack.c.b16 %v5214, %v5207
      %v5537 = vpack.c.b16 %v5222, %v5215
      %v5538 = vpack.c.b16 %v5223, %v5216
      %v5539 = vpack.c.b16 %v5224, %v5217
      %v5540 = vpack.c.b16 %v5225, %v5218
      %v5541 = vpack.c.b16 %v5226, %v5219
      %v5542 = vpack.c.b16 %v5227, %v5220
      %v5543 = vpack.c.b16 %v5228, %v5221
      %v5544 = vpack.c.b16 %v5236, %v5229
      %v5545 = vpack.c.b16 %v5237, %v5230
      %v5546 = vpack.c.b16 %v5238, %v5231
      %v5547 = vpack.c.b16 %v5239, %v5232
      %v5548 = vpack.c.b16 %v5240, %v5233
      %v5549 = vpack.c.b16 %v5241, %v5234
      %v5550 = vpack.c.b16 %v5242, %v5235
      %v5551 = vpack.c.b16 %v5250, %v5243
      %v5552 = vpack.c.b16 %v5251, %v5244
      %v5553 = vpack.c.b16 %v5252, %v5245
      %v5554 = vpack.c.b16 %v5253, %v5246
      %v5555 = vpack.c.b16 %v5254, %v5247
      %v5556 = vpack.c.b16 %v5255, %v5248
      %v5557 = vpack.c.b16 %v5256, %v5249
      %v5558 = vpack.c.b16 %v5264, %v5257
      %v5559 = vpack.c.b16 %v5265, %v5258
      %v5560 = vpack.c.b16 %v5266, %v5259
      %v5561 = vpack.c.b16 %v5267, %v5260
      %v5562 = vpack.c.b16 %v5268, %v5261
      %v5563 = vpack.c.b16 %v5269, %v5262
      %v5564 = vpack.c.b16 %v5270, %v5263
      %v5565 = vpack.c.b16 %v5278, %v5271
      %v5566 = vpack.c.b16 %v5279, %v5272
      %v5567 = vpack.c.b16 %v5280, %v5273
      %v5568 = vpack.c.b16 %v5281, %v5274
      %v5569 = vpack.c.b16 %v5282, %v5275
      %v5570 = vpack.c.b16 %v5283, %v5276
      %v5571 = vpack.c.b16 %v5284, %v5277
      %v5572 = vpack.c.b16 %v5292, %v5285
      %v5573 = vpack.c.b16 %v5293, %v5286
      %v5574 = vpack.c.b16 %v5294, %v5287
      %v5575 = vpack.c.b16 %v5295, %v5288
      %v5576 = vpack.c.b16 %v5296, %v5289
      %v5577 = vpack.c.b16 %v5297, %v5290
      %v5578 = vpack.c.b16 %v5298, %v5291
      %v5579 = vpack.c.b16 %v5306, %v5299
      %v5580 = vpack.c.b16 %v5307, %v5300
      %v5581 = vpack.c.b16 %v5308, %v5301
      %v5582 = vpack.c.b16 %v5309, %v5302
      %v5583 = vpack.c.b16 %v5310, %v5303
      %v5584 = vpack.c.b16 %v5311, %v5304
      %v5585 = vpack.c.b16 %v5312, %v5305
      %v5586 = vpack.c.b16 %v5320, %v5313
      %v5587 = vpack.c.b16 %v5321, %v5314
      %v5588 = vpack.c.b16 %v5322, %v5315
      %v5589 = vpack.c.b16 %v5323, %v5316
      %v5590 = vpack.c.b16 %v5324, %v5317
      %v5591 = vpack.c.b16 %v5325, %v5318
      %v5592 = vpack.c.b16 %v5326, %v5319
      %v5593 = vpack.c.b16 %v5334, %v5327
      %v5594 = vpack.c.b16 %v5335, %v5328
      %v5595 = vpack.c.b16 %v5336, %v5329
      %v5596 = vpack.c.b16 %v5337, %v5330
      %v5597 = vpack.c.b16 %v5338, %v5331
      %v5598 = vpack.c.b16 %v5339, %v5332
      %v5599 = vpack.c.b16 %v5340, %v5333
      %v5600 = vpack.c.b16 %v5348, %v5341
      %v5601 = vpack.c.b16 %v5349, %v5342
      %v5602 = vpack.c.b16 %v5350, %v5343
      %v5603 = vpack.c.b16 %v5351, %v5344
      %v5604 = vpack.c.b16 %v5352, %v5345
      %v5605 = vpack.c.b16 %v5353, %v5346
      %v5606 = vpack.c.b16 %v5354, %v5347
      %v5607 = vpack.c.b16 %v5362, %v5355
      %v5608 = vpack.c.b16 %v5363, %v5356
      %v5609 = vpack.c.b16 %v5364, %v5357
      %v5610 = vpack.c.b16 %v5365, %v5358
      %v5611 = vpack.c.b16 %v5366, %v5359
      %v5612 = vpack.c.b16 %v5367, %v5360
      %v5613 = vpack.c.b16 %v5368, %v5361
      %v5614 = vpack.c.b16 %v5376, %v5369
      %v5615 = vpack.c.b16 %v5377, %v5370
      %v5616 = vpack.c.b16 %v5378, %v5371
      %v5617 = vpack.c.b16 %v5379, %v5372
      %v5618 = vpack.c.b16 %v5380, %v5373
      %v5619 = vpack.c.b16 %v5381, %v5374
      %v5620 = vpack.c.b16 %v5382, %v5375
      %v5621 = vpack.c.b16 %v5390, %v5383
      %v5622 = vpack.c.b16 %v5391, %v5384
      %v5623 = vpack.c.b16 %v5392, %v5385
      %v5624 = vpack.c.b16 %v5393, %v5386
      %v5625 = vpack.c.b16 %v5394, %v5387
      %v5626 = vpack.c.b16 %v5395, %v5388
      %v5627 = vpack.c.b16 %v5396, %v5389
      %v5628 = vpack.c.b16 %v5404, %v5397
      %v5629 = vpack.c.b16 %v5405, %v5398
      %v5630 = vpack.c.b16 %v5406, %v5399
      %v5631 = vpack.c.b16 %v5407, %v5400
      %v5632 = vpack.c.b16 %v5408, %v5401
      %v5633 = vpack.c.b16 %v5409, %v5402
      %v5634 = vpack.c.b16 %v5410, %v5403
      %5859 = vmatprep.subr.bf16.mxu0 %v5461
      %5860 = vmatpush1.bf16.msra.mxu0 %v5460
      %5861 = vmatprep.subr.bf16.mxu0 %v5454
      %5862 = vmatpush1.bf16.msra.mxu0 %v5453
      %5863 = vmatprep.subr.bf16.mxu0 %v5447
      %5864 = vmatpush1.bf16.msra.mxu0 %v5446
      %5865 = vmatprep.subr.bf16.mxu0 %v5440
      %5866 = vmatpush1.bf16.msra.mxu0 %v5439
      %5867 = vmatprep.subr.bf16.mxu0 %v5433
      %5868 = vmatpush1.bf16.msra.mxu0 %v5432
      %5869 = vmatprep.subr.bf16.mxu0 %v5426
      %5870 = vmatpush1.bf16.msra.mxu0 %v5425
      %5871 = vmatprep.subr.bf16.mxu0 %v5419
      %5872 = vmatpush1.bf16.msra.mxu0 %v5418
      %5873 = vmatprep.subr.bf16.mxu0 %v5412
      %5874 = vmatpush1.bf16.msra.mxu0 %v5411
      %5875 = vmatprep.subr.bf16.mxu0 %v5517
      %5876 = vmatpush2.bf16.msra.mxu0 %v5516
      %5877 = vmatprep.subr.bf16.mxu0 %v5510
      %5878 = vmatpush2.bf16.msra.mxu0 %v5509
      %5879 = vmatprep.subr.bf16.mxu0 %v5503
      %5880 = vmatpush2.bf16.msra.mxu0 %v5502
      %5881 = vmatprep.subr.bf16.mxu0 %v5496
      %5882 = vmatpush2.bf16.msra.mxu0 %v5495
      %5883 = vmatprep.subr.bf16.mxu0 %v5489
      %5884 = vmatpush2.bf16.msra.mxu0 %v5488
      %5885 = vmatprep.subr.bf16.mxu0 %v5482
      %5886 = vmatpush2.bf16.msra.mxu0 %v5481
      %5887 = vmatprep.subr.bf16.mxu0 %v5475
      %5888 = vmatpush2.bf16.msra.mxu0 %v5474
      %5889 = vmatprep.subr.bf16.mxu0 %v5468
      %5890 = vmatpush2.bf16.msra.mxu0 %v5467
      %5891 = vmatprep.mubr.bf16.mxu0 %v4383
      %5892 = vmatmul.mubr.bf16.gmra.mxu0 %v4382
      %v5893 = vpop.f32.mrf.mxu0
      %v5894 = vadd.f32 %v4675, %v5893
      %v5895 = vpop.f32.mrf.mxu0
      %v5896 = vadd.f32 %v4679, %v5895
      %v5897 = vpop.f32.mrf.mxu0
      %v5898 = vadd.f32 %v4675, %v5897
      %v5899 = vpop.f32.mrf.mxu0
      %v5900 = vadd.f32 %v4679, %v5899
      %5901 = vmatprep.mubr.bf16.mxu0 %v4387
      %5902 = vmatmul.mubr.bf16.gmra.mxu0 %v4386
      %v5903 = vpop.f32.mrf.mxu0
      %v5904 = vadd.f32 %v4675, %v5903
      %v5905 = vpop.f32.mrf.mxu0
      %v5906 = vadd.f32 %v4679, %v5905
      %v5907 = vpop.f32.mrf.mxu0
      %v5908 = vadd.f32 %v4675, %v5907
      %v5909 = vpop.f32.mrf.mxu0
      %v5910 = vadd.f32 %v4679, %v5909
      %5911 = vmatprep.mubr.bf16.mxu0 %v4391
      %5912 = vmatmul.mubr.bf16.gmra.mxu0 %v4390
      %v5913 = vpop.f32.mrf.mxu0
      %v5914 = vadd.f32 %v4675, %v5913
      %v5915 = vpop.f32.mrf.mxu0
      %v5916 = vadd.f32 %v4679, %v5915
      %v5917 = vpop.f32.mrf.mxu0
      %v5918 = vadd.f32 %v4675, %v5917
      %v5919 = vpop.f32.mrf.mxu0
      %v5920 = vadd.f32 %v4679, %v5919
      %5921 = vmatprep.mubr.bf16.mxu0 %v4395
      %5922 = vmatmul.mubr.bf16.gmra.mxu0 %v4394
      %v5923 = vpop.f32.mrf.mxu0
      %v5924 = vadd.f32 %v4675, %v5923
      %v5925 = vpop.f32.mrf.mxu0
      %v5926 = vadd.f32 %v4679, %v5925
      %v5927 = vpop.f32.mrf.mxu0
      %v5928 = vadd.f32 %v4675, %v5927
      %v5929 = vpop.f32.mrf.mxu0
      %v5930 = vadd.f32 %v4679, %v5929
      %5931 = vmatprep.mubr.bf16.mxu0 %v4399
      %5932 = vmatmul.mubr.bf16.gmra.mxu0 %v4398
      %v5933 = vpop.f32.mrf.mxu0
      %v5934 = vadd.f32 %v4675, %v5933
      %v5935 = vpop.f32.mrf.mxu0
      %v5936 = vadd.f32 %v4679, %v5935
      %v5937 = vpop.f32.mrf.mxu0
      %v5938 = vadd.f32 %v4675, %v5937
      %v5939 = vpop.f32.mrf.mxu0
      %v5940 = vadd.f32 %v4679, %v5939
      %5941 = vmatprep.mubr.bf16.mxu0 %v4403
      %5942 = vmatmul.mubr.bf16.gmra.mxu0 %v4402
      %v5943 = vpop.f32.mrf.mxu0
      %v5944 = vadd.f32 %v4675, %v5943
      %v5945 = vpop.f32.mrf.mxu0
      %v5946 = vadd.f32 %v4679, %v5945
      %v5947 = vpop.f32.mrf.mxu0
      %v5948 = vadd.f32 %v4675, %v5947
      %v5949 = vpop.f32.mrf.mxu0
      %v5950 = vadd.f32 %v4679, %v5949
      %5951 = vmatprep.mubr.bf16.mxu0 %v4407
      %5952 = vmatmul.mubr.bf16.gmra.mxu0 %v4406
      %v5953 = vpop.f32.mrf.mxu0
      %v5954 = vadd.f32 %v4675, %v5953
      %v5955 = vpop.f32.mrf.mxu0
      %v5956 = vadd.f32 %v4679, %v5955
      %v5957 = vpop.f32.mrf.mxu0
      %v5958 = vadd.f32 %v4675, %v5957
      %v5959 = vpop.f32.mrf.mxu0
      %v5960 = vadd.f32 %v4679, %v5959
      %5961 = vmatprep.mubr.bf16.mxu0 %v4411
      %5962 = vmatmul.mubr.bf16.gmra.mxu0 %v4410
      %v5963 = vpop.f32.mrf.mxu0
      %v5964 = vadd.f32 %v4675, %v5963
      %v5965 = vpop.f32.mrf.mxu0
      %v5966 = vadd.f32 %v4679, %v5965
      %v5967 = vpop.f32.mrf.mxu0
      %v5968 = vadd.f32 %v4675, %v5967
      %v5969 = vpop.f32.mrf.mxu0
      %v5970 = vadd.f32 %v4679, %v5969
      %5971 = vdwg.mxu0
      %5972 = vmatprep.subr.bf16.mxu0 %v5573
      %5973 = vmatpush1.bf16.msra.mxu0 %v5572
      %5974 = vmatprep.subr.bf16.mxu0 %v5566
      %5975 = vmatpush1.bf16.msra.mxu0 %v5565
      %5976 = vmatprep.subr.bf16.mxu0 %v5559
      %5977 = vmatpush1.bf16.msra.mxu0 %v5558
      %5978 = vmatprep.subr.bf16.mxu0 %v5552
      %5979 = vmatpush1.bf16.msra.mxu0 %v5551
      %5980 = vmatprep.subr.bf16.mxu0 %v5545
      %5981 = vmatpush1.bf16.msra.mxu0 %v5544
      %5982 = vmatprep.subr.bf16.mxu0 %v5538
      %5983 = vmatpush1.bf16.msra.mxu0 %v5537
      %5984 = vmatprep.subr.bf16.mxu0 %v5531
      %5985 = vmatpush1.bf16.msra.mxu0 %v5530
      %5986 = vmatprep.subr.bf16.mxu0 %v5524
      %5987 = vmatpush1.bf16.msra.mxu0 %v5523
      %5988 = vmatprep.subr.bf16.mxu0 %v5629
      %5989 = vmatpush2.bf16.msra.mxu0 %v5628
      %5990 = vmatprep.subr.bf16.mxu0 %v5622
      %5991 = vmatpush2.bf16.msra.mxu0 %v5621
      %5992 = vmatprep.subr.bf16.mxu0 %v5615
      %5993 = vmatpush2.bf16.msra.mxu0 %v5614
      %5994 = vmatprep.subr.bf16.mxu0 %v5608
      %5995 = vmatpush2.bf16.msra.mxu0 %v5607
      %5996 = vmatprep.subr.bf16.mxu0 %v5601
      %5997 = vmatpush2.bf16.msra.mxu0 %v5600
      %5998 = vmatprep.subr.bf16.mxu0 %v5594
      %5999 = vmatpush2.bf16.msra.mxu0 %v5593
      %6000 = vmatprep.subr.bf16.mxu0 %v5587
      %6001 = vmatpush2.bf16.msra.mxu0 %v5586
      %6002 = vmatprep.subr.bf16.mxu0 %v5580
      %6003 = vmatpush2.bf16.msra.mxu0 %v5579
      %6004 = vmatprep.mubr.bf16.mxu0 %v4385
      %6005 = vmatmul.mubr.bf16.gmra.mxu0 %v4384
      %v6006 = vpop.f32.mrf.mxu0
      %v6007 = vadd.f32 %v5894, %v6006
      %v6008 = vpop.f32.mrf.mxu0
      %v6009 = vadd.f32 %v5896, %v6008
      %v6010 = vpop.f32.mrf.mxu0
      %v6011 = vadd.f32 %v5898, %v6010
      %v6012 = vpop.f32.mrf.mxu0
      %v6013 = vadd.f32 %v5900, %v6012
      %6014 = vmatprep.mubr.bf16.mxu0 %v4389
      %6015 = vmatmul.mubr.bf16.gmra.mxu0 %v4388
      %v6016 = vpop.f32.mrf.mxu0
      %v6017 = vadd.f32 %v5904, %v6016
      %v6018 = vpop.f32.mrf.mxu0
      %v6019 = vadd.f32 %v5906, %v6018
      %v6020 = vpop.f32.mrf.mxu0
      %v6021 = vadd.f32 %v5908, %v6020
      %v6022 = vpop.f32.mrf.mxu0
      %v6023 = vadd.f32 %v5910, %v6022
      %6024 = vmatprep.mubr.bf16.mxu0 %v4393
      %6025 = vmatmul.mubr.bf16.gmra.mxu0 %v4392
      %v6026 = vpop.f32.mrf.mxu0
      %v6027 = vadd.f32 %v5914, %v6026
      %v6028 = vpop.f32.mrf.mxu0
      %v6029 = vadd.f32 %v5916, %v6028
      %v6030 = vpop.f32.mrf.mxu0
      %v6031 = vadd.f32 %v5918, %v6030
      %v6032 = vpop.f32.mrf.mxu0
      %v6033 = vadd.f32 %v5920, %v6032
      %6034 = vmatprep.mubr.bf16.mxu0 %v4397
      %6035 = vmatmul.mubr.bf16.gmra.mxu0 %v4396
      %v6036 = vpop.f32.mrf.mxu0
      %v6037 = vadd.f32 %v5924, %v6036
      %v6038 = vpop.f32.mrf.mxu0
      %v6039 = vadd.f32 %v5926, %v6038
      %v6040 = vpop.f32.mrf.mxu0
      %v6041 = vadd.f32 %v5928, %v6040
      %v6042 = vpop.f32.mrf.mxu0
      %v6043 = vadd.f32 %v5930, %v6042
      %6044 = vmatprep.mubr.bf16.mxu0 %v4401
      %6045 = vmatmul.mubr.bf16.gmra.mxu0 %v4400
      %v6046 = vpop.f32.mrf.mxu0
      %v6047 = vadd.f32 %v5934, %v6046
      %v6048 = vpop.f32.mrf.mxu0
      %v6049 = vadd.f32 %v5936, %v6048
      %v6050 = vpop.f32.mrf.mxu0
      %v6051 = vadd.f32 %v5938, %v6050
      %v6052 = vpop.f32.mrf.mxu0
      %v6053 = vadd.f32 %v5940, %v6052
      %6054 = vmatprep.mubr.bf16.mxu0 %v4405
      %6055 = vmatmul.mubr.bf16.gmra.mxu0 %v4404
      %v6056 = vpop.f32.mrf.mxu0
      %v6057 = vadd.f32 %v5944, %v6056
      %v6058 = vpop.f32.mrf.mxu0
      %v6059 = vadd.f32 %v5946, %v6058
      %v6060 = vpop.f32.mrf.mxu0
      %v6061 = vadd.f32 %v5948, %v6060
      %v6062 = vpop.f32.mrf.mxu0
      %v6063 = vadd.f32 %v5950, %v6062
      %6064 = vmatprep.mubr.bf16.mxu0 %v4409
      %6065 = vmatmul.mubr.bf16.gmra.mxu0 %v4408
      %v6066 = vpop.f32.mrf.mxu0
      %v6067 = vadd.f32 %v5954, %v6066
      %v6068 = vpop.f32.mrf.mxu0
      %v6069 = vadd.f32 %v5956, %v6068
      %v6070 = vpop.f32.mrf.mxu0
      %v6071 = vadd.f32 %v5958, %v6070
      %v6072 = vpop.f32.mrf.mxu0
      %v6073 = vadd.f32 %v5960, %v6072
      %6074 = vmatprep.mubr.bf16.mxu0 %v4413
      %6075 = vmatmul.mubr.bf16.gmra.mxu0 %v4412
      %v6076 = vpop.f32.mrf.mxu0
      %v6077 = vadd.f32 %v5964, %v6076
      %v6078 = vpop.f32.mrf.mxu0
      %v6079 = vadd.f32 %v5966, %v6078
      %v6080 = vpop.f32.mrf.mxu0
      %v6081 = vadd.f32 %v5968, %v6080
      %v6082 = vpop.f32.mrf.mxu0
      %v6083 = vadd.f32 %v5970, %v6082
      %6084 = vdwg.mxu0
      %6085 = vmatprep.subr.bf16.mxu0 %v5463
      %6086 = vmatpush1.bf16.msra.mxu0 %v5462
      %6087 = vmatprep.subr.bf16.mxu0 %v5456
      %6088 = vmatpush1.bf16.msra.mxu0 %v5455
      %6089 = vmatprep.subr.bf16.mxu0 %v5449
      %6090 = vmatpush1.bf16.msra.mxu0 %v5448
      %6091 = vmatprep.subr.bf16.mxu0 %v5442
      %6092 = vmatpush1.bf16.msra.mxu0 %v5441
      %6093 = vmatprep.subr.bf16.mxu0 %v5435
      %6094 = vmatpush1.bf16.msra.mxu0 %v5434
      %6095 = vmatprep.subr.bf16.mxu0 %v5428
      %6096 = vmatpush1.bf16.msra.mxu0 %v5427
      %6097 = vmatprep.subr.bf16.mxu0 %v5421
      %6098 = vmatpush1.bf16.msra.mxu0 %v5420
      %6099 = vmatprep.subr.bf16.mxu0 %v5414
      %6100 = vmatpush1.bf16.msra.mxu0 %v5413
      %6101 = vmatprep.subr.bf16.mxu0 %v5519
      %6102 = vmatpush2.bf16.msra.mxu0 %v5518
      %6103 = vmatprep.subr.bf16.mxu0 %v5512
      %6104 = vmatpush2.bf16.msra.mxu0 %v5511
      %6105 = vmatprep.subr.bf16.mxu0 %v5505
      %6106 = vmatpush2.bf16.msra.mxu0 %v5504
      %6107 = vmatprep.subr.bf16.mxu0 %v5498
      %6108 = vmatpush2.bf16.msra.mxu0 %v5497
      %6109 = vmatprep.subr.bf16.mxu0 %v5491
      %6110 = vmatpush2.bf16.msra.mxu0 %v5490
      %6111 = vmatprep.subr.bf16.mxu0 %v5484
      %6112 = vmatpush2.bf16.msra.mxu0 %v5483
      %6113 = vmatprep.subr.bf16.mxu0 %v5477
      %6114 = vmatpush2.bf16.msra.mxu0 %v5476
      %6115 = vmatprep.subr.bf16.mxu0 %v5470
      %6116 = vmatpush2.bf16.msra.mxu0 %v5469
      %6117 = vmatprep.mubr.bf16.mxu0 %v4383
      %6118 = vmatmul.mubr.bf16.gmra.mxu0 %v4382
      %v6119 = vpop.f32.mrf.mxu0
      %v6120 = vadd.f32 %v4683, %v6119
      %v6121 = vpop.f32.mrf.mxu0
      %v6122 = vadd.f32 %v4687, %v6121
      %v6123 = vpop.f32.mrf.mxu0
      %v6124 = vadd.f32 %v4683, %v6123
      %v6125 = vpop.f32.mrf.mxu0
      %v6126 = vadd.f32 %v4687, %v6125
      %6127 = vmatprep.mubr.bf16.mxu0 %v4387
      %6128 = vmatmul.mubr.bf16.gmra.mxu0 %v4386
      %v6129 = vpop.f32.mrf.mxu0
      %v6130 = vadd.f32 %v4683, %v6129
      %v6131 = vpop.f32.mrf.mxu0
      %v6132 = vadd.f32 %v4687, %v6131
      %v6133 = vpop.f32.mrf.mxu0
      %v6134 = vadd.f32 %v4683, %v6133
      %v6135 = vpop.f32.mrf.mxu0
      %v6136 = vadd.f32 %v4687, %v6135
      %6137 = vmatprep.mubr.bf16.mxu0 %v4391
      %6138 = vmatmul.mubr.bf16.gmra.mxu0 %v4390
      %v6139 = vpop.f32.mrf.mxu0
      %v6140 = vadd.f32 %v4683, %v6139
      %v6141 = vpop.f32.mrf.mxu0
      %v6142 = vadd.f32 %v4687, %v6141
      %v6143 = vpop.f32.mrf.mxu0
      %v6144 = vadd.f32 %v4683, %v6143
      %v6145 = vpop.f32.mrf.mxu0
      %v6146 = vadd.f32 %v4687, %v6145
      %6147 = vmatprep.mubr.bf16.mxu0 %v4395
      %6148 = vmatmul.mubr.bf16.gmra.mxu0 %v4394
      %v6149 = vpop.f32.mrf.mxu0
      %v6150 = vadd.f32 %v4683, %v6149
      %v6151 = vpop.f32.mrf.mxu0
      %v6152 = vadd.f32 %v4687, %v6151
      %v6153 = vpop.f32.mrf.mxu0
      %v6154 = vadd.f32 %v4683, %v6153
      %v6155 = vpop.f32.mrf.mxu0
      %v6156 = vadd.f32 %v4687, %v6155
      %6157 = vmatprep.mubr.bf16.mxu0 %v4399
      %6158 = vmatmul.mubr.bf16.gmra.mxu0 %v4398
      %v6159 = vpop.f32.mrf.mxu0
      %v6160 = vadd.f32 %v4683, %v6159
      %v6161 = vpop.f32.mrf.mxu0
      %v6162 = vadd.f32 %v4687, %v6161
      %v6163 = vpop.f32.mrf.mxu0
      %v6164 = vadd.f32 %v4683, %v6163
      %v6165 = vpop.f32.mrf.mxu0
      %v6166 = vadd.f32 %v4687, %v6165
      %6167 = vmatprep.mubr.bf16.mxu0 %v4403
      %6168 = vmatmul.mubr.bf16.gmra.mxu0 %v4402
      %v6169 = vpop.f32.mrf.mxu0
      %v6170 = vadd.f32 %v4683, %v6169
      %v6171 = vpop.f32.mrf.mxu0
      %v6172 = vadd.f32 %v4687, %v6171
      %v6173 = vpop.f32.mrf.mxu0
      %v6174 = vadd.f32 %v4683, %v6173
      %v6175 = vpop.f32.mrf.mxu0
      %v6176 = vadd.f32 %v4687, %v6175
      %6177 = vmatprep.mubr.bf16.mxu0 %v4407
      %6178 = vmatmul.mubr.bf16.gmra.mxu0 %v4406
      %v6179 = vpop.f32.mrf.mxu0
      %v6180 = vadd.f32 %v4683, %v6179
      %v6181 = vpop.f32.mrf.mxu0
      %v6182 = vadd.f32 %v4687, %v6181
      %v6183 = vpop.f32.mrf.mxu0
      %v6184 = vadd.f32 %v4683, %v6183
      %v6185 = vpop.f32.mrf.mxu0
      %v6186 = vadd.f32 %v4687, %v6185
      %6187 = vmatprep.mubr.bf16.mxu0 %v4411
      %6188 = vmatmul.mubr.bf16.gmra.mxu0 %v4410
      %v6189 = vpop.f32.mrf.mxu0
      %v6190 = vadd.f32 %v4683, %v6189
      %v6191 = vpop.f32.mrf.mxu0
      %v6192 = vadd.f32 %v4687, %v6191
      %v6193 = vpop.f32.mrf.mxu0
      %v6194 = vadd.f32 %v4683, %v6193
      %v6195 = vpop.f32.mrf.mxu0
      %v6196 = vadd.f32 %v4687, %v6195
      %6197 = vdwg.mxu0
      %6198 = vmatprep.subr.bf16.mxu0 %v5575
      %6199 = vmatpush1.bf16.msra.mxu0 %v5574
      %6200 = vmatprep.subr.bf16.mxu0 %v5568
      %6201 = vmatpush1.bf16.msra.mxu0 %v5567
      %6202 = vmatprep.subr.bf16.mxu0 %v5561
      %6203 = vmatpush1.bf16.msra.mxu0 %v5560
      %6204 = vmatprep.subr.bf16.mxu0 %v5554
      %6205 = vmatpush1.bf16.msra.mxu0 %v5553
      %6206 = vmatprep.subr.bf16.mxu0 %v5547
      %6207 = vmatpush1.bf16.msra.mxu0 %v5546
      %6208 = vmatprep.subr.bf16.mxu0 %v5540
      %6209 = vmatpush1.bf16.msra.mxu0 %v5539
      %6210 = vmatprep.subr.bf16.mxu0 %v5533
      %6211 = vmatpush1.bf16.msra.mxu0 %v5532
      %6212 = vmatprep.subr.bf16.mxu0 %v5526
      %6213 = vmatpush1.bf16.msra.mxu0 %v5525
      %6214 = vmatprep.subr.bf16.mxu0 %v5631
      %6215 = vmatpush2.bf16.msra.mxu0 %v5630
      %6216 = vmatprep.subr.bf16.mxu0 %v5624
      %6217 = vmatpush2.bf16.msra.mxu0 %v5623
      %6218 = vmatprep.subr.bf16.mxu0 %v5617
      %6219 = vmatpush2.bf16.msra.mxu0 %v5616
      %6220 = vmatprep.subr.bf16.mxu0 %v5610
      %6221 = vmatpush2.bf16.msra.mxu0 %v5609
      %6222 = vmatprep.subr.bf16.mxu0 %v5603
      %6223 = vmatpush2.bf16.msra.mxu0 %v5602
      %6224 = vmatprep.subr.bf16.mxu0 %v5596
      %6225 = vmatpush2.bf16.msra.mxu0 %v5595
      %6226 = vmatprep.subr.bf16.mxu0 %v5589
      %6227 = vmatpush2.bf16.msra.mxu0 %v5588
      %6228 = vmatprep.subr.bf16.mxu0 %v5582
      %6229 = vmatpush2.bf16.msra.mxu0 %v5581
      %6230 = vmatprep.mubr.bf16.mxu0 %v4385
      %6231 = vmatmul.mubr.bf16.gmra.mxu0 %v4384
      %v6232 = vpop.f32.mrf.mxu0
      %v6233 = vadd.f32 %v6120, %v6232
      %v6234 = vpop.f32.mrf.mxu0
      %v6235 = vadd.f32 %v6122, %v6234
      %v6236 = vpop.f32.mrf.mxu0
      %v6237 = vadd.f32 %v6124, %v6236
      %v6238 = vpop.f32.mrf.mxu0
      %v6239 = vadd.f32 %v6126, %v6238
      %6240 = vmatprep.mubr.bf16.mxu0 %v4389
      %6241 = vmatmul.mubr.bf16.gmra.mxu0 %v4388
      %v6242 = vpop.f32.mrf.mxu0
      %v6243 = vadd.f32 %v6130, %v6242
      %v6244 = vpop.f32.mrf.mxu0
      %v6245 = vadd.f32 %v6132, %v6244
      %v6246 = vpop.f32.mrf.mxu0
      %v6247 = vadd.f32 %v6134, %v6246
      %v6248 = vpop.f32.mrf.mxu0
      %v6249 = vadd.f32 %v6136, %v6248
      %6250 = vmatprep.mubr.bf16.mxu0 %v4393
      %6251 = vmatmul.mubr.bf16.gmra.mxu0 %v4392
      %v6252 = vpop.f32.mrf.mxu0
      %v6253 = vadd.f32 %v6140, %v6252
      %v6254 = vpop.f32.mrf.mxu0
      %v6255 = vadd.f32 %v6142, %v6254
      %v6256 = vpop.f32.mrf.mxu0
      %v6257 = vadd.f32 %v6144, %v6256
      %v6258 = vpop.f32.mrf.mxu0
      %v6259 = vadd.f32 %v6146, %v6258
      %6260 = vmatprep.mubr.bf16.mxu0 %v4397
      %6261 = vmatmul.mubr.bf16.gmra.mxu0 %v4396
      %v6262 = vpop.f32.mrf.mxu0
      %v6263 = vadd.f32 %v6150, %v6262
      %v6264 = vpop.f32.mrf.mxu0
      %v6265 = vadd.f32 %v6152, %v6264
      %v6266 = vpop.f32.mrf.mxu0
      %v6267 = vadd.f32 %v6154, %v6266
      %v6268 = vpop.f32.mrf.mxu0
      %v6269 = vadd.f32 %v6156, %v6268
      %6270 = vmatprep.mubr.bf16.mxu0 %v4401
      %6271 = vmatmul.mubr.bf16.gmra.mxu0 %v4400
      %v6272 = vpop.f32.mrf.mxu0
      %v6273 = vadd.f32 %v6160, %v6272
      %v6274 = vpop.f32.mrf.mxu0
      %v6275 = vadd.f32 %v6162, %v6274
      %v6276 = vpop.f32.mrf.mxu0
      %v6277 = vadd.f32 %v6164, %v6276
      %v6278 = vpop.f32.mrf.mxu0
      %v6279 = vadd.f32 %v6166, %v6278
      %6280 = vmatprep.mubr.bf16.mxu0 %v4405
      %6281 = vmatmul.mubr.bf16.gmra.mxu0 %v4404
      %v6282 = vpop.f32.mrf.mxu0
      %v6283 = vadd.f32 %v6170, %v6282
      %v6284 = vpop.f32.mrf.mxu0
      %v6285 = vadd.f32 %v6172, %v6284
      %v6286 = vpop.f32.mrf.mxu0
      %v6287 = vadd.f32 %v6174, %v6286
      %v6288 = vpop.f32.mrf.mxu0
      %v6289 = vadd.f32 %v6176, %v6288
      %6290 = vmatprep.mubr.bf16.mxu0 %v4409
      %6291 = vmatmul.mubr.bf16.gmra.mxu0 %v4408
      %v6292 = vpop.f32.mrf.mxu0
      %v6293 = vadd.f32 %v6180, %v6292
      %v6294 = vpop.f32.mrf.mxu0
      %v6295 = vadd.f32 %v6182, %v6294
      %v6296 = vpop.f32.mrf.mxu0
      %v6297 = vadd.f32 %v6184, %v6296
      %v6298 = vpop.f32.mrf.mxu0
      %v6299 = vadd.f32 %v6186, %v6298
      %6300 = vmatprep.mubr.bf16.mxu0 %v4413
      %6301 = vmatmul.mubr.bf16.gmra.mxu0 %v4412
      %v6302 = vpop.f32.mrf.mxu0
      %v6303 = vadd.f32 %v6190, %v6302
      %v6304 = vpop.f32.mrf.mxu0
      %v6305 = vadd.f32 %v6192, %v6304
      %v6306 = vpop.f32.mrf.mxu0
      %v6307 = vadd.f32 %v6194, %v6306
      %v6308 = vpop.f32.mrf.mxu0
      %v6309 = vadd.f32 %v6196, %v6308
      %6310 = vdwg.mxu0
      %6311 = vmatprep.subr.bf16.mxu0 %v5465
      %6312 = vmatpush1.bf16.msra.mxu0 %v5464
      %6313 = vmatprep.subr.bf16.mxu0 %v5458
      %6314 = vmatpush1.bf16.msra.mxu0 %v5457
      %6315 = vmatprep.subr.bf16.mxu0 %v5451
      %6316 = vmatpush1.bf16.msra.mxu0 %v5450
      %6317 = vmatprep.subr.bf16.mxu0 %v5444
      %6318 = vmatpush1.bf16.msra.mxu0 %v5443
      %6319 = vmatprep.subr.bf16.mxu0 %v5437
      %6320 = vmatpush1.bf16.msra.mxu0 %v5436
      %6321 = vmatprep.subr.bf16.mxu0 %v5430
      %6322 = vmatpush1.bf16.msra.mxu0 %v5429
      %6323 = vmatprep.subr.bf16.mxu0 %v5423
      %6324 = vmatpush1.bf16.msra.mxu0 %v5422
      %6325 = vmatprep.subr.bf16.mxu0 %v5416
      %6326 = vmatpush1.bf16.msra.mxu0 %v5415
      %6327 = vmatprep.subr.bf16.mxu0 %v5521
      %6328 = vmatpush2.bf16.msra.mxu0 %v5520
      %6329 = vmatprep.subr.bf16.mxu0 %v5514
      %6330 = vmatpush2.bf16.msra.mxu0 %v5513
      %6331 = vmatprep.subr.bf16.mxu0 %v5507
      %6332 = vmatpush2.bf16.msra.mxu0 %v5506
      %6333 = vmatprep.subr.bf16.mxu0 %v5500
      %6334 = vmatpush2.bf16.msra.mxu0 %v5499
      %6335 = vmatprep.subr.bf16.mxu0 %v5493
      %6336 = vmatpush2.bf16.msra.mxu0 %v5492
      %6337 = vmatprep.subr.bf16.mxu0 %v5486
      %6338 = vmatpush2.bf16.msra.mxu0 %v5485
      %6339 = vmatprep.subr.bf16.mxu0 %v5479
      %6340 = vmatpush2.bf16.msra.mxu0 %v5478
      %6341 = vmatprep.subr.bf16.mxu0 %v5472
      %6342 = vmatpush2.bf16.msra.mxu0 %v5471
      %6343 = vmatprep.mubr.bf16.mxu0 %v4383
      %6344 = vmatmul.mubr.bf16.gmra.mxu0 %v4382
      %v6345 = vpop.f32.mrf.mxu0
      %v6346 = vadd.f32 %v4691, %v6345
      %v6347 = vpop.f32.mrf.mxu0
      %v6348 = vadd.f32 %v4695, %v6347
      %v6349 = vpop.f32.mrf.mxu0
      %v6350 = vadd.f32 %v4691, %v6349
      %v6351 = vpop.f32.mrf.mxu0
      %v6352 = vadd.f32 %v4695, %v6351
      %6353 = vmatprep.mubr.bf16.mxu0 %v4387
      %6354 = vmatmul.mubr.bf16.gmra.mxu0 %v4386
      %v6355 = vpop.f32.mrf.mxu0
      %v6356 = vadd.f32 %v4691, %v6355
      %v6357 = vpop.f32.mrf.mxu0
      %v6358 = vadd.f32 %v4695, %v6357
      %v6359 = vpop.f32.mrf.mxu0
      %v6360 = vadd.f32 %v4691, %v6359
      %v6361 = vpop.f32.mrf.mxu0
      %v6362 = vadd.f32 %v4695, %v6361
      %6363 = vmatprep.mubr.bf16.mxu0 %v4391
      %6364 = vmatmul.mubr.bf16.gmra.mxu0 %v4390
      %v6365 = vpop.f32.mrf.mxu0
      %v6366 = vadd.f32 %v4691, %v6365
      %v6367 = vpop.f32.mrf.mxu0
      %v6368 = vadd.f32 %v4695, %v6367
      %v6369 = vpop.f32.mrf.mxu0
      %v6370 = vadd.f32 %v4691, %v6369
      %v6371 = vpop.f32.mrf.mxu0
      %v6372 = vadd.f32 %v4695, %v6371
      %6373 = vmatprep.mubr.bf16.mxu0 %v4395
      %6374 = vmatmul.mubr.bf16.gmra.mxu0 %v4394
      %v6375 = vpop.f32.mrf.mxu0
      %v6376 = vadd.f32 %v4691, %v6375
      %v6377 = vpop.f32.mrf.mxu0
      %v6378 = vadd.f32 %v4695, %v6377
      %v6379 = vpop.f32.mrf.mxu0
      %v6380 = vadd.f32 %v4691, %v6379
      %v6381 = vpop.f32.mrf.mxu0
      %v6382 = vadd.f32 %v4695, %v6381
      %6383 = vmatprep.mubr.bf16.mxu0 %v4399
      %6384 = vmatmul.mubr.bf16.gmra.mxu0 %v4398
      %v6385 = vpop.f32.mrf.mxu0
      %v6386 = vadd.f32 %v4691, %v6385
      %v6387 = vpop.f32.mrf.mxu0
      %v6388 = vadd.f32 %v4695, %v6387
      %v6389 = vpop.f32.mrf.mxu0
      %v6390 = vadd.f32 %v4691, %v6389
      %v6391 = vpop.f32.mrf.mxu0
      %v6392 = vadd.f32 %v4695, %v6391
      %6393 = vmatprep.mubr.bf16.mxu0 %v4403
      %6394 = vmatmul.mubr.bf16.gmra.mxu0 %v4402
      %v6395 = vpop.f32.mrf.mxu0
      %v6396 = vadd.f32 %v4691, %v6395
      %v6397 = vpop.f32.mrf.mxu0
      %v6398 = vadd.f32 %v4695, %v6397
      %v6399 = vpop.f32.mrf.mxu0
      %v6400 = vadd.f32 %v4691, %v6399
      %v6401 = vpop.f32.mrf.mxu0
      %v6402 = vadd.f32 %v4695, %v6401
      %6403 = vmatprep.mubr.bf16.mxu0 %v4407
      %6404 = vmatmul.mubr.bf16.gmra.mxu0 %v4406
      %v6405 = vpop.f32.mrf.mxu0
      %v6406 = vadd.f32 %v4691, %v6405
      %v6407 = vpop.f32.mrf.mxu0
      %v6408 = vadd.f32 %v4695, %v6407
      %v6409 = vpop.f32.mrf.mxu0
      %v6410 = vadd.f32 %v4691, %v6409
      %v6411 = vpop.f32.mrf.mxu0
      %v6412 = vadd.f32 %v4695, %v6411
      %6413 = vmatprep.mubr.bf16.mxu0 %v4411
      %6414 = vmatmul.mubr.bf16.gmra.mxu0 %v4410
      %v6415 = vpop.f32.mrf.mxu0
      %v6416 = vadd.f32 %v4691, %v6415
      %v6417 = vpop.f32.mrf.mxu0
      %v6418 = vadd.f32 %v4695, %v6417
      %v6419 = vpop.f32.mrf.mxu0
      %v6420 = vadd.f32 %v4691, %v6419
      %v6421 = vpop.f32.mrf.mxu0
      %v6422 = vadd.f32 %v4695, %v6421
      %6423 = vdwg.mxu0
      %6424 = vmatprep.subr.bf16.mxu0 %v5577
      %6425 = vmatpush1.bf16.msra.mxu0 %v5576
      %6426 = vmatprep.subr.bf16.mxu0 %v5570
      %6427 = vmatpush1.bf16.msra.mxu0 %v5569
      %6428 = vmatprep.subr.bf16.mxu0 %v5563
      %6429 = vmatpush1.bf16.msra.mxu0 %v5562
      %6430 = vmatprep.subr.bf16.mxu0 %v5556
      %6431 = vmatpush1.bf16.msra.mxu0 %v5555
      %6432 = vmatprep.subr.bf16.mxu0 %v5549
      %6433 = vmatpush1.bf16.msra.mxu0 %v5548
      %6434 = vmatprep.subr.bf16.mxu0 %v5542
      %6435 = vmatpush1.bf16.msra.mxu0 %v5541
      %6436 = vmatprep.subr.bf16.mxu0 %v5535
      %6437 = vmatpush1.bf16.msra.mxu0 %v5534
      %6438 = vmatprep.subr.bf16.mxu0 %v5528
      %6439 = vmatpush1.bf16.msra.mxu0 %v5527
      %6440 = vmatprep.subr.bf16.mxu0 %v5633
      %6441 = vmatpush2.bf16.msra.mxu0 %v5632
      %6442 = vmatprep.subr.bf16.mxu0 %v5626
      %6443 = vmatpush2.bf16.msra.mxu0 %v5625
      %6444 = vmatprep.subr.bf16.mxu0 %v5619
      %6445 = vmatpush2.bf16.msra.mxu0 %v5618
      %6446 = vmatprep.subr.bf16.mxu0 %v5612
      %6447 = vmatpush2.bf16.msra.mxu0 %v5611
      %6448 = vmatprep.subr.bf16.mxu0 %v5605
      %6449 = vmatpush2.bf16.msra.mxu0 %v5604
      %6450 = vmatprep.subr.bf16.mxu0 %v5598
      %6451 = vmatpush2.bf16.msra.mxu0 %v5597
      %6452 = vmatprep.subr.bf16.mxu0 %v5591
      %6453 = vmatpush2.bf16.msra.mxu0 %v5590
      %6454 = vmatprep.subr.bf16.mxu0 %v5584
      %6455 = vmatpush2.bf16.msra.mxu0 %v5583
      %6456 = vmatprep.mubr.bf16.mxu0 %v4385
      %6457 = vmatmul.mubr.bf16.gmra.mxu0 %v4384
      %v6458 = vpop.f32.mrf.mxu0
      %v6459 = vadd.f32 %v6346, %v6458
      %v6460 = vpop.f32.mrf.mxu0
      %v6461 = vadd.f32 %v6348, %v6460
      %v6462 = vpop.f32.mrf.mxu0
      %v6463 = vadd.f32 %v6350, %v6462
      %v6464 = vpop.f32.mrf.mxu0
      %v6465 = vadd.f32 %v6352, %v6464
      %6466 = vmatprep.mubr.bf16.mxu0 %v4389
      %6467 = vmatmul.mubr.bf16.gmra.mxu0 %v4388
      %v6468 = vpop.f32.mrf.mxu0
      %v6469 = vadd.f32 %v6356, %v6468
      %v6470 = vpop.f32.mrf.mxu0
      %v6471 = vadd.f32 %v6358, %v6470
      %v6472 = vpop.f32.mrf.mxu0
      %v6473 = vadd.f32 %v6360, %v6472
      %v6474 = vpop.f32.mrf.mxu0
      %v6475 = vadd.f32 %v6362, %v6474
      %6476 = vmatprep.mubr.bf16.mxu0 %v4393
      %6477 = vmatmul.mubr.bf16.gmra.mxu0 %v4392
      %v6478 = vpop.f32.mrf.mxu0
      %v6479 = vadd.f32 %v6366, %v6478
      %v6480 = vpop.f32.mrf.mxu0
      %v6481 = vadd.f32 %v6368, %v6480
      %v6482 = vpop.f32.mrf.mxu0
      %v6483 = vadd.f32 %v6370, %v6482
      %v6484 = vpop.f32.mrf.mxu0
      %v6485 = vadd.f32 %v6372, %v6484
      %6486 = vmatprep.mubr.bf16.mxu0 %v4397
      %6487 = vmatmul.mubr.bf16.gmra.mxu0 %v4396
      %v6488 = vpop.f32.mrf.mxu0
      %v6489 = vadd.f32 %v6376, %v6488
      %v6490 = vpop.f32.mrf.mxu0
      %v6491 = vadd.f32 %v6378, %v6490
      %v6492 = vpop.f32.mrf.mxu0
      %v6493 = vadd.f32 %v6380, %v6492
      %v6494 = vpop.f32.mrf.mxu0
      %v6495 = vadd.f32 %v6382, %v6494
      %6496 = vmatprep.mubr.bf16.mxu0 %v4401
      %6497 = vmatmul.mubr.bf16.gmra.mxu0 %v4400
      %v6498 = vpop.f32.mrf.mxu0
      %v6499 = vadd.f32 %v6386, %v6498
      %v6500 = vpop.f32.mrf.mxu0
      %v6501 = vadd.f32 %v6388, %v6500
      %v6502 = vpop.f32.mrf.mxu0
      %v6503 = vadd.f32 %v6390, %v6502
      %v6504 = vpop.f32.mrf.mxu0
      %v6505 = vadd.f32 %v6392, %v6504
      %6506 = vmatprep.mubr.bf16.mxu0 %v4405
      %6507 = vmatmul.mubr.bf16.gmra.mxu0 %v4404
      %v6508 = vpop.f32.mrf.mxu0
      %v6509 = vadd.f32 %v6396, %v6508
      %v6510 = vpop.f32.mrf.mxu0
      %v6511 = vadd.f32 %v6398, %v6510
      %v6512 = vpop.f32.mrf.mxu0
      %v6513 = vadd.f32 %v6400, %v6512
      %v6514 = vpop.f32.mrf.mxu0
      %v6515 = vadd.f32 %v6402, %v6514
      %6516 = vmatprep.mubr.bf16.mxu0 %v4409
      %6517 = vmatmul.mubr.bf16.gmra.mxu0 %v4408
      %v6518 = vpop.f32.mrf.mxu0
      %v6519 = vadd.f32 %v6406, %v6518
      %v6520 = vpop.f32.mrf.mxu0
      %v6521 = vadd.f32 %v6408, %v6520
      %v6522 = vpop.f32.mrf.mxu0
      %v6523 = vadd.f32 %v6410, %v6522
      %v6524 = vpop.f32.mrf.mxu0
      %v6525 = vadd.f32 %v6412, %v6524
      %6526 = vmatprep.mubr.bf16.mxu0 %v4413
      %6527 = vmatmul.mubr.bf16.gmra.mxu0 %v4412
      %v6528 = vpop.f32.mrf.mxu0
      %v6529 = vadd.f32 %v6416, %v6528
      %v6530 = vpop.f32.mrf.mxu0
      %v6531 = vadd.f32 %v6418, %v6530
      %v6532 = vpop.f32.mrf.mxu0
      %v6533 = vadd.f32 %v6420, %v6532
      %v6534 = vpop.f32.mrf.mxu0
      %v6535 = vadd.f32 %v6422, %v6534
      %6536 = vdwg.mxu0
      %6537 = vmatprep.subr.bf16.mxu0 0
      %6538 = vmatpush1.bf16.msra.mxu0 %v5466
      %6539 = vmatprep.subr.bf16.mxu0 0
      %6540 = vmatpush1.bf16.msra.mxu0 %v5459
      %6541 = vmatprep.subr.bf16.mxu0 0
      %6542 = vmatpush1.bf16.msra.mxu0 %v5452
      %6543 = vmatprep.subr.bf16.mxu0 0
      %6544 = vmatpush1.bf16.msra.mxu0 %v5445
      %6545 = vmatprep.subr.bf16.mxu0 0
      %6546 = vmatpush1.bf16.msra.mxu0 %v5438
      %6547 = vmatprep.subr.bf16.mxu0 0
      %6548 = vmatpush1.bf16.msra.mxu0 %v5431
      %6549 = vmatprep.subr.bf16.mxu0 0
      %6550 = vmatpush1.bf16.msra.mxu0 %v5424
      %6551 = vmatprep.subr.bf16.mxu0 0
      %6552 = vmatpush1.bf16.msra.mxu0 %v5417
      %6553 = vmatprep.subr.bf16.mxu0 0
      %6554 = vmatpush2.bf16.msra.mxu0 %v5522
      %6555 = vmatprep.subr.bf16.mxu0 0
      %6556 = vmatpush2.bf16.msra.mxu0 %v5515
      %6557 = vmatprep.subr.bf16.mxu0 0
      %6558 = vmatpush2.bf16.msra.mxu0 %v5508
      %6559 = vmatprep.subr.bf16.mxu0 0
      %6560 = vmatpush2.bf16.msra.mxu0 %v5501
      %6561 = vmatprep.subr.bf16.mxu0 0
      %6562 = vmatpush2.bf16.msra.mxu0 %v5494
      %6563 = vmatprep.subr.bf16.mxu0 0
      %6564 = vmatpush2.bf16.msra.mxu0 %v5487
      %6565 = vmatprep.subr.bf16.mxu0 0
      %6566 = vmatpush2.bf16.msra.mxu0 %v5480
      %6567 = vmatprep.subr.bf16.mxu0 0
      %6568 = vmatpush2.bf16.msra.mxu0 %v5473
      %6569 = vmatprep.mubr.bf16.mxu0 %v4383
      %6570 = vmatmul.mubr.bf16.gmra.mxu0 %v4382
      %v6571 = vpop.f32.mrf.mxu0
      %v6572 = vadd.f32 %v4699, %v6571
      %v6573 = vpop.f32.mrf.mxu0
      %v6574 = vpop.f32.mrf.mxu0
      %v6575 = vadd.f32 %v4699, %v6574
      %v6576 = vpop.f32.mrf.mxu0
      %6577 = vmatprep.mubr.bf16.mxu0 %v4387
      %6578 = vmatmul.mubr.bf16.gmra.mxu0 %v4386
      %v6579 = vpop.f32.mrf.mxu0
      %v6580 = vadd.f32 %v4699, %v6579
      %v6581 = vpop.f32.mrf.mxu0
      %v6582 = vpop.f32.mrf.mxu0
      %v6583 = vadd.f32 %v4699, %v6582
      %v6584 = vpop.f32.mrf.mxu0
      %6585 = vmatprep.mubr.bf16.mxu0 %v4391
      %6586 = vmatmul.mubr.bf16.gmra.mxu0 %v4390
      %v6587 = vpop.f32.mrf.mxu0
      %v6588 = vadd.f32 %v4699, %v6587
      %v6589 = vpop.f32.mrf.mxu0
      %v6590 = vpop.f32.mrf.mxu0
      %v6591 = vadd.f32 %v4699, %v6590
      %v6592 = vpop.f32.mrf.mxu0
      %6593 = vmatprep.mubr.bf16.mxu0 %v4395
      %6594 = vmatmul.mubr.bf16.gmra.mxu0 %v4394
      %v6595 = vpop.f32.mrf.mxu0
      %v6596 = vadd.f32 %v4699, %v6595
      %v6597 = vpop.f32.mrf.mxu0
      %v6598 = vpop.f32.mrf.mxu0
      %v6599 = vadd.f32 %v4699, %v6598
      %v6600 = vpop.f32.mrf.mxu0
      %6601 = vmatprep.mubr.bf16.mxu0 %v4399
      %6602 = vmatmul.mubr.bf16.gmra.mxu0 %v4398
      %v6603 = vpop.f32.mrf.mxu0
      %v6604 = vadd.f32 %v4699, %v6603
      %v6605 = vpop.f32.mrf.mxu0
      %v6606 = vpop.f32.mrf.mxu0
      %v6607 = vadd.f32 %v4699, %v6606
      %v6608 = vpop.f32.mrf.mxu0
      %6609 = vmatprep.mubr.bf16.mxu0 %v4403
      %6610 = vmatmul.mubr.bf16.gmra.mxu0 %v4402
      %v6611 = vpop.f32.mrf.mxu0
      %v6612 = vadd.f32 %v4699, %v6611
      %v6613 = vpop.f32.mrf.mxu0
      %v6614 = vpop.f32.mrf.mxu0
      %v6615 = vadd.f32 %v4699, %v6614
      %v6616 = vpop.f32.mrf.mxu0
      %6617 = vmatprep.mubr.bf16.mxu0 %v4407
      %6618 = vmatmul.mubr.bf16.gmra.mxu0 %v4406
      %v6619 = vpop.f32.mrf.mxu0
      %v6620 = vadd.f32 %v4699, %v6619
      %v6621 = vpop.f32.mrf.mxu0
      %v6622 = vpop.f32.mrf.mxu0
      %v6623 = vadd.f32 %v4699, %v6622
      %v6624 = vpop.f32.mrf.mxu0
      %6625 = vmatprep.mubr.bf16.mxu0 %v4411
      %6626 = vmatmul.mubr.bf16.gmra.mxu0 %v4410
      %v6627 = vpop.f32.mrf.mxu0
      %v6628 = vadd.f32 %v4699, %v6627
      %v6629 = vpop.f32.mrf.mxu0
      %v6630 = vpop.f32.mrf.mxu0
      %v6631 = vadd.f32 %v4699, %v6630
      %v6632 = vpop.f32.mrf.mxu0
      %6633 = vdwg.mxu0
      %6634 = vmatprep.subr.bf16.mxu0 0
      %6635 = vmatpush1.bf16.msra.mxu0 %v5578
      %6636 = vmatprep.subr.bf16.mxu0 0
      %6637 = vmatpush1.bf16.msra.mxu0 %v5571
      %6638 = vmatprep.subr.bf16.mxu0 0
      %6639 = vmatpush1.bf16.msra.mxu0 %v5564
      %6640 = vmatprep.subr.bf16.mxu0 0
      %6641 = vmatpush1.bf16.msra.mxu0 %v5557
      %6642 = vmatprep.subr.bf16.mxu0 0
      %6643 = vmatpush1.bf16.msra.mxu0 %v5550
      %6644 = vmatprep.subr.bf16.mxu0 0
      %6645 = vmatpush1.bf16.msra.mxu0 %v5543
      %6646 = vmatprep.subr.bf16.mxu0 0
      %6647 = vmatpush1.bf16.msra.mxu0 %v5536
      %6648 = vmatprep.subr.bf16.mxu0 0
      %6649 = vmatpush1.bf16.msra.mxu0 %v5529
      %6650 = vmatprep.subr.bf16.mxu0 0
      %6651 = vmatpush2.bf16.msra.mxu0 %v5634
      %6652 = vmatprep.subr.bf16.mxu0 0
      %6653 = vmatpush2.bf16.msra.mxu0 %v5627
      %6654 = vmatprep.subr.bf16.mxu0 0
      %6655 = vmatpush2.bf16.msra.mxu0 %v5620
      %6656 = vmatprep.subr.bf16.mxu0 0
      %6657 = vmatpush2.bf16.msra.mxu0 %v5613
      %6658 = vmatprep.subr.bf16.mxu0 0
      %6659 = vmatpush2.bf16.msra.mxu0 %v5606
      %6660 = vmatprep.subr.bf16.mxu0 0
      %6661 = vmatpush2.bf16.msra.mxu0 %v5599
      %6662 = vmatprep.subr.bf16.mxu0 0
      %6663 = vmatpush2.bf16.msra.mxu0 %v5592
      %6664 = vmatprep.subr.bf16.mxu0 0
      %6665 = vmatpush2.bf16.msra.mxu0 %v5585
      %6666 = vmatprep.mubr.bf16.mxu0 %v4385
      %6667 = vmatmul.mubr.bf16.gmra.mxu0 %v4384
      %v6668 = vpop.f32.mrf.mxu0
      %v6669 = vadd.f32 %v6572, %v6668
      %v6670 = vpop.f32.mrf.mxu0
      %v6671 = vpop.f32.mrf.mxu0
      %v6672 = vadd.f32 %v6575, %v6671
      %v6673 = vpop.f32.mrf.mxu0
      %6674 = vmatprep.mubr.bf16.mxu0 %v4389
      %6675 = vmatmul.mubr.bf16.gmra.mxu0 %v4388
      %v6676 = vpop.f32.mrf.mxu0
      %v6677 = vadd.f32 %v6580, %v6676
      %v6678 = vpop.f32.mrf.mxu0
      %v6679 = vpop.f32.mrf.mxu0
      %v6680 = vadd.f32 %v6583, %v6679
      %v6681 = vpop.f32.mrf.mxu0
      %6682 = vmatprep.mubr.bf16.mxu0 %v4393
      %6683 = vmatmul.mubr.bf16.gmra.mxu0 %v4392
      %v6684 = vpop.f32.mrf.mxu0
      %v6685 = vadd.f32 %v6588, %v6684
      %v6686 = vpop.f32.mrf.mxu0
      %v6687 = vpop.f32.mrf.mxu0
      %v6688 = vadd.f32 %v6591, %v6687
      %v6689 = vpop.f32.mrf.mxu0
      %6690 = vmatprep.mubr.bf16.mxu0 %v4397
      %6691 = vmatmul.mubr.bf16.gmra.mxu0 %v4396
      %v6692 = vpop.f32.mrf.mxu0
      %v6693 = vadd.f32 %v6596, %v6692
      %v6694 = vpop.f32.mrf.mxu0
      %v6695 = vpop.f32.mrf.mxu0
      %v6696 = vadd.f32 %v6599, %v6695
      %v6697 = vpop.f32.mrf.mxu0
      %6698 = vmatprep.mubr.bf16.mxu0 %v4401
      %6699 = vmatmul.mubr.bf16.gmra.mxu0 %v4400
      %v6700 = vpop.f32.mrf.mxu0
      %v6701 = vadd.f32 %v6604, %v6700
      %v6702 = vpop.f32.mrf.mxu0
      %v6703 = vpop.f32.mrf.mxu0
      %v6704 = vadd.f32 %v6607, %v6703
      %v6705 = vpop.f32.mrf.mxu0
      %6706 = vmatprep.mubr.bf16.mxu0 %v4405
      %6707 = vmatmul.mubr.bf16.gmra.mxu0 %v4404
      %v6708 = vpop.f32.mrf.mxu0
      %v6709 = vadd.f32 %v6612, %v6708
      %v6710 = vpop.f32.mrf.mxu0
      %v6711 = vpop.f32.mrf.mxu0
      %v6712 = vadd.f32 %v6615, %v6711
      %v6713 = vpop.f32.mrf.mxu0
      %6714 = vmatprep.mubr.bf16.mxu0 %v4409
      %6715 = vmatmul.mubr.bf16.gmra.mxu0 %v4408
      %v6716 = vpop.f32.mrf.mxu0
      %v6717 = vadd.f32 %v6620, %v6716
      %v6718 = vpop.f32.mrf.mxu0
      %v6719 = vpop.f32.mrf.mxu0
      %v6720 = vadd.f32 %v6623, %v6719
      %v6721 = vpop.f32.mrf.mxu0
      %6722 = vmatprep.mubr.bf16.mxu0 %v4413
      %6723 = vmatmul.mubr.bf16.gmra.mxu0 %v4412
      %v6724 = vpop.f32.mrf.mxu0
      %v6725 = vadd.f32 %v6628, %v6724
      %v6726 = vpop.f32.mrf.mxu0
      %v6727 = vpop.f32.mrf.mxu0
      %v6728 = vadd.f32 %v6631, %v6727
      %v6729 = vpop.f32.mrf.mxu0
      %6730 = vdwg.mxu0
      %v6731 = vxor.u32 %v6007, 2147483648
      %v6732 = vxor.u32 %v6009, 2147483648
      %v6733 = vxor.u32 %v6233, 2147483648
      %v6734 = vxor.u32 %v6235, 2147483648
      %v6735 = vxor.u32 %v6459, 2147483648
      %v6736 = vxor.u32 %v6461, 2147483648
      %v6737 = vxor.u32 %v6669, 2147483648
      %v6738 = vxor.u32 %v6011, 2147483648
      %v6739 = vxor.u32 %v6013, 2147483648
      %v6740 = vxor.u32 %v6237, 2147483648
      %v6741 = vxor.u32 %v6239, 2147483648
      %v6742 = vxor.u32 %v6463, 2147483648
      %v6743 = vxor.u32 %v6465, 2147483648
      %v6744 = vxor.u32 %v6672, 2147483648
      %v6745 = vxor.u32 %v6017, 2147483648
      %v6746 = vxor.u32 %v6019, 2147483648
      %v6747 = vxor.u32 %v6243, 2147483648
      %v6748 = vxor.u32 %v6245, 2147483648
      %v6749 = vxor.u32 %v6469, 2147483648
      %v6750 = vxor.u32 %v6471, 2147483648
      %v6751 = vxor.u32 %v6677, 2147483648
      %v6752 = vxor.u32 %v6021, 2147483648
      %v6753 = vxor.u32 %v6023, 2147483648
      %v6754 = vxor.u32 %v6247, 2147483648
      %v6755 = vxor.u32 %v6249, 2147483648
      %v6756 = vxor.u32 %v6473, 2147483648
      %v6757 = vxor.u32 %v6475, 2147483648
      %v6758 = vxor.u32 %v6680, 2147483648
      %v6759 = vxor.u32 %v6027, 2147483648
      %v6760 = vxor.u32 %v6029, 2147483648
      %v6761 = vxor.u32 %v6253, 2147483648
      %v6762 = vxor.u32 %v6255, 2147483648
      %v6763 = vxor.u32 %v6479, 2147483648
      %v6764 = vxor.u32 %v6481, 2147483648
      %v6765 = vxor.u32 %v6685, 2147483648
      %v6766 = vxor.u32 %v6031, 2147483648
      %v6767 = vxor.u32 %v6033, 2147483648
      %v6768 = vxor.u32 %v6257, 2147483648
      %v6769 = vxor.u32 %v6259, 2147483648
      %v6770 = vxor.u32 %v6483, 2147483648
      %v6771 = vxor.u32 %v6485, 2147483648
      %v6772 = vxor.u32 %v6688, 2147483648
      %v6773 = vxor.u32 %v6037, 2147483648
      %v6774 = vxor.u32 %v6039, 2147483648
      %v6775 = vxor.u32 %v6263, 2147483648
      %v6776 = vxor.u32 %v6265, 2147483648
      %v6777 = vxor.u32 %v6489, 2147483648
      %v6778 = vxor.u32 %v6491, 2147483648
      %v6779 = vxor.u32 %v6693, 2147483648
      %v6780 = vxor.u32 %v6041, 2147483648
      %v6781 = vxor.u32 %v6043, 2147483648
      %v6782 = vxor.u32 %v6267, 2147483648
      %v6783 = vxor.u32 %v6269, 2147483648
      %v6784 = vxor.u32 %v6493, 2147483648
      %v6785 = vxor.u32 %v6495, 2147483648
      %v6786 = vxor.u32 %v6696, 2147483648
      %v6787 = vxor.u32 %v6047, 2147483648
      %v6788 = vxor.u32 %v6049, 2147483648
      %v6789 = vxor.u32 %v6273, 2147483648
      %v6790 = vxor.u32 %v6275, 2147483648
      %v6791 = vxor.u32 %v6499, 2147483648
      %v6792 = vxor.u32 %v6501, 2147483648
      %v6793 = vxor.u32 %v6701, 2147483648
      %v6794 = vxor.u32 %v6051, 2147483648
      %v6795 = vxor.u32 %v6053, 2147483648
      %v6796 = vxor.u32 %v6277, 2147483648
      %v6797 = vxor.u32 %v6279, 2147483648
      %v6798 = vxor.u32 %v6503, 2147483648
      %v6799 = vxor.u32 %v6505, 2147483648
      %v6800 = vxor.u32 %v6704, 2147483648
      %v6801 = vxor.u32 %v6057, 2147483648
      %v6802 = vxor.u32 %v6059, 2147483648
      %v6803 = vxor.u32 %v6283, 2147483648
      %v6804 = vxor.u32 %v6285, 2147483648
      %v6805 = vxor.u32 %v6509, 2147483648
      %v6806 = vxor.u32 %v6511, 2147483648
      %v6807 = vxor.u32 %v6709, 2147483648
      %v6808 = vxor.u32 %v6061, 2147483648
      %v6809 = vxor.u32 %v6063, 2147483648
      %v6810 = vxor.u32 %v6287, 2147483648
      %v6811 = vxor.u32 %v6289, 2147483648
      %v6812 = vxor.u32 %v6513, 2147483648
      %v6813 = vxor.u32 %v6515, 2147483648
      %v6814 = vxor.u32 %v6712, 2147483648
      %v6815 = vxor.u32 %v6067, 2147483648
      %v6816 = vxor.u32 %v6069, 2147483648
      %v6817 = vxor.u32 %v6293, 2147483648
      %v6818 = vxor.u32 %v6295, 2147483648
      %v6819 = vxor.u32 %v6519, 2147483648
      %v6820 = vxor.u32 %v6521, 2147483648
      %v6821 = vxor.u32 %v6717, 2147483648
      %v6822 = vxor.u32 %v6071, 2147483648
      %v6823 = vxor.u32 %v6073, 2147483648
      %v6824 = vxor.u32 %v6297, 2147483648
      %v6825 = vxor.u32 %v6299, 2147483648
      %v6826 = vxor.u32 %v6523, 2147483648
      %v6827 = vxor.u32 %v6525, 2147483648
      %v6828 = vxor.u32 %v6720, 2147483648
      %v6829 = vxor.u32 %v6077, 2147483648
      %v6830 = vxor.u32 %v6079, 2147483648
      %v6831 = vxor.u32 %v6303, 2147483648
      %v6832 = vxor.u32 %v6305, 2147483648
      %v6833 = vxor.u32 %v6529, 2147483648
      %v6834 = vxor.u32 %v6531, 2147483648
      %v6835 = vxor.u32 %v6725, 2147483648
      %v6836 = vxor.u32 %v6081, 2147483648
      %v6837 = vxor.u32 %v6083, 2147483648
      %v6838 = vxor.u32 %v6307, 2147483648
      %v6839 = vxor.u32 %v6309, 2147483648
      %v6840 = vxor.u32 %v6533, 2147483648
      %v6841 = vxor.u32 %v6535, 2147483648
      %v6842 = vxor.u32 %v6728, 2147483648
      %v6843 = vmul.f32 %v6731, 1.442695
      %v6844 = vpow.pop %v6843
      %v6845 = vmul.f32 %v6732, 1.442695
      %v6846 = vpow.pop %v6845
      %v6847 = vmul.f32 %v6733, 1.442695
      %v6848 = vpow.pop %v6847
      %v6849 = vmul.f32 %v6734, 1.442695
      %v6850 = vpow.pop %v6849
      %v6851 = vmul.f32 %v6735, 1.442695
      %v6852 = vpow.pop %v6851
      %v6853 = vmul.f32 %v6736, 1.442695
      %v6854 = vpow.pop %v6853
      %v6855 = vmul.f32 %v6737, 1.442695
      %v6856 = vpow.pop %v6855
      %v6857 = vmul.f32 %v6738, 1.442695
      %v6858 = vpow.pop %v6857
      %v6859 = vmul.f32 %v6739, 1.442695
      %v6860 = vpow.pop %v6859
      %v6861 = vmul.f32 %v6740, 1.442695
      %v6862 = vpow.pop %v6861
      %v6863 = vmul.f32 %v6741, 1.442695
      %v6864 = vpow.pop %v6863
      %v6865 = vmul.f32 %v6742, 1.442695
      %v6866 = vpow.pop %v6865
      %v6867 = vmul.f32 %v6743, 1.442695
      %v6868 = vpow.pop %v6867
      %v6869 = vmul.f32 %v6744, 1.442695
      %v6870 = vpow.pop %v6869
      %v6871 = vmul.f32 %v6745, 1.442695
      %v6872 = vpow.pop %v6871
      %v6873 = vmul.f32 %v6746, 1.442695
      %v6874 = vpow.pop %v6873
      %v6875 = vmul.f32 %v6747, 1.442695
      %v6876 = vpow.pop %v6875
      %v6877 = vmul.f32 %v6748, 1.442695
      %v6878 = vpow.pop %v6877
      %v6879 = vmul.f32 %v6749, 1.442695
      %v6880 = vpow.pop %v6879
      %v6881 = vmul.f32 %v6750, 1.442695
      %v6882 = vpow.pop %v6881
      %v6883 = vmul.f32 %v6751, 1.442695
      %v6884 = vpow.pop %v6883
      %v6885 = vmul.f32 %v6752, 1.442695
      %v6886 = vpow.pop %v6885
      %v6887 = vmul.f32 %v6753, 1.442695
      %v6888 = vpow.pop %v6887
      %v6889 = vmul.f32 %v6754, 1.442695
      %v6890 = vpow.pop %v6889
      %v6891 = vmul.f32 %v6755, 1.442695
      %v6892 = vpow.pop %v6891
      %v6893 = vmul.f32 %v6756, 1.442695
      %v6894 = vpow.pop %v6893
      %v6895 = vmul.f32 %v6757, 1.442695
      %v6896 = vpow.pop %v6895
      %v6897 = vmul.f32 %v6758, 1.442695
      %v6898 = vpow.pop %v6897
      %v6899 = vmul.f32 %v6759, 1.442695
      %v6900 = vpow.pop %v6899
      %v6901 = vmul.f32 %v6760, 1.442695
      %v6902 = vpow.pop %v6901
      %v6903 = vmul.f32 %v6761, 1.442695
      %v6904 = vpow.pop %v6903
      %v6905 = vmul.f32 %v6762, 1.442695
      %v6906 = vpow.pop %v6905
      %v6907 = vmul.f32 %v6763, 1.442695
      %v6908 = vpow.pop %v6907
      %v6909 = vmul.f32 %v6764, 1.442695
      %v6910 = vpow.pop %v6909
      %v6911 = vmul.f32 %v6765, 1.442695
      %v6912 = vpow.pop %v6911
      %v6913 = vmul.f32 %v6766, 1.442695
      %v6914 = vpow.pop %v6913
      %v6915 = vmul.f32 %v6767, 1.442695
      %v6916 = vpow.pop %v6915
      %v6917 = vmul.f32 %v6768, 1.442695
      %v6918 = vpow.pop %v6917
      %v6919 = vmul.f32 %v6769, 1.442695
      %v6920 = vpow.pop %v6919
      %v6921 = vmul.f32 %v6770, 1.442695
      %v6922 = vpow.pop %v6921
      %v6923 = vmul.f32 %v6771, 1.442695
      %v6924 = vpow.pop %v6923
      %v6925 = vmul.f32 %v6772, 1.442695
      %v6926 = vpow.pop %v6925
      %v6927 = vmul.f32 %v6773, 1.442695
      %v6928 = vpow.pop %v6927
      %v6929 = vmul.f32 %v6774, 1.442695
      %v6930 = vpow.pop %v6929
      %v6931 = vmul.f32 %v6775, 1.442695
      %v6932 = vpow.pop %v6931
      %v6933 = vmul.f32 %v6776, 1.442695
      %v6934 = vpow.pop %v6933
      %v6935 = vmul.f32 %v6777, 1.442695
      %v6936 = vpow.pop %v6935
      %v6937 = vmul.f32 %v6778, 1.442695
      %v6938 = vpow.pop %v6937
      %v6939 = vmul.f32 %v6779, 1.442695
      %v6940 = vpow.pop %v6939
      %v6941 = vmul.f32 %v6780, 1.442695
      %v6942 = vpow.pop %v6941
      %v6943 = vmul.f32 %v6781, 1.442695
      %v6944 = vpow.pop %v6943
      %v6945 = vmul.f32 %v6782, 1.442695
      %v6946 = vpow.pop %v6945
      %v6947 = vmul.f32 %v6783, 1.442695
      %v6948 = vpow.pop %v6947
      %v6949 = vmul.f32 %v6784, 1.442695
      %v6950 = vpow.pop %v6949
      %v6951 = vmul.f32 %v6785, 1.442695
      %v6952 = vpow.pop %v6951
      %v6953 = vmul.f32 %v6786, 1.442695
      %v6954 = vpow.pop %v6953
      %v6955 = vmul.f32 %v6787, 1.442695
      %v6956 = vpow.pop %v6955
      %v6957 = vmul.f32 %v6788, 1.442695
      %v6958 = vpow.pop %v6957
      %v6959 = vmul.f32 %v6789, 1.442695
      %v6960 = vpow.pop %v6959
      %v6961 = vmul.f32 %v6790, 1.442695
      %v6962 = vpow.pop %v6961
      %v6963 = vmul.f32 %v6791, 1.442695
      %v6964 = vpow.pop %v6963
      %v6965 = vmul.f32 %v6792, 1.442695
      %v6966 = vpow.pop %v6965
      %v6967 = vmul.f32 %v6793, 1.442695
      %v6968 = vpow.pop %v6967
      %v6969 = vmul.f32 %v6794, 1.442695
      %v6970 = vpow.pop %v6969
      %v6971 = vmul.f32 %v6795, 1.442695
      %v6972 = vpow.pop %v6971
      %v6973 = vmul.f32 %v6796, 1.442695
      %v6974 = vpow.pop %v6973
      %v6975 = vmul.f32 %v6797, 1.442695
      %v6976 = vpow.pop %v6975
      %v6977 = vmul.f32 %v6798, 1.442695
      %v6978 = vpow.pop %v6977
      %v6979 = vmul.f32 %v6799, 1.442695
      %v6980 = vpow.pop %v6979
      %v6981 = vmul.f32 %v6800, 1.442695
      %v6982 = vpow.pop %v6981
      %v6983 = vmul.f32 %v6801, 1.442695
      %v6984 = vpow.pop %v6983
      %v6985 = vmul.f32 %v6802, 1.442695
      %v6986 = vpow.pop %v6985
      %v6987 = vmul.f32 %v6803, 1.442695
      %v6988 = vpow.pop %v6987
      %v6989 = vmul.f32 %v6804, 1.442695
      %v6990 = vpow.pop %v6989
      %v6991 = vmul.f32 %v6805, 1.442695
      %v6992 = vpow.pop %v6991
      %v6993 = vmul.f32 %v6806, 1.442695
      %v6994 = vpow.pop %v6993
      %v6995 = vmul.f32 %v6807, 1.442695
      %v6996 = vpow.pop %v6995
      %v6997 = vmul.f32 %v6808, 1.442695
      %v6998 = vpow.pop %v6997
      %v6999 = vmul.f32 %v6809, 1.442695
      %v7000 = vpow.pop %v6999
      %v7001 = vmul.f32 %v6810, 1.442695
      %v7002 = vpow.pop %v7001
      %v7003 = vmul.f32 %v6811, 1.442695
      %v7004 = vpow.pop %v7003
      %v7005 = vmul.f32 %v6812, 1.442695
      %v7006 = vpow.pop %v7005
      %v7007 = vmul.f32 %v6813, 1.442695
      %v7008 = vpow.pop %v7007
      %v7009 = vmul.f32 %v6814, 1.442695
      %v7010 = vpow.pop %v7009
      %v7011 = vmul.f32 %v6815, 1.442695
      %v7012 = vpow.pop %v7011
      %v7013 = vmul.f32 %v6816, 1.442695
      %v7014 = vpow.pop %v7013
      %v7015 = vmul.f32 %v6817, 1.442695
      %v7016 = vpow.pop %v7015
      %v7017 = vmul.f32 %v6818, 1.442695
      %v7018 = vpow.pop %v7017
      %v7019 = vmul.f32 %v6819, 1.442695
      %v7020 = vpow.pop %v7019
      %v7021 = vmul.f32 %v6820, 1.442695
      %v7022 = vpow.pop %v7021
      %v7023 = vmul.f32 %v6821, 1.442695
      %v7024 = vpow.pop %v7023
      %v7025 = vmul.f32 %v6822, 1.442695
      %v7026 = vpow.pop %v7025
      %v7027 = vmul.f32 %v6823, 1.442695
      %v7028 = vpow.pop %v7027
      %v7029 = vmul.f32 %v6824, 1.442695
      %v7030 = vpow.pop %v7029
      %v7031 = vmul.f32 %v6825, 1.442695
      %v7032 = vpow.pop %v7031
      %v7033 = vmul.f32 %v6826, 1.442695
      %v7034 = vpow.pop %v7033
      %v7035 = vmul.f32 %v6827, 1.442695
      %v7036 = vpow.pop %v7035
      %v7037 = vmul.f32 %v6828, 1.442695
      %v7038 = vpow.pop %v7037
      %v7039 = vmul.f32 %v6829, 1.442695
      %v7040 = vpow.pop %v7039
      %v7041 = vmul.f32 %v6830, 1.442695
      %v7042 = vpow.pop %v7041
      %v7043 = vmul.f32 %v6831, 1.442695
      %v7044 = vpow.pop %v7043
      %v7045 = vmul.f32 %v6832, 1.442695
      %v7046 = vpow.pop %v7045
      %v7047 = vmul.f32 %v6833, 1.442695
      %v7048 = vpow.pop %v7047
      %v7049 = vmul.f32 %v6834, 1.442695
      %v7050 = vpow.pop %v7049
      %v7051 = vmul.f32 %v6835, 1.442695
      %v7052 = vpow.pop %v7051
      %v7053 = vmul.f32 %v6836, 1.442695
      %v7054 = vpow.pop %v7053
      %v7055 = vmul.f32 %v6837, 1.442695
      %v7056 = vpow.pop %v7055
      %v7057 = vmul.f32 %v6838, 1.442695
      %v7058 = vpow.pop %v7057
      %v7059 = vmul.f32 %v6839, 1.442695
      %v7060 = vpow.pop %v7059
      %v7061 = vmul.f32 %v6840, 1.442695
      %v7062 = vpow.pop %v7061
      %v7063 = vmul.f32 %v6841, 1.442695
      %v7064 = vpow.pop %v7063
      %v7065 = vmul.f32 %v6842, 1.442695
      %v7066 = vpow.pop %v7065
      %v7067 = vadd.f32 %v6844, 1.0
      %v7068 = vadd.f32 %v6846, 1.0
      %v7069 = vadd.f32 %v6848, 1.0
      %v7070 = vadd.f32 %v6850, 1.0
      %v7071 = vadd.f32 %v6852, 1.0
      %v7072 = vadd.f32 %v6854, 1.0
      %v7073 = vadd.f32 %v6856, 1.0
      %v7074 = vadd.f32 %v6858, 1.0
      %v7075 = vadd.f32 %v6860, 1.0
      %v7076 = vadd.f32 %v6862, 1.0
      %v7077 = vadd.f32 %v6864, 1.0
      %v7078 = vadd.f32 %v6866, 1.0
      %v7079 = vadd.f32 %v6868, 1.0
      %v7080 = vadd.f32 %v6870, 1.0
      %v7081 = vadd.f32 %v6872, 1.0
      %v7082 = vadd.f32 %v6874, 1.0
      %v7083 = vadd.f32 %v6876, 1.0
      %v7084 = vadd.f32 %v6878, 1.0
      %v7085 = vadd.f32 %v6880, 1.0
      %v7086 = vadd.f32 %v6882, 1.0
      %v7087 = vadd.f32 %v6884, 1.0
      %v7088 = vadd.f32 %v6886, 1.0
      %v7089 = vadd.f32 %v6888, 1.0
      %v7090 = vadd.f32 %v6890, 1.0
      %v7091 = vadd.f32 %v6892, 1.0
      %v7092 = vadd.f32 %v6894, 1.0
      %v7093 = vadd.f32 %v6896, 1.0
      %v7094 = vadd.f32 %v6898, 1.0
      %v7095 = vadd.f32 %v6900, 1.0
      %v7096 = vadd.f32 %v6902, 1.0
      %v7097 = vadd.f32 %v6904, 1.0
      %v7098 = vadd.f32 %v6906, 1.0
      %v7099 = vadd.f32 %v6908, 1.0
      %v7100 = vadd.f32 %v6910, 1.0
      %v7101 = vadd.f32 %v6912, 1.0
      %v7102 = vadd.f32 %v6914, 1.0
      %v7103 = vadd.f32 %v6916, 1.0
      %v7104 = vadd.f32 %v6918, 1.0
      %v7105 = vadd.f32 %v6920, 1.0
      %v7106 = vadd.f32 %v6922, 1.0
      %v7107 = vadd.f32 %v6924, 1.0
      %v7108 = vadd.f32 %v6926, 1.0
      %v7109 = vadd.f32 %v6928, 1.0
      %v7110 = vadd.f32 %v6930, 1.0
      %v7111 = vadd.f32 %v6932, 1.0
      %v7112 = vadd.f32 %v6934, 1.0
      %v7113 = vadd.f32 %v6936, 1.0
      %v7114 = vadd.f32 %v6938, 1.0
      %v7115 = vadd.f32 %v6940, 1.0
      %v7116 = vadd.f32 %v6942, 1.0
      %v7117 = vadd.f32 %v6944, 1.0
      %v7118 = vadd.f32 %v6946, 1.0
      %v7119 = vadd.f32 %v6948, 1.0
      %v7120 = vadd.f32 %v6950, 1.0
      %v7121 = vadd.f32 %v6952, 1.0
      %v7122 = vadd.f32 %v6954, 1.0
      %v7123 = vadd.f32 %v6956, 1.0
      %v7124 = vadd.f32 %v6958, 1.0
      %v7125 = vadd.f32 %v6960, 1.0
      %v7126 = vadd.f32 %v6962, 1.0
      %v7127 = vadd.f32 %v6964, 1.0
      %v7128 = vadd.f32 %v6966, 1.0
      %v7129 = vadd.f32 %v6968, 1.0
      %v7130 = vadd.f32 %v6970, 1.0
      %v7131 = vadd.f32 %v6972, 1.0
      %v7132 = vadd.f32 %v6974, 1.0
      %v7133 = vadd.f32 %v6976, 1.0
      %v7134 = vadd.f32 %v6978, 1.0
      %v7135 = vadd.f32 %v6980, 1.0
      %v7136 = vadd.f32 %v6982, 1.0
      %v7137 = vadd.f32 %v6984, 1.0
      %v7138 = vadd.f32 %v6986, 1.0
      %v7139 = vadd.f32 %v6988, 1.0
      %v7140 = vadd.f32 %v6990, 1.0
      %v7141 = vadd.f32 %v6992, 1.0
      %v7142 = vadd.f32 %v6994, 1.0
      %v7143 = vadd.f32 %v6996, 1.0
      %v7144 = vadd.f32 %v6998, 1.0
      %v7145 = vadd.f32 %v7000, 1.0
      %v7146 = vadd.f32 %v7002, 1.0
      %v7147 = vadd.f32 %v7004, 1.0
      %v7148 = vadd.f32 %v7006, 1.0
      %v7149 = vadd.f32 %v7008, 1.0
      %v7150 = vadd.f32 %v7010, 1.0
      %v7151 = vadd.f32 %v7012, 1.0
      %v7152 = vadd.f32 %v7014, 1.0
      %v7153 = vadd.f32 %v7016, 1.0
      %v7154 = vadd.f32 %v7018, 1.0
      %v7155 = vadd.f32 %v7020, 1.0
      %v7156 = vadd.f32 %v7022, 1.0
      %v7157 = vadd.f32 %v7024, 1.0
      %v7158 = vadd.f32 %v7026, 1.0
      %v7159 = vadd.f32 %v7028, 1.0
      %v7160 = vadd.f32 %v7030, 1.0
      %v7161 = vadd.f32 %v7032, 1.0
      %v7162 = vadd.f32 %v7034, 1.0
      %v7163 = vadd.f32 %v7036, 1.0
      %v7164 = vadd.f32 %v7038, 1.0
      %v7165 = vadd.f32 %v7040, 1.0
      %v7166 = vadd.f32 %v7042, 1.0
      %v7167 = vadd.f32 %v7044, 1.0
      %v7168 = vadd.f32 %v7046, 1.0
      %v7169 = vadd.f32 %v7048, 1.0
      %v7170 = vadd.f32 %v7050, 1.0
      %v7171 = vadd.f32 %v7052, 1.0
      %v7172 = vadd.f32 %v7054, 1.0
      %v7173 = vadd.f32 %v7056, 1.0
      %v7174 = vadd.f32 %v7058, 1.0
      %v7175 = vadd.f32 %v7060, 1.0
      %v7176 = vadd.f32 %v7062, 1.0
      %v7177 = vadd.f32 %v7064, 1.0
      %v7178 = vadd.f32 %v7066, 1.0
      %v7179 = vrcp.pop %v7067
      %v7180 = vmul.f32 1.0, %v7179
      %v7181 = vrcp.pop %v7068
      %v7182 = vmul.f32 1.0, %v7181
      %v7183 = vrcp.pop %v7069
      %v7184 = vmul.f32 1.0, %v7183
      %v7185 = vrcp.pop %v7070
      %v7186 = vmul.f32 1.0, %v7185
      %v7187 = vrcp.pop %v7071
      %v7188 = vmul.f32 1.0, %v7187
      %v7189 = vrcp.pop %v7072
      %v7190 = vmul.f32 1.0, %v7189
      %v7191 = vrcp.pop %v7073
      %v7192 = vmul.f32 1.0, %v7191
      %v7193 = vrcp.pop %v7074
      %v7194 = vmul.f32 1.0, %v7193
      %v7195 = vrcp.pop %v7075
      %v7196 = vmul.f32 1.0, %v7195
      %v7197 = vrcp.pop %v7076
      %v7198 = vmul.f32 1.0, %v7197
      %v7199 = vrcp.pop %v7077
      %v7200 = vmul.f32 1.0, %v7199
      %v7201 = vrcp.pop %v7078
      %v7202 = vmul.f32 1.0, %v7201
      %v7203 = vrcp.pop %v7079
      %v7204 = vmul.f32 1.0, %v7203
      %v7205 = vrcp.pop %v7080
      %v7206 = vmul.f32 1.0, %v7205
      %v7207 = vrcp.pop %v7081
      %v7208 = vmul.f32 1.0, %v7207
      %v7209 = vrcp.pop %v7082
      %v7210 = vmul.f32 1.0, %v7209
      %v7211 = vrcp.pop %v7083
      %v7212 = vmul.f32 1.0, %v7211
      %v7213 = vrcp.pop %v7084
      %v7214 = vmul.f32 1.0, %v7213
      %v7215 = vrcp.pop %v7085
      %v7216 = vmul.f32 1.0, %v7215
      %v7217 = vrcp.pop %v7086
      %v7218 = vmul.f32 1.0, %v7217
      %v7219 = vrcp.pop %v7087
      %v7220 = vmul.f32 1.0, %v7219
      %v7221 = vrcp.pop %v7088
      %v7222 = vmul.f32 1.0, %v7221
      %v7223 = vrcp.pop %v7089
      %v7224 = vmul.f32 1.0, %v7223
      %v7225 = vrcp.pop %v7090
      %v7226 = vmul.f32 1.0, %v7225
      %v7227 = vrcp.pop %v7091
      %v7228 = vmul.f32 1.0, %v7227
      %v7229 = vrcp.pop %v7092
      %v7230 = vmul.f32 1.0, %v7229
      %v7231 = vrcp.pop %v7093
      %v7232 = vmul.f32 1.0, %v7231
      %v7233 = vrcp.pop %v7094
      %v7234 = vmul.f32 1.0, %v7233
      %v7235 = vrcp.pop %v7095
      %v7236 = vmul.f32 1.0, %v7235
      %v7237 = vrcp.pop %v7096
      %v7238 = vmul.f32 1.0, %v7237
      %v7239 = vrcp.pop %v7097
      %v7240 = vmul.f32 1.0, %v7239
      %v7241 = vrcp.pop %v7098
      %v7242 = vmul.f32 1.0, %v7241
      %v7243 = vrcp.pop %v7099
      %v7244 = vmul.f32 1.0, %v7243
      %v7245 = vrcp.pop %v7100
      %v7246 = vmul.f32 1.0, %v7245
      %v7247 = vrcp.pop %v7101
      %v7248 = vmul.f32 1.0, %v7247
      %v7249 = vrcp.pop %v7102
      %v7250 = vmul.f32 1.0, %v7249
      %v7251 = vrcp.pop %v7103
      %v7252 = vmul.f32 1.0, %v7251
      %v7253 = vrcp.pop %v7104
      %v7254 = vmul.f32 1.0, %v7253
      %v7255 = vrcp.pop %v7105
      %v7256 = vmul.f32 1.0, %v7255
      %v7257 = vrcp.pop %v7106
      %v7258 = vmul.f32 1.0, %v7257
      %v7259 = vrcp.pop %v7107
      %v7260 = vmul.f32 1.0, %v7259
      %v7261 = vrcp.pop %v7108
      %v7262 = vmul.f32 1.0, %v7261
      %v7263 = vrcp.pop %v7109
      %v7264 = vmul.f32 1.0, %v7263
      %v7265 = vrcp.pop %v7110
      %v7266 = vmul.f32 1.0, %v7265
      %v7267 = vrcp.pop %v7111
      %v7268 = vmul.f32 1.0, %v7267
      %v7269 = vrcp.pop %v7112
      %v7270 = vmul.f32 1.0, %v7269
      %v7271 = vrcp.pop %v7113
      %v7272 = vmul.f32 1.0, %v7271
      %v7273 = vrcp.pop %v7114
      %v7274 = vmul.f32 1.0, %v7273
      %v7275 = vrcp.pop %v7115
      %v7276 = vmul.f32 1.0, %v7275
      %v7277 = vrcp.pop %v7116
      %v7278 = vmul.f32 1.0, %v7277
      %v7279 = vrcp.pop %v7117
      %v7280 = vmul.f32 1.0, %v7279
      %v7281 = vrcp.pop %v7118
      %v7282 = vmul.f32 1.0, %v7281
      %v7283 = vrcp.pop %v7119
      %v7284 = vmul.f32 1.0, %v7283
      %v7285 = vrcp.pop %v7120
      %v7286 = vmul.f32 1.0, %v7285
      %v7287 = vrcp.pop %v7121
      %v7288 = vmul.f32 1.0, %v7287
      %v7289 = vrcp.pop %v7122
      %v7290 = vmul.f32 1.0, %v7289
      %v7291 = vrcp.pop %v7123
      %v7292 = vmul.f32 1.0, %v7291
      %v7293 = vrcp.pop %v7124
      %v7294 = vmul.f32 1.0, %v7293
      %v7295 = vrcp.pop %v7125
      %v7296 = vmul.f32 1.0, %v7295
      %v7297 = vrcp.pop %v7126
      %v7298 = vmul.f32 1.0, %v7297
      %v7299 = vrcp.pop %v7127
      %v7300 = vmul.f32 1.0, %v7299
      %v7301 = vrcp.pop %v7128
      %v7302 = vmul.f32 1.0, %v7301
      %v7303 = vrcp.pop %v7129
      %v7304 = vmul.f32 1.0, %v7303
      %v7305 = vrcp.pop %v7130
      %v7306 = vmul.f32 1.0, %v7305
      %v7307 = vrcp.pop %v7131
      %v7308 = vmul.f32 1.0, %v7307
      %v7309 = vrcp.pop %v7132
      %v7310 = vmul.f32 1.0, %v7309
      %v7311 = vrcp.pop %v7133
      %v7312 = vmul.f32 1.0, %v7311
      %v7313 = vrcp.pop %v7134
      %v7314 = vmul.f32 1.0, %v7313
      %v7315 = vrcp.pop %v7135
      %v7316 = vmul.f32 1.0, %v7315
      %v7317 = vrcp.pop %v7136
      %v7318 = vmul.f32 1.0, %v7317
      %v7319 = vrcp.pop %v7137
      %v7320 = vmul.f32 1.0, %v7319
      %v7321 = vrcp.pop %v7138
      %v7322 = vmul.f32 1.0, %v7321
      %v7323 = vrcp.pop %v7139
      %v7324 = vmul.f32 1.0, %v7323
      %v7325 = vrcp.pop %v7140
      %v7326 = vmul.f32 1.0, %v7325
      %v7327 = vrcp.pop %v7141
      %v7328 = vmul.f32 1.0, %v7327
      %v7329 = vrcp.pop %v7142
      %v7330 = vmul.f32 1.0, %v7329
      %v7331 = vrcp.pop %v7143
      %v7332 = vmul.f32 1.0, %v7331
      %v7333 = vrcp.pop %v7144
      %v7334 = vmul.f32 1.0, %v7333
      %v7335 = vrcp.pop %v7145
      %v7336 = vmul.f32 1.0, %v7335
      %v7337 = vrcp.pop %v7146
      %v7338 = vmul.f32 1.0, %v7337
      %v7339 = vrcp.pop %v7147
      %v7340 = vmul.f32 1.0, %v7339
      %v7341 = vrcp.pop %v7148
      %v7342 = vmul.f32 1.0, %v7341
      %v7343 = vrcp.pop %v7149
      %v7344 = vmul.f32 1.0, %v7343
      %v7345 = vrcp.pop %v7150
      %v7346 = vmul.f32 1.0, %v7345
      %v7347 = vrcp.pop %v7151
      %v7348 = vmul.f32 1.0, %v7347
      %v7349 = vrcp.pop %v7152
      %v7350 = vmul.f32 1.0, %v7349
      %v7351 = vrcp.pop %v7153
      %v7352 = vmul.f32 1.0, %v7351
      %v7353 = vrcp.pop %v7154
      %v7354 = vmul.f32 1.0, %v7353
      %v7355 = vrcp.pop %v7155
      %v7356 = vmul.f32 1.0, %v7355
      %v7357 = vrcp.pop %v7156
      %v7358 = vmul.f32 1.0, %v7357
      %v7359 = vrcp.pop %v7157
      %v7360 = vmul.f32 1.0, %v7359
      %v7361 = vrcp.pop %v7158
      %v7362 = vmul.f32 1.0, %v7361
      %v7363 = vrcp.pop %v7159
      %v7364 = vmul.f32 1.0, %v7363
      %v7365 = vrcp.pop %v7160
      %v7366 = vmul.f32 1.0, %v7365
      %v7367 = vrcp.pop %v7161
      %v7368 = vmul.f32 1.0, %v7367
      %v7369 = vrcp.pop %v7162
      %v7370 = vmul.f32 1.0, %v7369
      %v7371 = vrcp.pop %v7163
      %v7372 = vmul.f32 1.0, %v7371
      %v7373 = vrcp.pop %v7164
      %v7374 = vmul.f32 1.0, %v7373
      %v7375 = vrcp.pop %v7165
      %v7376 = vmul.f32 1.0, %v7375
      %v7377 = vrcp.pop %v7166
      %v7378 = vmul.f32 1.0, %v7377
      %v7379 = vrcp.pop %v7167
      %v7380 = vmul.f32 1.0, %v7379
      %v7381 = vrcp.pop %v7168
      %v7382 = vmul.f32 1.0, %v7381
      %v7383 = vrcp.pop %v7169
      %v7384 = vmul.f32 1.0, %v7383
      %v7385 = vrcp.pop %v7170
      %v7386 = vmul.f32 1.0, %v7385
      %v7387 = vrcp.pop %v7171
      %v7388 = vmul.f32 1.0, %v7387
      %v7389 = vrcp.pop %v7172
      %v7390 = vmul.f32 1.0, %v7389
      %v7391 = vrcp.pop %v7173
      %v7392 = vmul.f32 1.0, %v7391
      %v7393 = vrcp.pop %v7174
      %v7394 = vmul.f32 1.0, %v7393
      %v7395 = vrcp.pop %v7175
      %v7396 = vmul.f32 1.0, %v7395
      %v7397 = vrcp.pop %v7176
      %v7398 = vmul.f32 1.0, %v7397
      %v7399 = vrcp.pop %v7177
      %v7400 = vmul.f32 1.0, %v7399
      %v7401 = vrcp.pop %v7178
      %v7402 = vmul.f32 1.0, %v7401
      %7403 = vst [vmem:[%s424] sm:$0xff] %v7180
      %7404 = vst [vmem:[%s424 + $0x8] sm:$0xff] %v7182
      %7405 = vst [vmem:[%s424 + $0x10] sm:$0xff] %v7184
      %7406 = vst [vmem:[%s424 + $0x18] sm:$0xff] %v7186
      %7407 = vst [vmem:[%s424 + $0x20] sm:$0xff] %v7188
      %7408 = vst [vmem:[%s424 + $0x28] sm:$0xff] %v7190
      %7409 = vst [vmem:[%s424 + $0x30] sm:$0xff] %v7192
      %7410 = vst [vmem:[%s424 + $0x38] sm:$0xff] %v7194
      %7411 = vst [vmem:[%s424 + $0x40] sm:$0xff] %v7196
      %7412 = vst [vmem:[%s424 + $0x48] sm:$0xff] %v7198
      %7413 = vst [vmem:[%s424 + $0x50] sm:$0xff] %v7200
      %7414 = vst [vmem:[%s424 + $0x58] sm:$0xff] %v7202
      %7415 = vst [vmem:[%s424 + $0x60] sm:$0xff] %v7204
      %7416 = vst [vmem:[%s424 + $0x68] sm:$0xff] %v7206
      %7417 = vst [vmem:[%s424 + $0x70] sm:$0xff] %v7208
      %7418 = vst [vmem:[%s424 + $0x78] sm:$0xff] %v7210
      %7419 = vst [vmem:[%s424 + $0x80] sm:$0xff] %v7212
      %7420 = vst [vmem:[%s424 + $0x88] sm:$0xff] %v7214
      %7421 = vst [vmem:[%s424 + $0x90] sm:$0xff] %v7216
      %7422 = vst [vmem:[%s424 + $0x98] sm:$0xff] %v7218
      %7423 = vst [vmem:[%s424 + $0xa0] sm:$0xff] %v7220
      %7424 = vst [vmem:[%s424 + $0xa8] sm:$0xff] %v7222
      %7425 = vst [vmem:[%s424 + $0xb0] sm:$0xff] %v7224
      %7426 = vst [vmem:[%s424 + $0xb8] sm:$0xff] %v7226
      %7427 = vst [vmem:[%s424 + $0xc0] sm:$0xff] %v7228
      %7428 = vst [vmem:[%s424 + $0xc8] sm:$0xff] %v7230
      %7429 = vst [vmem:[%s424 + $0xd0] sm:$0xff] %v7232
      %7430 = vst [vmem:[%s424 + $0xd8] sm:$0xff] %v7234
      %7431 = vst [vmem:[%s424 + $0xe0] sm:$0xff] %v7236
      %7432 = vst [vmem:[%s424 + $0xe8] sm:$0xff] %v7238
      %7433 = vst [vmem:[%s424 + $0xf0] sm:$0xff] %v7240
      %7434 = vst [vmem:[%s424 + $0xf8] sm:$0xff] %v7242
      %7435 = vst [vmem:[%s424 + $0x100] sm:$0xff] %v7244
      %7436 = vst [vmem:[%s424 + $0x108] sm:$0xff] %v7246
      %7437 = vst [vmem:[%s424 + $0x110] sm:$0xff] %v7248
      %7438 = vst [vmem:[%s424 + $0x118] sm:$0xff] %v7250
      %7439 = vst [vmem:[%s424 + $0x120] sm:$0xff] %v7252
      %7440 = vst [vmem:[%s424 + $0x128] sm:$0xff] %v7254
      %7441 = vst [vmem:[%s424 + $0x130] sm:$0xff] %v7256
      %7442 = vst [vmem:[%s424 + $0x138] sm:$0xff] %v7258
      %7443 = vst [vmem:[%s424 + $0x140] sm:$0xff] %v7260
      %7444 = vst [vmem:[%s424 + $0x148] sm:$0xff] %v7262
      %7445 = vst [vmem:[%s424 + $0x150] sm:$0xff] %v7264
      %7446 = vst [vmem:[%s424 + $0x158] sm:$0xff] %v7266
      %7447 = vst [vmem:[%s424 + $0x160] sm:$0xff] %v7268
      %7448 = vst [vmem:[%s424 + $0x168] sm:$0xff] %v7270
      %7449 = vst [vmem:[%s424 + $0x170] sm:$0xff] %v7272
      %7450 = vst [vmem:[%s424 + $0x178] sm:$0xff] %v7274
      %7451 = vst [vmem:[%s424 + $0x180] sm:$0xff] %v7276
      %7452 = vst [vmem:[%s424 + $0x188] sm:$0xff] %v7278
      %7453 = vst [vmem:[%s424 + $0x190] sm:$0xff] %v7280
      %7454 = vst [vmem:[%s424 + $0x198] sm:$0xff] %v7282
      %7455 = vst [vmem:[%s424 + $0x1a0] sm:$0xff] %v7284
      %7456 = vst [vmem:[%s424 + $0x1a8] sm:$0xff] %v7286
      %7457 = vst [vmem:[%s424 + $0x1b0] sm:$0xff] %v7288
      %7458 = vst [vmem:[%s424 + $0x1b8] sm:$0xff] %v7290
      %7459 = vst [vmem:[%s424 + $0x1c0] sm:$0xff] %v7292
      %7460 = vst [vmem:[%s424 + $0x1c8] sm:$0xff] %v7294
      %7461 = vst [vmem:[%s424 + $0x1d0] sm:$0xff] %v7296
      %7462 = vst [vmem:[%s424 + $0x1d8] sm:$0xff] %v7298
      %7463 = vst [vmem:[%s424 + $0x1e0] sm:$0xff] %v7300
      %7464 = vst [vmem:[%s424 + $0x1e8] sm:$0xff] %v7302
      %7465 = vst [vmem:[%s424 + $0x1f0] sm:$0xff] %v7304
      %7466 = vst [vmem:[%s424 + $0x1f8] sm:$0xff] %v7306
      %7467 = vst [vmem:[%s424 + $0x200] sm:$0xff] %v7308
      %7468 = vst [vmem:[%s424 + $0x208] sm:$0xff] %v7310
      %7469 = vst [vmem:[%s424 + $0x210] sm:$0xff] %v7312
      %7470 = vst [vmem:[%s424 + $0x218] sm:$0xff] %v7314
      %7471 = vst [vmem:[%s424 + $0x220] sm:$0xff] %v7316
      %7472 = vst [vmem:[%s424 + $0x228] sm:$0xff] %v7318
      %7473 = vst [vmem:[%s424 + $0x230] sm:$0xff] %v7320
      %7474 = vst [vmem:[%s424 + $0x238] sm:$0xff] %v7322
      %7475 = vst [vmem:[%s424 + $0x240] sm:$0xff] %v7324
      %7476 = vst [vmem:[%s424 + $0x248] sm:$0xff] %v7326
      %7477 = vst [vmem:[%s424 + $0x250] sm:$0xff] %v7328
      %7478 = vst [vmem:[%s424 + $0x258] sm:$0xff] %v7330
      %7479 = vst [vmem:[%s424 + $0x260] sm:$0xff] %v7332
      %7480 = vst [vmem:[%s424 + $0x268] sm:$0xff] %v7334
      %7481 = vst [vmem:[%s424 + $0x270] sm:$0xff] %v7336
      %7482 = vst [vmem:[%s424 + $0x278] sm:$0xff] %v7338
      %7483 = vst [vmem:[%s424 + $0x280] sm:$0xff] %v7340
      %7484 = vst [vmem:[%s424 + $0x288] sm:$0xff] %v7342
      %7485 = vst [vmem:[%s424 + $0x290] sm:$0xff] %v7344
      %7486 = vst [vmem:[%s424 + $0x298] sm:$0xff] %v7346
      %7487 = vst [vmem:[%s424 + $0x2a0] sm:$0xff] %v7348
      %7488 = vst [vmem:[%s424 + $0x2a8] sm:$0xff] %v7350
      %7489 = vst [vmem:[%s424 + $0x2b0] sm:$0xff] %v7352
      %7490 = vst [vmem:[%s424 + $0x2b8] sm:$0xff] %v7354
      %7491 = vst [vmem:[%s424 + $0x2c0] sm:$0xff] %v7356
      %7492 = vst [vmem:[%s424 + $0x2c8] sm:$0xff] %v7358
      %7493 = vst [vmem:[%s424 + $0x2d0] sm:$0xff] %v7360
      %7494 = vst [vmem:[%s424 + $0x2d8] sm:$0xff] %v7362
      %7495 = vst [vmem:[%s424 + $0x2e0] sm:$0xff] %v7364
      %7496 = vst [vmem:[%s424 + $0x2e8] sm:$0xff] %v7366
      %7497 = vst [vmem:[%s424 + $0x2f0] sm:$0xff] %v7368
      %7498 = vst [vmem:[%s424 + $0x2f8] sm:$0xff] %v7370
      %7499 = vst [vmem:[%s424 + $0x300] sm:$0xff] %v7372
      %7500 = vst [vmem:[%s424 + $0x308] sm:$0xff] %v7374
      %7501 = vst [vmem:[%s424 + $0x310] sm:$0xff] %v7376
      %7502 = vst [vmem:[%s424 + $0x318] sm:$0xff] %v7378
      %7503 = vst [vmem:[%s424 + $0x320] sm:$0xff] %v7380
      %7504 = vst [vmem:[%s424 + $0x328] sm:$0xff] %v7382
      %7505 = vst [vmem:[%s424 + $0x330] sm:$0xff] %v7384
      %7506 = vst [vmem:[%s424 + $0x338] sm:$0xff] %v7386
      %7507 = vst [vmem:[%s424 + $0x340] sm:$0xff] %v7388
      %7508 = vst [vmem:[%s424 + $0x348] sm:$0xff] %v7390
      %7509 = vst [vmem:[%s424 + $0x350] sm:$0xff] %v7392
      %7510 = vst [vmem:[%s424 + $0x358] sm:$0xff] %v7394
      %7511 = vst [vmem:[%s424 + $0x360] sm:$0xff] %v7396
      %7512 = vst [vmem:[%s424 + $0x368] sm:$0xff] %v7398
      %7513 = vst [vmem:[%s424 + $0x370] sm:$0xff] %v7400
      %7514 = vst [vmem:[%s424 + $0x378] sm:$0xff] %v7402
      %7515 = vst [vmem:[%s431] sm:$0xff] %v3696
      %7516 = vst [vmem:[%s431 + $0x8] sm:$0xff] %v3698
      %7517 = vst [vmem:[%s431 + $0x10] sm:$0xff] %v3700
      %7518 = vst [vmem:[%s431 + $0x18] sm:$0xff] %v3702
      %7519 = vst [vmem:[%s431 + $0x20] sm:$0xff] %v3706
      %7520 = vst [vmem:[%s431 + $0x28] sm:$0xff] %v3708
      %7521 = vst [vmem:[%s431 + $0x30] sm:$0xff] %v3710
      %7522 = vst [vmem:[%s431 + $0x38] sm:$0xff] %v3712
      %7523 = vst [vmem:[%s431 + $0x40] sm:$0xff] %v3716
      %7524 = vst [vmem:[%s431 + $0x48] sm:$0xff] %v3718
      %7525 = vst [vmem:[%s431 + $0x50] sm:$0xff] %v3720
      %7526 = vst [vmem:[%s431 + $0x58] sm:$0xff] %v3722
      %7527 = vst [vmem:[%s431 + $0x60] sm:$0xff] %v3726
      %7528 = vst [vmem:[%s431 + $0x68] sm:$0xff] %v3728
      %7529 = vst [vmem:[%s431 + $0x70] sm:$0xff] %v3730
      %7530 = vst [vmem:[%s431 + $0x78] sm:$0xff] %v3732
      %7531 = vst [vmem:[%s431 + $0x80] sm:$0xff] %v3736
      %7532 = vst [vmem:[%s431 + $0x88] sm:$0xff] %v3738
      %7533 = vst [vmem:[%s431 + $0x90] sm:$0xff] %v3740
      %7534 = vst [vmem:[%s431 + $0x98] sm:$0xff] %v3742
      %7535 = vst [vmem:[%s431 + $0xa0] sm:$0xff] %v3746
      %7536 = vst [vmem:[%s431 + $0xa8] sm:$0xff] %v3748
      %7537 = vst [vmem:[%s431 + $0xb0] sm:$0xff] %v3750
      %7538 = vst [vmem:[%s431 + $0xb8] sm:$0xff] %v3752
      %7539 = vst [vmem:[%s431 + $0xc0] sm:$0xff] %v3756
      %7540 = vst [vmem:[%s431 + $0xc8] sm:$0xff] %v3758
      %7541 = vst [vmem:[%s431 + $0xd0] sm:$0xff] %v3760
      %7542 = vst [vmem:[%s431 + $0xd8] sm:$0xff] %v3762
      %7543 = vst [vmem:[%s431 + $0xe0] sm:$0xff] %v3766
      %7544 = vst [vmem:[%s431 + $0xe8] sm:$0xff] %v3768
      %7545 = vst [vmem:[%s431 + $0xf0] sm:$0xff] %v3770
      %7546 = vst [vmem:[%s431 + $0xf8] sm:$0xff] %v3772
      %s7547 = smul.u32 16, %s23
      %p7548 = scmp.lt.s32.totalorder %s7547, 31
      %s7549 = scalar_select %p7548, %s7547, 31
      %s7550 = smul.addr %s7549, 7
      %s7551 = smul.addr %s7550, 8
      %s7552 = scalar_lea.vmem %s10, %s7551
      %s7553 = smul.u32 16, %s23
      %p7554 = scmp.lt.s32.totalorder %s7553, 31
      %s7555 = scalar_select %p7554, %s7553, 31
      %s7556 = smul.addr %s7555, 2
      %s7557 = smul.addr %s7556, 8
      %s7558 = scalar_lea.vmem %s11, %s7557
      // Predicated region
      $region61: #{vae_forward.1} parent=59 // pred_check
        %p7559 = pneg %p261
      $region62: #{vae_forward.1} parent=59 // pred_check_branch
        %7561 = sbr.rel (%p7559) target = $region64
      $region63: #{vae_forward.1} parent=59 // pred_region
        %s7562 = smul.u32 16, %s23
      $region64: #{vae_forward.1} parent=59 // pred_fallthru
        _
      // Predicated region
      $region65: #{vae_forward.1} parent=59 // pred_check
        %p7563 = pneg %p287
      $region66: #{vae_forward.1} parent=59 // pred_check_branch
        %7565 = sbr.rel (%p7563) target = $region68
      $region67: #{vae_forward.1} parent=59 // pred_region
        %s7566 = smul.u32 16, %s23
      $region68: #{vae_forward.1} parent=59 // pred_fallthru
        _
    $region60: #{vae_forward.1} parent=5 // pred_fallthru
      _
    %p7567 = scmp.le.s32.totalorder 2, %s18
    // Predicated region
    $region69: #{vae_forward.1} parent=5 // pred_check
      %p7568 = pneg %p7567
    $region70: #{vae_forward.1} parent=5 // pred_check_branch
      %7570 = sbr.rel (%p7568) target = $region72
    $region71: #{vae_forward.1} parent=5 // pred_region
      %s7571 = ssub.s32 %s18, 2
      // Predicated region
      $region73: #{vae_forward.1} parent=71 // pred_check
        %p7572 = pneg %p267
      $region74: #{vae_forward.1} parent=71 // pred_check_branch
        %7574 = sbr.rel (%p7572) target = $region76
      $region75: #{vae_forward.1} parent=71 // pred_region
        %s7575 = smul.u32 16, %s24
        %p7576 = scmp.lt.s32.totalorder %s7575, 31
        %s7577 = scalar_select %p7576, %s7575, 31
        %s7578 = smul.addr %s7577, 7
        %s7579 = smul.addr %s7578, 8
        %s7580 = scalar_lea.vmem %s10, %s7579
      $region76: #{vae_forward.1} parent=71 // pred_fallthru
        _
      // Predicated region
      $region77: #{vae_forward.1} parent=71 // pred_check
        %p7581 = pneg %p293
      $region78: #{vae_forward.1} parent=71 // pred_check_branch
        %7583 = sbr.rel (%p7581) target = $region80
      $region79: #{vae_forward.1} parent=71 // pred_region
        %s7584 = smul.u32 16, %s24
        %p7585 = scmp.lt.s32.totalorder %s7584, 31
        %s7586 = scalar_select %p7585, %s7584, 31
        %s7587 = smul.addr %s7586, 2
        %s7588 = smul.addr %s7587, 8
        %s7589 = scalar_lea.vmem %s11, %s7588
      $region80: #{vae_forward.1} parent=71 // pred_fallthru
        _
    $region72: #{vae_forward.1} parent=5 // pred_fallthru
      _
  $region6: #{vae_forward.1} parent=0 // loop_footer
    %s22 = sadd.s32 1, %s18
  $region7: #{vae_forward.1} parent=0 // loop_footer_branch
    %17 = sbr.rel target = $region3
  $region8: #{vae_forward.1} parent=0 // loop_exit
    _

</llo_original>
